<compile_context>
chip_gen: v6e
topology: v6e:2x2x1
jax: 0.10.0
libtpu: 0.0.40
codegen_flags: <defaults>
</compile_context>

<pallas_src>
import functools

import jax
import jax.numpy as jnp
from jax import lax
from jax.experimental import pallas as pl
from jax.experimental.pallas import tpu as pltpu

BN_EPS = 0.9  # nn.BatchNorm2d(C, 0.9): second positional arg is eps, not momentum.


# ----------------------------------------------------------------------------
# Fused Bottleneck kernel (identity skip) operating on the padded-flat layout.
# ----------------------------------------------------------------------------
def _interior_mask(n_rows, row0, wp, h, w):
  """f32 (n_rows, 1): 1.0 on image-interior positions of the padded grid.

  row/col are recovered from the flat index WITHOUT integer vector division
  (not universally lowerable on the VPU): for idx far below 2**23,
  truncating (idx + 0.5) * (1/wp) to int equals idx // wp exactly.
  """
  idx = lax.broadcasted_iota(jnp.int32, (n_rows, 1), 0) + row0
  r = ((idx.astype(jnp.float32) + 0.5) * (1.0 / wp)).astype(jnp.int32)
  c = idx - r * wp
  interior = (r >= 1) & (r <= h) & (c >= 1) & (c <= w)
  return interior.astype(jnp.float32)


def _bottleneck_kernel(x_ref, s1_ref, o1_ref, w1_ref, s2_ref, o2_ref, w2_ref,
                       s3_ref, o3_ref, w3_ref, b3_ref, out_ref, *, height,
                       width):
  """One image tile in padded-flat layout.

  x_ref:   (1, Mp, C) f32, Mp = (H+2)*(W+2), halo ring == 0
  out_ref: (1, Mp, C) f32, same layout, halo ring re-zeroed in-kernel
  """
  h, w = height, width
  wp = w + 2
  base = wp + 1
  mp = x_ref.shape[1]
  mi = mp - 2 * base                      # contiguous band covering the interior
  C = out_ref.shape[2]
  c2 = w1_ref.shape[1]

  x2 = x_ref[0]                                             # (Mp, C) f32

  # bn1 -> relu -> 1x1 conv (b1 folded into o2) -> bn2 -> relu.
  # Element-wise math stays f32 (v5e: no bf16 VPU); single bf16 cast per matmul.
  a1 = jnp.maximum(x2 * s1_ref[...] + o1_ref[...], 0.0)
  y1 = jnp.dot(a1.astype(jnp.bfloat16), w1_ref[...],
               preferred_element_type=jnp.float32)          # (Mp, C2)
  a2 = jnp.maximum(y1 * s2_ref[...] + o2_ref[...], 0.0)

  # Zero the halo ring once (implements the 3x3 conv zero padding) — hoisted
  # out of the tap loop.  Mask generated in-kernel from iota (no DMA'd mask).
  m_pad = _interior_mask(mp, 0, wp, h, w)                   # (Mp, 1) f32
  a2m = a2 * m_pad

  # 3x3 conv: 9 row-shifted taps of the padded activation, f32 accumulation.
  acc = None
  if c2 % 128 == 0:
    # Production path: hoisted bf16 cast + dx-packing along K (K = 3*C2 fills
    # the 256-deep MXU); lane-aligned concat of the taps is free.
    a2b = a2m.astype(jnp.bfloat16)
    for dy in range(3):
      off0 = base + (dy - 1) * wp - 1
      packed = jnp.concatenate(
          [a2b[off0 + dx:off0 + dx + mi, :] for dx in range(3)], axis=1)
      prod = jnp.dot(packed, w2_ref[dy], preferred_element_type=jnp.float32)
      acc = prod if acc is None else acc + prod              # (Mi, C2)
  else:
    # Small-C path (demo; MXU/lanes far from full anyway): 9 separate taps,
    # f32 slices + per-tap cast (well-proven lowering for sub-lane widths).
    for dy in range(3):
      w_dy = w2_ref[dy]                                      # (3*C2, C2)
      for dx in range(3):
        off = base + (dy - 1) * wp + (dx - 1)
        tap = a2m[off:off + mi, :].astype(jnp.bfloat16)
        w_tap = w_dy[dx * c2:(dx + 1) * c2, :]
        prod = jnp.dot(tap, w_tap, preferred_element_type=jnp.float32)
        acc = prod if acc is None else acc + prod            # (Mi, C2)

  # bn3 (b2 folded into o3) -> relu -> 1x1 conv -> + identity skip.
  a3 = jnp.maximum(acc * s3_ref[...] + o3_ref[...], 0.0)
  y3 = jnp.dot(a3.astype(jnp.bfloat16), w3_ref[...],
               preferred_element_type=jnp.float32) + b3_ref[...]

  m_out = _interior_mask(mi, base, wp, h, w)                 # (Mi, 1) f32
  res = (y3 + x2[base:base + mi, :]) * m_out                 # (Mi, C)

  # Emit the full padded-layout block (halo strips re-zeroed) so the next
  # bottleneck consumes it directly — no XLA pad/crop between blocks.
  zeros_strip = jnp.zeros((base, C), jnp.float32)
  out_ref[0, 0:base, :] = zeros_strip
  out_ref[0, base + mi:mp, :] = zeros_strip
  out_ref[0, base:base + mi, :] = res


# ----------------------------------------------------------------------------
# VMEM budgeting (generation-aware) and the pallas_call wrapper.
# ----------------------------------------------------------------------------
def _vmem_capacity_bytes():
  try:
    info = pltpu.get_tpu_info()
    cap = getattr(info, "vmem_capacity_bytes", None)
    if cap:
      return int(cap)
  except Exception:
    pass
  return 64 * 1024 * 1024        # conservative fallback (v7x per-TensorCore)


def _vmem_limit_bytes(mp, mi, c, c2):
  io = 2 * 2 * 4 * mp * c                                   # in+out, double-buffered
  weights = 2 * (c * c2 + 9 * c2 * c2 + c2 * c) + 4 * (2 * c + 4 * c2 + c)
  live = (4 * mp * c          # x2 (kept live for the skip add)
          + 4 * mp * c        # a1
          + 4 * mp * c2       # y1 / a2 / a2m
          + 2 * mp * c2       # a2b (bf16, packed path)
          + 2 * mi * 3 * c2   # packed taps (bf16)
          + 4 * mi * c2       # acc / a3
          + 2 * 4 * mi * c)   # y3 / res
  est = int(1.5 * (io + weights + live))                    # relayout headroom
  cap = _vmem_capacity_bytes()
  return int(min(max(est, 32 * 1024 * 1024), cap - 8 * 1024 * 1024))


def _bottleneck_pallas(xp, p, height, width):
  """xp: (N, Mp, C) f32 padded-flattened activation with a zero halo ring."""
  N, Mp, C = xp.shape
  C2 = p['w1'].shape[1]
  wp = width + 2
  assert Mp == (height + 2) * wp
  base = wp + 1
  Mi = Mp - 2 * base
  # HourGlass only instantiates identity-skip bottlenecks (in == out channels);
  # a channel-changing first block (conv skip) is NOT handled by this kernel.
  assert p['w1'].shape[0] == C and p['w3'].shape[1] == C

  row = lambda v: v.reshape(1, -1).astype(jnp.float32)
  # Fold conv biases into the following BN affine.
  o2f = p['o2'] + p['b1'] * p['s2']
  o3f = p['o3'] + p['b2'] * p['s3']
  # bf16 MXU operands, f32 accumulation in-kernel.
  w1 = p['w1'].astype(jnp.bfloat16)
  w2 = p['w2'].reshape(3, 3 * C2, C2).astype(jnp.bfloat16)  # (dy, dx*in, out)
  w3 = p['w3'].astype(jnp.bfloat16)

  def full(shape):  # constant-index spec: stays VMEM-resident across the grid
    return pl.BlockSpec(shape, lambda n, _nd=len(shape): (0,) * _nd)

  flops = int(2 * N * Mi * (C * C2 + 9 * C2 * C2 + C2 * C))
  bytes_accessed = int(4 * N * Mp * C * 2
                       + 2 * (C * C2 + 9 * C2 * C2 + C2 * C)
                       + 4 * (2 * C + 4 * C2 + C))

  # NOTE: for the demo C=8 the output last dim is far below 128 lanes (masked
  # stores, ~3-6% MXU width); production C=256/C2=128 is naturally lane-dense.
  return pl.pallas_call(
      functools.partial(_bottleneck_kernel, height=height, width=width),
      out_shape=jax.ShapeDtypeStruct((N, Mp, C), jnp.float32),
      grid=(N,),
      in_specs=[
          pl.BlockSpec((1, Mp, C), lambda n: (n, 0, 0)),      # activation tile
          full((1, C)), full((1, C)), full((C, C2)),          # bn1, w1
          full((1, C2)), full((1, C2)), full((3, 3 * C2, C2)),  # bn2(+b1), w2
          full((1, C2)), full((1, C2)), full((C2, C)),        # bn3(+b2), w3
          full((1, C)),                                       # b3
      ],
      out_specs=pl.BlockSpec((1, Mp, C), lambda n: (n, 0, 0)),
      compiler_params=pltpu.CompilerParams(
          dimension_semantics=("parallel",),
          vmem_limit_bytes=_vmem_limit_bytes(Mp, Mi, C, C2)),
      cost_estimate=pl.CostEstimate(flops=flops, transcendentals=0,
                                    bytes_accessed=bytes_accessed),
  )(xp, row(p['s1']), row(p['o1']), w1, row(p['s2']), row(o2f), w2,
    row(p['s3']), row(o3f), w3, row(p['b3']))


# ----------------------------------------------------------------------------
# Padded-layout helpers and HourGlass composition.
# ----------------------------------------------------------------------------
def _to_padded(x):
  N, H, W, C = x.shape
  return jnp.pad(x, ((0, 0), (1, 1), (1, 1), (0, 0))).reshape(
      N, (H + 2) * (W + 2), C)


def _from_padded(xp, height, width):
  N, _, C = xp.shape
  return xp.reshape(N, height + 2, width + 2, C)[:, 1:height + 1,
                                                 1:width + 1, :]


def _max_pool_2x2(x):
  N, H, W, C = x.shape
  assert H % 2 == 0 and W % 2 == 0
  return x.reshape(N, H // 2, 2, W // 2, 2, C).max(axis=(2, 4))


def _upsample_2x(x):
  return jnp.repeat(jnp.repeat(x, 2, axis=1), 2, axis=2)


def _hourglass_padded(xp, params, order, height, width):
  hh, wh = height // 2, width // 2
  up1 = xp
  for p in params['upper']:
    up1 = _bottleneck_pallas(up1, p, height, width)
  low = _to_padded(_max_pool_2x2(_from_padded(xp, height, width)))
  for p in params['lower']:
    low = _bottleneck_pallas(low, p, hh, wh)
  if order > 1:
    low = _hourglass_padded(low, params['inner'], order - 1, hh, wh)
  else:
    for p in params['deep']:
      low = _bottleneck_pallas(low, p, hh, wh)
  for p in params['output']:
    low = _bottleneck_pallas(low, p, hh, wh)
  up2 = _to_padded(_upsample_2x(_from_padded(low, hh, wh)))
  return up2 + up1                     # both padded-layout, both zero-halo


def hourglass_forward(x_nchw, params, order):
  x = jnp.transpose(x_nchw, (0, 2, 3, 1)).astype(jnp.float32)
  N, H, W, C = x.shape
  out = _hourglass_padded(_to_padded(x), params, order, H, W)
  return jnp.transpose(_from_padded(out, H, W), (0, 3, 1, 2))


# ----------------------------------------------------------------------------
# Deterministic synthetic parameters (BN folded into scale/offset, eps=0.9).
# ----------------------------------------------------------------------------
def _init_bottleneck(key, channels):
  C, C2 = channels, channels // 2
  keys = jax.random.split(key, 9)

  def u(k, shape, scale=0.5):
    return jax.random.uniform(k, shape, jnp.float32, -scale, scale)

  def bn_fold(k4, c):
    kg, kb, km, kv = jax.random.split(k4, 4)
    gamma = 1.0 + 0.1 * u(kg, (c,))
    beta = 0.1 * u(kb, (c,))
    mean = 0.1 * u(km, (c,))
    var = 1.0 + 0.1 * jnp.abs(u(kv, (c,)))
    scale = gamma * lax.rsqrt(var + BN_EPS)
    return scale, beta - mean * scale

  s1, o1 = bn_fold(keys[0], C)
  s2, o2 = bn_fold(keys[1], C2)
  s3, o3 = bn_fold(keys[2], C2)
  return dict(
      s1=s1, o1=o1, s2=s2, o2=o2, s3=s3, o3=o3,
      w1=u(keys[3], (C, C2)), b1=u(keys[4], (C2,)),
      w2=u(keys[5], (3, 3, C2, C2)), b2=u(keys[6], (C2,)),
      w3=u(keys[7], (C2, C)), b3=u(keys[8], (C,)))


def init_hourglass_params(key, order, channels, num_residual):
  k_up, k_low, k_out, k_in = jax.random.split(key, 4)

  def seq(k):
    return [_init_bottleneck(kk, channels)
            for kk in jax.random.split(k, num_residual)]

  params = dict(upper=seq(k_up), lower=seq(k_low), output=seq(k_out))
  if order > 1:
    params['inner'] = init_hourglass_params(k_in, order - 1, channels,
                                            num_residual)
  else:
    params['deep'] = seq(k_in)
  return params


# ----------------------------------------------------------------------------
# Pure-JAX reference (lax.conv, f32) matching the PyTorch forward semantics.
# ----------------------------------------------------------------------------
def _bottleneck_ref(x, p):
  def conv(a, w, b, pad):
    return lax.conv_general_dilated(
        a, w, (1, 1), pad, dimension_numbers=('NHWC', 'HWIO', 'NHWC'),
        precision=lax.Precision.HIGHEST) + b

  a1 = jax.nn.relu(x * p['s1'] + p['o1'])
  y1 = conv(a1, p['w1'][None, None], p['b1'], 'VALID')
  a2 = jax.nn.relu(y1 * p['s2'] + p['o2'])
  y2 = conv(a2, p['w2'], p['b2'], 'SAME')
  a3 = jax.nn.relu(y2 * p['s3'] + p['o3'])
  y3 = conv(a3, p['w3'][None, None], p['b3'], 'VALID')
  return y3 + x  # identity skip


def _hourglass_ref_nhwc(x, params, order):
  up1 = x
  for p in params['upper']:
    up1 = _bottleneck_ref(up1, p)
  low = _max_pool_2x2(x)
  for p in params['lower']:
    low = _bottleneck_ref(low, p)
  if order > 1:
    low = _hourglass_ref_nhwc(low, params['inner'], order - 1)
  else:
    for p in params['deep']:
      low = _bottleneck_ref(low, p)
  for p in params['output']:
    low = _bottleneck_ref(low, p)
  return _upsample_2x(low) + up1


def hourglass_ref(x_nchw, params, order):
  x = jnp.transpose(x_nchw, (0, 2, 3, 1)).astype(jnp.float32)
  return jnp.transpose(_hourglass_ref_nhwc(x, params, order), (0, 3, 1, 2))


# ----------------------------------------------------------------------------
if __name__ == "__main__":
  ORDER, CHANNELS, NUM_RESIDUAL = 2, 8, 1
  N, H, W = 2, 16, 16

  key = jax.random.PRNGKey(0)
  kx, kp = jax.random.split(key)
  x = jax.random.normal(kx, (N, CHANNELS, H, W), jnp.float32)
  params = init_hourglass_params(kp, ORDER, CHANNELS, NUM_RESIDUAL)

  fwd = jax.jit(functools.partial(hourglass_forward, order=ORDER))
  out = jax.block_until_ready(fwd(x, params))
  assert out.shape == (N, CHANNELS, H, W), out.shape

  ref = hourglass_ref(x, params, ORDER)
  max_err = float(jnp.max(jnp.abs(out - ref)))
  # bf16 MXU operands with f32 accumulation vs an f32 HIGHEST reference.
  assert max_err < 5e-2, f"mismatch vs reference: {max_err}"

  print("KERNEL_OK")
</pallas_src>

<mosaic_0001>
module attributes {stable_mosaic.version = 11 : i64} {
  func.func @_bottleneck_kernel(%arg0: i32, %arg1: memref<1x100x8xf32, #tpu.memory_space<vmem>>, %arg2: memref<1x8xf32, #tpu.memory_space<vmem>>, %arg3: memref<1x8xf32, #tpu.memory_space<vmem>>, %arg4: memref<8x4xbf16, #tpu.memory_space<vmem>>, %arg5: memref<1x4xf32, #tpu.memory_space<vmem>>, %arg6: memref<1x4xf32, #tpu.memory_space<vmem>>, %arg7: memref<3x12x4xbf16, #tpu.memory_space<vmem>>, %arg8: memref<1x4xf32, #tpu.memory_space<vmem>>, %arg9: memref<1x4xf32, #tpu.memory_space<vmem>>, %arg10: memref<4x8xbf16, #tpu.memory_space<vmem>>, %arg11: memref<1x8xf32, #tpu.memory_space<vmem>>, %arg12: memref<1x100x8xf32, #tpu.memory_space<vmem>>) attributes {dimension_semantics = [#tpu.dimension_semantics<parallel>], iteration_bounds = array<i64: 2>, scalar_prefetch = 0 : i64, scratch_operands = 0 : i64, tpu.core_type = #tpu.core_type<tc>, window_params = [{transform_indices = @transform_0, window_bounds = array<i64: 1, 100, 8>}, {pipeline_mode = #tpu.pipeline_mode<synchronous>, transform_indices = @transform_1, window_bounds = array<i64: 1, 8>}, {pipeline_mode = #tpu.pipeline_mode<synchronous>, transform_indices = @transform_2, window_bounds = array<i64: 1, 8>}, {pipeline_mode = #tpu.pipeline_mode<synchronous>, transform_indices = @transform_3, window_bounds = array<i64: 8, 4>}, {pipeline_mode = #tpu.pipeline_mode<synchronous>, transform_indices = @transform_4, window_bounds = array<i64: 1, 4>}, {pipeline_mode = #tpu.pipeline_mode<synchronous>, transform_indices = @transform_5, window_bounds = array<i64: 1, 4>}, {pipeline_mode = #tpu.pipeline_mode<synchronous>, transform_indices = @transform_6, window_bounds = array<i64: 3, 12, 4>}, {pipeline_mode = #tpu.pipeline_mode<synchronous>, transform_indices = @transform_7, window_bounds = array<i64: 1, 4>}, {pipeline_mode = #tpu.pipeline_mode<synchronous>, transform_indices = @transform_8, window_bounds = array<i64: 1, 4>}, {pipeline_mode = #tpu.pipeline_mode<synchronous>, transform_indices = @transform_9, window_bounds = array<i64: 4, 8>}, {pipeline_mode = #tpu.pipeline_mode<synchronous>, transform_indices = @transform_10, window_bounds = array<i64: 1, 8>}, {transform_indices = @transform_11, window_bounds = array<i64: 1, 100, 8>}]} {
    %c0 = arith.constant 0 : index
    %c0_0 = arith.constant 0 : index
    %c0_1 = arith.constant 0 : index
    %0 = vector.load %arg1[%c0, %c0_0, %c0_1] : memref<1x100x8xf32, #tpu.memory_space<vmem>>, vector<1x100x8xf32>
    %1 = vector.shape_cast %0 : vector<1x100x8xf32> to vector<100x8xf32>
    %c0_2 = arith.constant 0 : index
    %c0_3 = arith.constant 0 : index
    %2 = vector.load %arg2[%c0_2, %c0_3] : memref<1x8xf32, #tpu.memory_space<vmem>>, vector<1x8xf32>
    %3 = vector.broadcast %2 : vector<1x8xf32> to vector<100x8xf32>
    %4 = arith.mulf %1, %3 : vector<100x8xf32>
    %c0_4 = arith.constant 0 : index
    %c0_5 = arith.constant 0 : index
    %5 = vector.load %arg3[%c0_4, %c0_5] : memref<1x8xf32, #tpu.memory_space<vmem>>, vector<1x8xf32>
    %6 = vector.broadcast %5 : vector<1x8xf32> to vector<100x8xf32>
    %7 = arith.addf %4, %6 : vector<100x8xf32>
    %cst = arith.constant 0.000000e+00 : f32
    %8 = vector.broadcast %cst : f32 to vector<100x8xf32>
    %9 = arith.maximumf %7, %8 : vector<100x8xf32>
    %10 = arith.truncf %9 : vector<100x8xf32> to vector<100x8xbf16>
    %c0_6 = arith.constant 0 : index
    %c0_7 = arith.constant 0 : index
    %11 = vector.load %arg4[%c0_6, %c0_7] : memref<8x4xbf16, #tpu.memory_space<vmem>>, vector<8x4xbf16>
    %cst_8 = arith.constant dense<0.000000e+00> : vector<100x4xf32>
    %12 = tpu.matmul %10, %11, %cst_8 {dimension_numbers = #tpu.dot_dimension_numbers<[1], [0], [0], [1], [0, 0, 1, 1], [], []>} : vector<100x8xbf16>, vector<8x4xbf16>, vector<100x4xf32> -> vector<100x4xf32>
    %c0_9 = arith.constant 0 : index
    %c0_10 = arith.constant 0 : index
    %13 = vector.load %arg5[%c0_9, %c0_10] : memref<1x4xf32, #tpu.memory_space<vmem>>, vector<1x4xf32>
    %14 = vector.broadcast %13 : vector<1x4xf32> to vector<100x4xf32>
    %15 = arith.mulf %12, %14 : vector<100x4xf32>
    %c0_11 = arith.constant 0 : index
    %c0_12 = arith.constant 0 : index
    %16 = vector.load %arg6[%c0_11, %c0_12] : memref<1x4xf32, #tpu.memory_space<vmem>>, vector<1x4xf32>
    %17 = vector.broadcast %16 : vector<1x4xf32> to vector<100x4xf32>
    %18 = arith.addf %15, %17 : vector<100x4xf32>
    %cst_13 = arith.constant 0.000000e+00 : f32
    %19 = vector.broadcast %cst_13 : f32 to vector<100x4xf32>
    %20 = arith.maximumf %18, %19 : vector<100x4xf32>
    %21 = tpu.iota {dimensions = array<i32: 0>} : vector<100x1xi32>
    %c0_i32 = arith.constant 0 : i32
    %22 = vector.broadcast %c0_i32 : i32 to vector<100x1xi32>
    %23 = arith.addi %21, %22 : vector<100x1xi32>
    %24 = arith.sitofp %23 : vector<100x1xi32> to vector<100x1xf32>
    %cst_14 = arith.constant 5.000000e-01 : f32
    %25 = vector.broadcast %cst_14 : f32 to vector<100x1xf32>
    %26 = arith.addf %24, %25 : vector<100x1xf32>
    %cst_15 = arith.constant 1.000000e-01 : f32
    %27 = vector.broadcast %cst_15 : f32 to vector<100x1xf32>
    %28 = arith.mulf %26, %27 : vector<100x1xf32>
    %29 = arith.fptosi %28 : vector<100x1xf32> to vector<100x1xi32>
    %c10_i32 = arith.constant 10 : i32
    %30 = vector.broadcast %c10_i32 : i32 to vector<100x1xi32>
    %31 = arith.muli %29, %30 : vector<100x1xi32>
    %32 = arith.subi %23, %31 : vector<100x1xi32>
    %c1_i32 = arith.constant 1 : i32
    %33 = vector.broadcast %c1_i32 : i32 to vector<100x1xi32>
    %34 = arith.cmpi sge, %29, %33 : vector<100x1xi32>
    %c8_i32 = arith.constant 8 : i32
    %35 = vector.broadcast %c8_i32 : i32 to vector<100x1xi32>
    %36 = arith.cmpi sle, %29, %35 : vector<100x1xi32>
    %37 = arith.andi %34, %36 : vector<100x1xi1>
    %c1_i32_16 = arith.constant 1 : i32
    %38 = vector.broadcast %c1_i32_16 : i32 to vector<100x1xi32>
    %39 = arith.cmpi sge, %32, %38 : vector<100x1xi32>
    %40 = arith.andi %37, %39 : vector<100x1xi1>
    %c8_i32_17 = arith.constant 8 : i32
    %41 = vector.broadcast %c8_i32_17 : i32 to vector<100x1xi32>
    %42 = arith.cmpi sle, %32, %41 : vector<100x1xi32>
    %43 = arith.andi %40, %42 : vector<100x1xi1>
    %44 = arith.extui %43 : vector<100x1xi1> to vector<100x1xi32>
    %45 = arith.sitofp %44 : vector<100x1xi32> to vector<100x1xf32>
    %46 = vector.broadcast %45 : vector<100x1xf32> to vector<100x4xf32>
    %47 = arith.mulf %20, %46 : vector<100x4xf32>
    %c0_18 = arith.constant 0 : index
    %c0_19 = arith.constant 0 : index
    %c0_20 = arith.constant 0 : index
    %48 = vector.load %arg7[%c0_18, %c0_19, %c0_20] : memref<3x12x4xbf16, #tpu.memory_space<vmem>>, vector<1x12x4xbf16>
    %49 = vector.shape_cast %48 : vector<1x12x4xbf16> to vector<12x4xbf16>
    %50 = vector.extract_strided_slice %47 {offsets = [0, 0], sizes = [78, 4], strides = [1, 1]} : vector<100x4xf32> to vector<78x4xf32>
    %51 = arith.truncf %50 : vector<78x4xf32> to vector<78x4xbf16>
    %52 = vector.extract_strided_slice %49 {offsets = [0, 0], sizes = [4, 4], strides = [1, 1]} : vector<12x4xbf16> to vector<4x4xbf16>
    %cst_21 = arith.constant dense<0.000000e+00> : vector<78x4xf32>
    %53 = tpu.matmul %51, %52, %cst_21 {dimension_numbers = #tpu.dot_dimension_numbers<[1], [0], [0], [1], [0, 0, 1, 1], [], []>} : vector<78x4xbf16>, vector<4x4xbf16>, vector<78x4xf32> -> vector<78x4xf32>
    %54 = vector.extract_strided_slice %47 {offsets = [1, 0], sizes = [78, 4], strides = [1, 1]} : vector<100x4xf32> to vector<78x4xf32>
    %55 = arith.truncf %54 : vector<78x4xf32> to vector<78x4xbf16>
    %56 = vector.extract_strided_slice %49 {offsets = [4, 0], sizes = [4, 4], strides = [1, 1]} : vector<12x4xbf16> to vector<4x4xbf16>
    %cst_22 = arith.constant dense<0.000000e+00> : vector<78x4xf32>
    %57 = tpu.matmul %55, %56, %cst_22 {dimension_numbers = #tpu.dot_dimension_numbers<[1], [0], [0], [1], [0, 0, 1, 1], [], []>} : vector<78x4xbf16>, vector<4x4xbf16>, vector<78x4xf32> -> vector<78x4xf32>
    %58 = arith.addf %53, %57 : vector<78x4xf32>
    %59 = vector.extract_strided_slice %47 {offsets = [2, 0], sizes = [78, 4], strides = [1, 1]} : vector<100x4xf32> to vector<78x4xf32>
    %60 = arith.truncf %59 : vector<78x4xf32> to vector<78x4xbf16>
    %61 = vector.extract_strided_slice %49 {offsets = [8, 0], sizes = [4, 4], strides = [1, 1]} : vector<12x4xbf16> to vector<4x4xbf16>
    %cst_23 = arith.constant dense<0.000000e+00> : vector<78x4xf32>
    %62 = tpu.matmul %60, %61, %cst_23 {dimension_numbers = #tpu.dot_dimension_numbers<[1], [0], [0], [1], [0, 0, 1, 1], [], []>} : vector<78x4xbf16>, vector<4x4xbf16>, vector<78x4xf32> -> vector<78x4xf32>
    %63 = arith.addf %58, %62 : vector<78x4xf32>
    %c1 = arith.constant 1 : index
    %c0_24 = arith.constant 0 : index
    %c0_25 = arith.constant 0 : index
    %64 = vector.load %arg7[%c1, %c0_24, %c0_25] : memref<3x12x4xbf16, #tpu.memory_space<vmem>>, vector<1x12x4xbf16>
    %65 = vector.shape_cast %64 : vector<1x12x4xbf16> to vector<12x4xbf16>
    %66 = vector.extract_strided_slice %47 {offsets = [10, 0], sizes = [78, 4], strides = [1, 1]} : vector<100x4xf32> to vector<78x4xf32>
    %67 = arith.truncf %66 : vector<78x4xf32> to vector<78x4xbf16>
    %68 = vector.extract_strided_slice %65 {offsets = [0, 0], sizes = [4, 4], strides = [1, 1]} : vector<12x4xbf16> to vector<4x4xbf16>
    %cst_26 = arith.constant dense<0.000000e+00> : vector<78x4xf32>
    %69 = tpu.matmul %67, %68, %cst_26 {dimension_numbers = #tpu.dot_dimension_numbers<[1], [0], [0], [1], [0, 0, 1, 1], [], []>} : vector<78x4xbf16>, vector<4x4xbf16>, vector<78x4xf32> -> vector<78x4xf32>
    %70 = arith.addf %63, %69 : vector<78x4xf32>
    %71 = vector.extract_strided_slice %47 {offsets = [11, 0], sizes = [78, 4], strides = [1, 1]} : vector<100x4xf32> to vector<78x4xf32>
    %72 = arith.truncf %71 : vector<78x4xf32> to vector<78x4xbf16>
    %73 = vector.extract_strided_slice %65 {offsets = [4, 0], sizes = [4, 4], strides = [1, 1]} : vector<12x4xbf16> to vector<4x4xbf16>
    %cst_27 = arith.constant dense<0.000000e+00> : vector<78x4xf32>
    %74 = tpu.matmul %72, %73, %cst_27 {dimension_numbers = #tpu.dot_dimension_numbers<[1], [0], [0], [1], [0, 0, 1, 1], [], []>} : vector<78x4xbf16>, vector<4x4xbf16>, vector<78x4xf32> -> vector<78x4xf32>
    %75 = arith.addf %70, %74 : vector<78x4xf32>
    %76 = vector.extract_strided_slice %47 {offsets = [12, 0], sizes = [78, 4], strides = [1, 1]} : vector<100x4xf32> to vector<78x4xf32>
    %77 = arith.truncf %76 : vector<78x4xf32> to vector<78x4xbf16>
    %78 = vector.extract_strided_slice %65 {offsets = [8, 0], sizes = [4, 4], strides = [1, 1]} : vector<12x4xbf16> to vector<4x4xbf16>
    %cst_28 = arith.constant dense<0.000000e+00> : vector<78x4xf32>
    %79 = tpu.matmul %77, %78, %cst_28 {dimension_numbers = #tpu.dot_dimension_numbers<[1], [0], [0], [1], [0, 0, 1, 1], [], []>} : vector<78x4xbf16>, vector<4x4xbf16>, vector<78x4xf32> -> vector<78x4xf32>
    %80 = arith.addf %75, %79 : vector<78x4xf32>
    %c2 = arith.constant 2 : index
    %c0_29 = arith.constant 0 : index
    %c0_30 = arith.constant 0 : index
    %81 = vector.load %arg7[%c2, %c0_29, %c0_30] : memref<3x12x4xbf16, #tpu.memory_space<vmem>>, vector<1x12x4xbf16>
    %82 = vector.shape_cast %81 : vector<1x12x4xbf16> to vector<12x4xbf16>
    %83 = vector.extract_strided_slice %47 {offsets = [20, 0], sizes = [78, 4], strides = [1, 1]} : vector<100x4xf32> to vector<78x4xf32>
    %84 = arith.truncf %83 : vector<78x4xf32> to vector<78x4xbf16>
    %85 = vector.extract_strided_slice %82 {offsets = [0, 0], sizes = [4, 4], strides = [1, 1]} : vector<12x4xbf16> to vector<4x4xbf16>
    %cst_31 = arith.constant dense<0.000000e+00> : vector<78x4xf32>
    %86 = tpu.matmul %84, %85, %cst_31 {dimension_numbers = #tpu.dot_dimension_numbers<[1], [0], [0], [1], [0, 0, 1, 1], [], []>} : vector<78x4xbf16>, vector<4x4xbf16>, vector<78x4xf32> -> vector<78x4xf32>
    %87 = arith.addf %80, %86 : vector<78x4xf32>
    %88 = vector.extract_strided_slice %47 {offsets = [21, 0], sizes = [78, 4], strides = [1, 1]} : vector<100x4xf32> to vector<78x4xf32>
    %89 = arith.truncf %88 : vector<78x4xf32> to vector<78x4xbf16>
    %90 = vector.extract_strided_slice %82 {offsets = [4, 0], sizes = [4, 4], strides = [1, 1]} : vector<12x4xbf16> to vector<4x4xbf16>
    %cst_32 = arith.constant dense<0.000000e+00> : vector<78x4xf32>
    %91 = tpu.matmul %89, %90, %cst_32 {dimension_numbers = #tpu.dot_dimension_numbers<[1], [0], [0], [1], [0, 0, 1, 1], [], []>} : vector<78x4xbf16>, vector<4x4xbf16>, vector<78x4xf32> -> vector<78x4xf32>
    %92 = arith.addf %87, %91 : vector<78x4xf32>
    %93 = vector.extract_strided_slice %47 {offsets = [22, 0], sizes = [78, 4], strides = [1, 1]} : vector<100x4xf32> to vector<78x4xf32>
    %94 = arith.truncf %93 : vector<78x4xf32> to vector<78x4xbf16>
    %95 = vector.extract_strided_slice %82 {offsets = [8, 0], sizes = [4, 4], strides = [1, 1]} : vector<12x4xbf16> to vector<4x4xbf16>
    %cst_33 = arith.constant dense<0.000000e+00> : vector<78x4xf32>
    %96 = tpu.matmul %94, %95, %cst_33 {dimension_numbers = #tpu.dot_dimension_numbers<[1], [0], [0], [1], [0, 0, 1, 1], [], []>} : vector<78x4xbf16>, vector<4x4xbf16>, vector<78x4xf32> -> vector<78x4xf32>
    %97 = arith.addf %92, %96 : vector<78x4xf32>
    %c0_34 = arith.constant 0 : index
    %c0_35 = arith.constant 0 : index
    %98 = vector.load %arg8[%c0_34, %c0_35] : memref<1x4xf32, #tpu.memory_space<vmem>>, vector<1x4xf32>
    %99 = vector.broadcast %98 : vector<1x4xf32> to vector<78x4xf32>
    %100 = arith.mulf %97, %99 : vector<78x4xf32>
    %c0_36 = arith.constant 0 : index
    %c0_37 = arith.constant 0 : index
    %101 = vector.load %arg9[%c0_36, %c0_37] : memref<1x4xf32, #tpu.memory_space<vmem>>, vector<1x4xf32>
    %102 = vector.broadcast %101 : vector<1x4xf32> to vector<78x4xf32>
    %103 = arith.addf %100, %102 : vector<78x4xf32>
    %cst_38 = arith.constant 0.000000e+00 : f32
    %104 = vector.broadcast %cst_38 : f32 to vector<78x4xf32>
    %105 = arith.maximumf %103, %104 : vector<78x4xf32>
    %106 = arith.truncf %105 : vector<78x4xf32> to vector<78x4xbf16>
    %c0_39 = arith.constant 0 : index
    %c0_40 = arith.constant 0 : index
    %107 = vector.load %arg10[%c0_39, %c0_40] : memref<4x8xbf16, #tpu.memory_space<vmem>>, vector<4x8xbf16>
    %cst_41 = arith.constant dense<0.000000e+00> : vector<78x8xf32>
    %108 = tpu.matmul %106, %107, %cst_41 {dimension_numbers = #tpu.dot_dimension_numbers<[1], [0], [0], [1], [0, 0, 1, 1], [], []>} : vector<78x4xbf16>, vector<4x8xbf16>, vector<78x8xf32> -> vector<78x8xf32>
    %c0_42 = arith.constant 0 : index
    %c0_43 = arith.constant 0 : index
    %109 = vector.load %arg11[%c0_42, %c0_43] : memref<1x8xf32, #tpu.memory_space<vmem>>, vector<1x8xf32>
    %110 = vector.broadcast %109 : vector<1x8xf32> to vector<78x8xf32>
    %111 = arith.addf %108, %110 : vector<78x8xf32>
    %112 = tpu.iota {dimensions = array<i32: 0>} : vector<78x1xi32>
    %c11_i32 = arith.constant 11 : i32
    %113 = vector.broadcast %c11_i32 : i32 to vector<78x1xi32>
    %114 = arith.addi %112, %113 : vector<78x1xi32>
    %115 = arith.sitofp %114 : vector<78x1xi32> to vector<78x1xf32>
    %cst_44 = arith.constant 5.000000e-01 : f32
    %116 = vector.broadcast %cst_44 : f32 to vector<78x1xf32>
    %117 = arith.addf %115, %116 : vector<78x1xf32>
    %cst_45 = arith.constant 1.000000e-01 : f32
    %118 = vector.broadcast %cst_45 : f32 to vector<78x1xf32>
    %119 = arith.mulf %117, %118 : vector<78x1xf32>
    %120 = arith.fptosi %119 : vector<78x1xf32> to vector<78x1xi32>
    %c10_i32_46 = arith.constant 10 : i32
    %121 = vector.broadcast %c10_i32_46 : i32 to vector<78x1xi32>
    %122 = arith.muli %120, %121 : vector<78x1xi32>
    %123 = arith.subi %114, %122 : vector<78x1xi32>
    %c1_i32_47 = arith.constant 1 : i32
    %124 = vector.broadcast %c1_i32_47 : i32 to vector<78x1xi32>
    %125 = arith.cmpi sge, %120, %124 : vector<78x1xi32>
    %c8_i32_48 = arith.constant 8 : i32
    %126 = vector.broadcast %c8_i32_48 : i32 to vector<78x1xi32>
    %127 = arith.cmpi sle, %120, %126 : vector<78x1xi32>
    %128 = arith.andi %125, %127 : vector<78x1xi1>
    %c1_i32_49 = arith.constant 1 : i32
    %129 = vector.broadcast %c1_i32_49 : i32 to vector<78x1xi32>
    %130 = arith.cmpi sge, %123, %129 : vector<78x1xi32>
    %131 = arith.andi %128, %130 : vector<78x1xi1>
    %c8_i32_50 = arith.constant 8 : i32
    %132 = vector.broadcast %c8_i32_50 : i32 to vector<78x1xi32>
    %133 = arith.cmpi sle, %123, %132 : vector<78x1xi32>
    %134 = arith.andi %131, %133 : vector<78x1xi1>
    %135 = arith.extui %134 : vector<78x1xi1> to vector<78x1xi32>
    %136 = arith.sitofp %135 : vector<78x1xi32> to vector<78x1xf32>
    %137 = vector.extract_strided_slice %1 {offsets = [11, 0], sizes = [78, 8], strides = [1, 1]} : vector<100x8xf32> to vector<78x8xf32>
    %138 = arith.addf %111, %137 : vector<78x8xf32>
    %139 = vector.broadcast %136 : vector<78x1xf32> to vector<78x8xf32>
    %140 = arith.mulf %138, %139 : vector<78x8xf32>
    %cst_51 = arith.constant 0.000000e+00 : f32
    %141 = vector.broadcast %cst_51 : f32 to vector<11x8xf32>
    %c0_52 = arith.constant 0 : index
    %c0_53 = arith.constant 0 : index
    %c0_54 = arith.constant 0 : index
    %142 = vector.load %arg12[%c0_52, %c0_53, %c0_54] : memref<1x100x8xf32, #tpu.memory_space<vmem>>, vector<1x11x8xf32>
    %143 = vector.shape_cast %142 : vector<1x11x8xf32> to vector<11x8xf32>
    %144 = vector.shape_cast %141 : vector<11x8xf32> to vector<1x11x8xf32>
    tpu.vector_store %arg12[%c0_52, %c0_53, %c0_54], %144 {strides = array<i32>} : memref<1x100x8xf32, #tpu.memory_space<vmem>>, vector<1x11x8xf32>,
    %c0_55 = arith.constant 0 : index
    %c89 = arith.constant 89 : index
    %c0_56 = arith.constant 0 : index
    %145 = vector.load %arg12[%c0_55, %c89, %c0_56] : memref<1x100x8xf32, #tpu.memory_space<vmem>>, vector<1x11x8xf32>
    %146 = vector.shape_cast %145 : vector<1x11x8xf32> to vector<11x8xf32>
    %147 = vector.shape_cast %141 : vector<11x8xf32> to vector<1x11x8xf32>
    tpu.vector_store %arg12[%c0_55, %c89, %c0_56], %147 {strides = array<i32>} : memref<1x100x8xf32, #tpu.memory_space<vmem>>, vector<1x11x8xf32>,
    %c0_57 = arith.constant 0 : index
    %c11 = arith.constant 11 : index
    %c0_58 = arith.constant 0 : index
    %148 = vector.load %arg12[%c0_57, %c11, %c0_58] : memref<1x100x8xf32, #tpu.memory_space<vmem>>, vector<1x78x8xf32>
    %149 = vector.shape_cast %148 : vector<1x78x8xf32> to vector<78x8xf32>
    %150 = vector.shape_cast %140 : vector<78x8xf32> to vector<1x78x8xf32>
    tpu.vector_store %arg12[%c0_57, %c11, %c0_58], %150 {strides = array<i32>} : memref<1x100x8xf32, #tpu.memory_space<vmem>>, vector<1x78x8xf32>,
    return
  }
  func.func @transform_0(%arg0: i32) -> (i32, i32, i32) {
    %c0_i32 = arith.constant 0 : i32
    %c0_i32_0 = arith.constant 0 : i32
    %c0_i32_1 = arith.constant 0 : i32
    return %arg0, %c0_i32, %c0_i32_0 : i32, i32, i32
  }
  func.func @transform_1(%arg0: i32) -> (i32, i32) {
    %c0_i32 = arith.constant 0 : i32
    %c0_i32_0 = arith.constant 0 : i32
    %c0_i32_1 = arith.constant 0 : i32
    return %c0_i32, %c0_i32_0 : i32, i32
  }
  func.func @transform_2(%arg0: i32) -> (i32, i32) {
    %c0_i32 = arith.constant 0 : i32
    %c0_i32_0 = arith.constant 0 : i32
    %c0_i32_1 = arith.constant 0 : i32
    return %c0_i32, %c0_i32_0 : i32, i32
  }
  func.func @transform_3(%arg0: i32) -> (i32, i32) {
    %c0_i32 = arith.constant 0 : i32
    %c0_i32_0 = arith.constant 0 : i32
    %c0_i32_1 = arith.constant 0 : i32
    return %c0_i32, %c0_i32_0 : i32, i32
  }
  func.func @transform_4(%arg0: i32) -> (i32, i32) {
    %c0_i32 = arith.constant 0 : i32
    %c0_i32_0 = arith.constant 0 : i32
    %c0_i32_1 = arith.constant 0 : i32
    return %c0_i32, %c0_i32_0 : i32, i32
  }
  func.func @transform_5(%arg0: i32) -> (i32, i32) {
    %c0_i32 = arith.constant 0 : i32
    %c0_i32_0 = arith.constant 0 : i32
    %c0_i32_1 = arith.constant 0 : i32
    return %c0_i32, %c0_i32_0 : i32, i32
  }
  func.func @transform_6(%arg0: i32) -> (i32, i32, i32) {
    %c0_i32 = arith.constant 0 : i32
    %c0_i32_0 = arith.constant 0 : i32
    %c0_i32_1 = arith.constant 0 : i32
    %c0_i32_2 = arith.constant 0 : i32
    return %c0_i32, %c0_i32_0, %c0_i32_1 : i32, i32, i32
  }
  func.func @transform_7(%arg0: i32) -> (i32, i32) {
    %c0_i32 = arith.constant 0 : i32
    %c0_i32_0 = arith.constant 0 : i32
    %c0_i32_1 = arith.constant 0 : i32
    return %c0_i32, %c0_i32_0 : i32, i32
  }
  func.func @transform_8(%arg0: i32) -> (i32, i32) {
    %c0_i32 = arith.constant 0 : i32
    %c0_i32_0 = arith.constant 0 : i32
    %c0_i32_1 = arith.constant 0 : i32
    return %c0_i32, %c0_i32_0 : i32, i32
  }
  func.func @transform_9(%arg0: i32) -> (i32, i32) {
    %c0_i32 = arith.constant 0 : i32
    %c0_i32_0 = arith.constant 0 : i32
    %c0_i32_1 = arith.constant 0 : i32
    return %c0_i32, %c0_i32_0 : i32, i32
  }
  func.func @transform_10(%arg0: i32) -> (i32, i32) {
    %c0_i32 = arith.constant 0 : i32
    %c0_i32_0 = arith.constant 0 : i32
    %c0_i32_1 = arith.constant 0 : i32
    return %c0_i32, %c0_i32_0 : i32, i32
  }
  func.func @transform_11(%arg0: i32) -> (i32, i32, i32) {
    %c0_i32 = arith.constant 0 : i32
    %c0_i32_0 = arith.constant 0 : i32
    %c0_i32_1 = arith.constant 0 : i32
    return %arg0, %c0_i32, %c0_i32_0 : i32, i32, i32
  }
}

module attributes {stable_mosaic.version = 11 : i64} {
  func.func @_bottleneck_kernel(%arg0: i32, %arg1: memref<1x36x8xf32, #tpu.memory_space<vmem>>, %arg2: memref<1x8xf32, #tpu.memory_space<vmem>>, %arg3: memref<1x8xf32, #tpu.memory_space<vmem>>, %arg4: memref<8x4xbf16, #tpu.memory_space<vmem>>, %arg5: memref<1x4xf32, #tpu.memory_space<vmem>>, %arg6: memref<1x4xf32, #tpu.memory_space<vmem>>, %arg7: memref<3x12x4xbf16, #tpu.memory_space<vmem>>, %arg8: memref<1x4xf32, #tpu.memory_space<vmem>>, %arg9: memref<1x4xf32, #tpu.memory_space<vmem>>, %arg10: memref<4x8xbf16, #tpu.memory_space<vmem>>, %arg11: memref<1x8xf32, #tpu.memory_space<vmem>>, %arg12: memref<1x36x8xf32, #tpu.memory_space<vmem>>) attributes {dimension_semantics = [#tpu.dimension_semantics<parallel>], iteration_bounds = array<i64: 2>, scalar_prefetch = 0 : i64, scratch_operands = 0 : i64, tpu.core_type = #tpu.core_type<tc>, window_params = [{transform_indices = @transform_0, window_bounds = array<i64: 1, 36, 8>}, {pipeline_mode = #tpu.pipeline_mode<synchronous>, transform_indices = @transform_1, window_bounds = array<i64: 1, 8>}, {pipeline_mode = #tpu.pipeline_mode<synchronous>, transform_indices = @transform_2, window_bounds = array<i64: 1, 8>}, {pipeline_mode = #tpu.pipeline_mode<synchronous>, transform_indices = @transform_3, window_bounds = array<i64: 8, 4>}, {pipeline_mode = #tpu.pipeline_mode<synchronous>, transform_indices = @transform_4, window_bounds = array<i64: 1, 4>}, {pipeline_mode = #tpu.pipeline_mode<synchronous>, transform_indices = @transform_5, window_bounds = array<i64: 1, 4>}, {pipeline_mode = #tpu.pipeline_mode<synchronous>, transform_indices = @transform_6, window_bounds = array<i64: 3, 12, 4>}, {pipeline_mode = #tpu.pipeline_mode<synchronous>, transform_indices = @transform_7, window_bounds = array<i64: 1, 4>}, {pipeline_mode = #tpu.pipeline_mode<synchronous>, transform_indices = @transform_8, window_bounds = array<i64: 1, 4>}, {pipeline_mode = #tpu.pipeline_mode<synchronous>, transform_indices = @transform_9, window_bounds = array<i64: 4, 8>}, {pipeline_mode = #tpu.pipeline_mode<synchronous>, transform_indices = @transform_10, window_bounds = array<i64: 1, 8>}, {transform_indices = @transform_11, window_bounds = array<i64: 1, 36, 8>}]} {
    %c0 = arith.constant 0 : index
    %c0_0 = arith.constant 0 : index
    %c0_1 = arith.constant 0 : index
    %0 = vector.load %arg1[%c0, %c0_0, %c0_1] : memref<1x36x8xf32, #tpu.memory_space<vmem>>, vector<1x36x8xf32>
    %1 = vector.shape_cast %0 : vector<1x36x8xf32> to vector<36x8xf32>
    %c0_2 = arith.constant 0 : index
    %c0_3 = arith.constant 0 : index
    %2 = vector.load %arg2[%c0_2, %c0_3] : memref<1x8xf32, #tpu.memory_space<vmem>>, vector<1x8xf32>
    %3 = vector.broadcast %2 : vector<1x8xf32> to vector<36x8xf32>
    %4 = arith.mulf %1, %3 : vector<36x8xf32>
    %c0_4 = arith.constant 0 : index
    %c0_5 = arith.constant 0 : index
    %5 = vector.load %arg3[%c0_4, %c0_5] : memref<1x8xf32, #tpu.memory_space<vmem>>, vector<1x8xf32>
    %6 = vector.broadcast %5 : vector<1x8xf32> to vector<36x8xf32>
    %7 = arith.addf %4, %6 : vector<36x8xf32>
    %cst = arith.constant 0.000000e+00 : f32
    %8 = vector.broadcast %cst : f32 to vector<36x8xf32>
    %9 = arith.maximumf %7, %8 : vector<36x8xf32>
    %10 = arith.truncf %9 : vector<36x8xf32> to vector<36x8xbf16>
    %c0_6 = arith.constant 0 : index
    %c0_7 = arith.constant 0 : index
    %11 = vector.load %arg4[%c0_6, %c0_7] : memref<8x4xbf16, #tpu.memory_space<vmem>>, vector<8x4xbf16>
    %cst_8 = arith.constant dense<0.000000e+00> : vector<36x4xf32>
    %12 = tpu.matmul %10, %11, %cst_8 {dimension_numbers = #tpu.dot_dimension_numbers<[1], [0], [0], [1], [0, 0, 1, 1], [], []>} : vector<36x8xbf16>, vector<8x4xbf16>, vector<36x4xf32> -> vector<36x4xf32>
    %c0_9 = arith.constant 0 : index
    %c0_10 = arith.constant 0 : index
    %13 = vector.load %arg5[%c0_9, %c0_10] : memref<1x4xf32, #tpu.memory_space<vmem>>, vector<1x4xf32>
    %14 = vector.broadcast %13 : vector<1x4xf32> to vector<36x4xf32>
    %15 = arith.mulf %12, %14 : vector<36x4xf32>
    %c0_11 = arith.constant 0 : index
    %c0_12 = arith.constant 0 : index
    %16 = vector.load %arg6[%c0_11, %c0_12] : memref<1x4xf32, #tpu.memory_space<vmem>>, vector<1x4xf32>
    %17 = vector.broadcast %16 : vector<1x4xf32> to vector<36x4xf32>
    %18 = arith.addf %15, %17 : vector<36x4xf32>
    %cst_13 = arith.constant 0.000000e+00 : f32
    %19 = vector.broadcast %cst_13 : f32 to vector<36x4xf32>
    %20 = arith.maximumf %18, %19 : vector<36x4xf32>
    %21 = tpu.iota {dimensions = array<i32: 0>} : vector<36x1xi32>
    %c0_i32 = arith.constant 0 : i32
    %22 = vector.broadcast %c0_i32 : i32 to vector<36x1xi32>
    %23 = arith.addi %21, %22 : vector<36x1xi32>
    %24 = arith.sitofp %23 : vector<36x1xi32> to vector<36x1xf32>
    %cst_14 = arith.constant 5.000000e-01 : f32
    %25 = vector.broadcast %cst_14 : f32 to vector<36x1xf32>
    %26 = arith.addf %24, %25 : vector<36x1xf32>
    %cst_15 = arith.constant 0.166666672 : f32
    %27 = vector.broadcast %cst_15 : f32 to vector<36x1xf32>
    %28 = arith.mulf %26, %27 : vector<36x1xf32>
    %29 = arith.fptosi %28 : vector<36x1xf32> to vector<36x1xi32>
    %c6_i32 = arith.constant 6 : i32
    %30 = vector.broadcast %c6_i32 : i32 to vector<36x1xi32>
    %31 = arith.muli %29, %30 : vector<36x1xi32>
    %32 = arith.subi %23, %31 : vector<36x1xi32>
    %c1_i32 = arith.constant 1 : i32
    %33 = vector.broadcast %c1_i32 : i32 to vector<36x1xi32>
    %34 = arith.cmpi sge, %29, %33 : vector<36x1xi32>
    %c4_i32 = arith.constant 4 : i32
    %35 = vector.broadcast %c4_i32 : i32 to vector<36x1xi32>
    %36 = arith.cmpi sle, %29, %35 : vector<36x1xi32>
    %37 = arith.andi %34, %36 : vector<36x1xi1>
    %c1_i32_16 = arith.constant 1 : i32
    %38 = vector.broadcast %c1_i32_16 : i32 to vector<36x1xi32>
    %39 = arith.cmpi sge, %32, %38 : vector<36x1xi32>
    %40 = arith.andi %37, %39 : vector<36x1xi1>
    %c4_i32_17 = arith.constant 4 : i32
    %41 = vector.broadcast %c4_i32_17 : i32 to vector<36x1xi32>
    %42 = arith.cmpi sle, %32, %41 : vector<36x1xi32>
    %43 = arith.andi %40, %42 : vector<36x1xi1>
    %44 = arith.extui %43 : vector<36x1xi1> to vector<36x1xi32>
    %45 = arith.sitofp %44 : vector<36x1xi32> to vector<36x1xf32>
    %46 = vector.broadcast %45 : vector<36x1xf32> to vector<36x4xf32>
    %47 = arith.mulf %20, %46 : vector<36x4xf32>
    %c0_18 = arith.constant 0 : index
    %c0_19 = arith.constant 0 : index
    %c0_20 = arith.constant 0 : index
    %48 = vector.load %arg7[%c0_18, %c0_19, %c0_20] : memref<3x12x4xbf16, #tpu.memory_space<vmem>>, vector<1x12x4xbf16>
    %49 = vector.shape_cast %48 : vector<1x12x4xbf16> to vector<12x4xbf16>
    %50 = vector.extract_strided_slice %47 {offsets = [0, 0], sizes = [22, 4], strides = [1, 1]} : vector<36x4xf32> to vector<22x4xf32>
    %51 = arith.truncf %50 : vector<22x4xf32> to vector<22x4xbf16>
    %52 = vector.extract_strided_slice %49 {offsets = [0, 0], sizes = [4, 4], strides = [1, 1]} : vector<12x4xbf16> to vector<4x4xbf16>
    %cst_21 = arith.constant dense<0.000000e+00> : vector<22x4xf32>
    %53 = tpu.matmul %51, %52, %cst_21 {dimension_numbers = #tpu.dot_dimension_numbers<[1], [0], [0], [1], [0, 0, 1, 1], [], []>} : vector<22x4xbf16>, vector<4x4xbf16>, vector<22x4xf32> -> vector<22x4xf32>
    %54 = vector.extract_strided_slice %47 {offsets = [1, 0], sizes = [22, 4], strides = [1, 1]} : vector<36x4xf32> to vector<22x4xf32>
    %55 = arith.truncf %54 : vector<22x4xf32> to vector<22x4xbf16>
    %56 = vector.extract_strided_slice %49 {offsets = [4, 0], sizes = [4, 4], strides = [1, 1]} : vector<12x4xbf16> to vector<4x4xbf16>
    %cst_22 = arith.constant dense<0.000000e+00> : vector<22x4xf32>
    %57 = tpu.matmul %55, %56, %cst_22 {dimension_numbers = #tpu.dot_dimension_numbers<[1], [0], [0], [1], [0, 0, 1, 1], [], []>} : vector<22x4xbf16>, vector<4x4xbf16>, vector<22x4xf32> -> vector<22x4xf32>
    %58 = arith.addf %53, %57 : vector<22x4xf32>
    %59 = vector.extract_strided_slice %47 {offsets = [2, 0], sizes = [22, 4], strides = [1, 1]} : vector<36x4xf32> to vector<22x4xf32>
    %60 = arith.truncf %59 : vector<22x4xf32> to vector<22x4xbf16>
    %61 = vector.extract_strided_slice %49 {offsets = [8, 0], sizes = [4, 4], strides = [1, 1]} : vector<12x4xbf16> to vector<4x4xbf16>
    %cst_23 = arith.constant dense<0.000000e+00> : vector<22x4xf32>
    %62 = tpu.matmul %60, %61, %cst_23 {dimension_numbers = #tpu.dot_dimension_numbers<[1], [0], [0], [1], [0, 0, 1, 1], [], []>} : vector<22x4xbf16>, vector<4x4xbf16>, vector<22x4xf32> -> vector<22x4xf32>
    %63 = arith.addf %58, %62 : vector<22x4xf32>
    %c1 = arith.constant 1 : index
    %c0_24 = arith.constant 0 : index
    %c0_25 = arith.constant 0 : index
    %64 = vector.load %arg7[%c1, %c0_24, %c0_25] : memref<3x12x4xbf16, #tpu.memory_space<vmem>>, vector<1x12x4xbf16>
    %65 = vector.shape_cast %64 : vector<1x12x4xbf16> to vector<12x4xbf16>
    %66 = vector.extract_strided_slice %47 {offsets = [6, 0], sizes = [22, 4], strides = [1, 1]} : vector<36x4xf32> to vector<22x4xf32>
    %67 = arith.truncf %66 : vector<22x4xf32> to vector<22x4xbf16>
    %68 = vector.extract_strided_slice %65 {offsets = [0, 0], sizes = [4, 4], strides = [1, 1]} : vector<12x4xbf16> to vector<4x4xbf16>
    %cst_26 = arith.constant dense<0.000000e+00> : vector<22x4xf32>
    %69 = tpu.matmul %67, %68, %cst_26 {dimension_numbers = #tpu.dot_dimension_numbers<[1], [0], [0], [1], [0, 0, 1, 1], [], []>} : vector<22x4xbf16>, vector<4x4xbf16>, vector<22x4xf32> -> vector<22x4xf32>
    %70 = arith.addf %63, %69 : vector<22x4xf32>
    %71 = vector.extract_strided_slice %47 {offsets = [7, 0], sizes = [22, 4], strides = [1, 1]} : vector<36x4xf32> to vector<22x4xf32>
    %72 = arith.truncf %71 : vector<22x4xf32> to vector<22x4xbf16>
    %73 = vector.extract_strided_slice %65 {offsets = [4, 0], sizes = [4, 4], strides = [1, 1]} : vector<12x4xbf16> to vector<4x4xbf16>
    %cst_27 = arith.constant dense<0.000000e+00> : vector<22x4xf32>
    %74 = tpu.matmul %72, %73, %cst_27 {dimension_numbers = #tpu.dot_dimension_numbers<[1], [0], [0], [1], [0, 0, 1, 1], [], []>} : vector<22x4xbf16>, vector<4x4xbf16>, vector<22x4xf32> -> vector<22x4xf32>
    %75 = arith.addf %70, %74 : vector<22x4xf32>
    %76 = vector.extract_strided_slice %47 {offsets = [8, 0], sizes = [22, 4], strides = [1, 1]} : vector<36x4xf32> to vector<22x4xf32>
    %77 = arith.truncf %76 : vector<22x4xf32> to vector<22x4xbf16>
    %78 = vector.extract_strided_slice %65 {offsets = [8, 0], sizes = [4, 4], strides = [1, 1]} : vector<12x4xbf16> to vector<4x4xbf16>
    %cst_28 = arith.constant dense<0.000000e+00> : vector<22x4xf32>
    %79 = tpu.matmul %77, %78, %cst_28 {dimension_numbers = #tpu.dot_dimension_numbers<[1], [0], [0], [1], [0, 0, 1, 1], [], []>} : vector<22x4xbf16>, vector<4x4xbf16>, vector<22x4xf32> -> vector<22x4xf32>
    %80 = arith.addf %75, %79 : vector<22x4xf32>
    %c2 = arith.constant 2 : index
    %c0_29 = arith.constant 0 : index
    %c0_30 = arith.constant 0 : index
    %81 = vector.load %arg7[%c2, %c0_29, %c0_30] : memref<3x12x4xbf16, #tpu.memory_space<vmem>>, vector<1x12x4xbf16>
    %82 = vector.shape_cast %81 : vector<1x12x4xbf16> to vector<12x4xbf16>
    %83 = vector.extract_strided_slice %47 {offsets = [12, 0], sizes = [22, 4], strides = [1, 1]} : vector<36x4xf32> to vector<22x4xf32>
    %84 = arith.truncf %83 : vector<22x4xf32> to vector<22x4xbf16>
    %85 = vector.extract_strided_slice %82 {offsets = [0, 0], sizes = [4, 4], strides = [1, 1]} : vector<12x4xbf16> to vector<4x4xbf16>
    %cst_31 = arith.constant dense<0.000000e+00> : vector<22x4xf32>
    %86 = tpu.matmul %84, %85, %cst_31 {dimension_numbers = #tpu.dot_dimension_numbers<[1], [0], [0], [1], [0, 0, 1, 1], [], []>} : vector<22x4xbf16>, vector<4x4xbf16>, vector<22x4xf32> -> vector<22x4xf32>
    %87 = arith.addf %80, %86 : vector<22x4xf32>
    %88 = vector.extract_strided_slice %47 {offsets = [13, 0], sizes = [22, 4], strides = [1, 1]} : vector<36x4xf32> to vector<22x4xf32>
    %89 = arith.truncf %88 : vector<22x4xf32> to vector<22x4xbf16>
    %90 = vector.extract_strided_slice %82 {offsets = [4, 0], sizes = [4, 4], strides = [1, 1]} : vector<12x4xbf16> to vector<4x4xbf16>
    %cst_32 = arith.constant dense<0.000000e+00> : vector<22x4xf32>
    %91 = tpu.matmul %89, %90, %cst_32 {dimension_numbers = #tpu.dot_dimension_numbers<[1], [0], [0], [1], [0, 0, 1, 1], [], []>} : vector<22x4xbf16>, vector<4x4xbf16>, vector<22x4xf32> -> vector<22x4xf32>
    %92 = arith.addf %87, %91 : vector<22x4xf32>
    %93 = vector.extract_strided_slice %47 {offsets = [14, 0], sizes = [22, 4], strides = [1, 1]} : vector<36x4xf32> to vector<22x4xf32>
    %94 = arith.truncf %93 : vector<22x4xf32> to vector<22x4xbf16>
    %95 = vector.extract_strided_slice %82 {offsets = [8, 0], sizes = [4, 4], strides = [1, 1]} : vector<12x4xbf16> to vector<4x4xbf16>
    %cst_33 = arith.constant dense<0.000000e+00> : vector<22x4xf32>
    %96 = tpu.matmul %94, %95, %cst_33 {dimension_numbers = #tpu.dot_dimension_numbers<[1], [0], [0], [1], [0, 0, 1, 1], [], []>} : vector<22x4xbf16>, vector<4x4xbf16>, vector<22x4xf32> -> vector<22x4xf32>
    %97 = arith.addf %92, %96 : vector<22x4xf32>
    %c0_34 = arith.constant 0 : index
    %c0_35 = arith.constant 0 : index
    %98 = vector.load %arg8[%c0_34, %c0_35] : memref<1x4xf32, #tpu.memory_space<vmem>>, vector<1x4xf32>
    %99 = vector.broadcast %98 : vector<1x4xf32> to vector<22x4xf32>
    %100 = arith.mulf %97, %99 : vector<22x4xf32>
    %c0_36 = arith.constant 0 : index
    %c0_37 = arith.constant 0 : index
    %101 = vector.load %arg9[%c0_36, %c0_37] : memref<1x4xf32, #tpu.memory_space<vmem>>, vector<1x4xf32>
    %102 = vector.broadcast %101 : vector<1x4xf32> to vector<22x4xf32>
    %103 = arith.addf %100, %102 : vector<22x4xf32>
    %cst_38 = arith.constant 0.000000e+00 : f32
    %104 = vector.broadcast %cst_38 : f32 to vector<22x4xf32>
    %105 = arith.maximumf %103, %104 : vector<22x4xf32>
    %106 = arith.truncf %105 : vector<22x4xf32> to vector<22x4xbf16>
    %c0_39 = arith.constant 0 : index
    %c0_40 = arith.constant 0 : index
    %107 = vector.load %arg10[%c0_39, %c0_40] : memref<4x8xbf16, #tpu.memory_space<vmem>>, vector<4x8xbf16>
    %cst_41 = arith.constant dense<0.000000e+00> : vector<22x8xf32>
    %108 = tpu.matmul %106, %107, %cst_41 {dimension_numbers = #tpu.dot_dimension_numbers<[1], [0], [0], [1], [0, 0, 1, 1], [], []>} : vector<22x4xbf16>, vector<4x8xbf16>, vector<22x8xf32> -> vector<22x8xf32>
    %c0_42 = arith.constant 0 : index
    %c0_43 = arith.constant 0 : index
    %109 = vector.load %arg11[%c0_42, %c0_43] : memref<1x8xf32, #tpu.memory_space<vmem>>, vector<1x8xf32>
    %110 = vector.broadcast %109 : vector<1x8xf32> to vector<22x8xf32>
    %111 = arith.addf %108, %110 : vector<22x8xf32>
    %112 = tpu.iota {dimensions = array<i32: 0>} : vector<22x1xi32>
    %c7_i32 = arith.constant 7 : i32
    %113 = vector.broadcast %c7_i32 : i32 to vector<22x1xi32>
    %114 = arith.addi %112, %113 : vector<22x1xi32>
    %115 = arith.sitofp %114 : vector<22x1xi32> to vector<22x1xf32>
    %cst_44 = arith.constant 5.000000e-01 : f32
    %116 = vector.broadcast %cst_44 : f32 to vector<22x1xf32>
    %117 = arith.addf %115, %116 : vector<22x1xf32>
    %cst_45 = arith.constant 0.166666672 : f32
    %118 = vector.broadcast %cst_45 : f32 to vector<22x1xf32>
    %119 = arith.mulf %117, %118 : vector<22x1xf32>
    %120 = arith.fptosi %119 : vector<22x1xf32> to vector<22x1xi32>
    %c6_i32_46 = arith.constant 6 : i32
    %121 = vector.broadcast %c6_i32_46 : i32 to vector<22x1xi32>
    %122 = arith.muli %120, %121 : vector<22x1xi32>
    %123 = arith.subi %114, %122 : vector<22x1xi32>
    %c1_i32_47 = arith.constant 1 : i32
    %124 = vector.broadcast %c1_i32_47 : i32 to vector<22x1xi32>
    %125 = arith.cmpi sge, %120, %124 : vector<22x1xi32>
    %c4_i32_48 = arith.constant 4 : i32
    %126 = vector.broadcast %c4_i32_48 : i32 to vector<22x1xi32>
    %127 = arith.cmpi sle, %120, %126 : vector<22x1xi32>
    %128 = arith.andi %125, %127 : vector<22x1xi1>
    %c1_i32_49 = arith.constant 1 : i32
    %129 = vector.broadcast %c1_i32_49 : i32 to vector<22x1xi32>
    %130 = arith.cmpi sge, %123, %129 : vector<22x1xi32>
    %131 = arith.andi %128, %130 : vector<22x1xi1>
    %c4_i32_50 = arith.constant 4 : i32
    %132 = vector.broadcast %c4_i32_50 : i32 to vector<22x1xi32>
    %133 = arith.cmpi sle, %123, %132 : vector<22x1xi32>
    %134 = arith.andi %131, %133 : vector<22x1xi1>
    %135 = arith.extui %134 : vector<22x1xi1> to vector<22x1xi32>
    %136 = arith.sitofp %135 : vector<22x1xi32> to vector<22x1xf32>
    %137 = vector.extract_strided_slice %1 {offsets = [7, 0], sizes = [22, 8], strides = [1, 1]} : vector<36x8xf32> to vector<22x8xf32>
    %138 = arith.addf %111, %137 : vector<22x8xf32>
    %139 = vector.broadcast %136 : vector<22x1xf32> to vector<22x8xf32>
    %140 = arith.mulf %138, %139 : vector<22x8xf32>
    %cst_51 = arith.constant 0.000000e+00 : f32
    %141 = vector.broadcast %cst_51 : f32 to vector<7x8xf32>
    %c0_52 = arith.constant 0 : index
    %c0_53 = arith.constant 0 : index
    %c0_54 = arith.constant 0 : index
    %142 = vector.load %arg12[%c0_52, %c0_53, %c0_54] : memref<1x36x8xf32, #tpu.memory_space<vmem>>, vector<1x7x8xf32>
    %143 = vector.shape_cast %142 : vector<1x7x8xf32> to vector<7x8xf32>
    %144 = vector.shape_cast %141 : vector<7x8xf32> to vector<1x7x8xf32>
    tpu.vector_store %arg12[%c0_52, %c0_53, %c0_54], %144 {strides = array<i32>} : memref<1x36x8xf32, #tpu.memory_space<vmem>>, vector<1x7x8xf32>,
    %c0_55 = arith.constant 0 : index
    %c29 = arith.constant 29 : index
    %c0_56 = arith.constant 0 : index
    %145 = vector.load %arg12[%c0_55, %c29, %c0_56] : memref<1x36x8xf32, #tpu.memory_space<vmem>>, vector<1x7x8xf32>
    %146 = vector.shape_cast %145 : vector<1x7x8xf32> to vector<7x8xf32>
    %147 = vector.shape_cast %141 : vector<7x8xf32> to vector<1x7x8xf32>
    tpu.vector_store %arg12[%c0_55, %c29, %c0_56], %147 {strides = array<i32>} : memref<1x36x8xf32, #tpu.memory_space<vmem>>, vector<1x7x8xf32>,
    %c0_57 = arith.constant 0 : index
    %c7 = arith.constant 7 : index
    %c0_58 = arith.constant 0 : index
    %148 = vector.load %arg12[%c0_57, %c7, %c0_58] : memref<1x36x8xf32, #tpu.memory_space<vmem>>, vector<1x22x8xf32>
    %149 = vector.shape_cast %148 : vector<1x22x8xf32> to vector<22x8xf32>
    %150 = vector.shape_cast %140 : vector<22x8xf32> to vector<1x22x8xf32>
    tpu.vector_store %arg12[%c0_57, %c7, %c0_58], %150 {strides = array<i32>} : memref<1x36x8xf32, #tpu.memory_space<vmem>>, vector<1x22x8xf32>,
    return
  }
  func.func @transform_0(%arg0: i32) -> (i32, i32, i32) {
    %c0_i32 = arith.constant 0 : i32
    %c0_i32_0 = arith.constant 0 : i32
    %c0_i32_1 = arith.constant 0 : i32
    return %arg0, %c0_i32, %c0_i32_0 : i32, i32, i32
  }
  func.func @transform_1(%arg0: i32) -> (i32, i32) {
    %c0_i32 = arith.constant 0 : i32
    %c0_i32_0 = arith.constant 0 : i32
    %c0_i32_1 = arith.constant 0 : i32
    return %c0_i32, %c0_i32_0 : i32, i32
  }
  func.func @transform_2(%arg0: i32) -> (i32, i32) {
    %c0_i32 = arith.constant 0 : i32
    %c0_i32_0 = arith.constant 0 : i32
    %c0_i32_1 = arith.constant 0 : i32
    return %c0_i32, %c0_i32_0 : i32, i32
  }
  func.func @transform_3(%arg0: i32) -> (i32, i32) {
    %c0_i32 = arith.constant 0 : i32
    %c0_i32_0 = arith.constant 0 : i32
    %c0_i32_1 = arith.constant 0 : i32
    return %c0_i32, %c0_i32_0 : i32, i32
  }
  func.func @transform_4(%arg0: i32) -> (i32, i32) {
    %c0_i32 = arith.constant 0 : i32
    %c0_i32_0 = arith.constant 0 : i32
    %c0_i32_1 = arith.constant 0 : i32
    return %c0_i32, %c0_i32_0 : i32, i32
  }
  func.func @transform_5(%arg0: i32) -> (i32, i32) {
    %c0_i32 = arith.constant 0 : i32
    %c0_i32_0 = arith.constant 0 : i32
    %c0_i32_1 = arith.constant 0 : i32
    return %c0_i32, %c0_i32_0 : i32, i32
  }
  func.func @transform_6(%arg0: i32) -> (i32, i32, i32) {
    %c0_i32 = arith.constant 0 : i32
    %c0_i32_0 = arith.constant 0 : i32
    %c0_i32_1 = arith.constant 0 : i32
    %c0_i32_2 = arith.constant 0 : i32
    return %c0_i32, %c0_i32_0, %c0_i32_1 : i32, i32, i32
  }
  func.func @transform_7(%arg0: i32) -> (i32, i32) {
    %c0_i32 = arith.constant 0 : i32
    %c0_i32_0 = arith.constant 0 : i32
    %c0_i32_1 = arith.constant 0 : i32
    return %c0_i32, %c0_i32_0 : i32, i32
  }
  func.func @transform_8(%arg0: i32) -> (i32, i32) {
    %c0_i32 = arith.constant 0 : i32
    %c0_i32_0 = arith.constant 0 : i32
    %c0_i32_1 = arith.constant 0 : i32
    return %c0_i32, %c0_i32_0 : i32, i32
  }
  func.func @transform_9(%arg0: i32) -> (i32, i32) {
    %c0_i32 = arith.constant 0 : i32
    %c0_i32_0 = arith.constant 0 : i32
    %c0_i32_1 = arith.constant 0 : i32
    return %c0_i32, %c0_i32_0 : i32, i32
  }
  func.func @transform_10(%arg0: i32) -> (i32, i32) {
    %c0_i32 = arith.constant 0 : i32
    %c0_i32_0 = arith.constant 0 : i32
    %c0_i32_1 = arith.constant 0 : i32
    return %c0_i32, %c0_i32_0 : i32, i32
  }
  func.func @transform_11(%arg0: i32) -> (i32, i32, i32) {
    %c0_i32 = arith.constant 0 : i32
    %c0_i32_0 = arith.constant 0 : i32
    %c0_i32_1 = arith.constant 0 : i32
    return %arg0, %c0_i32, %c0_i32_0 : i32, i32, i32
  }
}

module attributes {stable_mosaic.version = 11 : i64} {
  func.func @_bottleneck_kernel(%arg0: i32, %arg1: memref<1x324x8xf32, #tpu.memory_space<vmem>>, %arg2: memref<1x8xf32, #tpu.memory_space<vmem>>, %arg3: memref<1x8xf32, #tpu.memory_space<vmem>>, %arg4: memref<8x4xbf16, #tpu.memory_space<vmem>>, %arg5: memref<1x4xf32, #tpu.memory_space<vmem>>, %arg6: memref<1x4xf32, #tpu.memory_space<vmem>>, %arg7: memref<3x12x4xbf16, #tpu.memory_space<vmem>>, %arg8: memref<1x4xf32, #tpu.memory_space<vmem>>, %arg9: memref<1x4xf32, #tpu.memory_space<vmem>>, %arg10: memref<4x8xbf16, #tpu.memory_space<vmem>>, %arg11: memref<1x8xf32, #tpu.memory_space<vmem>>, %arg12: memref<1x324x8xf32, #tpu.memory_space<vmem>>) attributes {dimension_semantics = [#tpu.dimension_semantics<parallel>], iteration_bounds = array<i64: 2>, scalar_prefetch = 0 : i64, scratch_operands = 0 : i64, tpu.core_type = #tpu.core_type<tc>, window_params = [{transform_indices = @transform_0, window_bounds = array<i64: 1, 324, 8>}, {pipeline_mode = #tpu.pipeline_mode<synchronous>, transform_indices = @transform_1, window_bounds = array<i64: 1, 8>}, {pipeline_mode = #tpu.pipeline_mode<synchronous>, transform_indices = @transform_2, window_bounds = array<i64: 1, 8>}, {pipeline_mode = #tpu.pipeline_mode<synchronous>, transform_indices = @transform_3, window_bounds = array<i64: 8, 4>}, {pipeline_mode = #tpu.pipeline_mode<synchronous>, transform_indices = @transform_4, window_bounds = array<i64: 1, 4>}, {pipeline_mode = #tpu.pipeline_mode<synchronous>, transform_indices = @transform_5, window_bounds = array<i64: 1, 4>}, {pipeline_mode = #tpu.pipeline_mode<synchronous>, transform_indices = @transform_6, window_bounds = array<i64: 3, 12, 4>}, {pipeline_mode = #tpu.pipeline_mode<synchronous>, transform_indices = @transform_7, window_bounds = array<i64: 1, 4>}, {pipeline_mode = #tpu.pipeline_mode<synchronous>, transform_indices = @transform_8, window_bounds = array<i64: 1, 4>}, {pipeline_mode = #tpu.pipeline_mode<synchronous>, transform_indices = @transform_9, window_bounds = array<i64: 4, 8>}, {pipeline_mode = #tpu.pipeline_mode<synchronous>, transform_indices = @transform_10, window_bounds = array<i64: 1, 8>}, {transform_indices = @transform_11, window_bounds = array<i64: 1, 324, 8>}]} {
    %c0 = arith.constant 0 : index
    %c0_0 = arith.constant 0 : index
    %c0_1 = arith.constant 0 : index
    %0 = vector.load %arg1[%c0, %c0_0, %c0_1] : memref<1x324x8xf32, #tpu.memory_space<vmem>>, vector<1x324x8xf32>
    %1 = vector.shape_cast %0 : vector<1x324x8xf32> to vector<324x8xf32>
    %c0_2 = arith.constant 0 : index
    %c0_3 = arith.constant 0 : index
    %2 = vector.load %arg2[%c0_2, %c0_3] : memref<1x8xf32, #tpu.memory_space<vmem>>, vector<1x8xf32>
    %3 = vector.broadcast %2 : vector<1x8xf32> to vector<324x8xf32>
    %4 = arith.mulf %1, %3 : vector<324x8xf32>
    %c0_4 = arith.constant 0 : index
    %c0_5 = arith.constant 0 : index
    %5 = vector.load %arg3[%c0_4, %c0_5] : memref<1x8xf32, #tpu.memory_space<vmem>>, vector<1x8xf32>
    %6 = vector.broadcast %5 : vector<1x8xf32> to vector<324x8xf32>
    %7 = arith.addf %4, %6 : vector<324x8xf32>
    %cst = arith.constant 0.000000e+00 : f32
    %8 = vector.broadcast %cst : f32 to vector<324x8xf32>
    %9 = arith.maximumf %7, %8 : vector<324x8xf32>
    %10 = arith.truncf %9 : vector<324x8xf32> to vector<324x8xbf16>
    %c0_6 = arith.constant 0 : index
    %c0_7 = arith.constant 0 : index
    %11 = vector.load %arg4[%c0_6, %c0_7] : memref<8x4xbf16, #tpu.memory_space<vmem>>, vector<8x4xbf16>
    %cst_8 = arith.constant dense<0.000000e+00> : vector<324x4xf32>
    %12 = tpu.matmul %10, %11, %cst_8 {dimension_numbers = #tpu.dot_dimension_numbers<[1], [0], [0], [1], [0, 0, 1, 1], [], []>} : vector<324x8xbf16>, vector<8x4xbf16>, vector<324x4xf32> -> vector<324x4xf32>
    %c0_9 = arith.constant 0 : index
    %c0_10 = arith.constant 0 : index
    %13 = vector.load %arg5[%c0_9, %c0_10] : memref<1x4xf32, #tpu.memory_space<vmem>>, vector<1x4xf32>
    %14 = vector.broadcast %13 : vector<1x4xf32> to vector<324x4xf32>
    %15 = arith.mulf %12, %14 : vector<324x4xf32>
    %c0_11 = arith.constant 0 : index
    %c0_12 = arith.constant 0 : index
    %16 = vector.load %arg6[%c0_11, %c0_12] : memref<1x4xf32, #tpu.memory_space<vmem>>, vector<1x4xf32>
    %17 = vector.broadcast %16 : vector<1x4xf32> to vector<324x4xf32>
    %18 = arith.addf %15, %17 : vector<324x4xf32>
    %cst_13 = arith.constant 0.000000e+00 : f32
    %19 = vector.broadcast %cst_13 : f32 to vector<324x4xf32>
    %20 = arith.maximumf %18, %19 : vector<324x4xf32>
    %21 = tpu.iota {dimensions = array<i32: 0>} : vector<324x1xi32>
    %c0_i32 = arith.constant 0 : i32
    %22 = vector.broadcast %c0_i32 : i32 to vector<324x1xi32>
    %23 = arith.addi %21, %22 : vector<324x1xi32>
    %24 = arith.sitofp %23 : vector<324x1xi32> to vector<324x1xf32>
    %cst_14 = arith.constant 5.000000e-01 : f32
    %25 = vector.broadcast %cst_14 : f32 to vector<324x1xf32>
    %26 = arith.addf %24, %25 : vector<324x1xf32>
    %cst_15 = arith.constant 0.055555556 : f32
    %27 = vector.broadcast %cst_15 : f32 to vector<324x1xf32>
    %28 = arith.mulf %26, %27 : vector<324x1xf32>
    %29 = arith.fptosi %28 : vector<324x1xf32> to vector<324x1xi32>
    %c18_i32 = arith.constant 18 : i32
    %30 = vector.broadcast %c18_i32 : i32 to vector<324x1xi32>
    %31 = arith.muli %29, %30 : vector<324x1xi32>
    %32 = arith.subi %23, %31 : vector<324x1xi32>
    %c1_i32 = arith.constant 1 : i32
    %33 = vector.broadcast %c1_i32 : i32 to vector<324x1xi32>
    %34 = arith.cmpi sge, %29, %33 : vector<324x1xi32>
    %c16_i32 = arith.constant 16 : i32
    %35 = vector.broadcast %c16_i32 : i32 to vector<324x1xi32>
    %36 = arith.cmpi sle, %29, %35 : vector<324x1xi32>
    %37 = arith.andi %34, %36 : vector<324x1xi1>
    %c1_i32_16 = arith.constant 1 : i32
    %38 = vector.broadcast %c1_i32_16 : i32 to vector<324x1xi32>
    %39 = arith.cmpi sge, %32, %38 : vector<324x1xi32>
    %40 = arith.andi %37, %39 : vector<324x1xi1>
    %c16_i32_17 = arith.constant 16 : i32
    %41 = vector.broadcast %c16_i32_17 : i32 to vector<324x1xi32>
    %42 = arith.cmpi sle, %32, %41 : vector<324x1xi32>
    %43 = arith.andi %40, %42 : vector<324x1xi1>
    %44 = arith.extui %43 : vector<324x1xi1> to vector<324x1xi32>
    %45 = arith.sitofp %44 : vector<324x1xi32> to vector<324x1xf32>
    %46 = vector.broadcast %45 : vector<324x1xf32> to vector<324x4xf32>
    %47 = arith.mulf %20, %46 : vector<324x4xf32>
    %c0_18 = arith.constant 0 : index
    %c0_19 = arith.constant 0 : index
    %c0_20 = arith.constant 0 : index
    %48 = vector.load %arg7[%c0_18, %c0_19, %c0_20] : memref<3x12x4xbf16, #tpu.memory_space<vmem>>, vector<1x12x4xbf16>
    %49 = vector.shape_cast %48 : vector<1x12x4xbf16> to vector<12x4xbf16>
    %50 = vector.extract_strided_slice %47 {offsets = [0, 0], sizes = [286, 4], strides = [1, 1]} : vector<324x4xf32> to vector<286x4xf32>
    %51 = arith.truncf %50 : vector<286x4xf32> to vector<286x4xbf16>
    %52 = vector.extract_strided_slice %49 {offsets = [0, 0], sizes = [4, 4], strides = [1, 1]} : vector<12x4xbf16> to vector<4x4xbf16>
    %cst_21 = arith.constant dense<0.000000e+00> : vector<286x4xf32>
    %53 = tpu.matmul %51, %52, %cst_21 {dimension_numbers = #tpu.dot_dimension_numbers<[1], [0], [0], [1], [0, 0, 1, 1], [], []>} : vector<286x4xbf16>, vector<4x4xbf16>, vector<286x4xf32> -> vector<286x4xf32>
    %54 = vector.extract_strided_slice %47 {offsets = [1, 0], sizes = [286, 4], strides = [1, 1]} : vector<324x4xf32> to vector<286x4xf32>
    %55 = arith.truncf %54 : vector<286x4xf32> to vector<286x4xbf16>
    %56 = vector.extract_strided_slice %49 {offsets = [4, 0], sizes = [4, 4], strides = [1, 1]} : vector<12x4xbf16> to vector<4x4xbf16>
    %cst_22 = arith.constant dense<0.000000e+00> : vector<286x4xf32>
    %57 = tpu.matmul %55, %56, %cst_22 {dimension_numbers = #tpu.dot_dimension_numbers<[1], [0], [0], [1], [0, 0, 1, 1], [], []>} : vector<286x4xbf16>, vector<4x4xbf16>, vector<286x4xf32> -> vector<286x4xf32>
    %58 = arith.addf %53, %57 : vector<286x4xf32>
    %59 = vector.extract_strided_slice %47 {offsets = [2, 0], sizes = [286, 4], strides = [1, 1]} : vector<324x4xf32> to vector<286x4xf32>
    %60 = arith.truncf %59 : vector<286x4xf32> to vector<286x4xbf16>
    %61 = vector.extract_strided_slice %49 {offsets = [8, 0], sizes = [4, 4], strides = [1, 1]} : vector<12x4xbf16> to vector<4x4xbf16>
    %cst_23 = arith.constant dense<0.000000e+00> : vector<286x4xf32>
    %62 = tpu.matmul %60, %61, %cst_23 {dimension_numbers = #tpu.dot_dimension_numbers<[1], [0], [0], [1], [0, 0, 1, 1], [], []>} : vector<286x4xbf16>, vector<4x4xbf16>, vector<286x4xf32> -> vector<286x4xf32>
    %63 = arith.addf %58, %62 : vector<286x4xf32>
    %c1 = arith.constant 1 : index
    %c0_24 = arith.constant 0 : index
    %c0_25 = arith.constant 0 : index
    %64 = vector.load %arg7[%c1, %c0_24, %c0_25] : memref<3x12x4xbf16, #tpu.memory_space<vmem>>, vector<1x12x4xbf16>
    %65 = vector.shape_cast %64 : vector<1x12x4xbf16> to vector<12x4xbf16>
    %66 = vector.extract_strided_slice %47 {offsets = [18, 0], sizes = [286, 4], strides = [1, 1]} : vector<324x4xf32> to vector<286x4xf32>
    %67 = arith.truncf %66 : vector<286x4xf32> to vector<286x4xbf16>
    %68 = vector.extract_strided_slice %65 {offsets = [0, 0], sizes = [4, 4], strides = [1, 1]} : vector<12x4xbf16> to vector<4x4xbf16>
    %cst_26 = arith.constant dense<0.000000e+00> : vector<286x4xf32>
    %69 = tpu.matmul %67, %68, %cst_26 {dimension_numbers = #tpu.dot_dimension_numbers<[1], [0], [0], [1], [0, 0, 1, 1], [], []>} : vector<286x4xbf16>, vector<4x4xbf16>, vector<286x4xf32> -> vector<286x4xf32>
    %70 = arith.addf %63, %69 : vector<286x4xf32>
    %71 = vector.extract_strided_slice %47 {offsets = [19, 0], sizes = [286, 4], strides = [1, 1]} : vector<324x4xf32> to vector<286x4xf32>
    %72 = arith.truncf %71 : vector<286x4xf32> to vector<286x4xbf16>
    %73 = vector.extract_strided_slice %65 {offsets = [4, 0], sizes = [4, 4], strides = [1, 1]} : vector<12x4xbf16> to vector<4x4xbf16>
    %cst_27 = arith.constant dense<0.000000e+00> : vector<286x4xf32>
    %74 = tpu.matmul %72, %73, %cst_27 {dimension_numbers = #tpu.dot_dimension_numbers<[1], [0], [0], [1], [0, 0, 1, 1], [], []>} : vector<286x4xbf16>, vector<4x4xbf16>, vector<286x4xf32> -> vector<286x4xf32>
    %75 = arith.addf %70, %74 : vector<286x4xf32>
    %76 = vector.extract_strided_slice %47 {offsets = [20, 0], sizes = [286, 4], strides = [1, 1]} : vector<324x4xf32> to vector<286x4xf32>
    %77 = arith.truncf %76 : vector<286x4xf32> to vector<286x4xbf16>
    %78 = vector.extract_strided_slice %65 {offsets = [8, 0], sizes = [4, 4], strides = [1, 1]} : vector<12x4xbf16> to vector<4x4xbf16>
    %cst_28 = arith.constant dense<0.000000e+00> : vector<286x4xf32>
    %79 = tpu.matmul %77, %78, %cst_28 {dimension_numbers = #tpu.dot_dimension_numbers<[1], [0], [0], [1], [0, 0, 1, 1], [], []>} : vector<286x4xbf16>, vector<4x4xbf16>, vector<286x4xf32> -> vector<286x4xf32>
    %80 = arith.addf %75, %79 : vector<286x4xf32>
    %c2 = arith.constant 2 : index
    %c0_29 = arith.constant 0 : index
    %c0_30 = arith.constant 0 : index
    %81 = vector.load %arg7[%c2, %c0_29, %c0_30] : memref<3x12x4xbf16, #tpu.memory_space<vmem>>, vector<1x12x4xbf16>
    %82 = vector.shape_cast %81 : vector<1x12x4xbf16> to vector<12x4xbf16>
    %83 = vector.extract_strided_slice %47 {offsets = [36, 0], sizes = [286, 4], strides = [1, 1]} : vector<324x4xf32> to vector<286x4xf32>
    %84 = arith.truncf %83 : vector<286x4xf32> to vector<286x4xbf16>
    %85 = vector.extract_strided_slice %82 {offsets = [0, 0], sizes = [4, 4], strides = [1, 1]} : vector<12x4xbf16> to vector<4x4xbf16>
    %cst_31 = arith.constant dense<0.000000e+00> : vector<286x4xf32>
    %86 = tpu.matmul %84, %85, %cst_31 {dimension_numbers = #tpu.dot_dimension_numbers<[1], [0], [0], [1], [0, 0, 1, 1], [], []>} : vector<286x4xbf16>, vector<4x4xbf16>, vector<286x4xf32> -> vector<286x4xf32>
    %87 = arith.addf %80, %86 : vector<286x4xf32>
    %88 = vector.extract_strided_slice %47 {offsets = [37, 0], sizes = [286, 4], strides = [1, 1]} : vector<324x4xf32> to vector<286x4xf32>
    %89 = arith.truncf %88 : vector<286x4xf32> to vector<286x4xbf16>
    %90 = vector.extract_strided_slice %82 {offsets = [4, 0], sizes = [4, 4], strides = [1, 1]} : vector<12x4xbf16> to vector<4x4xbf16>
    %cst_32 = arith.constant dense<0.000000e+00> : vector<286x4xf32>
    %91 = tpu.matmul %89, %90, %cst_32 {dimension_numbers = #tpu.dot_dimension_numbers<[1], [0], [0], [1], [0, 0, 1, 1], [], []>} : vector<286x4xbf16>, vector<4x4xbf16>, vector<286x4xf32> -> vector<286x4xf32>
    %92 = arith.addf %87, %91 : vector<286x4xf32>
    %93 = vector.extract_strided_slice %47 {offsets = [38, 0], sizes = [286, 4], strides = [1, 1]} : vector<324x4xf32> to vector<286x4xf32>
    %94 = arith.truncf %93 : vector<286x4xf32> to vector<286x4xbf16>
    %95 = vector.extract_strided_slice %82 {offsets = [8, 0], sizes = [4, 4], strides = [1, 1]} : vector<12x4xbf16> to vector<4x4xbf16>
    %cst_33 = arith.constant dense<0.000000e+00> : vector<286x4xf32>
    %96 = tpu.matmul %94, %95, %cst_33 {dimension_numbers = #tpu.dot_dimension_numbers<[1], [0], [0], [1], [0, 0, 1, 1], [], []>} : vector<286x4xbf16>, vector<4x4xbf16>, vector<286x4xf32> -> vector<286x4xf32>
    %97 = arith.addf %92, %96 : vector<286x4xf32>
    %c0_34 = arith.constant 0 : index
    %c0_35 = arith.constant 0 : index
    %98 = vector.load %arg8[%c0_34, %c0_35] : memref<1x4xf32, #tpu.memory_space<vmem>>, vector<1x4xf32>
    %99 = vector.broadcast %98 : vector<1x4xf32> to vector<286x4xf32>
    %100 = arith.mulf %97, %99 : vector<286x4xf32>
    %c0_36 = arith.constant 0 : index
    %c0_37 = arith.constant 0 : index
    %101 = vector.load %arg9[%c0_36, %c0_37] : memref<1x4xf32, #tpu.memory_space<vmem>>, vector<1x4xf32>
    %102 = vector.broadcast %101 : vector<1x4xf32> to vector<286x4xf32>
    %103 = arith.addf %100, %102 : vector<286x4xf32>
    %cst_38 = arith.constant 0.000000e+00 : f32
    %104 = vector.broadcast %cst_38 : f32 to vector<286x4xf32>
    %105 = arith.maximumf %103, %104 : vector<286x4xf32>
    %106 = arith.truncf %105 : vector<286x4xf32> to vector<286x4xbf16>
    %c0_39 = arith.constant 0 : index
    %c0_40 = arith.constant 0 : index
    %107 = vector.load %arg10[%c0_39, %c0_40] : memref<4x8xbf16, #tpu.memory_space<vmem>>, vector<4x8xbf16>
    %cst_41 = arith.constant dense<0.000000e+00> : vector<286x8xf32>
    %108 = tpu.matmul %106, %107, %cst_41 {dimension_numbers = #tpu.dot_dimension_numbers<[1], [0], [0], [1], [0, 0, 1, 1], [], []>} : vector<286x4xbf16>, vector<4x8xbf16>, vector<286x8xf32> -> vector<286x8xf32>
    %c0_42 = arith.constant 0 : index
    %c0_43 = arith.constant 0 : index
    %109 = vector.load %arg11[%c0_42, %c0_43] : memref<1x8xf32, #tpu.memory_space<vmem>>, vector<1x8xf32>
    %110 = vector.broadcast %109 : vector<1x8xf32> to vector<286x8xf32>
    %111 = arith.addf %108, %110 : vector<286x8xf32>
    %112 = tpu.iota {dimensions = array<i32: 0>} : vector<286x1xi32>
    %c19_i32 = arith.constant 19 : i32
    %113 = vector.broadcast %c19_i32 : i32 to vector<286x1xi32>
    %114 = arith.addi %112, %113 : vector<286x1xi32>
    %115 = arith.sitofp %114 : vector<286x1xi32> to vector<286x1xf32>
    %cst_44 = arith.constant 5.000000e-01 : f32
    %116 = vector.broadcast %cst_44 : f32 to vector<286x1xf32>
    %117 = arith.addf %115, %116 : vector<286x1xf32>
    %cst_45 = arith.constant 0.055555556 : f32
    %118 = vector.broadcast %cst_45 : f32 to vector<286x1xf32>
    %119 = arith.mulf %117, %118 : vector<286x1xf32>
    %120 = arith.fptosi %119 : vector<286x1xf32> to vector<286x1xi32>
    %c18_i32_46 = arith.constant 18 : i32
    %121 = vector.broadcast %c18_i32_46 : i32 to vector<286x1xi32>
    %122 = arith.muli %120, %121 : vector<286x1xi32>
    %123 = arith.subi %114, %122 : vector<286x1xi32>
    %c1_i32_47 = arith.constant 1 : i32
    %124 = vector.broadcast %c1_i32_47 : i32 to vector<286x1xi32>
    %125 = arith.cmpi sge, %120, %124 : vector<286x1xi32>
    %c16_i32_48 = arith.constant 16 : i32
    %126 = vector.broadcast %c16_i32_48 : i32 to vector<286x1xi32>
    %127 = arith.cmpi sle, %120, %126 : vector<286x1xi32>
    %128 = arith.andi %125, %127 : vector<286x1xi1>
    %c1_i32_49 = arith.constant 1 : i32
    %129 = vector.broadcast %c1_i32_49 : i32 to vector<286x1xi32>
    %130 = arith.cmpi sge, %123, %129 : vector<286x1xi32>
    %131 = arith.andi %128, %130 : vector<286x1xi1>
    %c16_i32_50 = arith.constant 16 : i32
    %132 = vector.broadcast %c16_i32_50 : i32 to vector<286x1xi32>
    %133 = arith.cmpi sle, %123, %132 : vector<286x1xi32>
    %134 = arith.andi %131, %133 : vector<286x1xi1>
    %135 = arith.extui %134 : vector<286x1xi1> to vector<286x1xi32>
    %136 = arith.sitofp %135 : vector<286x1xi32> to vector<286x1xf32>
    %137 = vector.extract_strided_slice %1 {offsets = [19, 0], sizes = [286, 8], strides = [1, 1]} : vector<324x8xf32> to vector<286x8xf32>
    %138 = arith.addf %111, %137 : vector<286x8xf32>
    %139 = vector.broadcast %136 : vector<286x1xf32> to vector<286x8xf32>
    %140 = arith.mulf %138, %139 : vector<286x8xf32>
    %cst_51 = arith.constant 0.000000e+00 : f32
    %141 = vector.broadcast %cst_51 : f32 to vector<19x8xf32>
    %c0_52 = arith.constant 0 : index
    %c0_53 = arith.constant 0 : index
    %c0_54 = arith.constant 0 : index
    %142 = vector.load %arg12[%c0_52, %c0_53, %c0_54] : memref<1x324x8xf32, #tpu.memory_space<vmem>>, vector<1x19x8xf32>
    %143 = vector.shape_cast %142 : vector<1x19x8xf32> to vector<19x8xf32>
    %144 = vector.shape_cast %141 : vector<19x8xf32> to vector<1x19x8xf32>
    tpu.vector_store %arg12[%c0_52, %c0_53, %c0_54], %144 {strides = array<i32>} : memref<1x324x8xf32, #tpu.memory_space<vmem>>, vector<1x19x8xf32>,
    %c0_55 = arith.constant 0 : index
    %c305 = arith.constant 305 : index
    %c0_56 = arith.constant 0 : index
    %145 = vector.load %arg12[%c0_55, %c305, %c0_56] : memref<1x324x8xf32, #tpu.memory_space<vmem>>, vector<1x19x8xf32>
    %146 = vector.shape_cast %145 : vector<1x19x8xf32> to vector<19x8xf32>
    %147 = vector.shape_cast %141 : vector<19x8xf32> to vector<1x19x8xf32>
    tpu.vector_store %arg12[%c0_55, %c305, %c0_56], %147 {strides = array<i32>} : memref<1x324x8xf32, #tpu.memory_space<vmem>>, vector<1x19x8xf32>,
    %c0_57 = arith.constant 0 : index
    %c19 = arith.constant 19 : index
    %c0_58 = arith.constant 0 : index
    %148 = vector.load %arg12[%c0_57, %c19, %c0_58] : memref<1x324x8xf32, #tpu.memory_space<vmem>>, vector<1x286x8xf32>
    %149 = vector.shape_cast %148 : vector<1x286x8xf32> to vector<286x8xf32>
    %150 = vector.shape_cast %140 : vector<286x8xf32> to vector<1x286x8xf32>
    tpu.vector_store %arg12[%c0_57, %c19, %c0_58], %150 {strides = array<i32>} : memref<1x324x8xf32, #tpu.memory_space<vmem>>, vector<1x286x8xf32>,
    return
  }
  func.func @transform_0(%arg0: i32) -> (i32, i32, i32) {
    %c0_i32 = arith.constant 0 : i32
    %c0_i32_0 = arith.constant 0 : i32
    %c0_i32_1 = arith.constant 0 : i32
    return %arg0, %c0_i32, %c0_i32_0 : i32, i32, i32
  }
  func.func @transform_1(%arg0: i32) -> (i32, i32) {
    %c0_i32 = arith.constant 0 : i32
    %c0_i32_0 = arith.constant 0 : i32
    %c0_i32_1 = arith.constant 0 : i32
    return %c0_i32, %c0_i32_0 : i32, i32
  }
  func.func @transform_2(%arg0: i32) -> (i32, i32) {
    %c0_i32 = arith.constant 0 : i32
    %c0_i32_0 = arith.constant 0 : i32
    %c0_i32_1 = arith.constant 0 : i32
    return %c0_i32, %c0_i32_0 : i32, i32
  }
  func.func @transform_3(%arg0: i32) -> (i32, i32) {
    %c0_i32 = arith.constant 0 : i32
    %c0_i32_0 = arith.constant 0 : i32
    %c0_i32_1 = arith.constant 0 : i32
    return %c0_i32, %c0_i32_0 : i32, i32
  }
  func.func @transform_4(%arg0: i32) -> (i32, i32) {
    %c0_i32 = arith.constant 0 : i32
    %c0_i32_0 = arith.constant 0 : i32
    %c0_i32_1 = arith.constant 0 : i32
    return %c0_i32, %c0_i32_0 : i32, i32
  }
  func.func @transform_5(%arg0: i32) -> (i32, i32) {
    %c0_i32 = arith.constant 0 : i32
    %c0_i32_0 = arith.constant 0 : i32
    %c0_i32_1 = arith.constant 0 : i32
    return %c0_i32, %c0_i32_0 : i32, i32
  }
  func.func @transform_6(%arg0: i32) -> (i32, i32, i32) {
    %c0_i32 = arith.constant 0 : i32
    %c0_i32_0 = arith.constant 0 : i32
    %c0_i32_1 = arith.constant 0 : i32
    %c0_i32_2 = arith.constant 0 : i32
    return %c0_i32, %c0_i32_0, %c0_i32_1 : i32, i32, i32
  }
  func.func @transform_7(%arg0: i32) -> (i32, i32) {
    %c0_i32 = arith.constant 0 : i32
    %c0_i32_0 = arith.constant 0 : i32
    %c0_i32_1 = arith.constant 0 : i32
    return %c0_i32, %c0_i32_0 : i32, i32
  }
  func.func @transform_8(%arg0: i32) -> (i32, i32) {
    %c0_i32 = arith.constant 0 : i32
    %c0_i32_0 = arith.constant 0 : i32
    %c0_i32_1 = arith.constant 0 : i32
    return %c0_i32, %c0_i32_0 : i32, i32
  }
  func.func @transform_9(%arg0: i32) -> (i32, i32) {
    %c0_i32 = arith.constant 0 : i32
    %c0_i32_0 = arith.constant 0 : i32
    %c0_i32_1 = arith.constant 0 : i32
    return %c0_i32, %c0_i32_0 : i32, i32
  }
  func.func @transform_10(%arg0: i32) -> (i32, i32) {
    %c0_i32 = arith.constant 0 : i32
    %c0_i32_0 = arith.constant 0 : i32
    %c0_i32_1 = arith.constant 0 : i32
    return %c0_i32, %c0_i32_0 : i32, i32
  }
  func.func @transform_11(%arg0: i32) -> (i32, i32, i32) {
    %c0_i32 = arith.constant 0 : i32
    %c0_i32_0 = arith.constant 0 : i32
    %c0_i32_1 = arith.constant 0 : i32
    return %arg0, %c0_i32, %c0_i32_0 : i32, i32, i32
  }
}

</mosaic_0001>

<llo_original>
// kernel: hourglass_forward.10
$region0: #{hourglass_forward.10}
  #allocation0 [shape = 'u32[]', space=smem, size = 0x4, offset = 0x4, fixed_abs, tag = 'smem constant byte address 0x4 - core index']
  #allocation1 [shape = 'u32[144,128]{1,0:T(1,128)}', space=vmem, size = 0x12000, scoped, tag = 'internal scratch']
  %s0 = inlined_call_operand.vmem [shape: f32[2,36,8], index: 0, kind: input, shape index: {}]
  %s1 = inlined_call_operand.vmem [shape: f32[1,8], index: 1, kind: input, shape index: {}]
  %s2 = inlined_call_operand.vmem [shape: f32[1,8], index: 2, kind: input, shape index: {}]
  %s3 = inlined_call_operand.vmem [shape: bf16[8,4], index: 3, kind: input, shape index: {}]
  %s4 = inlined_call_operand.vmem [shape: f32[1,4], index: 4, kind: input, shape index: {}]
  %s5 = inlined_call_operand.vmem [shape: f32[1,4], index: 5, kind: input, shape index: {}]
  %s6 = inlined_call_operand.vmem [shape: bf16[3,12,4], index: 6, kind: input, shape index: {}]
  %s7 = inlined_call_operand.vmem [shape: f32[1,4], index: 7, kind: input, shape index: {}]
  %s8 = inlined_call_operand.vmem [shape: f32[1,4], index: 8, kind: input, shape index: {}]
  %s9 = inlined_call_operand.vmem [shape: bf16[4,8], index: 9, kind: input, shape index: {}]
  %s10 = inlined_call_operand.vmem [shape: f32[1,8], index: 10, kind: input, shape index: {}]
  %s11 = inlined_call_operand.vmem [shape: f32[2,36,8], index: 11, kind: output, shape index: {}]
  %s12 = sld [smem:[#allocation0]]
  $region77: #{hourglass_forward.10} parent=0
    _
  %s14 = ssub.s32 1, %s12
  %s15 = scalar_select 0, %s14, %s12
  loop: start=0, step=1, limit=4
  $region2: #{hourglass_forward.10} parent=0 // loop_pre_header
    _
  $region3: #{hourglass_forward.10} parent=0 // loop_header
    %s17 = sphi 0, %s21
    %p18 = scmp.ge.s32.totalorder %s17, 4
    %s27 = sphi 0, %s29
    %s30 = sphi 0, %s27
    %s31 = sphi 0, %s30
    %s47 = sphi 0, %s31
    %s51 = sphi 0, %s51
    %s53 = sphi 0, %s51
    %s54 = sphi 0, %s53
    %s68 = sphi 0, %s54
    %s72 = sphi 0, %s72
    %s74 = sphi 0, %s72
    %s75 = sphi 0, %s74
    %s89 = sphi 0, %s75
    %s93 = sphi 0, %s93
    %s95 = sphi 0, %s93
    %s96 = sphi 0, %s95
    %s110 = sphi 0, %s96
    %s114 = sphi 0, %s114
    %s116 = sphi 0, %s114
    %s117 = sphi 0, %s116
    %s131 = sphi 0, %s117
    %s135 = sphi 0, %s135
    %s137 = sphi 0, %s135
    %s138 = sphi 0, %s137
    %s152 = sphi 0, %s138
    %s156 = sphi 0, %s156
    %s158 = sphi 0, %s156
    %s159 = sphi 0, %s158
    %s173 = sphi 0, %s159
    %s177 = sphi 0, %s177
    %s179 = sphi 0, %s177
    %s180 = sphi 0, %s179
    %s194 = sphi 0, %s180
    %s198 = sphi 0, %s198
    %s200 = sphi 0, %s198
    %s201 = sphi 0, %s200
    %s215 = sphi 0, %s201
    %s219 = sphi 0, %s219
    %s221 = sphi 0, %s219
    %s222 = sphi 0, %s221
    %s236 = sphi 0, %s222
    %s240 = sphi 0, %s240
    %s242 = sphi 0, %s240
    %s243 = sphi 0, %s242
    %s257 = sphi 0, %s243
    %s263 = sphi 0, %s265
    %s266 = sphi 0, %s263
    %s267 = sphi 0, %s266
    %s283 = sphi 0, %s267
  $region4: #{hourglass_forward.10} parent=0 // loop_header_branch
    %20 = sbr.rel (%p18) target = $region8
  $region5: #{hourglass_forward.10} parent=0 // loop_body
    %s22 = ssub.s32 %s17, 1
    %s23 = ssub.s32 %s17, 2
    %s24 = sadd.s32 %s17, 1
    %s25 = ssub.s32 %s17, %s24
    %p26 = scmp.eq.s32.totalorder %s25, 0
    %s28 = sadd.s32 %s27, 1
    %s29 = scalar_select %p26, %s27, %s28
    %p32 = pneg %p26
    %p33 = scmp.eq.s32.totalorder %s17, 1
    %p34 = por %p32, %p33
    %p35 = scmp.ne.s32.totalorder %s27, %s30
    %p36 = scmp.eq.s32.totalorder %s17, 0
    %p37 = por %p35, %p36
    %p38 = scmp.ne.s32.totalorder %s27, %s30
    %p39 = scmp.eq.s32.totalorder %s22, 1
    %p40 = por %p38, %p39
    %p41 = scmp.ne.s32.totalorder %s30, %s31
    %p42 = scmp.eq.s32.totalorder %s22, 0
    %p43 = por %p41, %p42
    %p44 = scmp.ne.s32.totalorder %s30, %s31
    %p45 = scmp.eq.s32.totalorder %s23, 1
    %p46 = por %p44, %p45
    %p48 = scmp.ne.s32.totalorder %s31, %s47
    %p49 = scmp.eq.s32.totalorder %s23, 0
    %p50 = por %p48, %p49
    %s52 = sadd.s32 %s51, 1
    %p55 = scmp.eq.s32.totalorder %s17, 1
    %p56 = scmp.ne.s32.totalorder %s51, %s53
    %p57 = scmp.eq.s32.totalorder %s17, 0
    %p58 = por %p56, %p57
    %p59 = scmp.ne.s32.totalorder %s51, %s53
    %p60 = scmp.eq.s32.totalorder %s22, 1
    %p61 = por %p59, %p60
    %p62 = scmp.ne.s32.totalorder %s53, %s54
    %p63 = scmp.eq.s32.totalorder %s22, 0
    %p64 = por %p62, %p63
    %p65 = scmp.ne.s32.totalorder %s53, %s54
    %p66 = scmp.eq.s32.totalorder %s23, 1
    %p67 = por %p65, %p66
    %p69 = scmp.ne.s32.totalorder %s54, %s68
    %p70 = scmp.eq.s32.totalorder %s23, 0
    %p71 = por %p69, %p70
    %s73 = sadd.s32 %s72, 1
    %p76 = scmp.eq.s32.totalorder %s17, 1
    %p77 = scmp.ne.s32.totalorder %s72, %s74
    %p78 = scmp.eq.s32.totalorder %s17, 0
    %p79 = por %p77, %p78
    %p80 = scmp.ne.s32.totalorder %s72, %s74
    %p81 = scmp.eq.s32.totalorder %s22, 1
    %p82 = por %p80, %p81
    %p83 = scmp.ne.s32.totalorder %s74, %s75
    %p84 = scmp.eq.s32.totalorder %s22, 0
    %p85 = por %p83, %p84
    %p86 = scmp.ne.s32.totalorder %s74, %s75
    %p87 = scmp.eq.s32.totalorder %s23, 1
    %p88 = por %p86, %p87
    %p90 = scmp.ne.s32.totalorder %s75, %s89
    %p91 = scmp.eq.s32.totalorder %s23, 0
    %p92 = por %p90, %p91
    %s94 = sadd.s32 %s93, 1
    %p97 = scmp.eq.s32.totalorder %s17, 1
    %p98 = scmp.ne.s32.totalorder %s93, %s95
    %p99 = scmp.eq.s32.totalorder %s17, 0
    %p100 = por %p98, %p99
    %p101 = scmp.ne.s32.totalorder %s93, %s95
    %p102 = scmp.eq.s32.totalorder %s22, 1
    %p103 = por %p101, %p102
    %p104 = scmp.ne.s32.totalorder %s95, %s96
    %p105 = scmp.eq.s32.totalorder %s22, 0
    %p106 = por %p104, %p105
    %p107 = scmp.ne.s32.totalorder %s95, %s96
    %p108 = scmp.eq.s32.totalorder %s23, 1
    %p109 = por %p107, %p108
    %p111 = scmp.ne.s32.totalorder %s96, %s110
    %p112 = scmp.eq.s32.totalorder %s23, 0
    %p113 = por %p111, %p112
    %s115 = sadd.s32 %s114, 1
    %p118 = scmp.eq.s32.totalorder %s17, 1
    %p119 = scmp.ne.s32.totalorder %s114, %s116
    %p120 = scmp.eq.s32.totalorder %s17, 0
    %p121 = por %p119, %p120
    %p122 = scmp.ne.s32.totalorder %s114, %s116
    %p123 = scmp.eq.s32.totalorder %s22, 1
    %p124 = por %p122, %p123
    %p125 = scmp.ne.s32.totalorder %s116, %s117
    %p126 = scmp.eq.s32.totalorder %s22, 0
    %p127 = por %p125, %p126
    %p128 = scmp.ne.s32.totalorder %s116, %s117
    %p129 = scmp.eq.s32.totalorder %s23, 1
    %p130 = por %p128, %p129
    %p132 = scmp.ne.s32.totalorder %s117, %s131
    %p133 = scmp.eq.s32.totalorder %s23, 0
    %p134 = por %p132, %p133
    %s136 = sadd.s32 %s135, 1
    %p139 = scmp.eq.s32.totalorder %s17, 1
    %p140 = scmp.ne.s32.totalorder %s135, %s137
    %p141 = scmp.eq.s32.totalorder %s17, 0
    %p142 = por %p140, %p141
    %p143 = scmp.ne.s32.totalorder %s135, %s137
    %p144 = scmp.eq.s32.totalorder %s22, 1
    %p145 = por %p143, %p144
    %p146 = scmp.ne.s32.totalorder %s137, %s138
    %p147 = scmp.eq.s32.totalorder %s22, 0
    %p148 = por %p146, %p147
    %p149 = scmp.ne.s32.totalorder %s137, %s138
    %p150 = scmp.eq.s32.totalorder %s23, 1
    %p151 = por %p149, %p150
    %p153 = scmp.ne.s32.totalorder %s138, %s152
    %p154 = scmp.eq.s32.totalorder %s23, 0
    %p155 = por %p153, %p154
    %s157 = sadd.s32 %s156, 1
    %p160 = scmp.eq.s32.totalorder %s17, 1
    %p161 = scmp.ne.s32.totalorder %s156, %s158
    %p162 = scmp.eq.s32.totalorder %s17, 0
    %p163 = por %p161, %p162
    %p164 = scmp.ne.s32.totalorder %s156, %s158
    %p165 = scmp.eq.s32.totalorder %s22, 1
    %p166 = por %p164, %p165
    %p167 = scmp.ne.s32.totalorder %s158, %s159
    %p168 = scmp.eq.s32.totalorder %s22, 0
    %p169 = por %p167, %p168
    %p170 = scmp.ne.s32.totalorder %s158, %s159
    %p171 = scmp.eq.s32.totalorder %s23, 1
    %p172 = por %p170, %p171
    %p174 = scmp.ne.s32.totalorder %s159, %s173
    %p175 = scmp.eq.s32.totalorder %s23, 0
    %p176 = por %p174, %p175
    %s178 = sadd.s32 %s177, 1
    %p181 = scmp.eq.s32.totalorder %s17, 1
    %p182 = scmp.ne.s32.totalorder %s177, %s179
    %p183 = scmp.eq.s32.totalorder %s17, 0
    %p184 = por %p182, %p183
    %p185 = scmp.ne.s32.totalorder %s177, %s179
    %p186 = scmp.eq.s32.totalorder %s22, 1
    %p187 = por %p185, %p186
    %p188 = scmp.ne.s32.totalorder %s179, %s180
    %p189 = scmp.eq.s32.totalorder %s22, 0
    %p190 = por %p188, %p189
    %p191 = scmp.ne.s32.totalorder %s179, %s180
    %p192 = scmp.eq.s32.totalorder %s23, 1
    %p193 = por %p191, %p192
    %p195 = scmp.ne.s32.totalorder %s180, %s194
    %p196 = scmp.eq.s32.totalorder %s23, 0
    %p197 = por %p195, %p196
    %s199 = sadd.s32 %s198, 1
    %p202 = scmp.eq.s32.totalorder %s17, 1
    %p203 = scmp.ne.s32.totalorder %s198, %s200
    %p204 = scmp.eq.s32.totalorder %s17, 0
    %p205 = por %p203, %p204
    %p206 = scmp.ne.s32.totalorder %s198, %s200
    %p207 = scmp.eq.s32.totalorder %s22, 1
    %p208 = por %p206, %p207
    %p209 = scmp.ne.s32.totalorder %s200, %s201
    %p210 = scmp.eq.s32.totalorder %s22, 0
    %p211 = por %p209, %p210
    %p212 = scmp.ne.s32.totalorder %s200, %s201
    %p213 = scmp.eq.s32.totalorder %s23, 1
    %p214 = por %p212, %p213
    %p216 = scmp.ne.s32.totalorder %s201, %s215
    %p217 = scmp.eq.s32.totalorder %s23, 0
    %p218 = por %p216, %p217
    %s220 = sadd.s32 %s219, 1
    %p223 = scmp.eq.s32.totalorder %s17, 1
    %p224 = scmp.ne.s32.totalorder %s219, %s221
    %p225 = scmp.eq.s32.totalorder %s17, 0
    %p226 = por %p224, %p225
    %p227 = scmp.ne.s32.totalorder %s219, %s221
    %p228 = scmp.eq.s32.totalorder %s22, 1
    %p229 = por %p227, %p228
    %p230 = scmp.ne.s32.totalorder %s221, %s222
    %p231 = scmp.eq.s32.totalorder %s22, 0
    %p232 = por %p230, %p231
    %p233 = scmp.ne.s32.totalorder %s221, %s222
    %p234 = scmp.eq.s32.totalorder %s23, 1
    %p235 = por %p233, %p234
    %p237 = scmp.ne.s32.totalorder %s222, %s236
    %p238 = scmp.eq.s32.totalorder %s23, 0
    %p239 = por %p237, %p238
    %s241 = sadd.s32 %s240, 1
    %p244 = scmp.eq.s32.totalorder %s17, 1
    %p245 = scmp.ne.s32.totalorder %s240, %s242
    %p246 = scmp.eq.s32.totalorder %s17, 0
    %p247 = por %p245, %p246
    %p248 = scmp.ne.s32.totalorder %s240, %s242
    %p249 = scmp.eq.s32.totalorder %s22, 1
    %p250 = por %p248, %p249
    %p251 = scmp.ne.s32.totalorder %s242, %s243
    %p252 = scmp.eq.s32.totalorder %s22, 0
    %p253 = por %p251, %p252
    %p254 = scmp.ne.s32.totalorder %s242, %s243
    %p255 = scmp.eq.s32.totalorder %s23, 1
    %p256 = por %p254, %p255
    %p258 = scmp.ne.s32.totalorder %s243, %s257
    %p259 = scmp.eq.s32.totalorder %s23, 0
    %p260 = por %p258, %p259
    %s261 = ssub.s32 %s17, %s24
    %p262 = scmp.eq.s32.totalorder %s261, 0
    %s264 = sadd.s32 %s263, 1
    %s265 = scalar_select %p262, %s263, %s264
    %p268 = pneg %p262
    %p269 = scmp.eq.s32.totalorder %s17, 1
    %p270 = por %p268, %p269
    %p271 = scmp.ne.s32.totalorder %s263, %s266
    %p272 = scmp.eq.s32.totalorder %s17, 0
    %p273 = por %p271, %p272
    %p274 = scmp.ne.s32.totalorder %s263, %s266
    %p275 = scmp.eq.s32.totalorder %s22, 1
    %p276 = por %p274, %p275
    %p277 = scmp.ne.s32.totalorder %s266, %s267
    %p278 = scmp.eq.s32.totalorder %s22, 0
    %p279 = por %p277, %p278
    %p280 = scmp.ne.s32.totalorder %s266, %s267
    %p281 = scmp.eq.s32.totalorder %s23, 1
    %p282 = por %p280, %p281
    %p284 = scmp.ne.s32.totalorder %s267, %s283
    %p285 = scmp.eq.s32.totalorder %s23, 0
    %p286 = por %p284, %p285
    %p287 = scmp.le.s32.totalorder 1, %s17
    %p288 = scmp.lt.s32.totalorder %s17, 3
    %p289 = pnand %p287, %p288
    %p290 = pneg %p289
    // Predicated region
    $region9: #{hourglass_forward.10} parent=5 // pred_check
      _
    $region10: #{hourglass_forward.10} parent=5 // pred_check_branch
      %292 = sbr.rel (%p289) target = $region12
    $region11: #{hourglass_forward.10} parent=5 // pred_region
      %s293 = ssub.s32 %s17, 1
      // Predicated region
      $region13: #{hourglass_forward.10} parent=11 // pred_check
        %p294 = pneg %p64
      $region14: #{hourglass_forward.10} parent=11 // pred_check_branch
        %296 = sbr.rel (%p294) target = $region16
      $region15: #{hourglass_forward.10} parent=11 // pred_region
        _
      $region16: #{hourglass_forward.10} parent=11 // pred_fallthru
        _
      // Predicated region
      $region17: #{hourglass_forward.10} parent=11 // pred_check
        %p297 = pneg %p85
      $region18: #{hourglass_forward.10} parent=11 // pred_check_branch
        %299 = sbr.rel (%p297) target = $region20
      $region19: #{hourglass_forward.10} parent=11 // pred_region
        _
      $region20: #{hourglass_forward.10} parent=11 // pred_fallthru
        _
      // Predicated region
      $region21: #{hourglass_forward.10} parent=11 // pred_check
        %p300 = pneg %p106
      $region22: #{hourglass_forward.10} parent=11 // pred_check_branch
        %302 = sbr.rel (%p300) target = $region24
      $region23: #{hourglass_forward.10} parent=11 // pred_region
        _
      $region24: #{hourglass_forward.10} parent=11 // pred_fallthru
        _
      // Predicated region
      $region25: #{hourglass_forward.10} parent=11 // pred_check
        %p303 = pneg %p127
      $region26: #{hourglass_forward.10} parent=11 // pred_check_branch
        %305 = sbr.rel (%p303) target = $region28
      $region27: #{hourglass_forward.10} parent=11 // pred_region
        _
      $region28: #{hourglass_forward.10} parent=11 // pred_fallthru
        _
      // Predicated region
      $region29: #{hourglass_forward.10} parent=11 // pred_check
        %p306 = pneg %p148
      $region30: #{hourglass_forward.10} parent=11 // pred_check_branch
        %308 = sbr.rel (%p306) target = $region32
      $region31: #{hourglass_forward.10} parent=11 // pred_region
        _
      $region32: #{hourglass_forward.10} parent=11 // pred_fallthru
        _
      // Predicated region
      $region33: #{hourglass_forward.10} parent=11 // pred_check
        %p309 = pneg %p169
      $region34: #{hourglass_forward.10} parent=11 // pred_check_branch
        %311 = sbr.rel (%p309) target = $region36
      $region35: #{hourglass_forward.10} parent=11 // pred_region
        _
      $region36: #{hourglass_forward.10} parent=11 // pred_fallthru
        _
      // Predicated region
      $region37: #{hourglass_forward.10} parent=11 // pred_check
        %p312 = pneg %p190
      $region38: #{hourglass_forward.10} parent=11 // pred_check_branch
        %314 = sbr.rel (%p312) target = $region40
      $region39: #{hourglass_forward.10} parent=11 // pred_region
        _
      $region40: #{hourglass_forward.10} parent=11 // pred_fallthru
        _
      // Predicated region
      $region41: #{hourglass_forward.10} parent=11 // pred_check
        %p315 = pneg %p211
      $region42: #{hourglass_forward.10} parent=11 // pred_check_branch
        %317 = sbr.rel (%p315) target = $region44
      $region43: #{hourglass_forward.10} parent=11 // pred_region
        _
      $region44: #{hourglass_forward.10} parent=11 // pred_fallthru
        _
      // Predicated region
      $region45: #{hourglass_forward.10} parent=11 // pred_check
        %p318 = pneg %p232
      $region46: #{hourglass_forward.10} parent=11 // pred_check_branch
        %320 = sbr.rel (%p318) target = $region48
      $region47: #{hourglass_forward.10} parent=11 // pred_region
        _
      $region48: #{hourglass_forward.10} parent=11 // pred_fallthru
        _
      // Predicated region
      $region49: #{hourglass_forward.10} parent=11 // pred_check
        %p321 = pneg %p253
      $region50: #{hourglass_forward.10} parent=11 // pred_check_branch
        %323 = sbr.rel (%p321) target = $region52
      $region51: #{hourglass_forward.10} parent=11 // pred_region
        _
      $region52: #{hourglass_forward.10} parent=11 // pred_fallthru
        _
    $region12: #{hourglass_forward.10} parent=5 // pred_fallthru
      _
    %p324 = scmp.lt.s32.totalorder %s17, 2
    // Predicated region
    $region53: #{hourglass_forward.10} parent=5 // pred_check
      %p325 = pneg %p324
    $region54: #{hourglass_forward.10} parent=5 // pred_check_branch
      %327 = sbr.rel (%p325) target = $region56
    $region55: #{hourglass_forward.10} parent=5 // pred_region
      // Predicated region
      $region57: #{hourglass_forward.10} parent=55 // pred_check
        %p328 = pneg %p37
      $region58: #{hourglass_forward.10} parent=55 // pred_check_branch
        %330 = sbr.rel (%p328) target = $region60
      $region59: #{hourglass_forward.10} parent=55 // pred_region
        %p331 = scmp.lt.s32.totalorder %s17, 1
        %s332 = scalar_select %p331, %s17, 1
        %s333 = smul.addr %s332, 5
        %s334 = smul.addr %s333, 8
        %s335 = scalar_lea.vmem %s0, %s334
      $region60: #{hourglass_forward.10} parent=55 // pred_fallthru
        _
    $region56: #{hourglass_forward.10} parent=5 // pred_fallthru
      _
    %p336 = scmp.le.s32.totalorder 1, %s17
    %p337 = scmp.lt.s32.totalorder %s17, 3
    %p338 = pnand %p336, %p337
    %p339 = pneg %p338
    // Predicated region
    $region61: #{hourglass_forward.10} parent=5 // pred_check
      _
    $region62: #{hourglass_forward.10} parent=5 // pred_check_branch
      %341 = sbr.rel (%p338) target = $region64
    $region63: #{hourglass_forward.10} parent=5 // pred_region
      %s342 = ssub.s32 %s17, 1
      %p343 = scmp.lt.s32.totalorder %s22, 1
      %s344 = scalar_select %p343, %s22, 1
      %s345 = smul.addr %s344, 5
      %s346 = smul.addr %s345, 8
      %s347 = scalar_lea.vmem %s0, %s346
      %p348 = pneg %p43
      %p349 = pneg %p40
      %p350 = pneg %p64
      %p351 = pneg %p61
      %p352 = pneg %p85
      %p353 = pneg %p82
      %p354 = pneg %p106
      %p355 = pneg %p103
      %p356 = pneg %p127
      %p357 = pneg %p124
      %p358 = pneg %p148
      %p359 = pneg %p145
      %p360 = pneg %p169
      %p361 = pneg %p166
      %p362 = pneg %p190
      %p363 = pneg %p187
      %p364 = pneg %p211
      %p365 = pneg %p208
      %p366 = pneg %p232
      %p367 = pneg %p229
      %p368 = pneg %p253
      %p369 = pneg %p250
      %p370 = pneg %p279
      %p371 = pneg %p276
      %p372 = scmp.lt.s32.totalorder %s22, 1
      %s373 = scalar_select %p372, %s22, 1
      %s374 = smul.addr %s373, 5
      %s375 = smul.addr %s374, 8
      %s376 = scalar_lea.vmem %s11, %s375
      %p377 = scmp.lt.s32.totalorder %s22, 1
      %s378 = scalar_select %p377, %s22, 1
      %s379 = smul.addr %s378, 5
      %s380 = smul.addr %s379, 8
      %s381 = scalar_lea.vmem %s0, %s380
      %p382 = scmp.lt.s32.totalorder %s22, 1
      %s383 = scalar_select %p382, %s22, 1
      %s384 = smul.addr %s383, 5
      %s385 = smul.addr %s384, 8
      %s386 = scalar_lea.vmem %s11, %s385
      %v388 = vld [vmem:[%s381] sm:$0xff]
      %v389 = vld [vmem:[%s381 + $0x8] sm:$0xff]
      %v390 = vld [vmem:[%s381 + $0x10] sm:$0xff]
      %v391 = vld [vmem:[%s381 + $0x18] sm:$0xff]
      %v392 = vld [vmem:[%s381 + $0x20] sm:$0xf]
      %v393 = vld [vmem:[%s1] sm:$0x1]
      %v395 = vlaneseq
      %v396 = vshrl.u32 %v395, 7
      %v397 = vsub.s32 0, %v396
      %v398 = vrot.slane %v393, %v397
      %v400 = vmul.f32 %v388, %v398
      %v401 = vmul.f32 %v389, %v398
      %v402 = vmul.f32 %v390, %v398
      %v403 = vmul.f32 %v391, %v398
      %v404 = vmul.f32 %v392, %v398
      %v405 = vld [vmem:[%s2] sm:$0x1]
      %v407 = vlaneseq
      %v408 = vshrl.u32 %v407, 7
      %v409 = vsub.s32 0, %v408
      %v410 = vrot.slane %v405, %v409
      %v412 = vadd.f32 %v400, %v410
      %v413 = vadd.f32 %v401, %v410
      %v414 = vadd.f32 %v402, %v410
      %v415 = vadd.f32 %v403, %v410
      %v416 = vadd.f32 %v404, %v410
      %v417 = vmax.f32 %v412, 0.0
      %v418 = vmax.f32 %v413, 0.0
      %v419 = vmax.f32 %v414, 0.0
      %v420 = vmax.f32 %v415, 0.0
      %v421 = vmax.f32 %v416, 0.0
      %v422 = vpack.c.bf16 %v418, %v417
      %v423 = vpack.c.bf16 %v420, %v419
      %v424 = vpack.c.bf16 %v421, %v421
      %v425 = vld [vmem:[%s3] sm:$0xf]
      %vm426 = vcmask 64512
      %v428 = vsel %vm426, %v422, 0
      %v431 = vsel %vm426, %v423, 0
      %v434 = vsel %vm426, %v424, 0
      %vm436 = vcmask 1043456
      %v438 = vsel %vm436, %v425, 0
      %440 = vmatprep.subr.bf16.mxu0 0
      %441 = vmatpush1.bf16.msra.mxu0 0
      %442 = vmatprep.subr.bf16.mxu0 0
      %443 = vmatpush1.bf16.msra.mxu0 0
      %444 = vmatprep.subr.bf16.mxu0 0
      %445 = vmatpush1.bf16.msra.mxu0 0
      %446 = vmatprep.subr.bf16.mxu0 0
      %447 = vmatpush1.bf16.msra.mxu0 0
      %448 = vmatprep.subr.bf16.mxu0 0
      %449 = vmatpush1.bf16.msra.mxu0 0
      %450 = vmatprep.subr.bf16.mxu0 0
      %451 = vmatpush1.bf16.msra.mxu0 0
      %452 = vmatprep.subr.bf16.mxu0 0
      %453 = vmatpush1.bf16.msra.mxu0 0
      %454 = vmatprep.subr.bf16.mxu0 0
      %455 = vmatpush1.bf16.msra.mxu0 %v438
      %456 = vmatprep.subr.bf16.mxu0 0
      %457 = vmatpush2.bf16.msra.mxu0 0
      %458 = vmatprep.subr.bf16.mxu0 0
      %459 = vmatpush2.bf16.msra.mxu0 0
      %460 = vmatprep.subr.bf16.mxu0 0
      %461 = vmatpush2.bf16.msra.mxu0 0
      %462 = vmatprep.subr.bf16.mxu0 0
      %463 = vmatpush2.bf16.msra.mxu0 0
      %464 = vmatprep.subr.bf16.mxu0 0
      %465 = vmatpush2.bf16.msra.mxu0 0
      %466 = vmatprep.subr.bf16.mxu0 0
      %467 = vmatpush2.bf16.msra.mxu0 0
      %468 = vmatprep.subr.bf16.mxu0 0
      %469 = vmatpush2.bf16.msra.mxu0 0
      %470 = vmatprep.subr.bf16.mxu0 0
      %471 = vmatpush2.bf16.msra.mxu0 0
      %472 = vmatprep.mubr.bf16.mxu0 0
      %473 = vmatmul.mubr.bf16.gmra.mxu0 %v428
      %v474 = vpop.f32.mrf.mxu0
      %v475 = vadd.f32 0.0, %v474
      %v476 = vpop.f32.mrf.mxu0
      %v477 = vpop.f32.mrf.mxu0
      %v478 = vadd.f32 0.0, %v477
      %v479 = vpop.f32.mrf.mxu0
      %480 = vmatprep.mubr.bf16.mxu0 0
      %481 = vmatmul.mubr.bf16.gmra.mxu0 %v431
      %v482 = vpop.f32.mrf.mxu0
      %v483 = vadd.f32 0.0, %v482
      %v484 = vpop.f32.mrf.mxu0
      %v485 = vpop.f32.mrf.mxu0
      %v486 = vadd.f32 0.0, %v485
      %v487 = vpop.f32.mrf.mxu0
      %488 = vmatprep.mubr.bf16.mxu0 0
      %489 = vmatmul.mubr.bf16.gmra.mxu0 %v434
      %v490 = vpop.f32.mrf.mxu0
      %v491 = vadd.f32 0.0, %v490
      %v492 = vpop.f32.mrf.mxu0
      %v493 = vpop.f32.mrf.mxu0
      %v494 = vpop.f32.mrf.mxu0
      %495 = vdwg.mxu0
      %v496 = vld [vmem:[%s4] sm:$0x1]
      %v498 = vlaneseq
      %v499 = vshrl.u32 %v498, 7
      %v500 = vsub.s32 0, %v499
      %v501 = vrot.slane %v496, %v500
      %v503 = vmul.f32 %v475, %v501
      %v504 = vmul.f32 %v478, %v501
      %v505 = vmul.f32 %v483, %v501
      %v506 = vmul.f32 %v486, %v501
      %v507 = vmul.f32 %v491, %v501
      %v508 = vld [vmem:[%s5] sm:$0x1]
      %v510 = vlaneseq
      %v511 = vshrl.u32 %v510, 7
      %v512 = vsub.s32 0, %v511
      %v513 = vrot.slane %v508, %v512
      %v515 = vadd.f32 %v503, %v513
      %v516 = vadd.f32 %v504, %v513
      %v517 = vadd.f32 %v505, %v513
      %v518 = vadd.f32 %v506, %v513
      %v519 = vadd.f32 %v507, %v513
      %v520 = vmax.f32 %v515, 0.0
      %v521 = vmax.f32 %v516, 0.0
      %v522 = vmax.f32 %v517, 0.0
      %v523 = vmax.f32 %v518, 0.0
      %v524 = vmax.f32 %v519, 0.0
      %v525 = vlaneseq
      %v526 = vshrl.u32 %v525, 7
      %v527 = vadd.s32 %v526, 8
      %v528 = vadd.s32 %v526, 16
      %v529 = vadd.s32 %v526, 24
      %v530 = vadd.s32 %v526, 32
      %v531 = vcvt.s32.f32 %v526
      %v532 = vcvt.s32.f32 %v527
      %v533 = vcvt.s32.f32 %v528
      %v534 = vcvt.s32.f32 %v529
      %v535 = vcvt.s32.f32 %v530
      %v536 = vadd.f32 %v531, 0.5
      %v537 = vadd.f32 %v532, 0.5
      %v538 = vadd.f32 %v533, 0.5
      %v539 = vadd.f32 %v534, 0.5
      %v540 = vadd.f32 %v535, 0.5
      %v541 = vmul.f32 %v536, 0.16666667
      %v542 = vmul.f32 %v537, 0.16666667
      %v543 = vmul.f32 %v538, 0.16666667
      %v544 = vmul.f32 %v539, 0.16666667
      %v545 = vmul.f32 %v540, 0.16666667
      %v546 = vcvt.f32.s32.to.zero.pseudo %v541
      %v547 = vcvt.f32.s32.to.zero.pseudo %v542
      %v548 = vcvt.f32.s32.to.zero.pseudo %v543
      %v549 = vcvt.f32.s32.to.zero.pseudo %v544
      %v550 = vcvt.f32.s32.to.zero.pseudo %v545
      %v551 = vmul.u32 %v546, 6
      %v552 = vmul.u32 %v547, 6
      %v553 = vmul.u32 %v548, 6
      %v554 = vmul.u32 %v549, 6
      %v555 = vmul.u32 %v550, 6
      %v556 = vsub.s32 %v526, %v551
      %v557 = vsub.s32 %v527, %v552
      %v558 = vsub.s32 %v528, %v553
      %v559 = vsub.s32 %v529, %v554
      %v560 = vsub.s32 %v530, %v555
      %vm561 = vcmp.ge.s32.totalorder %v546, 1
      %vm562 = vcmp.ge.s32.totalorder %v547, 1
      %vm563 = vcmp.ge.s32.totalorder %v548, 1
      %vm564 = vcmp.ge.s32.totalorder %v549, 1
      %vm565 = vcmp.ge.s32.totalorder %v550, 1
      %vm566 = vcmp.le.s32.totalorder %v546, 4
      %vm567 = vcmp.le.s32.totalorder %v547, 4
      %vm568 = vcmp.le.s32.totalorder %v548, 4
      %vm569 = vcmp.le.s32.totalorder %v549, 4
      %vm570 = vcmp.le.s32.totalorder %v550, 4
      %vm571 = vmand %vm561, %vm566
      %vm572 = vmand %vm562, %vm567
      %vm573 = vmand %vm563, %vm568
      %vm574 = vmand %vm564, %vm569
      %vm575 = vmand %vm565, %vm570
      %vm576 = vcmp.ge.s32.totalorder %v556, 1
      %vm577 = vcmp.ge.s32.totalorder %v557, 1
      %vm578 = vcmp.ge.s32.totalorder %v558, 1
      %vm579 = vcmp.ge.s32.totalorder %v559, 1
      %vm580 = vcmp.ge.s32.totalorder %v560, 1
      %vm581 = vmand %vm571, %vm576
      %vm582 = vmand %vm572, %vm577
      %vm583 = vmand %vm573, %vm578
      %vm584 = vmand %vm574, %vm579
      %vm585 = vmand %vm575, %vm580
      %vm586 = vcmp.le.s32.totalorder %v556, 4
      %vm587 = vcmp.le.s32.totalorder %v557, 4
      %vm588 = vcmp.le.s32.totalorder %v558, 4
      %vm589 = vcmp.le.s32.totalorder %v559, 4
      %vm590 = vcmp.le.s32.totalorder %v560, 4
      %vm591 = vmand %vm581, %vm586
      %vm592 = vmand %vm582, %vm587
      %vm593 = vmand %vm583, %vm588
      %vm594 = vmand %vm584, %vm589
      %vm595 = vmand %vm585, %vm590
      %v596 = vsel %vm591, 1, 0
      %v597 = vsel %vm592, 1, 0
      %v598 = vsel %vm593, 1, 0
      %v599 = vsel %vm594, 1, 0
      %v600 = vsel %vm595, 1, 0
      %v601 = vcvt.s32.f32 %v596
      %v602 = vcvt.s32.f32 %v597
      %v603 = vcvt.s32.f32 %v598
      %v604 = vcvt.s32.f32 %v599
      %v605 = vcvt.s32.f32 %v600
      %v606 = vmul.f32 %v520, %v601
      %v607 = vmul.f32 %v521, %v602
      %v608 = vmul.f32 %v522, %v603
      %v609 = vmul.f32 %v523, %v604
      %v610 = vmul.f32 %v524, %v605
      %v611 = vld [vmem:[%s6] sm:$0xf]
      %v612 = vld [vmem:[%s6 + $0x4] sm:$0x3]
      %v613 = vpack.c.bf16 %v607, %v606
      %v614 = vpack.c.bf16 %v608, %v608
      %vm615 = vsmask.f32 7424
      %v617 = vshrl.u32 %v613, 16
      %v619 = vshll.u32 %v613, 16
      %v621 = vrot.slane %v619, 1
      %v622 = vor.u32 %v617, %v621
      %v624 = vshll.u32 %v614, 16
      %v626 = vrot.slane %v624, 1
      %v627 = vsel %vm615, %v622, %v626
      %v628 = vshrl.u32 %v614, 16
      %v630 = vor.u32 %v628, %v626
      %v632 = vunpack.c.l.b16 %v611
      %v633 = vpack.c.b16 %v632, %v632
      %v634 = vrot.slane %v633, 2
      %vm635 = vcmask 31744
      %v637 = vsel %vm635, %v627, 0
      %v640 = vsel %vm635, %v630, 0
      %vm642 = vcmask 1041408
      %v644 = vsel %vm642, %v634, 0
      %646 = vmatprep.subr.bf16.mxu0 0
      %647 = vmatpush1.bf16.msra.mxu0 0
      %648 = vmatprep.subr.bf16.mxu0 0
      %649 = vmatpush1.bf16.msra.mxu0 0
      %650 = vmatprep.subr.bf16.mxu0 0
      %651 = vmatpush1.bf16.msra.mxu0 0
      %652 = vmatprep.subr.bf16.mxu0 0
      %653 = vmatpush1.bf16.msra.mxu0 0
      %654 = vmatprep.subr.bf16.mxu0 0
      %655 = vmatpush1.bf16.msra.mxu0 0
      %656 = vmatprep.subr.bf16.mxu0 0
      %657 = vmatpush1.bf16.msra.mxu0 0
      %658 = vmatprep.subr.bf16.mxu0 0
      %659 = vmatpush1.bf16.msra.mxu0 0
      %660 = vmatprep.subr.bf16.mxu0 0
      %661 = vmatpush1.bf16.msra.mxu0 %v644
      %662 = vmatprep.subr.bf16.mxu0 0
      %663 = vmatpush2.bf16.msra.mxu0 0
      %664 = vmatprep.subr.bf16.mxu0 0
      %665 = vmatpush2.bf16.msra.mxu0 0
      %666 = vmatprep.subr.bf16.mxu0 0
      %667 = vmatpush2.bf16.msra.mxu0 0
      %668 = vmatprep.subr.bf16.mxu0 0
      %669 = vmatpush2.bf16.msra.mxu0 0
      %670 = vmatprep.subr.bf16.mxu0 0
      %671 = vmatpush2.bf16.msra.mxu0 0
      %672 = vmatprep.subr.bf16.mxu0 0
      %673 = vmatpush2.bf16.msra.mxu0 0
      %674 = vmatprep.subr.bf16.mxu0 0
      %675 = vmatpush2.bf16.msra.mxu0 0
      %676 = vmatprep.subr.bf16.mxu0 0
      %677 = vmatpush2.bf16.msra.mxu0 0
      %678 = vmatprep.mubr.bf16.mxu0 0
      %679 = vmatmul.mubr.bf16.gmra.mxu0 %v637
      %v680 = vpop.f32.mrf.mxu0
      %v681 = vadd.f32 0.0, %v680
      %v682 = vpop.f32.mrf.mxu0
      %v683 = vpop.f32.mrf.mxu0
      %v684 = vadd.f32 0.0, %v683
      %v685 = vpop.f32.mrf.mxu0
      %686 = vmatprep.mubr.bf16.mxu0 0
      %687 = vmatmul.mubr.bf16.gmra.mxu0 %v640
      %v688 = vpop.f32.mrf.mxu0
      %v689 = vadd.f32 0.0, %v688
      %v690 = vpop.f32.mrf.mxu0
      %v691 = vpop.f32.mrf.mxu0
      %v692 = vpop.f32.mrf.mxu0
      %693 = vdwg.mxu0
      %v694 = vsel %vm635, %v613, 0
      %v696 = vsel %vm635, %v614, 0
      %v699 = vsel %vm642, %v611, 0
      %701 = vmatprep.subr.bf16.mxu0 0
      %702 = vmatpush1.bf16.msra.mxu0 0
      %703 = vmatprep.subr.bf16.mxu0 0
      %704 = vmatpush1.bf16.msra.mxu0 0
      %705 = vmatprep.subr.bf16.mxu0 0
      %706 = vmatpush1.bf16.msra.mxu0 0
      %707 = vmatprep.subr.bf16.mxu0 0
      %708 = vmatpush1.bf16.msra.mxu0 0
      %709 = vmatprep.subr.bf16.mxu0 0
      %710 = vmatpush1.bf16.msra.mxu0 0
      %711 = vmatprep.subr.bf16.mxu0 0
      %712 = vmatpush1.bf16.msra.mxu0 0
      %713 = vmatprep.subr.bf16.mxu0 0
      %714 = vmatpush1.bf16.msra.mxu0 0
      %715 = vmatprep.subr.bf16.mxu0 0
      %716 = vmatpush1.bf16.msra.mxu0 %v699
      %717 = vmatprep.subr.bf16.mxu0 0
      %718 = vmatpush2.bf16.msra.mxu0 0
      %719 = vmatprep.subr.bf16.mxu0 0
      %720 = vmatpush2.bf16.msra.mxu0 0
      %721 = vmatprep.subr.bf16.mxu0 0
      %722 = vmatpush2.bf16.msra.mxu0 0
      %723 = vmatprep.subr.bf16.mxu0 0
      %724 = vmatpush2.bf16.msra.mxu0 0
      %725 = vmatprep.subr.bf16.mxu0 0
      %726 = vmatpush2.bf16.msra.mxu0 0
      %727 = vmatprep.subr.bf16.mxu0 0
      %728 = vmatpush2.bf16.msra.mxu0 0
      %729 = vmatprep.subr.bf16.mxu0 0
      %730 = vmatpush2.bf16.msra.mxu0 0
      %731 = vmatprep.subr.bf16.mxu0 0
      %732 = vmatpush2.bf16.msra.mxu0 0
      %733 = vmatprep.mubr.bf16.mxu0 0
      %734 = vmatmul.mubr.bf16.gmra.mxu0 %v694
      %v735 = vpop.f32.mrf.mxu0
      %v736 = vadd.f32 %v681, %v735
      %v737 = vpop.f32.mrf.mxu0
      %v738 = vpop.f32.mrf.mxu0
      %v739 = vadd.f32 %v684, %v738
      %v740 = vpop.f32.mrf.mxu0
      %741 = vmatprep.mubr.bf16.mxu0 0
      %742 = vmatmul.mubr.bf16.gmra.mxu0 %v696
      %v743 = vpop.f32.mrf.mxu0
      %v744 = vadd.f32 %v689, %v743
      %v745 = vpop.f32.mrf.mxu0
      %v746 = vpop.f32.mrf.mxu0
      %v747 = vpop.f32.mrf.mxu0
      %748 = vdwg.mxu0
      %vm751 = vcmask 1046528
      %v752 = vrot.slane %v613, 1
      %v753 = vrot.slane %v614, 1
      %v754 = vsel %vm751, %v752, %v753
      %v756 = vsel %vm635, %v754, 0
      %v759 = vsel %vm635, %v753, 0
      %v762 = vsel %vm642, %v612, 0
      %764 = vmatprep.subr.bf16.mxu0 0
      %765 = vmatpush1.bf16.msra.mxu0 0
      %766 = vmatprep.subr.bf16.mxu0 0
      %767 = vmatpush1.bf16.msra.mxu0 0
      %768 = vmatprep.subr.bf16.mxu0 0
      %769 = vmatpush1.bf16.msra.mxu0 0
      %770 = vmatprep.subr.bf16.mxu0 0
      %771 = vmatpush1.bf16.msra.mxu0 0
      %772 = vmatprep.subr.bf16.mxu0 0
      %773 = vmatpush1.bf16.msra.mxu0 0
      %774 = vmatprep.subr.bf16.mxu0 0
      %775 = vmatpush1.bf16.msra.mxu0 0
      %776 = vmatprep.subr.bf16.mxu0 0
      %777 = vmatpush1.bf16.msra.mxu0 0
      %778 = vmatprep.subr.bf16.mxu0 0
      %779 = vmatpush1.bf16.msra.mxu0 %v762
      %780 = vmatprep.subr.bf16.mxu0 0
      %781 = vmatpush2.bf16.msra.mxu0 0
      %782 = vmatprep.subr.bf16.mxu0 0
      %783 = vmatpush2.bf16.msra.mxu0 0
      %784 = vmatprep.subr.bf16.mxu0 0
      %785 = vmatpush2.bf16.msra.mxu0 0
      %786 = vmatprep.subr.bf16.mxu0 0
      %787 = vmatpush2.bf16.msra.mxu0 0
      %788 = vmatprep.subr.bf16.mxu0 0
      %789 = vmatpush2.bf16.msra.mxu0 0
      %790 = vmatprep.subr.bf16.mxu0 0
      %791 = vmatpush2.bf16.msra.mxu0 0
      %792 = vmatprep.subr.bf16.mxu0 0
      %793 = vmatpush2.bf16.msra.mxu0 0
      %794 = vmatprep.subr.bf16.mxu0 0
      %795 = vmatpush2.bf16.msra.mxu0 0
      %796 = vmatprep.mubr.bf16.mxu0 0
      %797 = vmatmul.mubr.bf16.gmra.mxu0 %v756
      %v798 = vpop.f32.mrf.mxu0
      %v799 = vadd.f32 0.0, %v798
      %v800 = vpop.f32.mrf.mxu0
      %v801 = vpop.f32.mrf.mxu0
      %v802 = vadd.f32 0.0, %v801
      %v803 = vpop.f32.mrf.mxu0
      %804 = vmatprep.mubr.bf16.mxu0 0
      %805 = vmatmul.mubr.bf16.gmra.mxu0 %v759
      %v806 = vpop.f32.mrf.mxu0
      %v807 = vadd.f32 0.0, %v806
      %v808 = vpop.f32.mrf.mxu0
      %v809 = vpop.f32.mrf.mxu0
      %v810 = vpop.f32.mrf.mxu0
      %811 = vdwg.mxu0
      %v812 = vadd.f32 %v736, %v799
      %v813 = vadd.f32 %v739, %v802
      %v814 = vadd.f32 %v744, %v807
      %s815 = scalar_lea.vmem %s6, 8
      %v816 = vld [vmem:[%s815] sm:$0xf]
      %v817 = vld [vmem:[%s815 + $0x4] sm:$0x3]
      %v818 = vpack.c.bf16 %v609, %v608
      %vm820 = vcmask 1044480
      %v821 = vrot.slane %v613, 3
      %v822 = vrot.slane %v818, 3
      %v823 = vsel %vm820, %v821, %v822
      %v825 = vsel %vm635, %v823, 0
      %v828 = vsel %vm635, %v822, 0
      %v831 = vsel %vm642, %v816, 0
      %833 = vmatprep.subr.bf16.mxu0 0
      %834 = vmatpush1.bf16.msra.mxu0 0
      %835 = vmatprep.subr.bf16.mxu0 0
      %836 = vmatpush1.bf16.msra.mxu0 0
      %837 = vmatprep.subr.bf16.mxu0 0
      %838 = vmatpush1.bf16.msra.mxu0 0
      %839 = vmatprep.subr.bf16.mxu0 0
      %840 = vmatpush1.bf16.msra.mxu0 0
      %841 = vmatprep.subr.bf16.mxu0 0
      %842 = vmatpush1.bf16.msra.mxu0 0
      %843 = vmatprep.subr.bf16.mxu0 0
      %844 = vmatpush1.bf16.msra.mxu0 0
      %845 = vmatprep.subr.bf16.mxu0 0
      %846 = vmatpush1.bf16.msra.mxu0 0
      %847 = vmatprep.subr.bf16.mxu0 0
      %848 = vmatpush1.bf16.msra.mxu0 %v831
      %849 = vmatprep.subr.bf16.mxu0 0
      %850 = vmatpush2.bf16.msra.mxu0 0
      %851 = vmatprep.subr.bf16.mxu0 0
      %852 = vmatpush2.bf16.msra.mxu0 0
      %853 = vmatprep.subr.bf16.mxu0 0
      %854 = vmatpush2.bf16.msra.mxu0 0
      %855 = vmatprep.subr.bf16.mxu0 0
      %856 = vmatpush2.bf16.msra.mxu0 0
      %857 = vmatprep.subr.bf16.mxu0 0
      %858 = vmatpush2.bf16.msra.mxu0 0
      %859 = vmatprep.subr.bf16.mxu0 0
      %860 = vmatpush2.bf16.msra.mxu0 0
      %861 = vmatprep.subr.bf16.mxu0 0
      %862 = vmatpush2.bf16.msra.mxu0 0
      %863 = vmatprep.subr.bf16.mxu0 0
      %864 = vmatpush2.bf16.msra.mxu0 0
      %865 = vmatprep.mubr.bf16.mxu0 0
      %866 = vmatmul.mubr.bf16.gmra.mxu0 %v825
      %v867 = vpop.f32.mrf.mxu0
      %v868 = vadd.f32 0.0, %v867
      %v869 = vpop.f32.mrf.mxu0
      %v870 = vpop.f32.mrf.mxu0
      %v871 = vadd.f32 0.0, %v870
      %v872 = vpop.f32.mrf.mxu0
      %873 = vmatprep.mubr.bf16.mxu0 0
      %874 = vmatmul.mubr.bf16.gmra.mxu0 %v828
      %v875 = vpop.f32.mrf.mxu0
      %v876 = vadd.f32 0.0, %v875
      %v877 = vpop.f32.mrf.mxu0
      %v878 = vpop.f32.mrf.mxu0
      %v879 = vpop.f32.mrf.mxu0
      %880 = vdwg.mxu0
      %v881 = vadd.f32 %v812, %v868
      %v882 = vadd.f32 %v813, %v871
      %v883 = vadd.f32 %v814, %v876
      %vm884 = vsmask.f32 4352
      %v885 = vrot.slane %v617, 3
      %v886 = vrot.slane %v619, 4
      %v887 = vor.u32 %v885, %v886
      %v889 = vshrl.u32 %v818, 16
      %v891 = vrot.slane %v889, 3
      %v892 = vshll.u32 %v818, 16
      %v894 = vrot.slane %v892, 4
      %v895 = vor.u32 %v891, %v894
      %v896 = vsel %vm884, %v887, %v895
      %v898 = vunpack.c.l.b16 %v816
      %v899 = vpack.c.b16 %v898, %v898
      %v900 = vrot.slane %v899, 2
      %v902 = vsel %vm635, %v896, 0
      %v905 = vsel %vm635, %v895, 0
      %v908 = vsel %vm642, %v900, 0
      %910 = vmatprep.subr.bf16.mxu0 0
      %911 = vmatpush1.bf16.msra.mxu0 0
      %912 = vmatprep.subr.bf16.mxu0 0
      %913 = vmatpush1.bf16.msra.mxu0 0
      %914 = vmatprep.subr.bf16.mxu0 0
      %915 = vmatpush1.bf16.msra.mxu0 0
      %916 = vmatprep.subr.bf16.mxu0 0
      %917 = vmatpush1.bf16.msra.mxu0 0
      %918 = vmatprep.subr.bf16.mxu0 0
      %919 = vmatpush1.bf16.msra.mxu0 0
      %920 = vmatprep.subr.bf16.mxu0 0
      %921 = vmatpush1.bf16.msra.mxu0 0
      %922 = vmatprep.subr.bf16.mxu0 0
      %923 = vmatpush1.bf16.msra.mxu0 0
      %924 = vmatprep.subr.bf16.mxu0 0
      %925 = vmatpush1.bf16.msra.mxu0 %v908
      %926 = vmatprep.subr.bf16.mxu0 0
      %927 = vmatpush2.bf16.msra.mxu0 0
      %928 = vmatprep.subr.bf16.mxu0 0
      %929 = vmatpush2.bf16.msra.mxu0 0
      %930 = vmatprep.subr.bf16.mxu0 0
      %931 = vmatpush2.bf16.msra.mxu0 0
      %932 = vmatprep.subr.bf16.mxu0 0
      %933 = vmatpush2.bf16.msra.mxu0 0
      %934 = vmatprep.subr.bf16.mxu0 0
      %935 = vmatpush2.bf16.msra.mxu0 0
      %936 = vmatprep.subr.bf16.mxu0 0
      %937 = vmatpush2.bf16.msra.mxu0 0
      %938 = vmatprep.subr.bf16.mxu0 0
      %939 = vmatpush2.bf16.msra.mxu0 0
      %940 = vmatprep.subr.bf16.mxu0 0
      %941 = vmatpush2.bf16.msra.mxu0 0
      %942 = vmatprep.mubr.bf16.mxu0 0
      %943 = vmatmul.mubr.bf16.gmra.mxu0 %v902
      %v944 = vpop.f32.mrf.mxu0
      %v945 = vadd.f32 0.0, %v944
      %v946 = vpop.f32.mrf.mxu0
      %v947 = vpop.f32.mrf.mxu0
      %v948 = vadd.f32 0.0, %v947
      %v949 = vpop.f32.mrf.mxu0
      %950 = vmatprep.mubr.bf16.mxu0 0
      %951 = vmatmul.mubr.bf16.gmra.mxu0 %v905
      %v952 = vpop.f32.mrf.mxu0
      %v953 = vadd.f32 0.0, %v952
      %v954 = vpop.f32.mrf.mxu0
      %v955 = vpop.f32.mrf.mxu0
      %v956 = vpop.f32.mrf.mxu0
      %957 = vdwg.mxu0
      %v958 = vadd.f32 %v881, %v945
      %v959 = vadd.f32 %v882, %v948
      %v960 = vadd.f32 %v883, %v953
      %v961 = vpack.c.bf16 %v608, %v607
      %v962 = vpack.c.bf16 %v609, %v609
      %v964 = vsel %vm635, %v961, 0
      %v967 = vsel %vm635, %v962, 0
      %v970 = vsel %vm642, %v817, 0
      %972 = vmatprep.subr.bf16.mxu0 0
      %973 = vmatpush1.bf16.msra.mxu0 0
      %974 = vmatprep.subr.bf16.mxu0 0
      %975 = vmatpush1.bf16.msra.mxu0 0
      %976 = vmatprep.subr.bf16.mxu0 0
      %977 = vmatpush1.bf16.msra.mxu0 0
      %978 = vmatprep.subr.bf16.mxu0 0
      %979 = vmatpush1.bf16.msra.mxu0 0
      %980 = vmatprep.subr.bf16.mxu0 0
      %981 = vmatpush1.bf16.msra.mxu0 0
      %982 = vmatprep.subr.bf16.mxu0 0
      %983 = vmatpush1.bf16.msra.mxu0 0
      %984 = vmatprep.subr.bf16.mxu0 0
      %985 = vmatpush1.bf16.msra.mxu0 0
      %986 = vmatprep.subr.bf16.mxu0 0
      %987 = vmatpush1.bf16.msra.mxu0 %v970
      %988 = vmatprep.subr.bf16.mxu0 0
      %989 = vmatpush2.bf16.msra.mxu0 0
      %990 = vmatprep.subr.bf16.mxu0 0
      %991 = vmatpush2.bf16.msra.mxu0 0
      %992 = vmatprep.subr.bf16.mxu0 0
      %993 = vmatpush2.bf16.msra.mxu0 0
      %994 = vmatprep.subr.bf16.mxu0 0
      %995 = vmatpush2.bf16.msra.mxu0 0
      %996 = vmatprep.subr.bf16.mxu0 0
      %997 = vmatpush2.bf16.msra.mxu0 0
      %998 = vmatprep.subr.bf16.mxu0 0
      %999 = vmatpush2.bf16.msra.mxu0 0
      %1000 = vmatprep.subr.bf16.mxu0 0
      %1001 = vmatpush2.bf16.msra.mxu0 0
      %1002 = vmatprep.subr.bf16.mxu0 0
      %1003 = vmatpush2.bf16.msra.mxu0 0
      %1004 = vmatprep.mubr.bf16.mxu0 0
      %1005 = vmatmul.mubr.bf16.gmra.mxu0 %v964
      %v1006 = vpop.f32.mrf.mxu0
      %v1007 = vadd.f32 0.0, %v1006
      %v1008 = vpop.f32.mrf.mxu0
      %v1009 = vpop.f32.mrf.mxu0
      %v1010 = vadd.f32 0.0, %v1009
      %v1011 = vpop.f32.mrf.mxu0
      %1012 = vmatprep.mubr.bf16.mxu0 0
      %1013 = vmatmul.mubr.bf16.gmra.mxu0 %v967
      %v1014 = vpop.f32.mrf.mxu0
      %v1015 = vadd.f32 0.0, %v1014
      %v1016 = vpop.f32.mrf.mxu0
      %v1017 = vpop.f32.mrf.mxu0
      %v1018 = vpop.f32.mrf.mxu0
      %1019 = vdwg.mxu0
      %v1020 = vadd.f32 %v958, %v1007
      %v1021 = vadd.f32 %v959, %v1010
      %v1022 = vadd.f32 %v960, %v1015
      %s1023 = scalar_lea.vmem %s6, 16
      %v1024 = vld [vmem:[%s1023] sm:$0xf]
      %v1025 = vld [vmem:[%s1023 + $0x4] sm:$0x3]
      %v1026 = vpack.c.bf16 %v610, %v609
      %vm1029 = vcmask 1045504
      %v1030 = vrot.slane %v961, 2
      %v1031 = vrot.slane %v1026, 2
      %v1032 = vsel %vm1029, %v1030, %v1031
      %v1034 = vsel %vm635, %v1032, 0
      %v1037 = vsel %vm635, %v1031, 0
      %v1040 = vsel %vm642, %v1024, 0
      %1042 = vmatprep.subr.bf16.mxu0 0
      %1043 = vmatpush1.bf16.msra.mxu0 0
      %1044 = vmatprep.subr.bf16.mxu0 0
      %1045 = vmatpush1.bf16.msra.mxu0 0
      %1046 = vmatprep.subr.bf16.mxu0 0
      %1047 = vmatpush1.bf16.msra.mxu0 0
      %1048 = vmatprep.subr.bf16.mxu0 0
      %1049 = vmatpush1.bf16.msra.mxu0 0
      %1050 = vmatprep.subr.bf16.mxu0 0
      %1051 = vmatpush1.bf16.msra.mxu0 0
      %1052 = vmatprep.subr.bf16.mxu0 0
      %1053 = vmatpush1.bf16.msra.mxu0 0
      %1054 = vmatprep.subr.bf16.mxu0 0
      %1055 = vmatpush1.bf16.msra.mxu0 0
      %1056 = vmatprep.subr.bf16.mxu0 0
      %1057 = vmatpush1.bf16.msra.mxu0 %v1040
      %1058 = vmatprep.subr.bf16.mxu0 0
      %1059 = vmatpush2.bf16.msra.mxu0 0
      %1060 = vmatprep.subr.bf16.mxu0 0
      %1061 = vmatpush2.bf16.msra.mxu0 0
      %1062 = vmatprep.subr.bf16.mxu0 0
      %1063 = vmatpush2.bf16.msra.mxu0 0
      %1064 = vmatprep.subr.bf16.mxu0 0
      %1065 = vmatpush2.bf16.msra.mxu0 0
      %1066 = vmatprep.subr.bf16.mxu0 0
      %1067 = vmatpush2.bf16.msra.mxu0 0
      %1068 = vmatprep.subr.bf16.mxu0 0
      %1069 = vmatpush2.bf16.msra.mxu0 0
      %1070 = vmatprep.subr.bf16.mxu0 0
      %1071 = vmatpush2.bf16.msra.mxu0 0
      %1072 = vmatprep.subr.bf16.mxu0 0
      %1073 = vmatpush2.bf16.msra.mxu0 0
      %1074 = vmatprep.mubr.bf16.mxu0 0
      %1075 = vmatmul.mubr.bf16.gmra.mxu0 %v1034
      %v1076 = vpop.f32.mrf.mxu0
      %v1077 = vadd.f32 0.0, %v1076
      %v1078 = vpop.f32.mrf.mxu0
      %v1079 = vpop.f32.mrf.mxu0
      %v1080 = vadd.f32 0.0, %v1079
      %v1081 = vpop.f32.mrf.mxu0
      %1082 = vmatprep.mubr.bf16.mxu0 0
      %1083 = vmatmul.mubr.bf16.gmra.mxu0 %v1037
      %v1084 = vpop.f32.mrf.mxu0
      %v1085 = vadd.f32 0.0, %v1084
      %v1086 = vpop.f32.mrf.mxu0
      %v1087 = vpop.f32.mrf.mxu0
      %v1088 = vpop.f32.mrf.mxu0
      %1089 = vdwg.mxu0
      %v1090 = vadd.f32 %v1020, %v1077
      %v1091 = vadd.f32 %v1021, %v1080
      %v1092 = vadd.f32 %v1022, %v1085
      %vm1093 = vsmask.f32 5376
      %v1094 = vshrl.u32 %v961, 16
      %v1096 = vrot.slane %v1094, 2
      %v1097 = vshll.u32 %v961, 16
      %v1099 = vrot.slane %v1097, 3
      %v1100 = vor.u32 %v1096, %v1099
      %v1102 = vshrl.u32 %v1026, 16
      %v1104 = vrot.slane %v1102, 2
      %v1105 = vshll.u32 %v1026, 16
      %v1107 = vrot.slane %v1105, 3
      %v1108 = vor.u32 %v1104, %v1107
      %v1109 = vsel %vm1093, %v1100, %v1108
      %v1111 = vunpack.c.l.b16 %v1024
      %v1112 = vpack.c.b16 %v1111, %v1111
      %v1113 = vrot.slane %v1112, 2
      %v1115 = vsel %vm635, %v1109, 0
      %v1118 = vsel %vm635, %v1108, 0
      %v1121 = vsel %vm642, %v1113, 0
      %1123 = vmatprep.subr.bf16.mxu0 0
      %1124 = vmatpush1.bf16.msra.mxu0 0
      %1125 = vmatprep.subr.bf16.mxu0 0
      %1126 = vmatpush1.bf16.msra.mxu0 0
      %1127 = vmatprep.subr.bf16.mxu0 0
      %1128 = vmatpush1.bf16.msra.mxu0 0
      %1129 = vmatprep.subr.bf16.mxu0 0
      %1130 = vmatpush1.bf16.msra.mxu0 0
      %1131 = vmatprep.subr.bf16.mxu0 0
      %1132 = vmatpush1.bf16.msra.mxu0 0
      %1133 = vmatprep.subr.bf16.mxu0 0
      %1134 = vmatpush1.bf16.msra.mxu0 0
      %1135 = vmatprep.subr.bf16.mxu0 0
      %1136 = vmatpush1.bf16.msra.mxu0 0
      %1137 = vmatprep.subr.bf16.mxu0 0
      %1138 = vmatpush1.bf16.msra.mxu0 %v1121
      %1139 = vmatprep.subr.bf16.mxu0 0
      %1140 = vmatpush2.bf16.msra.mxu0 0
      %1141 = vmatprep.subr.bf16.mxu0 0
      %1142 = vmatpush2.bf16.msra.mxu0 0
      %1143 = vmatprep.subr.bf16.mxu0 0
      %1144 = vmatpush2.bf16.msra.mxu0 0
      %1145 = vmatprep.subr.bf16.mxu0 0
      %1146 = vmatpush2.bf16.msra.mxu0 0
      %1147 = vmatprep.subr.bf16.mxu0 0
      %1148 = vmatpush2.bf16.msra.mxu0 0
      %1149 = vmatprep.subr.bf16.mxu0 0
      %1150 = vmatpush2.bf16.msra.mxu0 0
      %1151 = vmatprep.subr.bf16.mxu0 0
      %1152 = vmatpush2.bf16.msra.mxu0 0
      %1153 = vmatprep.subr.bf16.mxu0 0
      %1154 = vmatpush2.bf16.msra.mxu0 0
      %1155 = vmatprep.mubr.bf16.mxu0 0
      %1156 = vmatmul.mubr.bf16.gmra.mxu0 %v1115
      %v1157 = vpop.f32.mrf.mxu0
      %v1158 = vadd.f32 0.0, %v1157
      %v1159 = vpop.f32.mrf.mxu0
      %v1160 = vpop.f32.mrf.mxu0
      %v1161 = vadd.f32 0.0, %v1160
      %v1162 = vpop.f32.mrf.mxu0
      %1163 = vmatprep.mubr.bf16.mxu0 0
      %1164 = vmatmul.mubr.bf16.gmra.mxu0 %v1118
      %v1165 = vpop.f32.mrf.mxu0
      %v1166 = vadd.f32 0.0, %v1165
      %v1167 = vpop.f32.mrf.mxu0
      %v1168 = vpop.f32.mrf.mxu0
      %v1169 = vpop.f32.mrf.mxu0
      %1170 = vdwg.mxu0
      %v1171 = vadd.f32 %v1090, %v1158
      %v1172 = vadd.f32 %v1091, %v1161
      %v1173 = vadd.f32 %v1092, %v1166
      %v1174 = vrot.slane %v961, 3
      %v1175 = vrot.slane %v1026, 3
      %v1176 = vsel %vm820, %v1174, %v1175
      %v1178 = vsel %vm635, %v1176, 0
      %v1181 = vsel %vm635, %v1175, 0
      %v1184 = vsel %vm642, %v1025, 0
      %1186 = vmatprep.subr.bf16.mxu0 0
      %1187 = vmatpush1.bf16.msra.mxu0 0
      %1188 = vmatprep.subr.bf16.mxu0 0
      %1189 = vmatpush1.bf16.msra.mxu0 0
      %1190 = vmatprep.subr.bf16.mxu0 0
      %1191 = vmatpush1.bf16.msra.mxu0 0
      %1192 = vmatprep.subr.bf16.mxu0 0
      %1193 = vmatpush1.bf16.msra.mxu0 0
      %1194 = vmatprep.subr.bf16.mxu0 0
      %1195 = vmatpush1.bf16.msra.mxu0 0
      %1196 = vmatprep.subr.bf16.mxu0 0
      %1197 = vmatpush1.bf16.msra.mxu0 0
      %1198 = vmatprep.subr.bf16.mxu0 0
      %1199 = vmatpush1.bf16.msra.mxu0 0
      %1200 = vmatprep.subr.bf16.mxu0 0
      %1201 = vmatpush1.bf16.msra.mxu0 %v1184
      %1202 = vmatprep.subr.bf16.mxu0 0
      %1203 = vmatpush2.bf16.msra.mxu0 0
      %1204 = vmatprep.subr.bf16.mxu0 0
      %1205 = vmatpush2.bf16.msra.mxu0 0
      %1206 = vmatprep.subr.bf16.mxu0 0
      %1207 = vmatpush2.bf16.msra.mxu0 0
      %1208 = vmatprep.subr.bf16.mxu0 0
      %1209 = vmatpush2.bf16.msra.mxu0 0
      %1210 = vmatprep.subr.bf16.mxu0 0
      %1211 = vmatpush2.bf16.msra.mxu0 0
      %1212 = vmatprep.subr.bf16.mxu0 0
      %1213 = vmatpush2.bf16.msra.mxu0 0
      %1214 = vmatprep.subr.bf16.mxu0 0
      %1215 = vmatpush2.bf16.msra.mxu0 0
      %1216 = vmatprep.subr.bf16.mxu0 0
      %1217 = vmatpush2.bf16.msra.mxu0 0
      %1218 = vmatprep.mubr.bf16.mxu0 0
      %1219 = vmatmul.mubr.bf16.gmra.mxu0 %v1178
      %v1220 = vpop.f32.mrf.mxu0
      %v1221 = vadd.f32 0.0, %v1220
      %v1222 = vpop.f32.mrf.mxu0
      %v1223 = vpop.f32.mrf.mxu0
      %v1224 = vadd.f32 0.0, %v1223
      %v1225 = vpop.f32.mrf.mxu0
      %1226 = vmatprep.mubr.bf16.mxu0 0
      %1227 = vmatmul.mubr.bf16.gmra.mxu0 %v1181
      %v1228 = vpop.f32.mrf.mxu0
      %v1229 = vadd.f32 0.0, %v1228
      %v1230 = vpop.f32.mrf.mxu0
      %v1231 = vpop.f32.mrf.mxu0
      %v1232 = vpop.f32.mrf.mxu0
      %1233 = vdwg.mxu0
      %v1234 = vadd.f32 %v1171, %v1221
      %v1235 = vadd.f32 %v1172, %v1224
      %v1236 = vadd.f32 %v1173, %v1229
      %v1237 = vld [vmem:[%s7] sm:$0x1]
      %v1239 = vlaneseq
      %v1240 = vshrl.u32 %v1239, 7
      %v1241 = vsub.s32 0, %v1240
      %v1242 = vrot.slane %v1237, %v1241
      %v1244 = vmul.f32 %v1234, %v1242
      %v1245 = vmul.f32 %v1235, %v1242
      %v1246 = vmul.f32 %v1236, %v1242
      %v1247 = vld [vmem:[%s8] sm:$0x1]
      %v1249 = vlaneseq
      %v1250 = vshrl.u32 %v1249, 7
      %v1251 = vsub.s32 0, %v1250
      %v1252 = vrot.slane %v1247, %v1251
      %v1254 = vadd.f32 %v1244, %v1252
      %v1255 = vadd.f32 %v1245, %v1252
      %v1256 = vadd.f32 %v1246, %v1252
      %v1257 = vmax.f32 %v1254, 0.0
      %v1258 = vmax.f32 %v1255, 0.0
      %v1259 = vmax.f32 %v1256, 0.0
      %v1260 = vpack.c.bf16 %v1258, %v1257
      %v1261 = vpack.c.bf16 %v1259, %v1259
      %v1262 = vld [vmem:[%s9] sm:$0x3]
      %v1263 = vld [vmem:[%s10] sm:$0x1]
      %v1265 = vlaneseq
      %v1266 = vshrl.u32 %v1265, 7
      %v1267 = vsub.s32 0, %v1266
      %v1268 = vrot.slane %v1263, %v1267
      %v1271 = vsel %vm635, %v1260, 0
      %v1274 = vsel %vm635, %v1261, 0
      %v1277 = vsel %vm642, %v1262, 0
      %1279 = vmatprep.subr.bf16.mxu0 0
      %1280 = vmatpush1.bf16.msra.mxu0 0
      %1281 = vmatprep.subr.bf16.mxu0 0
      %1282 = vmatpush1.bf16.msra.mxu0 0
      %1283 = vmatprep.subr.bf16.mxu0 0
      %1284 = vmatpush1.bf16.msra.mxu0 0
      %1285 = vmatprep.subr.bf16.mxu0 0
      %1286 = vmatpush1.bf16.msra.mxu0 0
      %1287 = vmatprep.subr.bf16.mxu0 0
      %1288 = vmatpush1.bf16.msra.mxu0 0
      %1289 = vmatprep.subr.bf16.mxu0 0
      %1290 = vmatpush1.bf16.msra.mxu0 0
      %1291 = vmatprep.subr.bf16.mxu0 0
      %1292 = vmatpush1.bf16.msra.mxu0 0
      %1293 = vmatprep.subr.bf16.mxu0 0
      %1294 = vmatpush1.bf16.msra.mxu0 %v1277
      %1295 = vmatprep.subr.bf16.mxu0 0
      %1296 = vmatpush2.bf16.msra.mxu0 0
      %1297 = vmatprep.subr.bf16.mxu0 0
      %1298 = vmatpush2.bf16.msra.mxu0 0
      %1299 = vmatprep.subr.bf16.mxu0 0
      %1300 = vmatpush2.bf16.msra.mxu0 0
      %1301 = vmatprep.subr.bf16.mxu0 0
      %1302 = vmatpush2.bf16.msra.mxu0 0
      %1303 = vmatprep.subr.bf16.mxu0 0
      %1304 = vmatpush2.bf16.msra.mxu0 0
      %1305 = vmatprep.subr.bf16.mxu0 0
      %1306 = vmatpush2.bf16.msra.mxu0 0
      %1307 = vmatprep.subr.bf16.mxu0 0
      %1308 = vmatpush2.bf16.msra.mxu0 0
      %1309 = vmatprep.subr.bf16.mxu0 0
      %1310 = vmatpush2.bf16.msra.mxu0 0
      %1311 = vmatprep.mubr.bf16.mxu0 0
      %1312 = vmatmul.mubr.bf16.gmra.mxu0 %v1271
      %v1313 = vpop.f32.mrf.mxu0
      %v1314 = vadd.f32 %v1268, %v1313
      %v1315 = vpop.f32.mrf.mxu0
      %v1316 = vpop.f32.mrf.mxu0
      %v1317 = vadd.f32 %v1268, %v1316
      %v1318 = vpop.f32.mrf.mxu0
      %1319 = vmatprep.mubr.bf16.mxu0 0
      %1320 = vmatmul.mubr.bf16.gmra.mxu0 %v1274
      %v1321 = vpop.f32.mrf.mxu0
      %v1322 = vadd.f32 %v1268, %v1321
      %v1323 = vpop.f32.mrf.mxu0
      %v1324 = vpop.f32.mrf.mxu0
      %v1325 = vpop.f32.mrf.mxu0
      %1326 = vdwg.mxu0
      %v1327 = vadd.s32 %v526, 7
      %v1328 = vadd.s32 %v527, 7
      %v1329 = vadd.s32 %v528, 7
      %v1330 = vcvt.s32.f32 %v1327
      %v1331 = vcvt.s32.f32 %v1328
      %v1332 = vcvt.s32.f32 %v1329
      %v1333 = vadd.f32 %v1330, 0.5
      %v1334 = vadd.f32 %v1331, 0.5
      %v1335 = vadd.f32 %v1332, 0.5
      %v1336 = vmul.f32 %v1333, 0.16666667
      %v1337 = vmul.f32 %v1334, 0.16666667
      %v1338 = vmul.f32 %v1335, 0.16666667
      %v1339 = vcvt.f32.s32.to.zero.pseudo %v1336
      %v1340 = vcvt.f32.s32.to.zero.pseudo %v1337
      %v1341 = vcvt.f32.s32.to.zero.pseudo %v1338
      %v1342 = vmul.u32 %v1339, 6
      %v1343 = vmul.u32 %v1340, 6
      %v1344 = vmul.u32 %v1341, 6
      %v1345 = vsub.s32 %v1327, %v1342
      %v1346 = vsub.s32 %v1328, %v1343
      %v1347 = vsub.s32 %v1329, %v1344
      %vm1348 = vcmp.ge.s32.totalorder %v1339, 1
      %vm1349 = vcmp.ge.s32.totalorder %v1340, 1
      %vm1350 = vcmp.ge.s32.totalorder %v1341, 1
      %vm1351 = vcmp.le.s32.totalorder %v1339, 4
      %vm1352 = vcmp.le.s32.totalorder %v1340, 4
      %vm1353 = vcmp.le.s32.totalorder %v1341, 4
      %vm1354 = vmand %vm1348, %vm1351
      %vm1355 = vmand %vm1349, %vm1352
      %vm1356 = vmand %vm1350, %vm1353
      %vm1357 = vcmp.ge.s32.totalorder %v1345, 1
      %vm1358 = vcmp.ge.s32.totalorder %v1346, 1
      %vm1359 = vcmp.ge.s32.totalorder %v1347, 1
      %vm1360 = vmand %vm1354, %vm1357
      %vm1361 = vmand %vm1355, %vm1358
      %vm1362 = vmand %vm1356, %vm1359
      %vm1363 = vcmp.le.s32.totalorder %v1345, 4
      %vm1364 = vcmp.le.s32.totalorder %v1346, 4
      %vm1365 = vcmp.le.s32.totalorder %v1347, 4
      %vm1366 = vmand %vm1360, %vm1363
      %vm1367 = vmand %vm1361, %vm1364
      %vm1368 = vmand %vm1362, %vm1365
      %v1369 = vsel %vm1366, 1, 0
      %v1370 = vsel %vm1367, 1, 0
      %v1371 = vsel %vm1368, 1, 0
      %v1372 = vcvt.s32.f32 %v1369
      %v1373 = vcvt.s32.f32 %v1370
      %v1374 = vcvt.s32.f32 %v1371
      %vm1379 = vcmask 1040384
      %v1380 = vrot.slane %v388, 7
      %v1381 = vrot.slane %v389, 7
      %v1382 = vsel %vm1379, %v1380, %v1381
      %v1383 = vrot.slane %v390, 7
      %v1384 = vsel %vm1379, %v1381, %v1383
      %v1385 = vrot.slane %v391, 7
      %v1386 = vsel %vm1379, %v1383, %v1385
      %v1390 = vadd.f32 %v1314, %v1382
      %v1391 = vadd.f32 %v1317, %v1384
      %v1392 = vadd.f32 %v1322, %v1386
      %v1393 = vmul.f32 %v1390, %v1372
      %v1394 = vmul.f32 %v1391, %v1373
      %v1395 = vmul.f32 %v1392, %v1374
      %vm1396 = vcmask 63488
      %1397 = vst.msk [vmem:[%s386] sm:$0x7f] %vm1396, 0.0
      %1398 = vst.msk [vmem:[%s386 + $0x1d] sm:$0x7f] %vm1396, 0.0
      %1399 = vst.msk [vmem:[%s386 + $0x7] sm:$0xff] %vm426, %v1393
      %1400 = vst.msk [vmem:[%s386 + $0xf] sm:$0xff] %vm426, %v1394
      %vm1401 = vcmask 62464
      %1402 = vst.msk [vmem:[%s386 + $0x17] sm:$0x3f] %vm1401, %v1395
      %p1403 = scmp.lt.s32.totalorder %s22, 1
      %s1404 = scalar_select %p1403, %s22, 1
      %s1405 = smul.addr %s1404, 5
      %s1406 = smul.addr %s1405, 8
      %s1407 = scalar_lea.vmem %s11, %s1406
      // Predicated region
      $region65: #{hourglass_forward.10} parent=63 // pred_check
        %p1408 = pneg %p276
      $region66: #{hourglass_forward.10} parent=63 // pred_check_branch
        %1410 = sbr.rel (%p1408) target = $region68
      $region67: #{hourglass_forward.10} parent=63 // pred_region
        _
      $region68: #{hourglass_forward.10} parent=63 // pred_fallthru
        _
    $region64: #{hourglass_forward.10} parent=5 // pred_fallthru
      _
    %p1411 = scmp.le.s32.totalorder 2, %s17
    // Predicated region
    $region69: #{hourglass_forward.10} parent=5 // pred_check
      %p1412 = pneg %p1411
    $region70: #{hourglass_forward.10} parent=5 // pred_check_branch
      %1414 = sbr.rel (%p1412) target = $region72
    $region71: #{hourglass_forward.10} parent=5 // pred_region
      %s1415 = ssub.s32 %s17, 2
      // Predicated region
      $region73: #{hourglass_forward.10} parent=71 // pred_check
        %p1416 = pneg %p282
      $region74: #{hourglass_forward.10} parent=71 // pred_check_branch
        %1418 = sbr.rel (%p1416) target = $region76
      $region75: #{hourglass_forward.10} parent=71 // pred_region
        %p1419 = scmp.lt.s32.totalorder %s23, 1
        %s1420 = scalar_select %p1419, %s23, 1
        %s1421 = smul.addr %s1420, 5
        %s1422 = smul.addr %s1421, 8
        %s1423 = scalar_lea.vmem %s11, %s1422
      $region76: #{hourglass_forward.10} parent=71 // pred_fallthru
        _
    $region72: #{hourglass_forward.10} parent=5 // pred_fallthru
      _
  $region6: #{hourglass_forward.10} parent=0 // loop_footer
    %s21 = sadd.s32 1, %s17
  $region7: #{hourglass_forward.10} parent=0 // loop_footer_branch
    %16 = sbr.rel target = $region3
  $region8: #{hourglass_forward.10} parent=0 // loop_exit
    _

// kernel: hourglass_forward.8
$region0: #{hourglass_forward.8}
  #allocation0 [shape = 'u32[]', space=smem, size = 0x4, offset = 0x4, fixed_abs, tag = 'smem constant byte address 0x4 - core index']
  #allocation1 [shape = 'u32[144,128]{1,0:T(1,128)}', space=vmem, size = 0x12000, scoped, tag = 'internal scratch']
  %s0 = inlined_call_operand.vmem [shape: f32[2,100,8], index: 0, kind: input, shape index: {}]
  %s1 = inlined_call_operand.vmem [shape: f32[1,8], index: 1, kind: input, shape index: {}]
  %s2 = inlined_call_operand.vmem [shape: f32[1,8], index: 2, kind: input, shape index: {}]
  %s3 = inlined_call_operand.vmem [shape: bf16[8,4], index: 3, kind: input, shape index: {}]
  %s4 = inlined_call_operand.vmem [shape: f32[1,4], index: 4, kind: input, shape index: {}]
  %s5 = inlined_call_operand.vmem [shape: f32[1,4], index: 5, kind: input, shape index: {}]
  %s6 = inlined_call_operand.vmem [shape: bf16[3,12,4], index: 6, kind: input, shape index: {}]
  %s7 = inlined_call_operand.vmem [shape: f32[1,4], index: 7, kind: input, shape index: {}]
  %s8 = inlined_call_operand.vmem [shape: f32[1,4], index: 8, kind: input, shape index: {}]
  %s9 = inlined_call_operand.vmem [shape: bf16[4,8], index: 9, kind: input, shape index: {}]
  %s10 = inlined_call_operand.vmem [shape: f32[1,8], index: 10, kind: input, shape index: {}]
  %s11 = inlined_call_operand.vmem [shape: f32[2,100,8], index: 11, kind: output, shape index: {}]
  %s12 = sld [smem:[#allocation0]]
  $region77: #{hourglass_forward.8} parent=0
    _
  %s14 = ssub.s32 1, %s12
  %s15 = scalar_select 0, %s14, %s12
  loop: start=0, step=1, limit=4
  $region2: #{hourglass_forward.8} parent=0 // loop_pre_header
    _
  $region3: #{hourglass_forward.8} parent=0 // loop_header
    %s17 = sphi 0, %s21
    %p18 = scmp.ge.s32.totalorder %s17, 4
    %s27 = sphi 0, %s29
    %s30 = sphi 0, %s27
    %s31 = sphi 0, %s30
    %s47 = sphi 0, %s31
    %s51 = sphi 0, %s51
    %s53 = sphi 0, %s51
    %s54 = sphi 0, %s53
    %s68 = sphi 0, %s54
    %s72 = sphi 0, %s72
    %s74 = sphi 0, %s72
    %s75 = sphi 0, %s74
    %s89 = sphi 0, %s75
    %s93 = sphi 0, %s93
    %s95 = sphi 0, %s93
    %s96 = sphi 0, %s95
    %s110 = sphi 0, %s96
    %s114 = sphi 0, %s114
    %s116 = sphi 0, %s114
    %s117 = sphi 0, %s116
    %s131 = sphi 0, %s117
    %s135 = sphi 0, %s135
    %s137 = sphi 0, %s135
    %s138 = sphi 0, %s137
    %s152 = sphi 0, %s138
    %s156 = sphi 0, %s156
    %s158 = sphi 0, %s156
    %s159 = sphi 0, %s158
    %s173 = sphi 0, %s159
    %s177 = sphi 0, %s177
    %s179 = sphi 0, %s177
    %s180 = sphi 0, %s179
    %s194 = sphi 0, %s180
    %s198 = sphi 0, %s198
    %s200 = sphi 0, %s198
    %s201 = sphi 0, %s200
    %s215 = sphi 0, %s201
    %s219 = sphi 0, %s219
    %s221 = sphi 0, %s219
    %s222 = sphi 0, %s221
    %s236 = sphi 0, %s222
    %s240 = sphi 0, %s240
    %s242 = sphi 0, %s240
    %s243 = sphi 0, %s242
    %s257 = sphi 0, %s243
    %s263 = sphi 0, %s265
    %s266 = sphi 0, %s263
    %s267 = sphi 0, %s266
    %s283 = sphi 0, %s267
  $region4: #{hourglass_forward.8} parent=0 // loop_header_branch
    %20 = sbr.rel (%p18) target = $region8
  $region5: #{hourglass_forward.8} parent=0 // loop_body
    %s22 = ssub.s32 %s17, 1
    %s23 = ssub.s32 %s17, 2
    %s24 = sadd.s32 %s17, 1
    %s25 = ssub.s32 %s17, %s24
    %p26 = scmp.eq.s32.totalorder %s25, 0
    %s28 = sadd.s32 %s27, 1
    %s29 = scalar_select %p26, %s27, %s28
    %p32 = pneg %p26
    %p33 = scmp.eq.s32.totalorder %s17, 1
    %p34 = por %p32, %p33
    %p35 = scmp.ne.s32.totalorder %s27, %s30
    %p36 = scmp.eq.s32.totalorder %s17, 0
    %p37 = por %p35, %p36
    %p38 = scmp.ne.s32.totalorder %s27, %s30
    %p39 = scmp.eq.s32.totalorder %s22, 1
    %p40 = por %p38, %p39
    %p41 = scmp.ne.s32.totalorder %s30, %s31
    %p42 = scmp.eq.s32.totalorder %s22, 0
    %p43 = por %p41, %p42
    %p44 = scmp.ne.s32.totalorder %s30, %s31
    %p45 = scmp.eq.s32.totalorder %s23, 1
    %p46 = por %p44, %p45
    %p48 = scmp.ne.s32.totalorder %s31, %s47
    %p49 = scmp.eq.s32.totalorder %s23, 0
    %p50 = por %p48, %p49
    %s52 = sadd.s32 %s51, 1
    %p55 = scmp.eq.s32.totalorder %s17, 1
    %p56 = scmp.ne.s32.totalorder %s51, %s53
    %p57 = scmp.eq.s32.totalorder %s17, 0
    %p58 = por %p56, %p57
    %p59 = scmp.ne.s32.totalorder %s51, %s53
    %p60 = scmp.eq.s32.totalorder %s22, 1
    %p61 = por %p59, %p60
    %p62 = scmp.ne.s32.totalorder %s53, %s54
    %p63 = scmp.eq.s32.totalorder %s22, 0
    %p64 = por %p62, %p63
    %p65 = scmp.ne.s32.totalorder %s53, %s54
    %p66 = scmp.eq.s32.totalorder %s23, 1
    %p67 = por %p65, %p66
    %p69 = scmp.ne.s32.totalorder %s54, %s68
    %p70 = scmp.eq.s32.totalorder %s23, 0
    %p71 = por %p69, %p70
    %s73 = sadd.s32 %s72, 1
    %p76 = scmp.eq.s32.totalorder %s17, 1
    %p77 = scmp.ne.s32.totalorder %s72, %s74
    %p78 = scmp.eq.s32.totalorder %s17, 0
    %p79 = por %p77, %p78
    %p80 = scmp.ne.s32.totalorder %s72, %s74
    %p81 = scmp.eq.s32.totalorder %s22, 1
    %p82 = por %p80, %p81
    %p83 = scmp.ne.s32.totalorder %s74, %s75
    %p84 = scmp.eq.s32.totalorder %s22, 0
    %p85 = por %p83, %p84
    %p86 = scmp.ne.s32.totalorder %s74, %s75
    %p87 = scmp.eq.s32.totalorder %s23, 1
    %p88 = por %p86, %p87
    %p90 = scmp.ne.s32.totalorder %s75, %s89
    %p91 = scmp.eq.s32.totalorder %s23, 0
    %p92 = por %p90, %p91
    %s94 = sadd.s32 %s93, 1
    %p97 = scmp.eq.s32.totalorder %s17, 1
    %p98 = scmp.ne.s32.totalorder %s93, %s95
    %p99 = scmp.eq.s32.totalorder %s17, 0
    %p100 = por %p98, %p99
    %p101 = scmp.ne.s32.totalorder %s93, %s95
    %p102 = scmp.eq.s32.totalorder %s22, 1
    %p103 = por %p101, %p102
    %p104 = scmp.ne.s32.totalorder %s95, %s96
    %p105 = scmp.eq.s32.totalorder %s22, 0
    %p106 = por %p104, %p105
    %p107 = scmp.ne.s32.totalorder %s95, %s96
    %p108 = scmp.eq.s32.totalorder %s23, 1
    %p109 = por %p107, %p108
    %p111 = scmp.ne.s32.totalorder %s96, %s110
    %p112 = scmp.eq.s32.totalorder %s23, 0
    %p113 = por %p111, %p112
    %s115 = sadd.s32 %s114, 1
    %p118 = scmp.eq.s32.totalorder %s17, 1
    %p119 = scmp.ne.s32.totalorder %s114, %s116
    %p120 = scmp.eq.s32.totalorder %s17, 0
    %p121 = por %p119, %p120
    %p122 = scmp.ne.s32.totalorder %s114, %s116
    %p123 = scmp.eq.s32.totalorder %s22, 1
    %p124 = por %p122, %p123
    %p125 = scmp.ne.s32.totalorder %s116, %s117
    %p126 = scmp.eq.s32.totalorder %s22, 0
    %p127 = por %p125, %p126
    %p128 = scmp.ne.s32.totalorder %s116, %s117
    %p129 = scmp.eq.s32.totalorder %s23, 1
    %p130 = por %p128, %p129
    %p132 = scmp.ne.s32.totalorder %s117, %s131
    %p133 = scmp.eq.s32.totalorder %s23, 0
    %p134 = por %p132, %p133
    %s136 = sadd.s32 %s135, 1
    %p139 = scmp.eq.s32.totalorder %s17, 1
    %p140 = scmp.ne.s32.totalorder %s135, %s137
    %p141 = scmp.eq.s32.totalorder %s17, 0
    %p142 = por %p140, %p141
    %p143 = scmp.ne.s32.totalorder %s135, %s137
    %p144 = scmp.eq.s32.totalorder %s22, 1
    %p145 = por %p143, %p144
    %p146 = scmp.ne.s32.totalorder %s137, %s138
    %p147 = scmp.eq.s32.totalorder %s22, 0
    %p148 = por %p146, %p147
    %p149 = scmp.ne.s32.totalorder %s137, %s138
    %p150 = scmp.eq.s32.totalorder %s23, 1
    %p151 = por %p149, %p150
    %p153 = scmp.ne.s32.totalorder %s138, %s152
    %p154 = scmp.eq.s32.totalorder %s23, 0
    %p155 = por %p153, %p154
    %s157 = sadd.s32 %s156, 1
    %p160 = scmp.eq.s32.totalorder %s17, 1
    %p161 = scmp.ne.s32.totalorder %s156, %s158
    %p162 = scmp.eq.s32.totalorder %s17, 0
    %p163 = por %p161, %p162
    %p164 = scmp.ne.s32.totalorder %s156, %s158
    %p165 = scmp.eq.s32.totalorder %s22, 1
    %p166 = por %p164, %p165
    %p167 = scmp.ne.s32.totalorder %s158, %s159
    %p168 = scmp.eq.s32.totalorder %s22, 0
    %p169 = por %p167, %p168
    %p170 = scmp.ne.s32.totalorder %s158, %s159
    %p171 = scmp.eq.s32.totalorder %s23, 1
    %p172 = por %p170, %p171
    %p174 = scmp.ne.s32.totalorder %s159, %s173
    %p175 = scmp.eq.s32.totalorder %s23, 0
    %p176 = por %p174, %p175
    %s178 = sadd.s32 %s177, 1
    %p181 = scmp.eq.s32.totalorder %s17, 1
    %p182 = scmp.ne.s32.totalorder %s177, %s179
    %p183 = scmp.eq.s32.totalorder %s17, 0
    %p184 = por %p182, %p183
    %p185 = scmp.ne.s32.totalorder %s177, %s179
    %p186 = scmp.eq.s32.totalorder %s22, 1
    %p187 = por %p185, %p186
    %p188 = scmp.ne.s32.totalorder %s179, %s180
    %p189 = scmp.eq.s32.totalorder %s22, 0
    %p190 = por %p188, %p189
    %p191 = scmp.ne.s32.totalorder %s179, %s180
    %p192 = scmp.eq.s32.totalorder %s23, 1
    %p193 = por %p191, %p192
    %p195 = scmp.ne.s32.totalorder %s180, %s194
    %p196 = scmp.eq.s32.totalorder %s23, 0
    %p197 = por %p195, %p196
    %s199 = sadd.s32 %s198, 1
    %p202 = scmp.eq.s32.totalorder %s17, 1
    %p203 = scmp.ne.s32.totalorder %s198, %s200
    %p204 = scmp.eq.s32.totalorder %s17, 0
    %p205 = por %p203, %p204
    %p206 = scmp.ne.s32.totalorder %s198, %s200
    %p207 = scmp.eq.s32.totalorder %s22, 1
    %p208 = por %p206, %p207
    %p209 = scmp.ne.s32.totalorder %s200, %s201
    %p210 = scmp.eq.s32.totalorder %s22, 0
    %p211 = por %p209, %p210
    %p212 = scmp.ne.s32.totalorder %s200, %s201
    %p213 = scmp.eq.s32.totalorder %s23, 1
    %p214 = por %p212, %p213
    %p216 = scmp.ne.s32.totalorder %s201, %s215
    %p217 = scmp.eq.s32.totalorder %s23, 0
    %p218 = por %p216, %p217
    %s220 = sadd.s32 %s219, 1
    %p223 = scmp.eq.s32.totalorder %s17, 1
    %p224 = scmp.ne.s32.totalorder %s219, %s221
    %p225 = scmp.eq.s32.totalorder %s17, 0
    %p226 = por %p224, %p225
    %p227 = scmp.ne.s32.totalorder %s219, %s221
    %p228 = scmp.eq.s32.totalorder %s22, 1
    %p229 = por %p227, %p228
    %p230 = scmp.ne.s32.totalorder %s221, %s222
    %p231 = scmp.eq.s32.totalorder %s22, 0
    %p232 = por %p230, %p231
    %p233 = scmp.ne.s32.totalorder %s221, %s222
    %p234 = scmp.eq.s32.totalorder %s23, 1
    %p235 = por %p233, %p234
    %p237 = scmp.ne.s32.totalorder %s222, %s236
    %p238 = scmp.eq.s32.totalorder %s23, 0
    %p239 = por %p237, %p238
    %s241 = sadd.s32 %s240, 1
    %p244 = scmp.eq.s32.totalorder %s17, 1
    %p245 = scmp.ne.s32.totalorder %s240, %s242
    %p246 = scmp.eq.s32.totalorder %s17, 0
    %p247 = por %p245, %p246
    %p248 = scmp.ne.s32.totalorder %s240, %s242
    %p249 = scmp.eq.s32.totalorder %s22, 1
    %p250 = por %p248, %p249
    %p251 = scmp.ne.s32.totalorder %s242, %s243
    %p252 = scmp.eq.s32.totalorder %s22, 0
    %p253 = por %p251, %p252
    %p254 = scmp.ne.s32.totalorder %s242, %s243
    %p255 = scmp.eq.s32.totalorder %s23, 1
    %p256 = por %p254, %p255
    %p258 = scmp.ne.s32.totalorder %s243, %s257
    %p259 = scmp.eq.s32.totalorder %s23, 0
    %p260 = por %p258, %p259
    %s261 = ssub.s32 %s17, %s24
    %p262 = scmp.eq.s32.totalorder %s261, 0
    %s264 = sadd.s32 %s263, 1
    %s265 = scalar_select %p262, %s263, %s264
    %p268 = pneg %p262
    %p269 = scmp.eq.s32.totalorder %s17, 1
    %p270 = por %p268, %p269
    %p271 = scmp.ne.s32.totalorder %s263, %s266
    %p272 = scmp.eq.s32.totalorder %s17, 0
    %p273 = por %p271, %p272
    %p274 = scmp.ne.s32.totalorder %s263, %s266
    %p275 = scmp.eq.s32.totalorder %s22, 1
    %p276 = por %p274, %p275
    %p277 = scmp.ne.s32.totalorder %s266, %s267
    %p278 = scmp.eq.s32.totalorder %s22, 0
    %p279 = por %p277, %p278
    %p280 = scmp.ne.s32.totalorder %s266, %s267
    %p281 = scmp.eq.s32.totalorder %s23, 1
    %p282 = por %p280, %p281
    %p284 = scmp.ne.s32.totalorder %s267, %s283
    %p285 = scmp.eq.s32.totalorder %s23, 0
    %p286 = por %p284, %p285
    %p287 = scmp.le.s32.totalorder 1, %s17
    %p288 = scmp.lt.s32.totalorder %s17, 3
    %p289 = pnand %p287, %p288
    %p290 = pneg %p289
    // Predicated region
    $region9: #{hourglass_forward.8} parent=5 // pred_check
      _
    $region10: #{hourglass_forward.8} parent=5 // pred_check_branch
      %292 = sbr.rel (%p289) target = $region12
    $region11: #{hourglass_forward.8} parent=5 // pred_region
      %s293 = ssub.s32 %s17, 1
      // Predicated region
      $region13: #{hourglass_forward.8} parent=11 // pred_check
        %p294 = pneg %p64
      $region14: #{hourglass_forward.8} parent=11 // pred_check_branch
        %296 = sbr.rel (%p294) target = $region16
      $region15: #{hourglass_forward.8} parent=11 // pred_region
        _
      $region16: #{hourglass_forward.8} parent=11 // pred_fallthru
        _
      // Predicated region
      $region17: #{hourglass_forward.8} parent=11 // pred_check
        %p297 = pneg %p85
      $region18: #{hourglass_forward.8} parent=11 // pred_check_branch
        %299 = sbr.rel (%p297) target = $region20
      $region19: #{hourglass_forward.8} parent=11 // pred_region
        _
      $region20: #{hourglass_forward.8} parent=11 // pred_fallthru
        _
      // Predicated region
      $region21: #{hourglass_forward.8} parent=11 // pred_check
        %p300 = pneg %p106
      $region22: #{hourglass_forward.8} parent=11 // pred_check_branch
        %302 = sbr.rel (%p300) target = $region24
      $region23: #{hourglass_forward.8} parent=11 // pred_region
        _
      $region24: #{hourglass_forward.8} parent=11 // pred_fallthru
        _
      // Predicated region
      $region25: #{hourglass_forward.8} parent=11 // pred_check
        %p303 = pneg %p127
      $region26: #{hourglass_forward.8} parent=11 // pred_check_branch
        %305 = sbr.rel (%p303) target = $region28
      $region27: #{hourglass_forward.8} parent=11 // pred_region
        _
      $region28: #{hourglass_forward.8} parent=11 // pred_fallthru
        _
      // Predicated region
      $region29: #{hourglass_forward.8} parent=11 // pred_check
        %p306 = pneg %p148
      $region30: #{hourglass_forward.8} parent=11 // pred_check_branch
        %308 = sbr.rel (%p306) target = $region32
      $region31: #{hourglass_forward.8} parent=11 // pred_region
        _
      $region32: #{hourglass_forward.8} parent=11 // pred_fallthru
        _
      // Predicated region
      $region33: #{hourglass_forward.8} parent=11 // pred_check
        %p309 = pneg %p169
      $region34: #{hourglass_forward.8} parent=11 // pred_check_branch
        %311 = sbr.rel (%p309) target = $region36
      $region35: #{hourglass_forward.8} parent=11 // pred_region
        _
      $region36: #{hourglass_forward.8} parent=11 // pred_fallthru
        _
      // Predicated region
      $region37: #{hourglass_forward.8} parent=11 // pred_check
        %p312 = pneg %p190
      $region38: #{hourglass_forward.8} parent=11 // pred_check_branch
        %314 = sbr.rel (%p312) target = $region40
      $region39: #{hourglass_forward.8} parent=11 // pred_region
        _
      $region40: #{hourglass_forward.8} parent=11 // pred_fallthru
        _
      // Predicated region
      $region41: #{hourglass_forward.8} parent=11 // pred_check
        %p315 = pneg %p211
      $region42: #{hourglass_forward.8} parent=11 // pred_check_branch
        %317 = sbr.rel (%p315) target = $region44
      $region43: #{hourglass_forward.8} parent=11 // pred_region
        _
      $region44: #{hourglass_forward.8} parent=11 // pred_fallthru
        _
      // Predicated region
      $region45: #{hourglass_forward.8} parent=11 // pred_check
        %p318 = pneg %p232
      $region46: #{hourglass_forward.8} parent=11 // pred_check_branch
        %320 = sbr.rel (%p318) target = $region48
      $region47: #{hourglass_forward.8} parent=11 // pred_region
        _
      $region48: #{hourglass_forward.8} parent=11 // pred_fallthru
        _
      // Predicated region
      $region49: #{hourglass_forward.8} parent=11 // pred_check
        %p321 = pneg %p253
      $region50: #{hourglass_forward.8} parent=11 // pred_check_branch
        %323 = sbr.rel (%p321) target = $region52
      $region51: #{hourglass_forward.8} parent=11 // pred_region
        _
      $region52: #{hourglass_forward.8} parent=11 // pred_fallthru
        _
    $region12: #{hourglass_forward.8} parent=5 // pred_fallthru
      _
    %p324 = scmp.lt.s32.totalorder %s17, 2
    // Predicated region
    $region53: #{hourglass_forward.8} parent=5 // pred_check
      %p325 = pneg %p324
    $region54: #{hourglass_forward.8} parent=5 // pred_check_branch
      %327 = sbr.rel (%p325) target = $region56
    $region55: #{hourglass_forward.8} parent=5 // pred_region
      // Predicated region
      $region57: #{hourglass_forward.8} parent=55 // pred_check
        %p328 = pneg %p37
      $region58: #{hourglass_forward.8} parent=55 // pred_check_branch
        %330 = sbr.rel (%p328) target = $region60
      $region59: #{hourglass_forward.8} parent=55 // pred_region
        %p331 = scmp.lt.s32.totalorder %s17, 1
        %s332 = scalar_select %p331, %s17, 1
        %s333 = smul.addr %s332, 13
        %s334 = smul.addr %s333, 8
        %s335 = scalar_lea.vmem %s0, %s334
      $region60: #{hourglass_forward.8} parent=55 // pred_fallthru
        _
    $region56: #{hourglass_forward.8} parent=5 // pred_fallthru
      _
    %p336 = scmp.le.s32.totalorder 1, %s17
    %p337 = scmp.lt.s32.totalorder %s17, 3
    %p338 = pnand %p336, %p337
    %p339 = pneg %p338
    // Predicated region
    $region61: #{hourglass_forward.8} parent=5 // pred_check
      _
    $region62: #{hourglass_forward.8} parent=5 // pred_check_branch
      %341 = sbr.rel (%p338) target = $region64
    $region63: #{hourglass_forward.8} parent=5 // pred_region
      %s342 = ssub.s32 %s17, 1
      %p343 = scmp.lt.s32.totalorder %s22, 1
      %s344 = scalar_select %p343, %s22, 1
      %s345 = smul.addr %s344, 13
      %s346 = smul.addr %s345, 8
      %s347 = scalar_lea.vmem %s0, %s346
      %p348 = pneg %p43
      %p349 = pneg %p40
      %p350 = pneg %p64
      %p351 = pneg %p61
      %p352 = pneg %p85
      %p353 = pneg %p82
      %p354 = pneg %p106
      %p355 = pneg %p103
      %p356 = pneg %p127
      %p357 = pneg %p124
      %p358 = pneg %p148
      %p359 = pneg %p145
      %p360 = pneg %p169
      %p361 = pneg %p166
      %p362 = pneg %p190
      %p363 = pneg %p187
      %p364 = pneg %p211
      %p365 = pneg %p208
      %p366 = pneg %p232
      %p367 = pneg %p229
      %p368 = pneg %p253
      %p369 = pneg %p250
      %p370 = pneg %p279
      %p371 = pneg %p276
      %p372 = scmp.lt.s32.totalorder %s22, 1
      %s373 = scalar_select %p372, %s22, 1
      %s374 = smul.addr %s373, 13
      %s375 = smul.addr %s374, 8
      %s376 = scalar_lea.vmem %s11, %s375
      %p377 = scmp.lt.s32.totalorder %s22, 1
      %s378 = scalar_select %p377, %s22, 1
      %s379 = smul.addr %s378, 13
      %s380 = smul.addr %s379, 8
      %s381 = scalar_lea.vmem %s0, %s380
      %p382 = scmp.lt.s32.totalorder %s22, 1
      %s383 = scalar_select %p382, %s22, 1
      %s384 = smul.addr %s383, 13
      %s385 = smul.addr %s384, 8
      %s386 = scalar_lea.vmem %s11, %s385
      %v388 = vld [vmem:[%s381] sm:$0xff]
      %v389 = vld [vmem:[%s381 + $0x8] sm:$0xff]
      %v390 = vld [vmem:[%s381 + $0x10] sm:$0xff]
      %v391 = vld [vmem:[%s381 + $0x18] sm:$0xff]
      %v392 = vld [vmem:[%s381 + $0x20] sm:$0xff]
      %v393 = vld [vmem:[%s381 + $0x28] sm:$0xff]
      %v394 = vld [vmem:[%s381 + $0x30] sm:$0xff]
      %v395 = vld [vmem:[%s381 + $0x38] sm:$0xff]
      %v396 = vld [vmem:[%s381 + $0x40] sm:$0xff]
      %v397 = vld [vmem:[%s381 + $0x48] sm:$0xff]
      %v398 = vld [vmem:[%s381 + $0x50] sm:$0xff]
      %v399 = vld [vmem:[%s381 + $0x58] sm:$0xff]
      %v400 = vld [vmem:[%s381 + $0x60] sm:$0xf]
      %v401 = vld [vmem:[%s1] sm:$0x1]
      %v403 = vlaneseq
      %v404 = vshrl.u32 %v403, 7
      %v405 = vsub.s32 0, %v404
      %v406 = vrot.slane %v401, %v405
      %v408 = vmul.f32 %v388, %v406
      %v409 = vmul.f32 %v389, %v406
      %v410 = vmul.f32 %v390, %v406
      %v411 = vmul.f32 %v391, %v406
      %v412 = vmul.f32 %v392, %v406
      %v413 = vmul.f32 %v393, %v406
      %v414 = vmul.f32 %v394, %v406
      %v415 = vmul.f32 %v395, %v406
      %v416 = vmul.f32 %v396, %v406
      %v417 = vmul.f32 %v397, %v406
      %v418 = vmul.f32 %v398, %v406
      %v419 = vmul.f32 %v399, %v406
      %v420 = vmul.f32 %v400, %v406
      %v421 = vld [vmem:[%s2] sm:$0x1]
      %v423 = vlaneseq
      %v424 = vshrl.u32 %v423, 7
      %v425 = vsub.s32 0, %v424
      %v426 = vrot.slane %v421, %v425
      %v428 = vadd.f32 %v408, %v426
      %v429 = vadd.f32 %v409, %v426
      %v430 = vadd.f32 %v410, %v426
      %v431 = vadd.f32 %v411, %v426
      %v432 = vadd.f32 %v412, %v426
      %v433 = vadd.f32 %v413, %v426
      %v434 = vadd.f32 %v414, %v426
      %v435 = vadd.f32 %v415, %v426
      %v436 = vadd.f32 %v416, %v426
      %v437 = vadd.f32 %v417, %v426
      %v438 = vadd.f32 %v418, %v426
      %v439 = vadd.f32 %v419, %v426
      %v440 = vadd.f32 %v420, %v426
      %v441 = vmax.f32 %v428, 0.0
      %v442 = vmax.f32 %v429, 0.0
      %v443 = vmax.f32 %v430, 0.0
      %v444 = vmax.f32 %v431, 0.0
      %v445 = vmax.f32 %v432, 0.0
      %v446 = vmax.f32 %v433, 0.0
      %v447 = vmax.f32 %v434, 0.0
      %v448 = vmax.f32 %v435, 0.0
      %v449 = vmax.f32 %v436, 0.0
      %v450 = vmax.f32 %v437, 0.0
      %v451 = vmax.f32 %v438, 0.0
      %v452 = vmax.f32 %v439, 0.0
      %v453 = vmax.f32 %v440, 0.0
      %v454 = vpack.c.bf16 %v442, %v441
      %v455 = vpack.c.bf16 %v444, %v443
      %v456 = vpack.c.bf16 %v446, %v445
      %v457 = vpack.c.bf16 %v448, %v447
      %v458 = vpack.c.bf16 %v450, %v449
      %v459 = vpack.c.bf16 %v452, %v451
      %v460 = vpack.c.bf16 %v453, %v453
      %v461 = vld [vmem:[%s3] sm:$0xf]
      %vm462 = vcmask 64512
      %v464 = vsel %vm462, %v454, 0
      %v467 = vsel %vm462, %v455, 0
      %v470 = vsel %vm462, %v456, 0
      %v473 = vsel %vm462, %v457, 0
      %v476 = vsel %vm462, %v458, 0
      %v479 = vsel %vm462, %v459, 0
      %v482 = vsel %vm462, %v460, 0
      %vm484 = vcmask 1043456
      %v486 = vsel %vm484, %v461, 0
      %488 = vmatprep.subr.bf16.mxu0 0
      %489 = vmatpush1.bf16.msra.mxu0 0
      %490 = vmatprep.subr.bf16.mxu0 0
      %491 = vmatpush1.bf16.msra.mxu0 0
      %492 = vmatprep.subr.bf16.mxu0 0
      %493 = vmatpush1.bf16.msra.mxu0 0
      %494 = vmatprep.subr.bf16.mxu0 0
      %495 = vmatpush1.bf16.msra.mxu0 0
      %496 = vmatprep.subr.bf16.mxu0 0
      %497 = vmatpush1.bf16.msra.mxu0 0
      %498 = vmatprep.subr.bf16.mxu0 0
      %499 = vmatpush1.bf16.msra.mxu0 0
      %500 = vmatprep.subr.bf16.mxu0 0
      %501 = vmatpush1.bf16.msra.mxu0 0
      %502 = vmatprep.subr.bf16.mxu0 0
      %503 = vmatpush1.bf16.msra.mxu0 %v486
      %504 = vmatprep.subr.bf16.mxu0 0
      %505 = vmatpush2.bf16.msra.mxu0 0
      %506 = vmatprep.subr.bf16.mxu0 0
      %507 = vmatpush2.bf16.msra.mxu0 0
      %508 = vmatprep.subr.bf16.mxu0 0
      %509 = vmatpush2.bf16.msra.mxu0 0
      %510 = vmatprep.subr.bf16.mxu0 0
      %511 = vmatpush2.bf16.msra.mxu0 0
      %512 = vmatprep.subr.bf16.mxu0 0
      %513 = vmatpush2.bf16.msra.mxu0 0
      %514 = vmatprep.subr.bf16.mxu0 0
      %515 = vmatpush2.bf16.msra.mxu0 0
      %516 = vmatprep.subr.bf16.mxu0 0
      %517 = vmatpush2.bf16.msra.mxu0 0
      %518 = vmatprep.subr.bf16.mxu0 0
      %519 = vmatpush2.bf16.msra.mxu0 0
      %520 = vmatprep.mubr.bf16.mxu0 0
      %521 = vmatmul.mubr.bf16.gmra.mxu0 %v464
      %v522 = vpop.f32.mrf.mxu0
      %v523 = vadd.f32 0.0, %v522
      %v524 = vpop.f32.mrf.mxu0
      %v525 = vpop.f32.mrf.mxu0
      %v526 = vadd.f32 0.0, %v525
      %v527 = vpop.f32.mrf.mxu0
      %528 = vmatprep.mubr.bf16.mxu0 0
      %529 = vmatmul.mubr.bf16.gmra.mxu0 %v467
      %v530 = vpop.f32.mrf.mxu0
      %v531 = vadd.f32 0.0, %v530
      %v532 = vpop.f32.mrf.mxu0
      %v533 = vpop.f32.mrf.mxu0
      %v534 = vadd.f32 0.0, %v533
      %v535 = vpop.f32.mrf.mxu0
      %536 = vmatprep.mubr.bf16.mxu0 0
      %537 = vmatmul.mubr.bf16.gmra.mxu0 %v470
      %v538 = vpop.f32.mrf.mxu0
      %v539 = vadd.f32 0.0, %v538
      %v540 = vpop.f32.mrf.mxu0
      %v541 = vpop.f32.mrf.mxu0
      %v542 = vadd.f32 0.0, %v541
      %v543 = vpop.f32.mrf.mxu0
      %544 = vmatprep.mubr.bf16.mxu0 0
      %545 = vmatmul.mubr.bf16.gmra.mxu0 %v473
      %v546 = vpop.f32.mrf.mxu0
      %v547 = vadd.f32 0.0, %v546
      %v548 = vpop.f32.mrf.mxu0
      %v549 = vpop.f32.mrf.mxu0
      %v550 = vadd.f32 0.0, %v549
      %v551 = vpop.f32.mrf.mxu0
      %552 = vmatprep.mubr.bf16.mxu0 0
      %553 = vmatmul.mubr.bf16.gmra.mxu0 %v476
      %v554 = vpop.f32.mrf.mxu0
      %v555 = vadd.f32 0.0, %v554
      %v556 = vpop.f32.mrf.mxu0
      %v557 = vpop.f32.mrf.mxu0
      %v558 = vadd.f32 0.0, %v557
      %v559 = vpop.f32.mrf.mxu0
      %560 = vmatprep.mubr.bf16.mxu0 0
      %561 = vmatmul.mubr.bf16.gmra.mxu0 %v479
      %v562 = vpop.f32.mrf.mxu0
      %v563 = vadd.f32 0.0, %v562
      %v564 = vpop.f32.mrf.mxu0
      %v565 = vpop.f32.mrf.mxu0
      %v566 = vadd.f32 0.0, %v565
      %v567 = vpop.f32.mrf.mxu0
      %568 = vmatprep.mubr.bf16.mxu0 0
      %569 = vmatmul.mubr.bf16.gmra.mxu0 %v482
      %v570 = vpop.f32.mrf.mxu0
      %v571 = vadd.f32 0.0, %v570
      %v572 = vpop.f32.mrf.mxu0
      %v573 = vpop.f32.mrf.mxu0
      %v574 = vpop.f32.mrf.mxu0
      %575 = vdwg.mxu0
      %v576 = vld [vmem:[%s4] sm:$0x1]
      %v578 = vlaneseq
      %v579 = vshrl.u32 %v578, 7
      %v580 = vsub.s32 0, %v579
      %v581 = vrot.slane %v576, %v580
      %v583 = vmul.f32 %v523, %v581
      %v584 = vmul.f32 %v526, %v581
      %v585 = vmul.f32 %v531, %v581
      %v586 = vmul.f32 %v534, %v581
      %v587 = vmul.f32 %v539, %v581
      %v588 = vmul.f32 %v542, %v581
      %v589 = vmul.f32 %v547, %v581
      %v590 = vmul.f32 %v550, %v581
      %v591 = vmul.f32 %v555, %v581
      %v592 = vmul.f32 %v558, %v581
      %v593 = vmul.f32 %v563, %v581
      %v594 = vmul.f32 %v566, %v581
      %v595 = vmul.f32 %v571, %v581
      %v596 = vld [vmem:[%s5] sm:$0x1]
      %v598 = vlaneseq
      %v599 = vshrl.u32 %v598, 7
      %v600 = vsub.s32 0, %v599
      %v601 = vrot.slane %v596, %v600
      %v603 = vadd.f32 %v583, %v601
      %v604 = vadd.f32 %v584, %v601
      %v605 = vadd.f32 %v585, %v601
      %v606 = vadd.f32 %v586, %v601
      %v607 = vadd.f32 %v587, %v601
      %v608 = vadd.f32 %v588, %v601
      %v609 = vadd.f32 %v589, %v601
      %v610 = vadd.f32 %v590, %v601
      %v611 = vadd.f32 %v591, %v601
      %v612 = vadd.f32 %v592, %v601
      %v613 = vadd.f32 %v593, %v601
      %v614 = vadd.f32 %v594, %v601
      %v615 = vadd.f32 %v595, %v601
      %v616 = vmax.f32 %v603, 0.0
      %v617 = vmax.f32 %v604, 0.0
      %v618 = vmax.f32 %v605, 0.0
      %v619 = vmax.f32 %v606, 0.0
      %v620 = vmax.f32 %v607, 0.0
      %v621 = vmax.f32 %v608, 0.0
      %v622 = vmax.f32 %v609, 0.0
      %v623 = vmax.f32 %v610, 0.0
      %v624 = vmax.f32 %v611, 0.0
      %v625 = vmax.f32 %v612, 0.0
      %v626 = vmax.f32 %v613, 0.0
      %v627 = vmax.f32 %v614, 0.0
      %v628 = vmax.f32 %v615, 0.0
      %v629 = vlaneseq
      %v630 = vshrl.u32 %v629, 7
      %v631 = vadd.s32 %v630, 8
      %v632 = vadd.s32 %v630, 16
      %v633 = vadd.s32 %v630, 24
      %v634 = vadd.s32 %v630, 32
      %v635 = vadd.s32 %v630, 40
      %v636 = vadd.s32 %v630, 48
      %v637 = vadd.s32 %v630, 56
      %v638 = vadd.s32 %v630, 64
      %v639 = vadd.s32 %v630, 72
      %v640 = vadd.s32 %v630, 80
      %v641 = vadd.s32 %v630, 88
      %v642 = vadd.s32 %v630, 96
      %v643 = vcvt.s32.f32 %v630
      %v644 = vcvt.s32.f32 %v631
      %v645 = vcvt.s32.f32 %v632
      %v646 = vcvt.s32.f32 %v633
      %v647 = vcvt.s32.f32 %v634
      %v648 = vcvt.s32.f32 %v635
      %v649 = vcvt.s32.f32 %v636
      %v650 = vcvt.s32.f32 %v637
      %v651 = vcvt.s32.f32 %v638
      %v652 = vcvt.s32.f32 %v639
      %v653 = vcvt.s32.f32 %v640
      %v654 = vcvt.s32.f32 %v641
      %v655 = vcvt.s32.f32 %v642
      %v656 = vadd.f32 %v643, 0.5
      %v657 = vadd.f32 %v644, 0.5
      %v658 = vadd.f32 %v645, 0.5
      %v659 = vadd.f32 %v646, 0.5
      %v660 = vadd.f32 %v647, 0.5
      %v661 = vadd.f32 %v648, 0.5
      %v662 = vadd.f32 %v649, 0.5
      %v663 = vadd.f32 %v650, 0.5
      %v664 = vadd.f32 %v651, 0.5
      %v665 = vadd.f32 %v652, 0.5
      %v666 = vadd.f32 %v653, 0.5
      %v667 = vadd.f32 %v654, 0.5
      %v668 = vadd.f32 %v655, 0.5
      %v669 = vmul.f32 %v656, 0.1
      %v670 = vmul.f32 %v657, 0.1
      %v671 = vmul.f32 %v658, 0.1
      %v672 = vmul.f32 %v659, 0.1
      %v673 = vmul.f32 %v660, 0.1
      %v674 = vmul.f32 %v661, 0.1
      %v675 = vmul.f32 %v662, 0.1
      %v676 = vmul.f32 %v663, 0.1
      %v677 = vmul.f32 %v664, 0.1
      %v678 = vmul.f32 %v665, 0.1
      %v679 = vmul.f32 %v666, 0.1
      %v680 = vmul.f32 %v667, 0.1
      %v681 = vmul.f32 %v668, 0.1
      %v682 = vcvt.f32.s32.to.zero.pseudo %v669
      %v683 = vcvt.f32.s32.to.zero.pseudo %v670
      %v684 = vcvt.f32.s32.to.zero.pseudo %v671
      %v685 = vcvt.f32.s32.to.zero.pseudo %v672
      %v686 = vcvt.f32.s32.to.zero.pseudo %v673
      %v687 = vcvt.f32.s32.to.zero.pseudo %v674
      %v688 = vcvt.f32.s32.to.zero.pseudo %v675
      %v689 = vcvt.f32.s32.to.zero.pseudo %v676
      %v690 = vcvt.f32.s32.to.zero.pseudo %v677
      %v691 = vcvt.f32.s32.to.zero.pseudo %v678
      %v692 = vcvt.f32.s32.to.zero.pseudo %v679
      %v693 = vcvt.f32.s32.to.zero.pseudo %v680
      %v694 = vcvt.f32.s32.to.zero.pseudo %v681
      %v695 = vmul.u32 %v682, 10
      %v696 = vmul.u32 %v683, 10
      %v697 = vmul.u32 %v684, 10
      %v698 = vmul.u32 %v685, 10
      %v699 = vmul.u32 %v686, 10
      %v700 = vmul.u32 %v687, 10
      %v701 = vmul.u32 %v688, 10
      %v702 = vmul.u32 %v689, 10
      %v703 = vmul.u32 %v690, 10
      %v704 = vmul.u32 %v691, 10
      %v705 = vmul.u32 %v692, 10
      %v706 = vmul.u32 %v693, 10
      %v707 = vmul.u32 %v694, 10
      %v708 = vsub.s32 %v630, %v695
      %v709 = vsub.s32 %v631, %v696
      %v710 = vsub.s32 %v632, %v697
      %v711 = vsub.s32 %v633, %v698
      %v712 = vsub.s32 %v634, %v699
      %v713 = vsub.s32 %v635, %v700
      %v714 = vsub.s32 %v636, %v701
      %v715 = vsub.s32 %v637, %v702
      %v716 = vsub.s32 %v638, %v703
      %v717 = vsub.s32 %v639, %v704
      %v718 = vsub.s32 %v640, %v705
      %v719 = vsub.s32 %v641, %v706
      %v720 = vsub.s32 %v642, %v707
      %vm721 = vcmp.ge.s32.totalorder %v682, 1
      %vm722 = vcmp.ge.s32.totalorder %v683, 1
      %vm723 = vcmp.ge.s32.totalorder %v684, 1
      %vm724 = vcmp.ge.s32.totalorder %v685, 1
      %vm725 = vcmp.ge.s32.totalorder %v686, 1
      %vm726 = vcmp.ge.s32.totalorder %v687, 1
      %vm727 = vcmp.ge.s32.totalorder %v688, 1
      %vm728 = vcmp.ge.s32.totalorder %v689, 1
      %vm729 = vcmp.ge.s32.totalorder %v690, 1
      %vm730 = vcmp.ge.s32.totalorder %v691, 1
      %vm731 = vcmp.ge.s32.totalorder %v692, 1
      %vm732 = vcmp.ge.s32.totalorder %v693, 1
      %vm733 = vcmp.ge.s32.totalorder %v694, 1
      %vm734 = vcmp.le.s32.totalorder %v682, 8
      %vm735 = vcmp.le.s32.totalorder %v683, 8
      %vm736 = vcmp.le.s32.totalorder %v684, 8
      %vm737 = vcmp.le.s32.totalorder %v685, 8
      %vm738 = vcmp.le.s32.totalorder %v686, 8
      %vm739 = vcmp.le.s32.totalorder %v687, 8
      %vm740 = vcmp.le.s32.totalorder %v688, 8
      %vm741 = vcmp.le.s32.totalorder %v689, 8
      %vm742 = vcmp.le.s32.totalorder %v690, 8
      %vm743 = vcmp.le.s32.totalorder %v691, 8
      %vm744 = vcmp.le.s32.totalorder %v692, 8
      %vm745 = vcmp.le.s32.totalorder %v693, 8
      %vm746 = vcmp.le.s32.totalorder %v694, 8
      %vm747 = vmand %vm721, %vm734
      %vm748 = vmand %vm722, %vm735
      %vm749 = vmand %vm723, %vm736
      %vm750 = vmand %vm724, %vm737
      %vm751 = vmand %vm725, %vm738
      %vm752 = vmand %vm726, %vm739
      %vm753 = vmand %vm727, %vm740
      %vm754 = vmand %vm728, %vm741
      %vm755 = vmand %vm729, %vm742
      %vm756 = vmand %vm730, %vm743
      %vm757 = vmand %vm731, %vm744
      %vm758 = vmand %vm732, %vm745
      %vm759 = vmand %vm733, %vm746
      %vm760 = vcmp.ge.s32.totalorder %v708, 1
      %vm761 = vcmp.ge.s32.totalorder %v709, 1
      %vm762 = vcmp.ge.s32.totalorder %v710, 1
      %vm763 = vcmp.ge.s32.totalorder %v711, 1
      %vm764 = vcmp.ge.s32.totalorder %v712, 1
      %vm765 = vcmp.ge.s32.totalorder %v713, 1
      %vm766 = vcmp.ge.s32.totalorder %v714, 1
      %vm767 = vcmp.ge.s32.totalorder %v715, 1
      %vm768 = vcmp.ge.s32.totalorder %v716, 1
      %vm769 = vcmp.ge.s32.totalorder %v717, 1
      %vm770 = vcmp.ge.s32.totalorder %v718, 1
      %vm771 = vcmp.ge.s32.totalorder %v719, 1
      %vm772 = vcmp.ge.s32.totalorder %v720, 1
      %vm773 = vmand %vm747, %vm760
      %vm774 = vmand %vm748, %vm761
      %vm775 = vmand %vm749, %vm762
      %vm776 = vmand %vm750, %vm763
      %vm777 = vmand %vm751, %vm764
      %vm778 = vmand %vm752, %vm765
      %vm779 = vmand %vm753, %vm766
      %vm780 = vmand %vm754, %vm767
      %vm781 = vmand %vm755, %vm768
      %vm782 = vmand %vm756, %vm769
      %vm783 = vmand %vm757, %vm770
      %vm784 = vmand %vm758, %vm771
      %vm785 = vmand %vm759, %vm772
      %vm786 = vcmp.le.s32.totalorder %v708, 8
      %vm787 = vcmp.le.s32.totalorder %v709, 8
      %vm788 = vcmp.le.s32.totalorder %v710, 8
      %vm789 = vcmp.le.s32.totalorder %v711, 8
      %vm790 = vcmp.le.s32.totalorder %v712, 8
      %vm791 = vcmp.le.s32.totalorder %v713, 8
      %vm792 = vcmp.le.s32.totalorder %v714, 8
      %vm793 = vcmp.le.s32.totalorder %v715, 8
      %vm794 = vcmp.le.s32.totalorder %v716, 8
      %vm795 = vcmp.le.s32.totalorder %v717, 8
      %vm796 = vcmp.le.s32.totalorder %v718, 8
      %vm797 = vcmp.le.s32.totalorder %v719, 8
      %vm798 = vcmp.le.s32.totalorder %v720, 8
      %vm799 = vmand %vm773, %vm786
      %vm800 = vmand %vm774, %vm787
      %vm801 = vmand %vm775, %vm788
      %vm802 = vmand %vm776, %vm789
      %vm803 = vmand %vm777, %vm790
      %vm804 = vmand %vm778, %vm791
      %vm805 = vmand %vm779, %vm792
      %vm806 = vmand %vm780, %vm793
      %vm807 = vmand %vm781, %vm794
      %vm808 = vmand %vm782, %vm795
      %vm809 = vmand %vm783, %vm796
      %vm810 = vmand %vm784, %vm797
      %vm811 = vmand %vm785, %vm798
      %v812 = vsel %vm799, 1, 0
      %v813 = vsel %vm800, 1, 0
      %v814 = vsel %vm801, 1, 0
      %v815 = vsel %vm802, 1, 0
      %v816 = vsel %vm803, 1, 0
      %v817 = vsel %vm804, 1, 0
      %v818 = vsel %vm805, 1, 0
      %v819 = vsel %vm806, 1, 0
      %v820 = vsel %vm807, 1, 0
      %v821 = vsel %vm808, 1, 0
      %v822 = vsel %vm809, 1, 0
      %v823 = vsel %vm810, 1, 0
      %v824 = vsel %vm811, 1, 0
      %v825 = vcvt.s32.f32 %v812
      %v826 = vcvt.s32.f32 %v813
      %v827 = vcvt.s32.f32 %v814
      %v828 = vcvt.s32.f32 %v815
      %v829 = vcvt.s32.f32 %v816
      %v830 = vcvt.s32.f32 %v817
      %v831 = vcvt.s32.f32 %v818
      %v832 = vcvt.s32.f32 %v819
      %v833 = vcvt.s32.f32 %v820
      %v834 = vcvt.s32.f32 %v821
      %v835 = vcvt.s32.f32 %v822
      %v836 = vcvt.s32.f32 %v823
      %v837 = vcvt.s32.f32 %v824
      %v838 = vmul.f32 %v616, %v825
      %v839 = vmul.f32 %v617, %v826
      %v840 = vmul.f32 %v618, %v827
      %v841 = vmul.f32 %v619, %v828
      %v842 = vmul.f32 %v620, %v829
      %v843 = vmul.f32 %v621, %v830
      %v844 = vmul.f32 %v622, %v831
      %v845 = vmul.f32 %v623, %v832
      %v846 = vmul.f32 %v624, %v833
      %v847 = vmul.f32 %v625, %v834
      %v848 = vmul.f32 %v626, %v835
      %v849 = vmul.f32 %v627, %v836
      %v850 = vmul.f32 %v628, %v837
      %v851 = vld [vmem:[%s6] sm:$0xf]
      %v852 = vld [vmem:[%s6 + $0x4] sm:$0x3]
      %v853 = vpack.c.bf16 %v839, %v838
      %v854 = vpack.c.bf16 %v841, %v840
      %v855 = vpack.c.bf16 %v843, %v842
      %v856 = vpack.c.bf16 %v845, %v844
      %v857 = vpack.c.bf16 %v847, %v846
      %vm858 = vsmask.f32 7424
      %v860 = vshrl.u32 %v853, 16
      %v862 = vshll.u32 %v853, 16
      %v864 = vrot.slane %v862, 1
      %v865 = vor.u32 %v860, %v864
      %v867 = vshll.u32 %v854, 16
      %v869 = vrot.slane %v867, 1
      %v870 = vsel %vm858, %v865, %v869
      %v871 = vshrl.u32 %v854, 16
      %v873 = vor.u32 %v871, %v869
      %v875 = vshll.u32 %v855, 16
      %v877 = vrot.slane %v875, 1
      %v878 = vsel %vm858, %v873, %v877
      %v879 = vshrl.u32 %v855, 16
      %v881 = vor.u32 %v879, %v877
      %v883 = vshll.u32 %v856, 16
      %v885 = vrot.slane %v883, 1
      %v886 = vsel %vm858, %v881, %v885
      %v887 = vshrl.u32 %v856, 16
      %v889 = vor.u32 %v887, %v885
      %v891 = vshll.u32 %v857, 16
      %v893 = vrot.slane %v891, 1
      %v894 = vsel %vm858, %v889, %v893
      %v895 = vshrl.u32 %v857, 16
      %v897 = vor.u32 %v895, %v893
      %v899 = vunpack.c.l.b16 %v851
      %v900 = vpack.c.b16 %v899, %v899
      %v901 = vrot.slane %v900, 2
      %vm902 = vcmask 31744
      %v904 = vsel %vm902, %v870, 0
      %v907 = vsel %vm902, %v878, 0
      %v910 = vsel %vm902, %v886, 0
      %v913 = vsel %vm902, %v894, 0
      %v916 = vsel %vm902, %v897, 0
      %vm918 = vcmask 1041408
      %v920 = vsel %vm918, %v901, 0
      %922 = vmatprep.subr.bf16.mxu0 0
      %923 = vmatpush1.bf16.msra.mxu0 0
      %924 = vmatprep.subr.bf16.mxu0 0
      %925 = vmatpush1.bf16.msra.mxu0 0
      %926 = vmatprep.subr.bf16.mxu0 0
      %927 = vmatpush1.bf16.msra.mxu0 0
      %928 = vmatprep.subr.bf16.mxu0 0
      %929 = vmatpush1.bf16.msra.mxu0 0
      %930 = vmatprep.subr.bf16.mxu0 0
      %931 = vmatpush1.bf16.msra.mxu0 0
      %932 = vmatprep.subr.bf16.mxu0 0
      %933 = vmatpush1.bf16.msra.mxu0 0
      %934 = vmatprep.subr.bf16.mxu0 0
      %935 = vmatpush1.bf16.msra.mxu0 0
      %936 = vmatprep.subr.bf16.mxu0 0
      %937 = vmatpush1.bf16.msra.mxu0 %v920
      %938 = vmatprep.subr.bf16.mxu0 0
      %939 = vmatpush2.bf16.msra.mxu0 0
      %940 = vmatprep.subr.bf16.mxu0 0
      %941 = vmatpush2.bf16.msra.mxu0 0
      %942 = vmatprep.subr.bf16.mxu0 0
      %943 = vmatpush2.bf16.msra.mxu0 0
      %944 = vmatprep.subr.bf16.mxu0 0
      %945 = vmatpush2.bf16.msra.mxu0 0
      %946 = vmatprep.subr.bf16.mxu0 0
      %947 = vmatpush2.bf16.msra.mxu0 0
      %948 = vmatprep.subr.bf16.mxu0 0
      %949 = vmatpush2.bf16.msra.mxu0 0
      %950 = vmatprep.subr.bf16.mxu0 0
      %951 = vmatpush2.bf16.msra.mxu0 0
      %952 = vmatprep.subr.bf16.mxu0 0
      %953 = vmatpush2.bf16.msra.mxu0 0
      %954 = vmatprep.mubr.bf16.mxu0 0
      %955 = vmatmul.mubr.bf16.gmra.mxu0 %v904
      %v956 = vpop.f32.mrf.mxu0
      %v957 = vadd.f32 0.0, %v956
      %v958 = vpop.f32.mrf.mxu0
      %v959 = vpop.f32.mrf.mxu0
      %v960 = vadd.f32 0.0, %v959
      %v961 = vpop.f32.mrf.mxu0
      %962 = vmatprep.mubr.bf16.mxu0 0
      %963 = vmatmul.mubr.bf16.gmra.mxu0 %v907
      %v964 = vpop.f32.mrf.mxu0
      %v965 = vadd.f32 0.0, %v964
      %v966 = vpop.f32.mrf.mxu0
      %v967 = vpop.f32.mrf.mxu0
      %v968 = vadd.f32 0.0, %v967
      %v969 = vpop.f32.mrf.mxu0
      %970 = vmatprep.mubr.bf16.mxu0 0
      %971 = vmatmul.mubr.bf16.gmra.mxu0 %v910
      %v972 = vpop.f32.mrf.mxu0
      %v973 = vadd.f32 0.0, %v972
      %v974 = vpop.f32.mrf.mxu0
      %v975 = vpop.f32.mrf.mxu0
      %v976 = vadd.f32 0.0, %v975
      %v977 = vpop.f32.mrf.mxu0
      %978 = vmatprep.mubr.bf16.mxu0 0
      %979 = vmatmul.mubr.bf16.gmra.mxu0 %v913
      %v980 = vpop.f32.mrf.mxu0
      %v981 = vadd.f32 0.0, %v980
      %v982 = vpop.f32.mrf.mxu0
      %v983 = vpop.f32.mrf.mxu0
      %v984 = vadd.f32 0.0, %v983
      %v985 = vpop.f32.mrf.mxu0
      %986 = vmatprep.mubr.bf16.mxu0 0
      %987 = vmatmul.mubr.bf16.gmra.mxu0 %v916
      %v988 = vpop.f32.mrf.mxu0
      %v989 = vadd.f32 0.0, %v988
      %v990 = vpop.f32.mrf.mxu0
      %v991 = vpop.f32.mrf.mxu0
      %v992 = vadd.f32 0.0, %v991
      %v993 = vpop.f32.mrf.mxu0
      %994 = vdwg.mxu0
      %v995 = vsel %vm902, %v853, 0
      %v997 = vsel %vm902, %v854, 0
      %v999 = vsel %vm902, %v855, 0
      %v1001 = vsel %vm902, %v856, 0
      %v1003 = vsel %vm902, %v857, 0
      %v1006 = vsel %vm918, %v851, 0
      %1008 = vmatprep.subr.bf16.mxu0 0
      %1009 = vmatpush1.bf16.msra.mxu0 0
      %1010 = vmatprep.subr.bf16.mxu0 0
      %1011 = vmatpush1.bf16.msra.mxu0 0
      %1012 = vmatprep.subr.bf16.mxu0 0
      %1013 = vmatpush1.bf16.msra.mxu0 0
      %1014 = vmatprep.subr.bf16.mxu0 0
      %1015 = vmatpush1.bf16.msra.mxu0 0
      %1016 = vmatprep.subr.bf16.mxu0 0
      %1017 = vmatpush1.bf16.msra.mxu0 0
      %1018 = vmatprep.subr.bf16.mxu0 0
      %1019 = vmatpush1.bf16.msra.mxu0 0
      %1020 = vmatprep.subr.bf16.mxu0 0
      %1021 = vmatpush1.bf16.msra.mxu0 0
      %1022 = vmatprep.subr.bf16.mxu0 0
      %1023 = vmatpush1.bf16.msra.mxu0 %v1006
      %1024 = vmatprep.subr.bf16.mxu0 0
      %1025 = vmatpush2.bf16.msra.mxu0 0
      %1026 = vmatprep.subr.bf16.mxu0 0
      %1027 = vmatpush2.bf16.msra.mxu0 0
      %1028 = vmatprep.subr.bf16.mxu0 0
      %1029 = vmatpush2.bf16.msra.mxu0 0
      %1030 = vmatprep.subr.bf16.mxu0 0
      %1031 = vmatpush2.bf16.msra.mxu0 0
      %1032 = vmatprep.subr.bf16.mxu0 0
      %1033 = vmatpush2.bf16.msra.mxu0 0
      %1034 = vmatprep.subr.bf16.mxu0 0
      %1035 = vmatpush2.bf16.msra.mxu0 0
      %1036 = vmatprep.subr.bf16.mxu0 0
      %1037 = vmatpush2.bf16.msra.mxu0 0
      %1038 = vmatprep.subr.bf16.mxu0 0
      %1039 = vmatpush2.bf16.msra.mxu0 0
      %1040 = vmatprep.mubr.bf16.mxu0 0
      %1041 = vmatmul.mubr.bf16.gmra.mxu0 %v995
      %v1042 = vpop.f32.mrf.mxu0
      %v1043 = vadd.f32 %v957, %v1042
      %v1044 = vpop.f32.mrf.mxu0
      %v1045 = vpop.f32.mrf.mxu0
      %v1046 = vadd.f32 %v960, %v1045
      %v1047 = vpop.f32.mrf.mxu0
      %1048 = vmatprep.mubr.bf16.mxu0 0
      %1049 = vmatmul.mubr.bf16.gmra.mxu0 %v997
      %v1050 = vpop.f32.mrf.mxu0
      %v1051 = vadd.f32 %v965, %v1050
      %v1052 = vpop.f32.mrf.mxu0
      %v1053 = vpop.f32.mrf.mxu0
      %v1054 = vadd.f32 %v968, %v1053
      %v1055 = vpop.f32.mrf.mxu0
      %1056 = vmatprep.mubr.bf16.mxu0 0
      %1057 = vmatmul.mubr.bf16.gmra.mxu0 %v999
      %v1058 = vpop.f32.mrf.mxu0
      %v1059 = vadd.f32 %v973, %v1058
      %v1060 = vpop.f32.mrf.mxu0
      %v1061 = vpop.f32.mrf.mxu0
      %v1062 = vadd.f32 %v976, %v1061
      %v1063 = vpop.f32.mrf.mxu0
      %1064 = vmatprep.mubr.bf16.mxu0 0
      %1065 = vmatmul.mubr.bf16.gmra.mxu0 %v1001
      %v1066 = vpop.f32.mrf.mxu0
      %v1067 = vadd.f32 %v981, %v1066
      %v1068 = vpop.f32.mrf.mxu0
      %v1069 = vpop.f32.mrf.mxu0
      %v1070 = vadd.f32 %v984, %v1069
      %v1071 = vpop.f32.mrf.mxu0
      %1072 = vmatprep.mubr.bf16.mxu0 0
      %1073 = vmatmul.mubr.bf16.gmra.mxu0 %v1003
      %v1074 = vpop.f32.mrf.mxu0
      %v1075 = vadd.f32 %v989, %v1074
      %v1076 = vpop.f32.mrf.mxu0
      %v1077 = vpop.f32.mrf.mxu0
      %v1078 = vadd.f32 %v992, %v1077
      %v1079 = vpop.f32.mrf.mxu0
      %1080 = vdwg.mxu0
      %vm1086 = vcmask 1046528
      %v1087 = vrot.slane %v853, 1
      %v1088 = vrot.slane %v854, 1
      %v1089 = vsel %vm1086, %v1087, %v1088
      %v1090 = vrot.slane %v855, 1
      %v1091 = vsel %vm1086, %v1088, %v1090
      %v1092 = vrot.slane %v856, 1
      %v1093 = vsel %vm1086, %v1090, %v1092
      %v1094 = vrot.slane %v857, 1
      %v1095 = vsel %vm1086, %v1092, %v1094
      %v1097 = vsel %vm902, %v1089, 0
      %v1100 = vsel %vm902, %v1091, 0
      %v1103 = vsel %vm902, %v1093, 0
      %v1106 = vsel %vm902, %v1095, 0
      %v1109 = vsel %vm902, %v1094, 0
      %v1112 = vsel %vm918, %v852, 0
      %1114 = vmatprep.subr.bf16.mxu0 0
      %1115 = vmatpush1.bf16.msra.mxu0 0
      %1116 = vmatprep.subr.bf16.mxu0 0
      %1117 = vmatpush1.bf16.msra.mxu0 0
      %1118 = vmatprep.subr.bf16.mxu0 0
      %1119 = vmatpush1.bf16.msra.mxu0 0
      %1120 = vmatprep.subr.bf16.mxu0 0
      %1121 = vmatpush1.bf16.msra.mxu0 0
      %1122 = vmatprep.subr.bf16.mxu0 0
      %1123 = vmatpush1.bf16.msra.mxu0 0
      %1124 = vmatprep.subr.bf16.mxu0 0
      %1125 = vmatpush1.bf16.msra.mxu0 0
      %1126 = vmatprep.subr.bf16.mxu0 0
      %1127 = vmatpush1.bf16.msra.mxu0 0
      %1128 = vmatprep.subr.bf16.mxu0 0
      %1129 = vmatpush1.bf16.msra.mxu0 %v1112
      %1130 = vmatprep.subr.bf16.mxu0 0
      %1131 = vmatpush2.bf16.msra.mxu0 0
      %1132 = vmatprep.subr.bf16.mxu0 0
      %1133 = vmatpush2.bf16.msra.mxu0 0
      %1134 = vmatprep.subr.bf16.mxu0 0
      %1135 = vmatpush2.bf16.msra.mxu0 0
      %1136 = vmatprep.subr.bf16.mxu0 0
      %1137 = vmatpush2.bf16.msra.mxu0 0
      %1138 = vmatprep.subr.bf16.mxu0 0
      %1139 = vmatpush2.bf16.msra.mxu0 0
      %1140 = vmatprep.subr.bf16.mxu0 0
      %1141 = vmatpush2.bf16.msra.mxu0 0
      %1142 = vmatprep.subr.bf16.mxu0 0
      %1143 = vmatpush2.bf16.msra.mxu0 0
      %1144 = vmatprep.subr.bf16.mxu0 0
      %1145 = vmatpush2.bf16.msra.mxu0 0
      %1146 = vmatprep.mubr.bf16.mxu0 0
      %1147 = vmatmul.mubr.bf16.gmra.mxu0 %v1097
      %v1148 = vpop.f32.mrf.mxu0
      %v1149 = vadd.f32 0.0, %v1148
      %v1150 = vpop.f32.mrf.mxu0
      %v1151 = vpop.f32.mrf.mxu0
      %v1152 = vadd.f32 0.0, %v1151
      %v1153 = vpop.f32.mrf.mxu0
      %1154 = vmatprep.mubr.bf16.mxu0 0
      %1155 = vmatmul.mubr.bf16.gmra.mxu0 %v1100
      %v1156 = vpop.f32.mrf.mxu0
      %v1157 = vadd.f32 0.0, %v1156
      %v1158 = vpop.f32.mrf.mxu0
      %v1159 = vpop.f32.mrf.mxu0
      %v1160 = vadd.f32 0.0, %v1159
      %v1161 = vpop.f32.mrf.mxu0
      %1162 = vmatprep.mubr.bf16.mxu0 0
      %1163 = vmatmul.mubr.bf16.gmra.mxu0 %v1103
      %v1164 = vpop.f32.mrf.mxu0
      %v1165 = vadd.f32 0.0, %v1164
      %v1166 = vpop.f32.mrf.mxu0
      %v1167 = vpop.f32.mrf.mxu0
      %v1168 = vadd.f32 0.0, %v1167
      %v1169 = vpop.f32.mrf.mxu0
      %1170 = vmatprep.mubr.bf16.mxu0 0
      %1171 = vmatmul.mubr.bf16.gmra.mxu0 %v1106
      %v1172 = vpop.f32.mrf.mxu0
      %v1173 = vadd.f32 0.0, %v1172
      %v1174 = vpop.f32.mrf.mxu0
      %v1175 = vpop.f32.mrf.mxu0
      %v1176 = vadd.f32 0.0, %v1175
      %v1177 = vpop.f32.mrf.mxu0
      %1178 = vmatprep.mubr.bf16.mxu0 0
      %1179 = vmatmul.mubr.bf16.gmra.mxu0 %v1109
      %v1180 = vpop.f32.mrf.mxu0
      %v1181 = vadd.f32 0.0, %v1180
      %v1182 = vpop.f32.mrf.mxu0
      %v1183 = vpop.f32.mrf.mxu0
      %v1184 = vadd.f32 0.0, %v1183
      %v1185 = vpop.f32.mrf.mxu0
      %1186 = vdwg.mxu0
      %v1187 = vadd.f32 %v1043, %v1149
      %v1188 = vadd.f32 %v1046, %v1152
      %v1189 = vadd.f32 %v1051, %v1157
      %v1190 = vadd.f32 %v1054, %v1160
      %v1191 = vadd.f32 %v1059, %v1165
      %v1192 = vadd.f32 %v1062, %v1168
      %v1193 = vadd.f32 %v1067, %v1173
      %v1194 = vadd.f32 %v1070, %v1176
      %v1195 = vadd.f32 %v1075, %v1181
      %v1196 = vadd.f32 %v1078, %v1184
      %s1197 = scalar_lea.vmem %s6, 8
      %v1198 = vld [vmem:[%s1197] sm:$0xf]
      %v1199 = vld [vmem:[%s1197 + $0x4] sm:$0x3]
      %v1200 = vpack.c.bf16 %v840, %v839
      %v1201 = vpack.c.bf16 %v842, %v841
      %v1202 = vpack.c.bf16 %v844, %v843
      %v1203 = vpack.c.bf16 %v846, %v845
      %v1204 = vpack.c.bf16 %v848, %v847
      %v1210 = vrot.slane %v1200, 1
      %v1211 = vrot.slane %v1201, 1
      %v1212 = vsel %vm1086, %v1210, %v1211
      %v1213 = vrot.slane %v1202, 1
      %v1214 = vsel %vm1086, %v1211, %v1213
      %v1215 = vrot.slane %v1203, 1
      %v1216 = vsel %vm1086, %v1213, %v1215
      %v1217 = vrot.slane %v1204, 1
      %v1218 = vsel %vm1086, %v1215, %v1217
      %v1220 = vsel %vm902, %v1212, 0
      %v1223 = vsel %vm902, %v1214, 0
      %v1226 = vsel %vm902, %v1216, 0
      %v1229 = vsel %vm902, %v1218, 0
      %v1232 = vsel %vm902, %v1217, 0
      %v1235 = vsel %vm918, %v1198, 0
      %1237 = vmatprep.subr.bf16.mxu0 0
      %1238 = vmatpush1.bf16.msra.mxu0 0
      %1239 = vmatprep.subr.bf16.mxu0 0
      %1240 = vmatpush1.bf16.msra.mxu0 0
      %1241 = vmatprep.subr.bf16.mxu0 0
      %1242 = vmatpush1.bf16.msra.mxu0 0
      %1243 = vmatprep.subr.bf16.mxu0 0
      %1244 = vmatpush1.bf16.msra.mxu0 0
      %1245 = vmatprep.subr.bf16.mxu0 0
      %1246 = vmatpush1.bf16.msra.mxu0 0
      %1247 = vmatprep.subr.bf16.mxu0 0
      %1248 = vmatpush1.bf16.msra.mxu0 0
      %1249 = vmatprep.subr.bf16.mxu0 0
      %1250 = vmatpush1.bf16.msra.mxu0 0
      %1251 = vmatprep.subr.bf16.mxu0 0
      %1252 = vmatpush1.bf16.msra.mxu0 %v1235
      %1253 = vmatprep.subr.bf16.mxu0 0
      %1254 = vmatpush2.bf16.msra.mxu0 0
      %1255 = vmatprep.subr.bf16.mxu0 0
      %1256 = vmatpush2.bf16.msra.mxu0 0
      %1257 = vmatprep.subr.bf16.mxu0 0
      %1258 = vmatpush2.bf16.msra.mxu0 0
      %1259 = vmatprep.subr.bf16.mxu0 0
      %1260 = vmatpush2.bf16.msra.mxu0 0
      %1261 = vmatprep.subr.bf16.mxu0 0
      %1262 = vmatpush2.bf16.msra.mxu0 0
      %1263 = vmatprep.subr.bf16.mxu0 0
      %1264 = vmatpush2.bf16.msra.mxu0 0
      %1265 = vmatprep.subr.bf16.mxu0 0
      %1266 = vmatpush2.bf16.msra.mxu0 0
      %1267 = vmatprep.subr.bf16.mxu0 0
      %1268 = vmatpush2.bf16.msra.mxu0 0
      %1269 = vmatprep.mubr.bf16.mxu0 0
      %1270 = vmatmul.mubr.bf16.gmra.mxu0 %v1220
      %v1271 = vpop.f32.mrf.mxu0
      %v1272 = vadd.f32 0.0, %v1271
      %v1273 = vpop.f32.mrf.mxu0
      %v1274 = vpop.f32.mrf.mxu0
      %v1275 = vadd.f32 0.0, %v1274
      %v1276 = vpop.f32.mrf.mxu0
      %1277 = vmatprep.mubr.bf16.mxu0 0
      %1278 = vmatmul.mubr.bf16.gmra.mxu0 %v1223
      %v1279 = vpop.f32.mrf.mxu0
      %v1280 = vadd.f32 0.0, %v1279
      %v1281 = vpop.f32.mrf.mxu0
      %v1282 = vpop.f32.mrf.mxu0
      %v1283 = vadd.f32 0.0, %v1282
      %v1284 = vpop.f32.mrf.mxu0
      %1285 = vmatprep.mubr.bf16.mxu0 0
      %1286 = vmatmul.mubr.bf16.gmra.mxu0 %v1226
      %v1287 = vpop.f32.mrf.mxu0
      %v1288 = vadd.f32 0.0, %v1287
      %v1289 = vpop.f32.mrf.mxu0
      %v1290 = vpop.f32.mrf.mxu0
      %v1291 = vadd.f32 0.0, %v1290
      %v1292 = vpop.f32.mrf.mxu0
      %1293 = vmatprep.mubr.bf16.mxu0 0
      %1294 = vmatmul.mubr.bf16.gmra.mxu0 %v1229
      %v1295 = vpop.f32.mrf.mxu0
      %v1296 = vadd.f32 0.0, %v1295
      %v1297 = vpop.f32.mrf.mxu0
      %v1298 = vpop.f32.mrf.mxu0
      %v1299 = vadd.f32 0.0, %v1298
      %v1300 = vpop.f32.mrf.mxu0
      %1301 = vmatprep.mubr.bf16.mxu0 0
      %1302 = vmatmul.mubr.bf16.gmra.mxu0 %v1232
      %v1303 = vpop.f32.mrf.mxu0
      %v1304 = vadd.f32 0.0, %v1303
      %v1305 = vpop.f32.mrf.mxu0
      %v1306 = vpop.f32.mrf.mxu0
      %v1307 = vadd.f32 0.0, %v1306
      %v1308 = vpop.f32.mrf.mxu0
      %1309 = vdwg.mxu0
      %v1310 = vadd.f32 %v1187, %v1272
      %v1311 = vadd.f32 %v1188, %v1275
      %v1312 = vadd.f32 %v1189, %v1280
      %v1313 = vadd.f32 %v1190, %v1283
      %v1314 = vadd.f32 %v1191, %v1288
      %v1315 = vadd.f32 %v1192, %v1291
      %v1316 = vadd.f32 %v1193, %v1296
      %v1317 = vadd.f32 %v1194, %v1299
      %v1318 = vadd.f32 %v1195, %v1304
      %v1319 = vadd.f32 %v1196, %v1307
      %v1320 = vpack.c.bf16 %v849, %v849
      %vm1321 = vsmask.f32 6400
      %v1323 = vshrl.u32 %v1200, 16
      %v1325 = vrot.slane %v1323, 1
      %v1326 = vshll.u32 %v1200, 16
      %v1328 = vrot.slane %v1326, 2
      %v1329 = vor.u32 %v1325, %v1328
      %v1331 = vshrl.u32 %v1201, 16
      %v1333 = vrot.slane %v1331, 1
      %v1334 = vshll.u32 %v1201, 16
      %v1336 = vrot.slane %v1334, 2
      %v1337 = vor.u32 %v1333, %v1336
      %v1338 = vsel %vm1321, %v1329, %v1337
      %v1340 = vshrl.u32 %v1202, 16
      %v1342 = vrot.slane %v1340, 1
      %v1343 = vshll.u32 %v1202, 16
      %v1345 = vrot.slane %v1343, 2
      %v1346 = vor.u32 %v1342, %v1345
      %v1347 = vsel %vm1321, %v1337, %v1346
      %v1349 = vshrl.u32 %v1203, 16
      %v1351 = vrot.slane %v1349, 1
      %v1352 = vshll.u32 %v1203, 16
      %v1354 = vrot.slane %v1352, 2
      %v1355 = vor.u32 %v1351, %v1354
      %v1356 = vsel %vm1321, %v1346, %v1355
      %v1358 = vshrl.u32 %v1204, 16
      %v1360 = vrot.slane %v1358, 1
      %v1361 = vshll.u32 %v1204, 16
      %v1363 = vrot.slane %v1361, 2
      %v1364 = vor.u32 %v1360, %v1363
      %v1365 = vsel %vm1321, %v1355, %v1364
      %v1367 = vshll.u32 %v1320, 16
      %v1369 = vrot.slane %v1367, 2
      %v1370 = vsel %vm1321, %v1364, %v1369
      %v1372 = vunpack.c.l.b16 %v1198
      %v1373 = vpack.c.b16 %v1372, %v1372
      %v1374 = vrot.slane %v1373, 2
      %v1376 = vsel %vm902, %v1338, 0
      %v1379 = vsel %vm902, %v1347, 0
      %v1382 = vsel %vm902, %v1356, 0
      %v1385 = vsel %vm902, %v1365, 0
      %v1388 = vsel %vm902, %v1370, 0
      %v1391 = vsel %vm918, %v1374, 0
      %1393 = vmatprep.subr.bf16.mxu0 0
      %1394 = vmatpush1.bf16.msra.mxu0 0
      %1395 = vmatprep.subr.bf16.mxu0 0
      %1396 = vmatpush1.bf16.msra.mxu0 0
      %1397 = vmatprep.subr.bf16.mxu0 0
      %1398 = vmatpush1.bf16.msra.mxu0 0
      %1399 = vmatprep.subr.bf16.mxu0 0
      %1400 = vmatpush1.bf16.msra.mxu0 0
      %1401 = vmatprep.subr.bf16.mxu0 0
      %1402 = vmatpush1.bf16.msra.mxu0 0
      %1403 = vmatprep.subr.bf16.mxu0 0
      %1404 = vmatpush1.bf16.msra.mxu0 0
      %1405 = vmatprep.subr.bf16.mxu0 0
      %1406 = vmatpush1.bf16.msra.mxu0 0
      %1407 = vmatprep.subr.bf16.mxu0 0
      %1408 = vmatpush1.bf16.msra.mxu0 %v1391
      %1409 = vmatprep.subr.bf16.mxu0 0
      %1410 = vmatpush2.bf16.msra.mxu0 0
      %1411 = vmatprep.subr.bf16.mxu0 0
      %1412 = vmatpush2.bf16.msra.mxu0 0
      %1413 = vmatprep.subr.bf16.mxu0 0
      %1414 = vmatpush2.bf16.msra.mxu0 0
      %1415 = vmatprep.subr.bf16.mxu0 0
      %1416 = vmatpush2.bf16.msra.mxu0 0
      %1417 = vmatprep.subr.bf16.mxu0 0
      %1418 = vmatpush2.bf16.msra.mxu0 0
      %1419 = vmatprep.subr.bf16.mxu0 0
      %1420 = vmatpush2.bf16.msra.mxu0 0
      %1421 = vmatprep.subr.bf16.mxu0 0
      %1422 = vmatpush2.bf16.msra.mxu0 0
      %1423 = vmatprep.subr.bf16.mxu0 0
      %1424 = vmatpush2.bf16.msra.mxu0 0
      %1425 = vmatprep.mubr.bf16.mxu0 0
      %1426 = vmatmul.mubr.bf16.gmra.mxu0 %v1376
      %v1427 = vpop.f32.mrf.mxu0
      %v1428 = vadd.f32 0.0, %v1427
      %v1429 = vpop.f32.mrf.mxu0
      %v1430 = vpop.f32.mrf.mxu0
      %v1431 = vadd.f32 0.0, %v1430
      %v1432 = vpop.f32.mrf.mxu0
      %1433 = vmatprep.mubr.bf16.mxu0 0
      %1434 = vmatmul.mubr.bf16.gmra.mxu0 %v1379
      %v1435 = vpop.f32.mrf.mxu0
      %v1436 = vadd.f32 0.0, %v1435
      %v1437 = vpop.f32.mrf.mxu0
      %v1438 = vpop.f32.mrf.mxu0
      %v1439 = vadd.f32 0.0, %v1438
      %v1440 = vpop.f32.mrf.mxu0
      %1441 = vmatprep.mubr.bf16.mxu0 0
      %1442 = vmatmul.mubr.bf16.gmra.mxu0 %v1382
      %v1443 = vpop.f32.mrf.mxu0
      %v1444 = vadd.f32 0.0, %v1443
      %v1445 = vpop.f32.mrf.mxu0
      %v1446 = vpop.f32.mrf.mxu0
      %v1447 = vadd.f32 0.0, %v1446
      %v1448 = vpop.f32.mrf.mxu0
      %1449 = vmatprep.mubr.bf16.mxu0 0
      %1450 = vmatmul.mubr.bf16.gmra.mxu0 %v1385
      %v1451 = vpop.f32.mrf.mxu0
      %v1452 = vadd.f32 0.0, %v1451
      %v1453 = vpop.f32.mrf.mxu0
      %v1454 = vpop.f32.mrf.mxu0
      %v1455 = vadd.f32 0.0, %v1454
      %v1456 = vpop.f32.mrf.mxu0
      %1457 = vmatprep.mubr.bf16.mxu0 0
      %1458 = vmatmul.mubr.bf16.gmra.mxu0 %v1388
      %v1459 = vpop.f32.mrf.mxu0
      %v1460 = vadd.f32 0.0, %v1459
      %v1461 = vpop.f32.mrf.mxu0
      %v1462 = vpop.f32.mrf.mxu0
      %v1463 = vadd.f32 0.0, %v1462
      %v1464 = vpop.f32.mrf.mxu0
      %1465 = vdwg.mxu0
      %v1466 = vadd.f32 %v1310, %v1428
      %v1467 = vadd.f32 %v1311, %v1431
      %v1468 = vadd.f32 %v1312, %v1436
      %v1469 = vadd.f32 %v1313, %v1439
      %v1470 = vadd.f32 %v1314, %v1444
      %v1471 = vadd.f32 %v1315, %v1447
      %v1472 = vadd.f32 %v1316, %v1452
      %v1473 = vadd.f32 %v1317, %v1455
      %v1474 = vadd.f32 %v1318, %v1460
      %v1475 = vadd.f32 %v1319, %v1463
      %vm1477 = vcmask 1045504
      %v1478 = vrot.slane %v1200, 2
      %v1479 = vrot.slane %v1201, 2
      %v1480 = vsel %vm1477, %v1478, %v1479
      %v1481 = vrot.slane %v1202, 2
      %v1482 = vsel %vm1477, %v1479, %v1481
      %v1483 = vrot.slane %v1203, 2
      %v1484 = vsel %vm1477, %v1481, %v1483
      %v1485 = vrot.slane %v1204, 2
      %v1486 = vsel %vm1477, %v1483, %v1485
      %v1487 = vrot.slane %v1320, 2
      %v1488 = vsel %vm1477, %v1485, %v1487
      %v1490 = vsel %vm902, %v1480, 0
      %v1493 = vsel %vm902, %v1482, 0
      %v1496 = vsel %vm902, %v1484, 0
      %v1499 = vsel %vm902, %v1486, 0
      %v1502 = vsel %vm902, %v1488, 0
      %v1505 = vsel %vm918, %v1199, 0
      %1507 = vmatprep.subr.bf16.mxu0 0
      %1508 = vmatpush1.bf16.msra.mxu0 0
      %1509 = vmatprep.subr.bf16.mxu0 0
      %1510 = vmatpush1.bf16.msra.mxu0 0
      %1511 = vmatprep.subr.bf16.mxu0 0
      %1512 = vmatpush1.bf16.msra.mxu0 0
      %1513 = vmatprep.subr.bf16.mxu0 0
      %1514 = vmatpush1.bf16.msra.mxu0 0
      %1515 = vmatprep.subr.bf16.mxu0 0
      %1516 = vmatpush1.bf16.msra.mxu0 0
      %1517 = vmatprep.subr.bf16.mxu0 0
      %1518 = vmatpush1.bf16.msra.mxu0 0
      %1519 = vmatprep.subr.bf16.mxu0 0
      %1520 = vmatpush1.bf16.msra.mxu0 0
      %1521 = vmatprep.subr.bf16.mxu0 0
      %1522 = vmatpush1.bf16.msra.mxu0 %v1505
      %1523 = vmatprep.subr.bf16.mxu0 0
      %1524 = vmatpush2.bf16.msra.mxu0 0
      %1525 = vmatprep.subr.bf16.mxu0 0
      %1526 = vmatpush2.bf16.msra.mxu0 0
      %1527 = vmatprep.subr.bf16.mxu0 0
      %1528 = vmatpush2.bf16.msra.mxu0 0
      %1529 = vmatprep.subr.bf16.mxu0 0
      %1530 = vmatpush2.bf16.msra.mxu0 0
      %1531 = vmatprep.subr.bf16.mxu0 0
      %1532 = vmatpush2.bf16.msra.mxu0 0
      %1533 = vmatprep.subr.bf16.mxu0 0
      %1534 = vmatpush2.bf16.msra.mxu0 0
      %1535 = vmatprep.subr.bf16.mxu0 0
      %1536 = vmatpush2.bf16.msra.mxu0 0
      %1537 = vmatprep.subr.bf16.mxu0 0
      %1538 = vmatpush2.bf16.msra.mxu0 0
      %1539 = vmatprep.mubr.bf16.mxu0 0
      %1540 = vmatmul.mubr.bf16.gmra.mxu0 %v1490
      %v1541 = vpop.f32.mrf.mxu0
      %v1542 = vadd.f32 0.0, %v1541
      %v1543 = vpop.f32.mrf.mxu0
      %v1544 = vpop.f32.mrf.mxu0
      %v1545 = vadd.f32 0.0, %v1544
      %v1546 = vpop.f32.mrf.mxu0
      %1547 = vmatprep.mubr.bf16.mxu0 0
      %1548 = vmatmul.mubr.bf16.gmra.mxu0 %v1493
      %v1549 = vpop.f32.mrf.mxu0
      %v1550 = vadd.f32 0.0, %v1549
      %v1551 = vpop.f32.mrf.mxu0
      %v1552 = vpop.f32.mrf.mxu0
      %v1553 = vadd.f32 0.0, %v1552
      %v1554 = vpop.f32.mrf.mxu0
      %1555 = vmatprep.mubr.bf16.mxu0 0
      %1556 = vmatmul.mubr.bf16.gmra.mxu0 %v1496
      %v1557 = vpop.f32.mrf.mxu0
      %v1558 = vadd.f32 0.0, %v1557
      %v1559 = vpop.f32.mrf.mxu0
      %v1560 = vpop.f32.mrf.mxu0
      %v1561 = vadd.f32 0.0, %v1560
      %v1562 = vpop.f32.mrf.mxu0
      %1563 = vmatprep.mubr.bf16.mxu0 0
      %1564 = vmatmul.mubr.bf16.gmra.mxu0 %v1499
      %v1565 = vpop.f32.mrf.mxu0
      %v1566 = vadd.f32 0.0, %v1565
      %v1567 = vpop.f32.mrf.mxu0
      %v1568 = vpop.f32.mrf.mxu0
      %v1569 = vadd.f32 0.0, %v1568
      %v1570 = vpop.f32.mrf.mxu0
      %1571 = vmatprep.mubr.bf16.mxu0 0
      %1572 = vmatmul.mubr.bf16.gmra.mxu0 %v1502
      %v1573 = vpop.f32.mrf.mxu0
      %v1574 = vadd.f32 0.0, %v1573
      %v1575 = vpop.f32.mrf.mxu0
      %v1576 = vpop.f32.mrf.mxu0
      %v1577 = vadd.f32 0.0, %v1576
      %v1578 = vpop.f32.mrf.mxu0
      %1579 = vdwg.mxu0
      %v1580 = vadd.f32 %v1466, %v1542
      %v1581 = vadd.f32 %v1467, %v1545
      %v1582 = vadd.f32 %v1468, %v1550
      %v1583 = vadd.f32 %v1469, %v1553
      %v1584 = vadd.f32 %v1470, %v1558
      %v1585 = vadd.f32 %v1471, %v1561
      %v1586 = vadd.f32 %v1472, %v1566
      %v1587 = vadd.f32 %v1473, %v1569
      %v1588 = vadd.f32 %v1474, %v1574
      %v1589 = vadd.f32 %v1475, %v1577
      %s1590 = scalar_lea.vmem %s6, 16
      %v1591 = vld [vmem:[%s1590] sm:$0xf]
      %v1592 = vld [vmem:[%s1590 + $0x4] sm:$0x3]
      %v1593 = vpack.c.bf16 %v849, %v848
      %v1594 = vpack.c.bf16 %v850, %v850
      %v1597 = vrot.slane %v854, 2
      %v1598 = vrot.slane %v855, 2
      %v1599 = vsel %vm1477, %v1597, %v1598
      %v1600 = vrot.slane %v856, 2
      %v1601 = vsel %vm1477, %v1598, %v1600
      %v1602 = vrot.slane %v857, 2
      %v1603 = vsel %vm1477, %v1600, %v1602
      %v1604 = vrot.slane %v1593, 2
      %v1605 = vsel %vm1477, %v1602, %v1604
      %v1606 = vrot.slane %v1594, 2
      %v1607 = vsel %vm1477, %v1604, %v1606
      %v1609 = vsel %vm902, %v1599, 0
      %v1612 = vsel %vm902, %v1601, 0
      %v1615 = vsel %vm902, %v1603, 0
      %v1618 = vsel %vm902, %v1605, 0
      %v1621 = vsel %vm902, %v1607, 0
      %v1624 = vsel %vm918, %v1591, 0
      %1626 = vmatprep.subr.bf16.mxu0 0
      %1627 = vmatpush1.bf16.msra.mxu0 0
      %1628 = vmatprep.subr.bf16.mxu0 0
      %1629 = vmatpush1.bf16.msra.mxu0 0
      %1630 = vmatprep.subr.bf16.mxu0 0
      %1631 = vmatpush1.bf16.msra.mxu0 0
      %1632 = vmatprep.subr.bf16.mxu0 0
      %1633 = vmatpush1.bf16.msra.mxu0 0
      %1634 = vmatprep.subr.bf16.mxu0 0
      %1635 = vmatpush1.bf16.msra.mxu0 0
      %1636 = vmatprep.subr.bf16.mxu0 0
      %1637 = vmatpush1.bf16.msra.mxu0 0
      %1638 = vmatprep.subr.bf16.mxu0 0
      %1639 = vmatpush1.bf16.msra.mxu0 0
      %1640 = vmatprep.subr.bf16.mxu0 0
      %1641 = vmatpush1.bf16.msra.mxu0 %v1624
      %1642 = vmatprep.subr.bf16.mxu0 0
      %1643 = vmatpush2.bf16.msra.mxu0 0
      %1644 = vmatprep.subr.bf16.mxu0 0
      %1645 = vmatpush2.bf16.msra.mxu0 0
      %1646 = vmatprep.subr.bf16.mxu0 0
      %1647 = vmatpush2.bf16.msra.mxu0 0
      %1648 = vmatprep.subr.bf16.mxu0 0
      %1649 = vmatpush2.bf16.msra.mxu0 0
      %1650 = vmatprep.subr.bf16.mxu0 0
      %1651 = vmatpush2.bf16.msra.mxu0 0
      %1652 = vmatprep.subr.bf16.mxu0 0
      %1653 = vmatpush2.bf16.msra.mxu0 0
      %1654 = vmatprep.subr.bf16.mxu0 0
      %1655 = vmatpush2.bf16.msra.mxu0 0
      %1656 = vmatprep.subr.bf16.mxu0 0
      %1657 = vmatpush2.bf16.msra.mxu0 0
      %1658 = vmatprep.mubr.bf16.mxu0 0
      %1659 = vmatmul.mubr.bf16.gmra.mxu0 %v1609
      %v1660 = vpop.f32.mrf.mxu0
      %v1661 = vadd.f32 0.0, %v1660
      %v1662 = vpop.f32.mrf.mxu0
      %v1663 = vpop.f32.mrf.mxu0
      %v1664 = vadd.f32 0.0, %v1663
      %v1665 = vpop.f32.mrf.mxu0
      %1666 = vmatprep.mubr.bf16.mxu0 0
      %1667 = vmatmul.mubr.bf16.gmra.mxu0 %v1612
      %v1668 = vpop.f32.mrf.mxu0
      %v1669 = vadd.f32 0.0, %v1668
      %v1670 = vpop.f32.mrf.mxu0
      %v1671 = vpop.f32.mrf.mxu0
      %v1672 = vadd.f32 0.0, %v1671
      %v1673 = vpop.f32.mrf.mxu0
      %1674 = vmatprep.mubr.bf16.mxu0 0
      %1675 = vmatmul.mubr.bf16.gmra.mxu0 %v1615
      %v1676 = vpop.f32.mrf.mxu0
      %v1677 = vadd.f32 0.0, %v1676
      %v1678 = vpop.f32.mrf.mxu0
      %v1679 = vpop.f32.mrf.mxu0
      %v1680 = vadd.f32 0.0, %v1679
      %v1681 = vpop.f32.mrf.mxu0
      %1682 = vmatprep.mubr.bf16.mxu0 0
      %1683 = vmatmul.mubr.bf16.gmra.mxu0 %v1618
      %v1684 = vpop.f32.mrf.mxu0
      %v1685 = vadd.f32 0.0, %v1684
      %v1686 = vpop.f32.mrf.mxu0
      %v1687 = vpop.f32.mrf.mxu0
      %v1688 = vadd.f32 0.0, %v1687
      %v1689 = vpop.f32.mrf.mxu0
      %1690 = vmatprep.mubr.bf16.mxu0 0
      %1691 = vmatmul.mubr.bf16.gmra.mxu0 %v1621
      %v1692 = vpop.f32.mrf.mxu0
      %v1693 = vadd.f32 0.0, %v1692
      %v1694 = vpop.f32.mrf.mxu0
      %v1695 = vpop.f32.mrf.mxu0
      %v1696 = vadd.f32 0.0, %v1695
      %v1697 = vpop.f32.mrf.mxu0
      %1698 = vdwg.mxu0
      %v1699 = vadd.f32 %v1580, %v1661
      %v1700 = vadd.f32 %v1581, %v1664
      %v1701 = vadd.f32 %v1582, %v1669
      %v1702 = vadd.f32 %v1583, %v1672
      %v1703 = vadd.f32 %v1584, %v1677
      %v1704 = vadd.f32 %v1585, %v1680
      %v1705 = vadd.f32 %v1586, %v1685
      %v1706 = vadd.f32 %v1587, %v1688
      %v1707 = vadd.f32 %v1588, %v1693
      %v1708 = vadd.f32 %v1589, %v1696
      %vm1709 = vsmask.f32 5376
      %v1710 = vrot.slane %v871, 2
      %v1711 = vrot.slane %v867, 3
      %v1712 = vor.u32 %v1710, %v1711
      %v1713 = vrot.slane %v879, 2
      %v1714 = vrot.slane %v875, 3
      %v1715 = vor.u32 %v1713, %v1714
      %v1716 = vsel %vm1709, %v1712, %v1715
      %v1717 = vrot.slane %v887, 2
      %v1718 = vrot.slane %v883, 3
      %v1719 = vor.u32 %v1717, %v1718
      %v1720 = vsel %vm1709, %v1715, %v1719
      %v1721 = vrot.slane %v895, 2
      %v1722 = vrot.slane %v891, 3
      %v1723 = vor.u32 %v1721, %v1722
      %v1724 = vsel %vm1709, %v1719, %v1723
      %v1726 = vshrl.u32 %v1593, 16
      %v1728 = vrot.slane %v1726, 2
      %v1729 = vshll.u32 %v1593, 16
      %v1731 = vrot.slane %v1729, 3
      %v1732 = vor.u32 %v1728, %v1731
      %v1733 = vsel %vm1709, %v1723, %v1732
      %v1735 = vshrl.u32 %v1594, 16
      %v1737 = vrot.slane %v1735, 2
      %v1738 = vshll.u32 %v1594, 16
      %v1740 = vrot.slane %v1738, 3
      %v1741 = vor.u32 %v1737, %v1740
      %v1742 = vsel %vm1709, %v1732, %v1741
      %v1744 = vunpack.c.l.b16 %v1591
      %v1745 = vpack.c.b16 %v1744, %v1744
      %v1746 = vrot.slane %v1745, 2
      %v1748 = vsel %vm902, %v1716, 0
      %v1751 = vsel %vm902, %v1720, 0
      %v1754 = vsel %vm902, %v1724, 0
      %v1757 = vsel %vm902, %v1733, 0
      %v1760 = vsel %vm902, %v1742, 0
      %v1763 = vsel %vm918, %v1746, 0
      %1765 = vmatprep.subr.bf16.mxu0 0
      %1766 = vmatpush1.bf16.msra.mxu0 0
      %1767 = vmatprep.subr.bf16.mxu0 0
      %1768 = vmatpush1.bf16.msra.mxu0 0
      %1769 = vmatprep.subr.bf16.mxu0 0
      %1770 = vmatpush1.bf16.msra.mxu0 0
      %1771 = vmatprep.subr.bf16.mxu0 0
      %1772 = vmatpush1.bf16.msra.mxu0 0
      %1773 = vmatprep.subr.bf16.mxu0 0
      %1774 = vmatpush1.bf16.msra.mxu0 0
      %1775 = vmatprep.subr.bf16.mxu0 0
      %1776 = vmatpush1.bf16.msra.mxu0 0
      %1777 = vmatprep.subr.bf16.mxu0 0
      %1778 = vmatpush1.bf16.msra.mxu0 0
      %1779 = vmatprep.subr.bf16.mxu0 0
      %1780 = vmatpush1.bf16.msra.mxu0 %v1763
      %1781 = vmatprep.subr.bf16.mxu0 0
      %1782 = vmatpush2.bf16.msra.mxu0 0
      %1783 = vmatprep.subr.bf16.mxu0 0
      %1784 = vmatpush2.bf16.msra.mxu0 0
      %1785 = vmatprep.subr.bf16.mxu0 0
      %1786 = vmatpush2.bf16.msra.mxu0 0
      %1787 = vmatprep.subr.bf16.mxu0 0
      %1788 = vmatpush2.bf16.msra.mxu0 0
      %1789 = vmatprep.subr.bf16.mxu0 0
      %1790 = vmatpush2.bf16.msra.mxu0 0
      %1791 = vmatprep.subr.bf16.mxu0 0
      %1792 = vmatpush2.bf16.msra.mxu0 0
      %1793 = vmatprep.subr.bf16.mxu0 0
      %1794 = vmatpush2.bf16.msra.mxu0 0
      %1795 = vmatprep.subr.bf16.mxu0 0
      %1796 = vmatpush2.bf16.msra.mxu0 0
      %1797 = vmatprep.mubr.bf16.mxu0 0
      %1798 = vmatmul.mubr.bf16.gmra.mxu0 %v1748
      %v1799 = vpop.f32.mrf.mxu0
      %v1800 = vadd.f32 0.0, %v1799
      %v1801 = vpop.f32.mrf.mxu0
      %v1802 = vpop.f32.mrf.mxu0
      %v1803 = vadd.f32 0.0, %v1802
      %v1804 = vpop.f32.mrf.mxu0
      %1805 = vmatprep.mubr.bf16.mxu0 0
      %1806 = vmatmul.mubr.bf16.gmra.mxu0 %v1751
      %v1807 = vpop.f32.mrf.mxu0
      %v1808 = vadd.f32 0.0, %v1807
      %v1809 = vpop.f32.mrf.mxu0
      %v1810 = vpop.f32.mrf.mxu0
      %v1811 = vadd.f32 0.0, %v1810
      %v1812 = vpop.f32.mrf.mxu0
      %1813 = vmatprep.mubr.bf16.mxu0 0
      %1814 = vmatmul.mubr.bf16.gmra.mxu0 %v1754
      %v1815 = vpop.f32.mrf.mxu0
      %v1816 = vadd.f32 0.0, %v1815
      %v1817 = vpop.f32.mrf.mxu0
      %v1818 = vpop.f32.mrf.mxu0
      %v1819 = vadd.f32 0.0, %v1818
      %v1820 = vpop.f32.mrf.mxu0
      %1821 = vmatprep.mubr.bf16.mxu0 0
      %1822 = vmatmul.mubr.bf16.gmra.mxu0 %v1757
      %v1823 = vpop.f32.mrf.mxu0
      %v1824 = vadd.f32 0.0, %v1823
      %v1825 = vpop.f32.mrf.mxu0
      %v1826 = vpop.f32.mrf.mxu0
      %v1827 = vadd.f32 0.0, %v1826
      %v1828 = vpop.f32.mrf.mxu0
      %1829 = vmatprep.mubr.bf16.mxu0 0
      %1830 = vmatmul.mubr.bf16.gmra.mxu0 %v1760
      %v1831 = vpop.f32.mrf.mxu0
      %v1832 = vadd.f32 0.0, %v1831
      %v1833 = vpop.f32.mrf.mxu0
      %v1834 = vpop.f32.mrf.mxu0
      %v1835 = vadd.f32 0.0, %v1834
      %v1836 = vpop.f32.mrf.mxu0
      %1837 = vdwg.mxu0
      %v1838 = vadd.f32 %v1699, %v1800
      %v1839 = vadd.f32 %v1700, %v1803
      %v1840 = vadd.f32 %v1701, %v1808
      %v1841 = vadd.f32 %v1702, %v1811
      %v1842 = vadd.f32 %v1703, %v1816
      %v1843 = vadd.f32 %v1704, %v1819
      %v1844 = vadd.f32 %v1705, %v1824
      %v1845 = vadd.f32 %v1706, %v1827
      %v1846 = vadd.f32 %v1707, %v1832
      %v1847 = vadd.f32 %v1708, %v1835
      %vm1848 = vcmask 1044480
      %v1849 = vrot.slane %v854, 3
      %v1850 = vrot.slane %v855, 3
      %v1851 = vsel %vm1848, %v1849, %v1850
      %v1852 = vrot.slane %v856, 3
      %v1853 = vsel %vm1848, %v1850, %v1852
      %v1854 = vrot.slane %v857, 3
      %v1855 = vsel %vm1848, %v1852, %v1854
      %v1856 = vrot.slane %v1593, 3
      %v1857 = vsel %vm1848, %v1854, %v1856
      %v1858 = vrot.slane %v1594, 3
      %v1859 = vsel %vm1848, %v1856, %v1858
      %v1861 = vsel %vm902, %v1851, 0
      %v1864 = vsel %vm902, %v1853, 0
      %v1867 = vsel %vm902, %v1855, 0
      %v1870 = vsel %vm902, %v1857, 0
      %v1873 = vsel %vm902, %v1859, 0
      %v1876 = vsel %vm918, %v1592, 0
      %1878 = vmatprep.subr.bf16.mxu0 0
      %1879 = vmatpush1.bf16.msra.mxu0 0
      %1880 = vmatprep.subr.bf16.mxu0 0
      %1881 = vmatpush1.bf16.msra.mxu0 0
      %1882 = vmatprep.subr.bf16.mxu0 0
      %1883 = vmatpush1.bf16.msra.mxu0 0
      %1884 = vmatprep.subr.bf16.mxu0 0
      %1885 = vmatpush1.bf16.msra.mxu0 0
      %1886 = vmatprep.subr.bf16.mxu0 0
      %1887 = vmatpush1.bf16.msra.mxu0 0
      %1888 = vmatprep.subr.bf16.mxu0 0
      %1889 = vmatpush1.bf16.msra.mxu0 0
      %1890 = vmatprep.subr.bf16.mxu0 0
      %1891 = vmatpush1.bf16.msra.mxu0 0
      %1892 = vmatprep.subr.bf16.mxu0 0
      %1893 = vmatpush1.bf16.msra.mxu0 %v1876
      %1894 = vmatprep.subr.bf16.mxu0 0
      %1895 = vmatpush2.bf16.msra.mxu0 0
      %1896 = vmatprep.subr.bf16.mxu0 0
      %1897 = vmatpush2.bf16.msra.mxu0 0
      %1898 = vmatprep.subr.bf16.mxu0 0
      %1899 = vmatpush2.bf16.msra.mxu0 0
      %1900 = vmatprep.subr.bf16.mxu0 0
      %1901 = vmatpush2.bf16.msra.mxu0 0
      %1902 = vmatprep.subr.bf16.mxu0 0
      %1903 = vmatpush2.bf16.msra.mxu0 0
      %1904 = vmatprep.subr.bf16.mxu0 0
      %1905 = vmatpush2.bf16.msra.mxu0 0
      %1906 = vmatprep.subr.bf16.mxu0 0
      %1907 = vmatpush2.bf16.msra.mxu0 0
      %1908 = vmatprep.subr.bf16.mxu0 0
      %1909 = vmatpush2.bf16.msra.mxu0 0
      %1910 = vmatprep.mubr.bf16.mxu0 0
      %1911 = vmatmul.mubr.bf16.gmra.mxu0 %v1861
      %v1912 = vpop.f32.mrf.mxu0
      %v1913 = vadd.f32 0.0, %v1912
      %v1914 = vpop.f32.mrf.mxu0
      %v1915 = vpop.f32.mrf.mxu0
      %v1916 = vadd.f32 0.0, %v1915
      %v1917 = vpop.f32.mrf.mxu0
      %1918 = vmatprep.mubr.bf16.mxu0 0
      %1919 = vmatmul.mubr.bf16.gmra.mxu0 %v1864
      %v1920 = vpop.f32.mrf.mxu0
      %v1921 = vadd.f32 0.0, %v1920
      %v1922 = vpop.f32.mrf.mxu0
      %v1923 = vpop.f32.mrf.mxu0
      %v1924 = vadd.f32 0.0, %v1923
      %v1925 = vpop.f32.mrf.mxu0
      %1926 = vmatprep.mubr.bf16.mxu0 0
      %1927 = vmatmul.mubr.bf16.gmra.mxu0 %v1867
      %v1928 = vpop.f32.mrf.mxu0
      %v1929 = vadd.f32 0.0, %v1928
      %v1930 = vpop.f32.mrf.mxu0
      %v1931 = vpop.f32.mrf.mxu0
      %v1932 = vadd.f32 0.0, %v1931
      %v1933 = vpop.f32.mrf.mxu0
      %1934 = vmatprep.mubr.bf16.mxu0 0
      %1935 = vmatmul.mubr.bf16.gmra.mxu0 %v1870
      %v1936 = vpop.f32.mrf.mxu0
      %v1937 = vadd.f32 0.0, %v1936
      %v1938 = vpop.f32.mrf.mxu0
      %v1939 = vpop.f32.mrf.mxu0
      %v1940 = vadd.f32 0.0, %v1939
      %v1941 = vpop.f32.mrf.mxu0
      %1942 = vmatprep.mubr.bf16.mxu0 0
      %1943 = vmatmul.mubr.bf16.gmra.mxu0 %v1873
      %v1944 = vpop.f32.mrf.mxu0
      %v1945 = vadd.f32 0.0, %v1944
      %v1946 = vpop.f32.mrf.mxu0
      %v1947 = vpop.f32.mrf.mxu0
      %v1948 = vadd.f32 0.0, %v1947
      %v1949 = vpop.f32.mrf.mxu0
      %1950 = vdwg.mxu0
      %v1951 = vadd.f32 %v1838, %v1913
      %v1952 = vadd.f32 %v1839, %v1916
      %v1953 = vadd.f32 %v1840, %v1921
      %v1954 = vadd.f32 %v1841, %v1924
      %v1955 = vadd.f32 %v1842, %v1929
      %v1956 = vadd.f32 %v1843, %v1932
      %v1957 = vadd.f32 %v1844, %v1937
      %v1958 = vadd.f32 %v1845, %v1940
      %v1959 = vadd.f32 %v1846, %v1945
      %v1960 = vadd.f32 %v1847, %v1948
      %v1961 = vld [vmem:[%s7] sm:$0x1]
      %v1963 = vlaneseq
      %v1964 = vshrl.u32 %v1963, 7
      %v1965 = vsub.s32 0, %v1964
      %v1966 = vrot.slane %v1961, %v1965
      %v1968 = vmul.f32 %v1951, %v1966
      %v1969 = vmul.f32 %v1952, %v1966
      %v1970 = vmul.f32 %v1953, %v1966
      %v1971 = vmul.f32 %v1954, %v1966
      %v1972 = vmul.f32 %v1955, %v1966
      %v1973 = vmul.f32 %v1956, %v1966
      %v1974 = vmul.f32 %v1957, %v1966
      %v1975 = vmul.f32 %v1958, %v1966
      %v1976 = vmul.f32 %v1959, %v1966
      %v1977 = vmul.f32 %v1960, %v1966
      %v1978 = vld [vmem:[%s8] sm:$0x1]
      %v1980 = vlaneseq
      %v1981 = vshrl.u32 %v1980, 7
      %v1982 = vsub.s32 0, %v1981
      %v1983 = vrot.slane %v1978, %v1982
      %v1985 = vadd.f32 %v1968, %v1983
      %v1986 = vadd.f32 %v1969, %v1983
      %v1987 = vadd.f32 %v1970, %v1983
      %v1988 = vadd.f32 %v1971, %v1983
      %v1989 = vadd.f32 %v1972, %v1983
      %v1990 = vadd.f32 %v1973, %v1983
      %v1991 = vadd.f32 %v1974, %v1983
      %v1992 = vadd.f32 %v1975, %v1983
      %v1993 = vadd.f32 %v1976, %v1983
      %v1994 = vadd.f32 %v1977, %v1983
      %v1995 = vmax.f32 %v1985, 0.0
      %v1996 = vmax.f32 %v1986, 0.0
      %v1997 = vmax.f32 %v1987, 0.0
      %v1998 = vmax.f32 %v1988, 0.0
      %v1999 = vmax.f32 %v1989, 0.0
      %v2000 = vmax.f32 %v1990, 0.0
      %v2001 = vmax.f32 %v1991, 0.0
      %v2002 = vmax.f32 %v1992, 0.0
      %v2003 = vmax.f32 %v1993, 0.0
      %v2004 = vmax.f32 %v1994, 0.0
      %v2005 = vpack.c.bf16 %v1996, %v1995
      %v2006 = vpack.c.bf16 %v1998, %v1997
      %v2007 = vpack.c.bf16 %v2000, %v1999
      %v2008 = vpack.c.bf16 %v2002, %v2001
      %v2009 = vpack.c.bf16 %v2004, %v2003
      %v2010 = vld [vmem:[%s9] sm:$0x3]
      %v2011 = vld [vmem:[%s10] sm:$0x1]
      %v2013 = vlaneseq
      %v2014 = vshrl.u32 %v2013, 7
      %v2015 = vsub.s32 0, %v2014
      %v2016 = vrot.slane %v2011, %v2015
      %v2019 = vsel %vm902, %v2005, 0
      %v2022 = vsel %vm902, %v2006, 0
      %v2025 = vsel %vm902, %v2007, 0
      %v2028 = vsel %vm902, %v2008, 0
      %v2031 = vsel %vm902, %v2009, 0
      %v2034 = vsel %vm918, %v2010, 0
      %2036 = vmatprep.subr.bf16.mxu0 0
      %2037 = vmatpush1.bf16.msra.mxu0 0
      %2038 = vmatprep.subr.bf16.mxu0 0
      %2039 = vmatpush1.bf16.msra.mxu0 0
      %2040 = vmatprep.subr.bf16.mxu0 0
      %2041 = vmatpush1.bf16.msra.mxu0 0
      %2042 = vmatprep.subr.bf16.mxu0 0
      %2043 = vmatpush1.bf16.msra.mxu0 0
      %2044 = vmatprep.subr.bf16.mxu0 0
      %2045 = vmatpush1.bf16.msra.mxu0 0
      %2046 = vmatprep.subr.bf16.mxu0 0
      %2047 = vmatpush1.bf16.msra.mxu0 0
      %2048 = vmatprep.subr.bf16.mxu0 0
      %2049 = vmatpush1.bf16.msra.mxu0 0
      %2050 = vmatprep.subr.bf16.mxu0 0
      %2051 = vmatpush1.bf16.msra.mxu0 %v2034
      %2052 = vmatprep.subr.bf16.mxu0 0
      %2053 = vmatpush2.bf16.msra.mxu0 0
      %2054 = vmatprep.subr.bf16.mxu0 0
      %2055 = vmatpush2.bf16.msra.mxu0 0
      %2056 = vmatprep.subr.bf16.mxu0 0
      %2057 = vmatpush2.bf16.msra.mxu0 0
      %2058 = vmatprep.subr.bf16.mxu0 0
      %2059 = vmatpush2.bf16.msra.mxu0 0
      %2060 = vmatprep.subr.bf16.mxu0 0
      %2061 = vmatpush2.bf16.msra.mxu0 0
      %2062 = vmatprep.subr.bf16.mxu0 0
      %2063 = vmatpush2.bf16.msra.mxu0 0
      %2064 = vmatprep.subr.bf16.mxu0 0
      %2065 = vmatpush2.bf16.msra.mxu0 0
      %2066 = vmatprep.subr.bf16.mxu0 0
      %2067 = vmatpush2.bf16.msra.mxu0 0
      %2068 = vmatprep.mubr.bf16.mxu0 0
      %2069 = vmatmul.mubr.bf16.gmra.mxu0 %v2019
      %v2070 = vpop.f32.mrf.mxu0
      %v2071 = vadd.f32 %v2016, %v2070
      %v2072 = vpop.f32.mrf.mxu0
      %v2073 = vpop.f32.mrf.mxu0
      %v2074 = vadd.f32 %v2016, %v2073
      %v2075 = vpop.f32.mrf.mxu0
      %2076 = vmatprep.mubr.bf16.mxu0 0
      %2077 = vmatmul.mubr.bf16.gmra.mxu0 %v2022
      %v2078 = vpop.f32.mrf.mxu0
      %v2079 = vadd.f32 %v2016, %v2078
      %v2080 = vpop.f32.mrf.mxu0
      %v2081 = vpop.f32.mrf.mxu0
      %v2082 = vadd.f32 %v2016, %v2081
      %v2083 = vpop.f32.mrf.mxu0
      %2084 = vmatprep.mubr.bf16.mxu0 0
      %2085 = vmatmul.mubr.bf16.gmra.mxu0 %v2025
      %v2086 = vpop.f32.mrf.mxu0
      %v2087 = vadd.f32 %v2016, %v2086
      %v2088 = vpop.f32.mrf.mxu0
      %v2089 = vpop.f32.mrf.mxu0
      %v2090 = vadd.f32 %v2016, %v2089
      %v2091 = vpop.f32.mrf.mxu0
      %2092 = vmatprep.mubr.bf16.mxu0 0
      %2093 = vmatmul.mubr.bf16.gmra.mxu0 %v2028
      %v2094 = vpop.f32.mrf.mxu0
      %v2095 = vadd.f32 %v2016, %v2094
      %v2096 = vpop.f32.mrf.mxu0
      %v2097 = vpop.f32.mrf.mxu0
      %v2098 = vadd.f32 %v2016, %v2097
      %v2099 = vpop.f32.mrf.mxu0
      %2100 = vmatprep.mubr.bf16.mxu0 0
      %2101 = vmatmul.mubr.bf16.gmra.mxu0 %v2031
      %v2102 = vpop.f32.mrf.mxu0
      %v2103 = vadd.f32 %v2016, %v2102
      %v2104 = vpop.f32.mrf.mxu0
      %v2105 = vpop.f32.mrf.mxu0
      %v2106 = vadd.f32 %v2016, %v2105
      %v2107 = vpop.f32.mrf.mxu0
      %2108 = vdwg.mxu0
      %v2109 = vadd.s32 %v630, 11
      %v2110 = vadd.s32 %v631, 11
      %v2111 = vadd.s32 %v632, 11
      %v2112 = vadd.s32 %v633, 11
      %v2113 = vadd.s32 %v634, 11
      %v2114 = vadd.s32 %v635, 11
      %v2115 = vadd.s32 %v636, 11
      %v2116 = vadd.s32 %v637, 11
      %v2117 = vadd.s32 %v638, 11
      %v2118 = vadd.s32 %v639, 11
      %v2119 = vcvt.s32.f32 %v2109
      %v2120 = vcvt.s32.f32 %v2110
      %v2121 = vcvt.s32.f32 %v2111
      %v2122 = vcvt.s32.f32 %v2112
      %v2123 = vcvt.s32.f32 %v2113
      %v2124 = vcvt.s32.f32 %v2114
      %v2125 = vcvt.s32.f32 %v2115
      %v2126 = vcvt.s32.f32 %v2116
      %v2127 = vcvt.s32.f32 %v2117
      %v2128 = vcvt.s32.f32 %v2118
      %v2129 = vadd.f32 %v2119, 0.5
      %v2130 = vadd.f32 %v2120, 0.5
      %v2131 = vadd.f32 %v2121, 0.5
      %v2132 = vadd.f32 %v2122, 0.5
      %v2133 = vadd.f32 %v2123, 0.5
      %v2134 = vadd.f32 %v2124, 0.5
      %v2135 = vadd.f32 %v2125, 0.5
      %v2136 = vadd.f32 %v2126, 0.5
      %v2137 = vadd.f32 %v2127, 0.5
      %v2138 = vadd.f32 %v2128, 0.5
      %v2139 = vmul.f32 %v2129, 0.1
      %v2140 = vmul.f32 %v2130, 0.1
      %v2141 = vmul.f32 %v2131, 0.1
      %v2142 = vmul.f32 %v2132, 0.1
      %v2143 = vmul.f32 %v2133, 0.1
      %v2144 = vmul.f32 %v2134, 0.1
      %v2145 = vmul.f32 %v2135, 0.1
      %v2146 = vmul.f32 %v2136, 0.1
      %v2147 = vmul.f32 %v2137, 0.1
      %v2148 = vmul.f32 %v2138, 0.1
      %v2149 = vcvt.f32.s32.to.zero.pseudo %v2139
      %v2150 = vcvt.f32.s32.to.zero.pseudo %v2140
      %v2151 = vcvt.f32.s32.to.zero.pseudo %v2141
      %v2152 = vcvt.f32.s32.to.zero.pseudo %v2142
      %v2153 = vcvt.f32.s32.to.zero.pseudo %v2143
      %v2154 = vcvt.f32.s32.to.zero.pseudo %v2144
      %v2155 = vcvt.f32.s32.to.zero.pseudo %v2145
      %v2156 = vcvt.f32.s32.to.zero.pseudo %v2146
      %v2157 = vcvt.f32.s32.to.zero.pseudo %v2147
      %v2158 = vcvt.f32.s32.to.zero.pseudo %v2148
      %v2159 = vmul.u32 %v2149, 10
      %v2160 = vmul.u32 %v2150, 10
      %v2161 = vmul.u32 %v2151, 10
      %v2162 = vmul.u32 %v2152, 10
      %v2163 = vmul.u32 %v2153, 10
      %v2164 = vmul.u32 %v2154, 10
      %v2165 = vmul.u32 %v2155, 10
      %v2166 = vmul.u32 %v2156, 10
      %v2167 = vmul.u32 %v2157, 10
      %v2168 = vmul.u32 %v2158, 10
      %v2169 = vsub.s32 %v2109, %v2159
      %v2170 = vsub.s32 %v2110, %v2160
      %v2171 = vsub.s32 %v2111, %v2161
      %v2172 = vsub.s32 %v2112, %v2162
      %v2173 = vsub.s32 %v2113, %v2163
      %v2174 = vsub.s32 %v2114, %v2164
      %v2175 = vsub.s32 %v2115, %v2165
      %v2176 = vsub.s32 %v2116, %v2166
      %v2177 = vsub.s32 %v2117, %v2167
      %v2178 = vsub.s32 %v2118, %v2168
      %vm2179 = vcmp.ge.s32.totalorder %v2149, 1
      %vm2180 = vcmp.ge.s32.totalorder %v2150, 1
      %vm2181 = vcmp.ge.s32.totalorder %v2151, 1
      %vm2182 = vcmp.ge.s32.totalorder %v2152, 1
      %vm2183 = vcmp.ge.s32.totalorder %v2153, 1
      %vm2184 = vcmp.ge.s32.totalorder %v2154, 1
      %vm2185 = vcmp.ge.s32.totalorder %v2155, 1
      %vm2186 = vcmp.ge.s32.totalorder %v2156, 1
      %vm2187 = vcmp.ge.s32.totalorder %v2157, 1
      %vm2188 = vcmp.ge.s32.totalorder %v2158, 1
      %vm2189 = vcmp.le.s32.totalorder %v2149, 8
      %vm2190 = vcmp.le.s32.totalorder %v2150, 8
      %vm2191 = vcmp.le.s32.totalorder %v2151, 8
      %vm2192 = vcmp.le.s32.totalorder %v2152, 8
      %vm2193 = vcmp.le.s32.totalorder %v2153, 8
      %vm2194 = vcmp.le.s32.totalorder %v2154, 8
      %vm2195 = vcmp.le.s32.totalorder %v2155, 8
      %vm2196 = vcmp.le.s32.totalorder %v2156, 8
      %vm2197 = vcmp.le.s32.totalorder %v2157, 8
      %vm2198 = vcmp.le.s32.totalorder %v2158, 8
      %vm2199 = vmand %vm2179, %vm2189
      %vm2200 = vmand %vm2180, %vm2190
      %vm2201 = vmand %vm2181, %vm2191
      %vm2202 = vmand %vm2182, %vm2192
      %vm2203 = vmand %vm2183, %vm2193
      %vm2204 = vmand %vm2184, %vm2194
      %vm2205 = vmand %vm2185, %vm2195
      %vm2206 = vmand %vm2186, %vm2196
      %vm2207 = vmand %vm2187, %vm2197
      %vm2208 = vmand %vm2188, %vm2198
      %vm2209 = vcmp.ge.s32.totalorder %v2169, 1
      %vm2210 = vcmp.ge.s32.totalorder %v2170, 1
      %vm2211 = vcmp.ge.s32.totalorder %v2171, 1
      %vm2212 = vcmp.ge.s32.totalorder %v2172, 1
      %vm2213 = vcmp.ge.s32.totalorder %v2173, 1
      %vm2214 = vcmp.ge.s32.totalorder %v2174, 1
      %vm2215 = vcmp.ge.s32.totalorder %v2175, 1
      %vm2216 = vcmp.ge.s32.totalorder %v2176, 1
      %vm2217 = vcmp.ge.s32.totalorder %v2177, 1
      %vm2218 = vcmp.ge.s32.totalorder %v2178, 1
      %vm2219 = vmand %vm2199, %vm2209
      %vm2220 = vmand %vm2200, %vm2210
      %vm2221 = vmand %vm2201, %vm2211
      %vm2222 = vmand %vm2202, %vm2212
      %vm2223 = vmand %vm2203, %vm2213
      %vm2224 = vmand %vm2204, %vm2214
      %vm2225 = vmand %vm2205, %vm2215
      %vm2226 = vmand %vm2206, %vm2216
      %vm2227 = vmand %vm2207, %vm2217
      %vm2228 = vmand %vm2208, %vm2218
      %vm2229 = vcmp.le.s32.totalorder %v2169, 8
      %vm2230 = vcmp.le.s32.totalorder %v2170, 8
      %vm2231 = vcmp.le.s32.totalorder %v2171, 8
      %vm2232 = vcmp.le.s32.totalorder %v2172, 8
      %vm2233 = vcmp.le.s32.totalorder %v2173, 8
      %vm2234 = vcmp.le.s32.totalorder %v2174, 8
      %vm2235 = vcmp.le.s32.totalorder %v2175, 8
      %vm2236 = vcmp.le.s32.totalorder %v2176, 8
      %vm2237 = vcmp.le.s32.totalorder %v2177, 8
      %vm2238 = vcmp.le.s32.totalorder %v2178, 8
      %vm2239 = vmand %vm2219, %vm2229
      %vm2240 = vmand %vm2220, %vm2230
      %vm2241 = vmand %vm2221, %vm2231
      %vm2242 = vmand %vm2222, %vm2232
      %vm2243 = vmand %vm2223, %vm2233
      %vm2244 = vmand %vm2224, %vm2234
      %vm2245 = vmand %vm2225, %vm2235
      %vm2246 = vmand %vm2226, %vm2236
      %vm2247 = vmand %vm2227, %vm2237
      %vm2248 = vmand %vm2228, %vm2238
      %v2249 = vsel %vm2239, 1, 0
      %v2250 = vsel %vm2240, 1, 0
      %v2251 = vsel %vm2241, 1, 0
      %v2252 = vsel %vm2242, 1, 0
      %v2253 = vsel %vm2243, 1, 0
      %v2254 = vsel %vm2244, 1, 0
      %v2255 = vsel %vm2245, 1, 0
      %v2256 = vsel %vm2246, 1, 0
      %v2257 = vsel %vm2247, 1, 0
      %v2258 = vsel %vm2248, 1, 0
      %v2259 = vcvt.s32.f32 %v2249
      %v2260 = vcvt.s32.f32 %v2250
      %v2261 = vcvt.s32.f32 %v2251
      %v2262 = vcvt.s32.f32 %v2252
      %v2263 = vcvt.s32.f32 %v2253
      %v2264 = vcvt.s32.f32 %v2254
      %v2265 = vcvt.s32.f32 %v2255
      %v2266 = vcvt.s32.f32 %v2256
      %v2267 = vcvt.s32.f32 %v2257
      %v2268 = vcvt.s32.f32 %v2258
      %vm2280 = vcmask 1044480
      %v2281 = vrot.slane %v389, 3
      %v2282 = vrot.slane %v390, 3
      %v2283 = vsel %vm2280, %v2281, %v2282
      %v2284 = vrot.slane %v391, 3
      %v2285 = vsel %vm2280, %v2282, %v2284
      %v2286 = vrot.slane %v392, 3
      %v2287 = vsel %vm2280, %v2284, %v2286
      %v2288 = vrot.slane %v393, 3
      %v2289 = vsel %vm2280, %v2286, %v2288
      %v2290 = vrot.slane %v394, 3
      %v2291 = vsel %vm2280, %v2288, %v2290
      %v2292 = vrot.slane %v395, 3
      %v2293 = vsel %vm2280, %v2290, %v2292
      %v2294 = vrot.slane %v396, 3
      %v2295 = vsel %vm2280, %v2292, %v2294
      %v2296 = vrot.slane %v397, 3
      %v2297 = vsel %vm2280, %v2294, %v2296
      %v2298 = vrot.slane %v398, 3
      %v2299 = vsel %vm2280, %v2296, %v2298
      %v2300 = vrot.slane %v399, 3
      %v2301 = vsel %vm2280, %v2298, %v2300
      %v2312 = vadd.f32 %v2071, %v2283
      %v2313 = vadd.f32 %v2074, %v2285
      %v2314 = vadd.f32 %v2079, %v2287
      %v2315 = vadd.f32 %v2082, %v2289
      %v2316 = vadd.f32 %v2087, %v2291
      %v2317 = vadd.f32 %v2090, %v2293
      %v2318 = vadd.f32 %v2095, %v2295
      %v2319 = vadd.f32 %v2098, %v2297
      %v2320 = vadd.f32 %v2103, %v2299
      %v2321 = vadd.f32 %v2106, %v2301
      %v2322 = vmul.f32 %v2312, %v2259
      %v2323 = vmul.f32 %v2313, %v2260
      %v2324 = vmul.f32 %v2314, %v2261
      %v2325 = vmul.f32 %v2315, %v2262
      %v2326 = vmul.f32 %v2316, %v2263
      %v2327 = vmul.f32 %v2317, %v2264
      %v2328 = vmul.f32 %v2318, %v2265
      %v2329 = vmul.f32 %v2319, %v2266
      %v2330 = vmul.f32 %v2320, %v2267
      %v2331 = vmul.f32 %v2321, %v2268
      %2332 = vst.msk [vmem:[%s386] sm:$0xff] %vm462, 0.0
      %vm2333 = vcmask 59392
      %2334 = vst.msk [vmem:[%s386 + $0x8] sm:$0x7] %vm2333, 0.0
      %2335 = vst.msk [vmem:[%s386 + $0x59] sm:$0xff] %vm462, 0.0
      %2336 = vst.msk [vmem:[%s386 + $0x61] sm:$0x7] %vm2333, 0.0
      %2337 = vst.msk [vmem:[%s386 + $0xb] sm:$0xff] %vm462, %v2322
      %2338 = vst.msk [vmem:[%s386 + $0x13] sm:$0xff] %vm462, %v2323
      %2339 = vst.msk [vmem:[%s386 + $0x1b] sm:$0xff] %vm462, %v2324
      %2340 = vst.msk [vmem:[%s386 + $0x23] sm:$0xff] %vm462, %v2325
      %2341 = vst.msk [vmem:[%s386 + $0x2b] sm:$0xff] %vm462, %v2326
      %2342 = vst.msk [vmem:[%s386 + $0x33] sm:$0xff] %vm462, %v2327
      %2343 = vst.msk [vmem:[%s386 + $0x3b] sm:$0xff] %vm462, %v2328
      %2344 = vst.msk [vmem:[%s386 + $0x43] sm:$0xff] %vm462, %v2329
      %2345 = vst.msk [vmem:[%s386 + $0x4b] sm:$0xff] %vm462, %v2330
      %vm2346 = vcmask 62464
      %2347 = vst.msk [vmem:[%s386 + $0x53] sm:$0x3f] %vm2346, %v2331
      %p2348 = scmp.lt.s32.totalorder %s22, 1
      %s2349 = scalar_select %p2348, %s22, 1
      %s2350 = smul.addr %s2349, 13
      %s2351 = smul.addr %s2350, 8
      %s2352 = scalar_lea.vmem %s11, %s2351
      // Predicated region
      $region65: #{hourglass_forward.8} parent=63 // pred_check
        %p2353 = pneg %p276
      $region66: #{hourglass_forward.8} parent=63 // pred_check_branch
        %2355 = sbr.rel (%p2353) target = $region68
      $region67: #{hourglass_forward.8} parent=63 // pred_region
        _
      $region68: #{hourglass_forward.8} parent=63 // pred_fallthru
        _
    $region64: #{hourglass_forward.8} parent=5 // pred_fallthru
      _
    %p2356 = scmp.le.s32.totalorder 2, %s17
    // Predicated region
    $region69: #{hourglass_forward.8} parent=5 // pred_check
      %p2357 = pneg %p2356
    $region70: #{hourglass_forward.8} parent=5 // pred_check_branch
      %2359 = sbr.rel (%p2357) target = $region72
    $region71: #{hourglass_forward.8} parent=5 // pred_region
      %s2360 = ssub.s32 %s17, 2
      // Predicated region
      $region73: #{hourglass_forward.8} parent=71 // pred_check
        %p2361 = pneg %p282
      $region74: #{hourglass_forward.8} parent=71 // pred_check_branch
        %2363 = sbr.rel (%p2361) target = $region76
      $region75: #{hourglass_forward.8} parent=71 // pred_region
        %p2364 = scmp.lt.s32.totalorder %s23, 1
        %s2365 = scalar_select %p2364, %s23, 1
        %s2366 = smul.addr %s2365, 13
        %s2367 = smul.addr %s2366, 8
        %s2368 = scalar_lea.vmem %s11, %s2367
      $region76: #{hourglass_forward.8} parent=71 // pred_fallthru
        _
    $region72: #{hourglass_forward.8} parent=5 // pred_fallthru
      _
  $region6: #{hourglass_forward.8} parent=0 // loop_footer
    %s21 = sadd.s32 1, %s17
  $region7: #{hourglass_forward.8} parent=0 // loop_footer_branch
    %16 = sbr.rel target = $region3
  $region8: #{hourglass_forward.8} parent=0 // loop_exit
    _

// kernel: hourglass_forward.7
$region0: #{hourglass_forward.7}
  #allocation0 [shape = 'u32[]', space=smem, size = 0x4, offset = 0x4, fixed_abs, tag = 'smem constant byte address 0x4 - core index']
  #allocation1 [shape = 'u32[144,128]{1,0:T(1,128)}', space=vmem, size = 0x12000, scoped, tag = 'internal scratch']
  %s0 = inlined_call_operand.vmem [shape: f32[2,324,8], index: 0, kind: input, shape index: {}]
  %s1 = inlined_call_operand.vmem [shape: f32[1,8], index: 1, kind: input, shape index: {}]
  %s2 = inlined_call_operand.vmem [shape: f32[1,8], index: 2, kind: input, shape index: {}]
  %s3 = inlined_call_operand.vmem [shape: bf16[8,4], index: 3, kind: input, shape index: {}]
  %s4 = inlined_call_operand.vmem [shape: f32[1,4], index: 4, kind: input, shape index: {}]
  %s5 = inlined_call_operand.vmem [shape: f32[1,4], index: 5, kind: input, shape index: {}]
  %s6 = inlined_call_operand.vmem [shape: bf16[3,12,4], index: 6, kind: input, shape index: {}]
  %s7 = inlined_call_operand.vmem [shape: f32[1,4], index: 7, kind: input, shape index: {}]
  %s8 = inlined_call_operand.vmem [shape: f32[1,4], index: 8, kind: input, shape index: {}]
  %s9 = inlined_call_operand.vmem [shape: bf16[4,8], index: 9, kind: input, shape index: {}]
  %s10 = inlined_call_operand.vmem [shape: f32[1,8], index: 10, kind: input, shape index: {}]
  %s11 = inlined_call_operand.vmem [shape: f32[2,324,8], index: 11, kind: output, shape index: {}]
  %s12 = sld [smem:[#allocation0]]
  $region77: #{hourglass_forward.7} parent=0
    _
  %s14 = ssub.s32 1, %s12
  %s15 = scalar_select 0, %s14, %s12
  loop: start=0, step=1, limit=4
  $region2: #{hourglass_forward.7} parent=0 // loop_pre_header
    _
  $region3: #{hourglass_forward.7} parent=0 // loop_header
    %s17 = sphi 0, %s21
    %p18 = scmp.ge.s32.totalorder %s17, 4
    %s27 = sphi 0, %s29
    %s30 = sphi 0, %s27
    %s31 = sphi 0, %s30
    %s47 = sphi 0, %s31
    %s51 = sphi 0, %s51
    %s53 = sphi 0, %s51
    %s54 = sphi 0, %s53
    %s68 = sphi 0, %s54
    %s72 = sphi 0, %s72
    %s74 = sphi 0, %s72
    %s75 = sphi 0, %s74
    %s89 = sphi 0, %s75
    %s93 = sphi 0, %s93
    %s95 = sphi 0, %s93
    %s96 = sphi 0, %s95
    %s110 = sphi 0, %s96
    %s114 = sphi 0, %s114
    %s116 = sphi 0, %s114
    %s117 = sphi 0, %s116
    %s131 = sphi 0, %s117
    %s135 = sphi 0, %s135
    %s137 = sphi 0, %s135
    %s138 = sphi 0, %s137
    %s152 = sphi 0, %s138
    %s156 = sphi 0, %s156
    %s158 = sphi 0, %s156
    %s159 = sphi 0, %s158
    %s173 = sphi 0, %s159
    %s177 = sphi 0, %s177
    %s179 = sphi 0, %s177
    %s180 = sphi 0, %s179
    %s194 = sphi 0, %s180
    %s198 = sphi 0, %s198
    %s200 = sphi 0, %s198
    %s201 = sphi 0, %s200
    %s215 = sphi 0, %s201
    %s219 = sphi 0, %s219
    %s221 = sphi 0, %s219
    %s222 = sphi 0, %s221
    %s236 = sphi 0, %s222
    %s240 = sphi 0, %s240
    %s242 = sphi 0, %s240
    %s243 = sphi 0, %s242
    %s257 = sphi 0, %s243
    %s263 = sphi 0, %s265
    %s266 = sphi 0, %s263
    %s267 = sphi 0, %s266
    %s283 = sphi 0, %s267
  $region4: #{hourglass_forward.7} parent=0 // loop_header_branch
    %20 = sbr.rel (%p18) target = $region8
  $region5: #{hourglass_forward.7} parent=0 // loop_body
    %s22 = ssub.s32 %s17, 1
    %s23 = ssub.s32 %s17, 2
    %s24 = sadd.s32 %s17, 1
    %s25 = ssub.s32 %s17, %s24
    %p26 = scmp.eq.s32.totalorder %s25, 0
    %s28 = sadd.s32 %s27, 1
    %s29 = scalar_select %p26, %s27, %s28
    %p32 = pneg %p26
    %p33 = scmp.eq.s32.totalorder %s17, 1
    %p34 = por %p32, %p33
    %p35 = scmp.ne.s32.totalorder %s27, %s30
    %p36 = scmp.eq.s32.totalorder %s17, 0
    %p37 = por %p35, %p36
    %p38 = scmp.ne.s32.totalorder %s27, %s30
    %p39 = scmp.eq.s32.totalorder %s22, 1
    %p40 = por %p38, %p39
    %p41 = scmp.ne.s32.totalorder %s30, %s31
    %p42 = scmp.eq.s32.totalorder %s22, 0
    %p43 = por %p41, %p42
    %p44 = scmp.ne.s32.totalorder %s30, %s31
    %p45 = scmp.eq.s32.totalorder %s23, 1
    %p46 = por %p44, %p45
    %p48 = scmp.ne.s32.totalorder %s31, %s47
    %p49 = scmp.eq.s32.totalorder %s23, 0
    %p50 = por %p48, %p49
    %s52 = sadd.s32 %s51, 1
    %p55 = scmp.eq.s32.totalorder %s17, 1
    %p56 = scmp.ne.s32.totalorder %s51, %s53
    %p57 = scmp.eq.s32.totalorder %s17, 0
    %p58 = por %p56, %p57
    %p59 = scmp.ne.s32.totalorder %s51, %s53
    %p60 = scmp.eq.s32.totalorder %s22, 1
    %p61 = por %p59, %p60
    %p62 = scmp.ne.s32.totalorder %s53, %s54
    %p63 = scmp.eq.s32.totalorder %s22, 0
    %p64 = por %p62, %p63
    %p65 = scmp.ne.s32.totalorder %s53, %s54
    %p66 = scmp.eq.s32.totalorder %s23, 1
    %p67 = por %p65, %p66
    %p69 = scmp.ne.s32.totalorder %s54, %s68
    %p70 = scmp.eq.s32.totalorder %s23, 0
    %p71 = por %p69, %p70
    %s73 = sadd.s32 %s72, 1
    %p76 = scmp.eq.s32.totalorder %s17, 1
    %p77 = scmp.ne.s32.totalorder %s72, %s74
    %p78 = scmp.eq.s32.totalorder %s17, 0
    %p79 = por %p77, %p78
    %p80 = scmp.ne.s32.totalorder %s72, %s74
    %p81 = scmp.eq.s32.totalorder %s22, 1
    %p82 = por %p80, %p81
    %p83 = scmp.ne.s32.totalorder %s74, %s75
    %p84 = scmp.eq.s32.totalorder %s22, 0
    %p85 = por %p83, %p84
    %p86 = scmp.ne.s32.totalorder %s74, %s75
    %p87 = scmp.eq.s32.totalorder %s23, 1
    %p88 = por %p86, %p87
    %p90 = scmp.ne.s32.totalorder %s75, %s89
    %p91 = scmp.eq.s32.totalorder %s23, 0
    %p92 = por %p90, %p91
    %s94 = sadd.s32 %s93, 1
    %p97 = scmp.eq.s32.totalorder %s17, 1
    %p98 = scmp.ne.s32.totalorder %s93, %s95
    %p99 = scmp.eq.s32.totalorder %s17, 0
    %p100 = por %p98, %p99
    %p101 = scmp.ne.s32.totalorder %s93, %s95
    %p102 = scmp.eq.s32.totalorder %s22, 1
    %p103 = por %p101, %p102
    %p104 = scmp.ne.s32.totalorder %s95, %s96
    %p105 = scmp.eq.s32.totalorder %s22, 0
    %p106 = por %p104, %p105
    %p107 = scmp.ne.s32.totalorder %s95, %s96
    %p108 = scmp.eq.s32.totalorder %s23, 1
    %p109 = por %p107, %p108
    %p111 = scmp.ne.s32.totalorder %s96, %s110
    %p112 = scmp.eq.s32.totalorder %s23, 0
    %p113 = por %p111, %p112
    %s115 = sadd.s32 %s114, 1
    %p118 = scmp.eq.s32.totalorder %s17, 1
    %p119 = scmp.ne.s32.totalorder %s114, %s116
    %p120 = scmp.eq.s32.totalorder %s17, 0
    %p121 = por %p119, %p120
    %p122 = scmp.ne.s32.totalorder %s114, %s116
    %p123 = scmp.eq.s32.totalorder %s22, 1
    %p124 = por %p122, %p123
    %p125 = scmp.ne.s32.totalorder %s116, %s117
    %p126 = scmp.eq.s32.totalorder %s22, 0
    %p127 = por %p125, %p126
    %p128 = scmp.ne.s32.totalorder %s116, %s117
    %p129 = scmp.eq.s32.totalorder %s23, 1
    %p130 = por %p128, %p129
    %p132 = scmp.ne.s32.totalorder %s117, %s131
    %p133 = scmp.eq.s32.totalorder %s23, 0
    %p134 = por %p132, %p133
    %s136 = sadd.s32 %s135, 1
    %p139 = scmp.eq.s32.totalorder %s17, 1
    %p140 = scmp.ne.s32.totalorder %s135, %s137
    %p141 = scmp.eq.s32.totalorder %s17, 0
    %p142 = por %p140, %p141
    %p143 = scmp.ne.s32.totalorder %s135, %s137
    %p144 = scmp.eq.s32.totalorder %s22, 1
    %p145 = por %p143, %p144
    %p146 = scmp.ne.s32.totalorder %s137, %s138
    %p147 = scmp.eq.s32.totalorder %s22, 0
    %p148 = por %p146, %p147
    %p149 = scmp.ne.s32.totalorder %s137, %s138
    %p150 = scmp.eq.s32.totalorder %s23, 1
    %p151 = por %p149, %p150
    %p153 = scmp.ne.s32.totalorder %s138, %s152
    %p154 = scmp.eq.s32.totalorder %s23, 0
    %p155 = por %p153, %p154
    %s157 = sadd.s32 %s156, 1
    %p160 = scmp.eq.s32.totalorder %s17, 1
    %p161 = scmp.ne.s32.totalorder %s156, %s158
    %p162 = scmp.eq.s32.totalorder %s17, 0
    %p163 = por %p161, %p162
    %p164 = scmp.ne.s32.totalorder %s156, %s158
    %p165 = scmp.eq.s32.totalorder %s22, 1
    %p166 = por %p164, %p165
    %p167 = scmp.ne.s32.totalorder %s158, %s159
    %p168 = scmp.eq.s32.totalorder %s22, 0
    %p169 = por %p167, %p168
    %p170 = scmp.ne.s32.totalorder %s158, %s159
    %p171 = scmp.eq.s32.totalorder %s23, 1
    %p172 = por %p170, %p171
    %p174 = scmp.ne.s32.totalorder %s159, %s173
    %p175 = scmp.eq.s32.totalorder %s23, 0
    %p176 = por %p174, %p175
    %s178 = sadd.s32 %s177, 1
    %p181 = scmp.eq.s32.totalorder %s17, 1
    %p182 = scmp.ne.s32.totalorder %s177, %s179
    %p183 = scmp.eq.s32.totalorder %s17, 0
    %p184 = por %p182, %p183
    %p185 = scmp.ne.s32.totalorder %s177, %s179
    %p186 = scmp.eq.s32.totalorder %s22, 1
    %p187 = por %p185, %p186
    %p188 = scmp.ne.s32.totalorder %s179, %s180
    %p189 = scmp.eq.s32.totalorder %s22, 0
    %p190 = por %p188, %p189
    %p191 = scmp.ne.s32.totalorder %s179, %s180
    %p192 = scmp.eq.s32.totalorder %s23, 1
    %p193 = por %p191, %p192
    %p195 = scmp.ne.s32.totalorder %s180, %s194
    %p196 = scmp.eq.s32.totalorder %s23, 0
    %p197 = por %p195, %p196
    %s199 = sadd.s32 %s198, 1
    %p202 = scmp.eq.s32.totalorder %s17, 1
    %p203 = scmp.ne.s32.totalorder %s198, %s200
    %p204 = scmp.eq.s32.totalorder %s17, 0
    %p205 = por %p203, %p204
    %p206 = scmp.ne.s32.totalorder %s198, %s200
    %p207 = scmp.eq.s32.totalorder %s22, 1
    %p208 = por %p206, %p207
    %p209 = scmp.ne.s32.totalorder %s200, %s201
    %p210 = scmp.eq.s32.totalorder %s22, 0
    %p211 = por %p209, %p210
    %p212 = scmp.ne.s32.totalorder %s200, %s201
    %p213 = scmp.eq.s32.totalorder %s23, 1
    %p214 = por %p212, %p213
    %p216 = scmp.ne.s32.totalorder %s201, %s215
    %p217 = scmp.eq.s32.totalorder %s23, 0
    %p218 = por %p216, %p217
    %s220 = sadd.s32 %s219, 1
    %p223 = scmp.eq.s32.totalorder %s17, 1
    %p224 = scmp.ne.s32.totalorder %s219, %s221
    %p225 = scmp.eq.s32.totalorder %s17, 0
    %p226 = por %p224, %p225
    %p227 = scmp.ne.s32.totalorder %s219, %s221
    %p228 = scmp.eq.s32.totalorder %s22, 1
    %p229 = por %p227, %p228
    %p230 = scmp.ne.s32.totalorder %s221, %s222
    %p231 = scmp.eq.s32.totalorder %s22, 0
    %p232 = por %p230, %p231
    %p233 = scmp.ne.s32.totalorder %s221, %s222
    %p234 = scmp.eq.s32.totalorder %s23, 1
    %p235 = por %p233, %p234
    %p237 = scmp.ne.s32.totalorder %s222, %s236
    %p238 = scmp.eq.s32.totalorder %s23, 0
    %p239 = por %p237, %p238
    %s241 = sadd.s32 %s240, 1
    %p244 = scmp.eq.s32.totalorder %s17, 1
    %p245 = scmp.ne.s32.totalorder %s240, %s242
    %p246 = scmp.eq.s32.totalorder %s17, 0
    %p247 = por %p245, %p246
    %p248 = scmp.ne.s32.totalorder %s240, %s242
    %p249 = scmp.eq.s32.totalorder %s22, 1
    %p250 = por %p248, %p249
    %p251 = scmp.ne.s32.totalorder %s242, %s243
    %p252 = scmp.eq.s32.totalorder %s22, 0
    %p253 = por %p251, %p252
    %p254 = scmp.ne.s32.totalorder %s242, %s243
    %p255 = scmp.eq.s32.totalorder %s23, 1
    %p256 = por %p254, %p255
    %p258 = scmp.ne.s32.totalorder %s243, %s257
    %p259 = scmp.eq.s32.totalorder %s23, 0
    %p260 = por %p258, %p259
    %s261 = ssub.s32 %s17, %s24
    %p262 = scmp.eq.s32.totalorder %s261, 0
    %s264 = sadd.s32 %s263, 1
    %s265 = scalar_select %p262, %s263, %s264
    %p268 = pneg %p262
    %p269 = scmp.eq.s32.totalorder %s17, 1
    %p270 = por %p268, %p269
    %p271 = scmp.ne.s32.totalorder %s263, %s266
    %p272 = scmp.eq.s32.totalorder %s17, 0
    %p273 = por %p271, %p272
    %p274 = scmp.ne.s32.totalorder %s263, %s266
    %p275 = scmp.eq.s32.totalorder %s22, 1
    %p276 = por %p274, %p275
    %p277 = scmp.ne.s32.totalorder %s266, %s267
    %p278 = scmp.eq.s32.totalorder %s22, 0
    %p279 = por %p277, %p278
    %p280 = scmp.ne.s32.totalorder %s266, %s267
    %p281 = scmp.eq.s32.totalorder %s23, 1
    %p282 = por %p280, %p281
    %p284 = scmp.ne.s32.totalorder %s267, %s283
    %p285 = scmp.eq.s32.totalorder %s23, 0
    %p286 = por %p284, %p285
    %p287 = scmp.le.s32.totalorder 1, %s17
    %p288 = scmp.lt.s32.totalorder %s17, 3
    %p289 = pnand %p287, %p288
    %p290 = pneg %p289
    // Predicated region
    $region9: #{hourglass_forward.7} parent=5 // pred_check
      _
    $region10: #{hourglass_forward.7} parent=5 // pred_check_branch
      %292 = sbr.rel (%p289) target = $region12
    $region11: #{hourglass_forward.7} parent=5 // pred_region
      %s293 = ssub.s32 %s17, 1
      // Predicated region
      $region13: #{hourglass_forward.7} parent=11 // pred_check
        %p294 = pneg %p64
      $region14: #{hourglass_forward.7} parent=11 // pred_check_branch
        %296 = sbr.rel (%p294) target = $region16
      $region15: #{hourglass_forward.7} parent=11 // pred_region
        _
      $region16: #{hourglass_forward.7} parent=11 // pred_fallthru
        _
      // Predicated region
      $region17: #{hourglass_forward.7} parent=11 // pred_check
        %p297 = pneg %p85
      $region18: #{hourglass_forward.7} parent=11 // pred_check_branch
        %299 = sbr.rel (%p297) target = $region20
      $region19: #{hourglass_forward.7} parent=11 // pred_region
        _
      $region20: #{hourglass_forward.7} parent=11 // pred_fallthru
        _
      // Predicated region
      $region21: #{hourglass_forward.7} parent=11 // pred_check
        %p300 = pneg %p106
      $region22: #{hourglass_forward.7} parent=11 // pred_check_branch
        %302 = sbr.rel (%p300) target = $region24
      $region23: #{hourglass_forward.7} parent=11 // pred_region
        _
      $region24: #{hourglass_forward.7} parent=11 // pred_fallthru
        _
      // Predicated region
      $region25: #{hourglass_forward.7} parent=11 // pred_check
        %p303 = pneg %p127
      $region26: #{hourglass_forward.7} parent=11 // pred_check_branch
        %305 = sbr.rel (%p303) target = $region28
      $region27: #{hourglass_forward.7} parent=11 // pred_region
        _
      $region28: #{hourglass_forward.7} parent=11 // pred_fallthru
        _
      // Predicated region
      $region29: #{hourglass_forward.7} parent=11 // pred_check
        %p306 = pneg %p148
      $region30: #{hourglass_forward.7} parent=11 // pred_check_branch
        %308 = sbr.rel (%p306) target = $region32
      $region31: #{hourglass_forward.7} parent=11 // pred_region
        _
      $region32: #{hourglass_forward.7} parent=11 // pred_fallthru
        _
      // Predicated region
      $region33: #{hourglass_forward.7} parent=11 // pred_check
        %p309 = pneg %p169
      $region34: #{hourglass_forward.7} parent=11 // pred_check_branch
        %311 = sbr.rel (%p309) target = $region36
      $region35: #{hourglass_forward.7} parent=11 // pred_region
        _
      $region36: #{hourglass_forward.7} parent=11 // pred_fallthru
        _
      // Predicated region
      $region37: #{hourglass_forward.7} parent=11 // pred_check
        %p312 = pneg %p190
      $region38: #{hourglass_forward.7} parent=11 // pred_check_branch
        %314 = sbr.rel (%p312) target = $region40
      $region39: #{hourglass_forward.7} parent=11 // pred_region
        _
      $region40: #{hourglass_forward.7} parent=11 // pred_fallthru
        _
      // Predicated region
      $region41: #{hourglass_forward.7} parent=11 // pred_check
        %p315 = pneg %p211
      $region42: #{hourglass_forward.7} parent=11 // pred_check_branch
        %317 = sbr.rel (%p315) target = $region44
      $region43: #{hourglass_forward.7} parent=11 // pred_region
        _
      $region44: #{hourglass_forward.7} parent=11 // pred_fallthru
        _
      // Predicated region
      $region45: #{hourglass_forward.7} parent=11 // pred_check
        %p318 = pneg %p232
      $region46: #{hourglass_forward.7} parent=11 // pred_check_branch
        %320 = sbr.rel (%p318) target = $region48
      $region47: #{hourglass_forward.7} parent=11 // pred_region
        _
      $region48: #{hourglass_forward.7} parent=11 // pred_fallthru
        _
      // Predicated region
      $region49: #{hourglass_forward.7} parent=11 // pred_check
        %p321 = pneg %p253
      $region50: #{hourglass_forward.7} parent=11 // pred_check_branch
        %323 = sbr.rel (%p321) target = $region52
      $region51: #{hourglass_forward.7} parent=11 // pred_region
        _
      $region52: #{hourglass_forward.7} parent=11 // pred_fallthru
        _
    $region12: #{hourglass_forward.7} parent=5 // pred_fallthru
      _
    %p324 = scmp.lt.s32.totalorder %s17, 2
    // Predicated region
    $region53: #{hourglass_forward.7} parent=5 // pred_check
      %p325 = pneg %p324
    $region54: #{hourglass_forward.7} parent=5 // pred_check_branch
      %327 = sbr.rel (%p325) target = $region56
    $region55: #{hourglass_forward.7} parent=5 // pred_region
      // Predicated region
      $region57: #{hourglass_forward.7} parent=55 // pred_check
        %p328 = pneg %p37
      $region58: #{hourglass_forward.7} parent=55 // pred_check_branch
        %330 = sbr.rel (%p328) target = $region60
      $region59: #{hourglass_forward.7} parent=55 // pred_region
        %p331 = scmp.lt.s32.totalorder %s17, 1
        %s332 = scalar_select %p331, %s17, 1
        %s333 = smul.addr %s332, 41
        %s334 = smul.addr %s333, 8
        %s335 = scalar_lea.vmem %s0, %s334
      $region60: #{hourglass_forward.7} parent=55 // pred_fallthru
        _
    $region56: #{hourglass_forward.7} parent=5 // pred_fallthru
      _
    %p336 = scmp.le.s32.totalorder 1, %s17
    %p337 = scmp.lt.s32.totalorder %s17, 3
    %p338 = pnand %p336, %p337
    %p339 = pneg %p338
    // Predicated region
    $region61: #{hourglass_forward.7} parent=5 // pred_check
      _
    $region62: #{hourglass_forward.7} parent=5 // pred_check_branch
      %341 = sbr.rel (%p338) target = $region64
    $region63: #{hourglass_forward.7} parent=5 // pred_region
      %s342 = ssub.s32 %s17, 1
      %p343 = scmp.lt.s32.totalorder %s22, 1
      %s344 = scalar_select %p343, %s22, 1
      %s345 = smul.addr %s344, 41
      %s346 = smul.addr %s345, 8
      %s347 = scalar_lea.vmem %s0, %s346
      %p348 = pneg %p43
      %p349 = pneg %p40
      %p350 = pneg %p64
      %p351 = pneg %p61
      %p352 = pneg %p85
      %p353 = pneg %p82
      %p354 = pneg %p106
      %p355 = pneg %p103
      %p356 = pneg %p127
      %p357 = pneg %p124
      %p358 = pneg %p148
      %p359 = pneg %p145
      %p360 = pneg %p169
      %p361 = pneg %p166
      %p362 = pneg %p190
      %p363 = pneg %p187
      %p364 = pneg %p211
      %p365 = pneg %p208
      %p366 = pneg %p232
      %p367 = pneg %p229
      %p368 = pneg %p253
      %p369 = pneg %p250
      %p370 = pneg %p279
      %p371 = pneg %p276
      %p372 = scmp.lt.s32.totalorder %s22, 1
      %s373 = scalar_select %p372, %s22, 1
      %s374 = smul.addr %s373, 41
      %s375 = smul.addr %s374, 8
      %s376 = scalar_lea.vmem %s11, %s375
      %p377 = scmp.lt.s32.totalorder %s22, 1
      %s378 = scalar_select %p377, %s22, 1
      %s379 = smul.addr %s378, 41
      %s380 = smul.addr %s379, 8
      %s381 = scalar_lea.vmem %s0, %s380
      %p382 = scmp.lt.s32.totalorder %s22, 1
      %s383 = scalar_select %p382, %s22, 1
      %s384 = smul.addr %s383, 41
      %s385 = smul.addr %s384, 8
      %s386 = scalar_lea.vmem %s11, %s385
      %v388 = vld [vmem:[%s381] sm:$0xff]
      %v389 = vld [vmem:[%s381 + $0x8] sm:$0xff]
      %v390 = vld [vmem:[%s381 + $0x10] sm:$0xff]
      %v391 = vld [vmem:[%s381 + $0x18] sm:$0xff]
      %v392 = vld [vmem:[%s381 + $0x20] sm:$0xff]
      %v393 = vld [vmem:[%s381 + $0x28] sm:$0xff]
      %v394 = vld [vmem:[%s381 + $0x30] sm:$0xff]
      %v395 = vld [vmem:[%s381 + $0x38] sm:$0xff]
      %v396 = vld [vmem:[%s381 + $0x40] sm:$0xff]
      %v397 = vld [vmem:[%s381 + $0x48] sm:$0xff]
      %v398 = vld [vmem:[%s381 + $0x50] sm:$0xff]
      %v399 = vld [vmem:[%s381 + $0x58] sm:$0xff]
      %v400 = vld [vmem:[%s381 + $0x60] sm:$0xff]
      %v401 = vld [vmem:[%s381 + $0x68] sm:$0xff]
      %v402 = vld [vmem:[%s381 + $0x70] sm:$0xff]
      %v403 = vld [vmem:[%s381 + $0x78] sm:$0xff]
      %v404 = vld [vmem:[%s381 + $0x80] sm:$0xff]
      %v405 = vld [vmem:[%s381 + $0x88] sm:$0xff]
      %v406 = vld [vmem:[%s381 + $0x90] sm:$0xff]
      %v407 = vld [vmem:[%s381 + $0x98] sm:$0xff]
      %v408 = vld [vmem:[%s381 + $0xa0] sm:$0xff]
      %v409 = vld [vmem:[%s381 + $0xa8] sm:$0xff]
      %v410 = vld [vmem:[%s381 + $0xb0] sm:$0xff]
      %v411 = vld [vmem:[%s381 + $0xb8] sm:$0xff]
      %v412 = vld [vmem:[%s381 + $0xc0] sm:$0xff]
      %v413 = vld [vmem:[%s381 + $0xc8] sm:$0xff]
      %v414 = vld [vmem:[%s381 + $0xd0] sm:$0xff]
      %v415 = vld [vmem:[%s381 + $0xd8] sm:$0xff]
      %v416 = vld [vmem:[%s381 + $0xe0] sm:$0xff]
      %v417 = vld [vmem:[%s381 + $0xe8] sm:$0xff]
      %v418 = vld [vmem:[%s381 + $0xf0] sm:$0xff]
      %v419 = vld [vmem:[%s381 + $0xf8] sm:$0xff]
      %v420 = vld [vmem:[%s381 + $0x100] sm:$0xff]
      %v421 = vld [vmem:[%s381 + $0x108] sm:$0xff]
      %v422 = vld [vmem:[%s381 + $0x110] sm:$0xff]
      %v423 = vld [vmem:[%s381 + $0x118] sm:$0xff]
      %v424 = vld [vmem:[%s381 + $0x120] sm:$0xff]
      %v425 = vld [vmem:[%s381 + $0x128] sm:$0xff]
      %v426 = vld [vmem:[%s381 + $0x130] sm:$0xff]
      %v427 = vld [vmem:[%s381 + $0x138] sm:$0xff]
      %v428 = vld [vmem:[%s381 + $0x140] sm:$0xf]
      %v429 = vld [vmem:[%s1] sm:$0x1]
      %v431 = vlaneseq
      %v432 = vshrl.u32 %v431, 7
      %v433 = vsub.s32 0, %v432
      %v434 = vrot.slane %v429, %v433
      %v436 = vmul.f32 %v388, %v434
      %v437 = vmul.f32 %v389, %v434
      %v438 = vmul.f32 %v390, %v434
      %v439 = vmul.f32 %v391, %v434
      %v440 = vmul.f32 %v392, %v434
      %v441 = vmul.f32 %v393, %v434
      %v442 = vmul.f32 %v394, %v434
      %v443 = vmul.f32 %v395, %v434
      %v444 = vmul.f32 %v396, %v434
      %v445 = vmul.f32 %v397, %v434
      %v446 = vmul.f32 %v398, %v434
      %v447 = vmul.f32 %v399, %v434
      %v448 = vmul.f32 %v400, %v434
      %v449 = vmul.f32 %v401, %v434
      %v450 = vmul.f32 %v402, %v434
      %v451 = vmul.f32 %v403, %v434
      %v452 = vmul.f32 %v404, %v434
      %v453 = vmul.f32 %v405, %v434
      %v454 = vmul.f32 %v406, %v434
      %v455 = vmul.f32 %v407, %v434
      %v456 = vmul.f32 %v408, %v434
      %v457 = vmul.f32 %v409, %v434
      %v458 = vmul.f32 %v410, %v434
      %v459 = vmul.f32 %v411, %v434
      %v460 = vmul.f32 %v412, %v434
      %v461 = vmul.f32 %v413, %v434
      %v462 = vmul.f32 %v414, %v434
      %v463 = vmul.f32 %v415, %v434
      %v464 = vmul.f32 %v416, %v434
      %v465 = vmul.f32 %v417, %v434
      %v466 = vmul.f32 %v418, %v434
      %v467 = vmul.f32 %v419, %v434
      %v468 = vmul.f32 %v420, %v434
      %v469 = vmul.f32 %v421, %v434
      %v470 = vmul.f32 %v422, %v434
      %v471 = vmul.f32 %v423, %v434
      %v472 = vmul.f32 %v424, %v434
      %v473 = vmul.f32 %v425, %v434
      %v474 = vmul.f32 %v426, %v434
      %v475 = vmul.f32 %v427, %v434
      %v476 = vmul.f32 %v428, %v434
      %v477 = vld [vmem:[%s2] sm:$0x1]
      %v479 = vlaneseq
      %v480 = vshrl.u32 %v479, 7
      %v481 = vsub.s32 0, %v480
      %v482 = vrot.slane %v477, %v481
      %v484 = vadd.f32 %v436, %v482
      %v485 = vadd.f32 %v437, %v482
      %v486 = vadd.f32 %v438, %v482
      %v487 = vadd.f32 %v439, %v482
      %v488 = vadd.f32 %v440, %v482
      %v489 = vadd.f32 %v441, %v482
      %v490 = vadd.f32 %v442, %v482
      %v491 = vadd.f32 %v443, %v482
      %v492 = vadd.f32 %v444, %v482
      %v493 = vadd.f32 %v445, %v482
      %v494 = vadd.f32 %v446, %v482
      %v495 = vadd.f32 %v447, %v482
      %v496 = vadd.f32 %v448, %v482
      %v497 = vadd.f32 %v449, %v482
      %v498 = vadd.f32 %v450, %v482
      %v499 = vadd.f32 %v451, %v482
      %v500 = vadd.f32 %v452, %v482
      %v501 = vadd.f32 %v453, %v482
      %v502 = vadd.f32 %v454, %v482
      %v503 = vadd.f32 %v455, %v482
      %v504 = vadd.f32 %v456, %v482
      %v505 = vadd.f32 %v457, %v482
      %v506 = vadd.f32 %v458, %v482
      %v507 = vadd.f32 %v459, %v482
      %v508 = vadd.f32 %v460, %v482
      %v509 = vadd.f32 %v461, %v482
      %v510 = vadd.f32 %v462, %v482
      %v511 = vadd.f32 %v463, %v482
      %v512 = vadd.f32 %v464, %v482
      %v513 = vadd.f32 %v465, %v482
      %v514 = vadd.f32 %v466, %v482
      %v515 = vadd.f32 %v467, %v482
      %v516 = vadd.f32 %v468, %v482
      %v517 = vadd.f32 %v469, %v482
      %v518 = vadd.f32 %v470, %v482
      %v519 = vadd.f32 %v471, %v482
      %v520 = vadd.f32 %v472, %v482
      %v521 = vadd.f32 %v473, %v482
      %v522 = vadd.f32 %v474, %v482
      %v523 = vadd.f32 %v475, %v482
      %v524 = vadd.f32 %v476, %v482
      %v525 = vmax.f32 %v484, 0.0
      %v526 = vmax.f32 %v485, 0.0
      %v527 = vmax.f32 %v486, 0.0
      %v528 = vmax.f32 %v487, 0.0
      %v529 = vmax.f32 %v488, 0.0
      %v530 = vmax.f32 %v489, 0.0
      %v531 = vmax.f32 %v490, 0.0
      %v532 = vmax.f32 %v491, 0.0
      %v533 = vmax.f32 %v492, 0.0
      %v534 = vmax.f32 %v493, 0.0
      %v535 = vmax.f32 %v494, 0.0
      %v536 = vmax.f32 %v495, 0.0
      %v537 = vmax.f32 %v496, 0.0
      %v538 = vmax.f32 %v497, 0.0
      %v539 = vmax.f32 %v498, 0.0
      %v540 = vmax.f32 %v499, 0.0
      %v541 = vmax.f32 %v500, 0.0
      %v542 = vmax.f32 %v501, 0.0
      %v543 = vmax.f32 %v502, 0.0
      %v544 = vmax.f32 %v503, 0.0
      %v545 = vmax.f32 %v504, 0.0
      %v546 = vmax.f32 %v505, 0.0
      %v547 = vmax.f32 %v506, 0.0
      %v548 = vmax.f32 %v507, 0.0
      %v549 = vmax.f32 %v508, 0.0
      %v550 = vmax.f32 %v509, 0.0
      %v551 = vmax.f32 %v510, 0.0
      %v552 = vmax.f32 %v511, 0.0
      %v553 = vmax.f32 %v512, 0.0
      %v554 = vmax.f32 %v513, 0.0
      %v555 = vmax.f32 %v514, 0.0
      %v556 = vmax.f32 %v515, 0.0
      %v557 = vmax.f32 %v516, 0.0
      %v558 = vmax.f32 %v517, 0.0
      %v559 = vmax.f32 %v518, 0.0
      %v560 = vmax.f32 %v519, 0.0
      %v561 = vmax.f32 %v520, 0.0
      %v562 = vmax.f32 %v521, 0.0
      %v563 = vmax.f32 %v522, 0.0
      %v564 = vmax.f32 %v523, 0.0
      %v565 = vmax.f32 %v524, 0.0
      %v566 = vpack.c.bf16 %v526, %v525
      %v567 = vpack.c.bf16 %v528, %v527
      %v568 = vpack.c.bf16 %v530, %v529
      %v569 = vpack.c.bf16 %v532, %v531
      %v570 = vpack.c.bf16 %v534, %v533
      %v571 = vpack.c.bf16 %v536, %v535
      %v572 = vpack.c.bf16 %v538, %v537
      %v573 = vpack.c.bf16 %v540, %v539
      %v574 = vpack.c.bf16 %v542, %v541
      %v575 = vpack.c.bf16 %v544, %v543
      %v576 = vpack.c.bf16 %v546, %v545
      %v577 = vpack.c.bf16 %v548, %v547
      %v578 = vpack.c.bf16 %v550, %v549
      %v579 = vpack.c.bf16 %v552, %v551
      %v580 = vpack.c.bf16 %v554, %v553
      %v581 = vpack.c.bf16 %v556, %v555
      %v582 = vpack.c.bf16 %v558, %v557
      %v583 = vpack.c.bf16 %v560, %v559
      %v584 = vpack.c.bf16 %v562, %v561
      %v585 = vpack.c.bf16 %v564, %v563
      %v586 = vpack.c.bf16 %v565, %v565
      %v587 = vld [vmem:[%s3] sm:$0xf]
      %vm588 = vcmask 64512
      %v590 = vsel %vm588, %v566, 0
      %v593 = vsel %vm588, %v567, 0
      %v596 = vsel %vm588, %v568, 0
      %v599 = vsel %vm588, %v569, 0
      %v602 = vsel %vm588, %v570, 0
      %v605 = vsel %vm588, %v571, 0
      %v608 = vsel %vm588, %v572, 0
      %v611 = vsel %vm588, %v573, 0
      %v614 = vsel %vm588, %v574, 0
      %v617 = vsel %vm588, %v575, 0
      %v620 = vsel %vm588, %v576, 0
      %v623 = vsel %vm588, %v577, 0
      %v626 = vsel %vm588, %v578, 0
      %v629 = vsel %vm588, %v579, 0
      %v632 = vsel %vm588, %v580, 0
      %v635 = vsel %vm588, %v581, 0
      %v638 = vsel %vm588, %v582, 0
      %v641 = vsel %vm588, %v583, 0
      %v644 = vsel %vm588, %v584, 0
      %v647 = vsel %vm588, %v585, 0
      %v650 = vsel %vm588, %v586, 0
      %vm652 = vcmask 1043456
      %v654 = vsel %vm652, %v587, 0
      %656 = vmatprep.subr.bf16.mxu0 0
      %657 = vmatpush1.bf16.msra.mxu0 0
      %658 = vmatprep.subr.bf16.mxu0 0
      %659 = vmatpush1.bf16.msra.mxu0 0
      %660 = vmatprep.subr.bf16.mxu0 0
      %661 = vmatpush1.bf16.msra.mxu0 0
      %662 = vmatprep.subr.bf16.mxu0 0
      %663 = vmatpush1.bf16.msra.mxu0 0
      %664 = vmatprep.subr.bf16.mxu0 0
      %665 = vmatpush1.bf16.msra.mxu0 0
      %666 = vmatprep.subr.bf16.mxu0 0
      %667 = vmatpush1.bf16.msra.mxu0 0
      %668 = vmatprep.subr.bf16.mxu0 0
      %669 = vmatpush1.bf16.msra.mxu0 0
      %670 = vmatprep.subr.bf16.mxu0 0
      %671 = vmatpush1.bf16.msra.mxu0 %v654
      %672 = vmatprep.subr.bf16.mxu0 0
      %673 = vmatpush2.bf16.msra.mxu0 0
      %674 = vmatprep.subr.bf16.mxu0 0
      %675 = vmatpush2.bf16.msra.mxu0 0
      %676 = vmatprep.subr.bf16.mxu0 0
      %677 = vmatpush2.bf16.msra.mxu0 0
      %678 = vmatprep.subr.bf16.mxu0 0
      %679 = vmatpush2.bf16.msra.mxu0 0
      %680 = vmatprep.subr.bf16.mxu0 0
      %681 = vmatpush2.bf16.msra.mxu0 0
      %682 = vmatprep.subr.bf16.mxu0 0
      %683 = vmatpush2.bf16.msra.mxu0 0
      %684 = vmatprep.subr.bf16.mxu0 0
      %685 = vmatpush2.bf16.msra.mxu0 0
      %686 = vmatprep.subr.bf16.mxu0 0
      %687 = vmatpush2.bf16.msra.mxu0 0
      %688 = vmatprep.mubr.bf16.mxu0 0
      %689 = vmatmul.mubr.bf16.gmra.mxu0 %v590
      %v690 = vpop.f32.mrf.mxu0
      %v691 = vadd.f32 0.0, %v690
      %v692 = vpop.f32.mrf.mxu0
      %v693 = vpop.f32.mrf.mxu0
      %v694 = vadd.f32 0.0, %v693
      %v695 = vpop.f32.mrf.mxu0
      %696 = vmatprep.mubr.bf16.mxu0 0
      %697 = vmatmul.mubr.bf16.gmra.mxu0 %v593
      %v698 = vpop.f32.mrf.mxu0
      %v699 = vadd.f32 0.0, %v698
      %v700 = vpop.f32.mrf.mxu0
      %v701 = vpop.f32.mrf.mxu0
      %v702 = vadd.f32 0.0, %v701
      %v703 = vpop.f32.mrf.mxu0
      %704 = vmatprep.mubr.bf16.mxu0 0
      %705 = vmatmul.mubr.bf16.gmra.mxu0 %v596
      %v706 = vpop.f32.mrf.mxu0
      %v707 = vadd.f32 0.0, %v706
      %v708 = vpop.f32.mrf.mxu0
      %v709 = vpop.f32.mrf.mxu0
      %v710 = vadd.f32 0.0, %v709
      %v711 = vpop.f32.mrf.mxu0
      %712 = vmatprep.mubr.bf16.mxu0 0
      %713 = vmatmul.mubr.bf16.gmra.mxu0 %v599
      %v714 = vpop.f32.mrf.mxu0
      %v715 = vadd.f32 0.0, %v714
      %v716 = vpop.f32.mrf.mxu0
      %v717 = vpop.f32.mrf.mxu0
      %v718 = vadd.f32 0.0, %v717
      %v719 = vpop.f32.mrf.mxu0
      %720 = vmatprep.mubr.bf16.mxu0 0
      %721 = vmatmul.mubr.bf16.gmra.mxu0 %v602
      %v722 = vpop.f32.mrf.mxu0
      %v723 = vadd.f32 0.0, %v722
      %v724 = vpop.f32.mrf.mxu0
      %v725 = vpop.f32.mrf.mxu0
      %v726 = vadd.f32 0.0, %v725
      %v727 = vpop.f32.mrf.mxu0
      %728 = vmatprep.mubr.bf16.mxu0 0
      %729 = vmatmul.mubr.bf16.gmra.mxu0 %v605
      %v730 = vpop.f32.mrf.mxu0
      %v731 = vadd.f32 0.0, %v730
      %v732 = vpop.f32.mrf.mxu0
      %v733 = vpop.f32.mrf.mxu0
      %v734 = vadd.f32 0.0, %v733
      %v735 = vpop.f32.mrf.mxu0
      %736 = vmatprep.mubr.bf16.mxu0 0
      %737 = vmatmul.mubr.bf16.gmra.mxu0 %v608
      %v738 = vpop.f32.mrf.mxu0
      %v739 = vadd.f32 0.0, %v738
      %v740 = vpop.f32.mrf.mxu0
      %v741 = vpop.f32.mrf.mxu0
      %v742 = vadd.f32 0.0, %v741
      %v743 = vpop.f32.mrf.mxu0
      %744 = vmatprep.mubr.bf16.mxu0 0
      %745 = vmatmul.mubr.bf16.gmra.mxu0 %v611
      %v746 = vpop.f32.mrf.mxu0
      %v747 = vadd.f32 0.0, %v746
      %v748 = vpop.f32.mrf.mxu0
      %v749 = vpop.f32.mrf.mxu0
      %v750 = vadd.f32 0.0, %v749
      %v751 = vpop.f32.mrf.mxu0
      %752 = vmatprep.mubr.bf16.mxu0 0
      %753 = vmatmul.mubr.bf16.gmra.mxu0 %v614
      %v754 = vpop.f32.mrf.mxu0
      %v755 = vadd.f32 0.0, %v754
      %v756 = vpop.f32.mrf.mxu0
      %v757 = vpop.f32.mrf.mxu0
      %v758 = vadd.f32 0.0, %v757
      %v759 = vpop.f32.mrf.mxu0
      %760 = vmatprep.mubr.bf16.mxu0 0
      %761 = vmatmul.mubr.bf16.gmra.mxu0 %v617
      %v762 = vpop.f32.mrf.mxu0
      %v763 = vadd.f32 0.0, %v762
      %v764 = vpop.f32.mrf.mxu0
      %v765 = vpop.f32.mrf.mxu0
      %v766 = vadd.f32 0.0, %v765
      %v767 = vpop.f32.mrf.mxu0
      %768 = vmatprep.mubr.bf16.mxu0 0
      %769 = vmatmul.mubr.bf16.gmra.mxu0 %v620
      %v770 = vpop.f32.mrf.mxu0
      %v771 = vadd.f32 0.0, %v770
      %v772 = vpop.f32.mrf.mxu0
      %v773 = vpop.f32.mrf.mxu0
      %v774 = vadd.f32 0.0, %v773
      %v775 = vpop.f32.mrf.mxu0
      %776 = vmatprep.mubr.bf16.mxu0 0
      %777 = vmatmul.mubr.bf16.gmra.mxu0 %v623
      %v778 = vpop.f32.mrf.mxu0
      %v779 = vadd.f32 0.0, %v778
      %v780 = vpop.f32.mrf.mxu0
      %v781 = vpop.f32.mrf.mxu0
      %v782 = vadd.f32 0.0, %v781
      %v783 = vpop.f32.mrf.mxu0
      %784 = vmatprep.mubr.bf16.mxu0 0
      %785 = vmatmul.mubr.bf16.gmra.mxu0 %v626
      %v786 = vpop.f32.mrf.mxu0
      %v787 = vadd.f32 0.0, %v786
      %v788 = vpop.f32.mrf.mxu0
      %v789 = vpop.f32.mrf.mxu0
      %v790 = vadd.f32 0.0, %v789
      %v791 = vpop.f32.mrf.mxu0
      %792 = vmatprep.mubr.bf16.mxu0 0
      %793 = vmatmul.mubr.bf16.gmra.mxu0 %v629
      %v794 = vpop.f32.mrf.mxu0
      %v795 = vadd.f32 0.0, %v794
      %v796 = vpop.f32.mrf.mxu0
      %v797 = vpop.f32.mrf.mxu0
      %v798 = vadd.f32 0.0, %v797
      %v799 = vpop.f32.mrf.mxu0
      %800 = vmatprep.mubr.bf16.mxu0 0
      %801 = vmatmul.mubr.bf16.gmra.mxu0 %v632
      %v802 = vpop.f32.mrf.mxu0
      %v803 = vadd.f32 0.0, %v802
      %v804 = vpop.f32.mrf.mxu0
      %v805 = vpop.f32.mrf.mxu0
      %v806 = vadd.f32 0.0, %v805
      %v807 = vpop.f32.mrf.mxu0
      %808 = vmatprep.mubr.bf16.mxu0 0
      %809 = vmatmul.mubr.bf16.gmra.mxu0 %v635
      %v810 = vpop.f32.mrf.mxu0
      %v811 = vadd.f32 0.0, %v810
      %v812 = vpop.f32.mrf.mxu0
      %v813 = vpop.f32.mrf.mxu0
      %v814 = vadd.f32 0.0, %v813
      %v815 = vpop.f32.mrf.mxu0
      %816 = vmatprep.mubr.bf16.mxu0 0
      %817 = vmatmul.mubr.bf16.gmra.mxu0 %v638
      %v818 = vpop.f32.mrf.mxu0
      %v819 = vadd.f32 0.0, %v818
      %v820 = vpop.f32.mrf.mxu0
      %v821 = vpop.f32.mrf.mxu0
      %v822 = vadd.f32 0.0, %v821
      %v823 = vpop.f32.mrf.mxu0
      %824 = vmatprep.mubr.bf16.mxu0 0
      %825 = vmatmul.mubr.bf16.gmra.mxu0 %v641
      %v826 = vpop.f32.mrf.mxu0
      %v827 = vadd.f32 0.0, %v826
      %v828 = vpop.f32.mrf.mxu0
      %v829 = vpop.f32.mrf.mxu0
      %v830 = vadd.f32 0.0, %v829
      %v831 = vpop.f32.mrf.mxu0
      %832 = vmatprep.mubr.bf16.mxu0 0
      %833 = vmatmul.mubr.bf16.gmra.mxu0 %v644
      %v834 = vpop.f32.mrf.mxu0
      %v835 = vadd.f32 0.0, %v834
      %v836 = vpop.f32.mrf.mxu0
      %v837 = vpop.f32.mrf.mxu0
      %v838 = vadd.f32 0.0, %v837
      %v839 = vpop.f32.mrf.mxu0
      %840 = vmatprep.mubr.bf16.mxu0 0
      %841 = vmatmul.mubr.bf16.gmra.mxu0 %v647
      %v842 = vpop.f32.mrf.mxu0
      %v843 = vadd.f32 0.0, %v842
      %v844 = vpop.f32.mrf.mxu0
      %v845 = vpop.f32.mrf.mxu0
      %v846 = vadd.f32 0.0, %v845
      %v847 = vpop.f32.mrf.mxu0
      %848 = vmatprep.mubr.bf16.mxu0 0
      %849 = vmatmul.mubr.bf16.gmra.mxu0 %v650
      %v850 = vpop.f32.mrf.mxu0
      %v851 = vadd.f32 0.0, %v850
      %v852 = vpop.f32.mrf.mxu0
      %v853 = vpop.f32.mrf.mxu0
      %v854 = vpop.f32.mrf.mxu0
      %855 = vdwg.mxu0
      %v856 = vld [vmem:[%s4] sm:$0x1]
      %v858 = vlaneseq
      %v859 = vshrl.u32 %v858, 7
      %v860 = vsub.s32 0, %v859
      %v861 = vrot.slane %v856, %v860
      %v863 = vmul.f32 %v691, %v861
      %v864 = vmul.f32 %v694, %v861
      %v865 = vmul.f32 %v699, %v861
      %v866 = vmul.f32 %v702, %v861
      %v867 = vmul.f32 %v707, %v861
      %v868 = vmul.f32 %v710, %v861
      %v869 = vmul.f32 %v715, %v861
      %v870 = vmul.f32 %v718, %v861
      %v871 = vmul.f32 %v723, %v861
      %v872 = vmul.f32 %v726, %v861
      %v873 = vmul.f32 %v731, %v861
      %v874 = vmul.f32 %v734, %v861
      %v875 = vmul.f32 %v739, %v861
      %v876 = vmul.f32 %v742, %v861
      %v877 = vmul.f32 %v747, %v861
      %v878 = vmul.f32 %v750, %v861
      %v879 = vmul.f32 %v755, %v861
      %v880 = vmul.f32 %v758, %v861
      %v881 = vmul.f32 %v763, %v861
      %v882 = vmul.f32 %v766, %v861
      %v883 = vmul.f32 %v771, %v861
      %v884 = vmul.f32 %v774, %v861
      %v885 = vmul.f32 %v779, %v861
      %v886 = vmul.f32 %v782, %v861
      %v887 = vmul.f32 %v787, %v861
      %v888 = vmul.f32 %v790, %v861
      %v889 = vmul.f32 %v795, %v861
      %v890 = vmul.f32 %v798, %v861
      %v891 = vmul.f32 %v803, %v861
      %v892 = vmul.f32 %v806, %v861
      %v893 = vmul.f32 %v811, %v861
      %v894 = vmul.f32 %v814, %v861
      %v895 = vmul.f32 %v819, %v861
      %v896 = vmul.f32 %v822, %v861
      %v897 = vmul.f32 %v827, %v861
      %v898 = vmul.f32 %v830, %v861
      %v899 = vmul.f32 %v835, %v861
      %v900 = vmul.f32 %v838, %v861
      %v901 = vmul.f32 %v843, %v861
      %v902 = vmul.f32 %v846, %v861
      %v903 = vmul.f32 %v851, %v861
      %v904 = vld [vmem:[%s5] sm:$0x1]
      %v906 = vlaneseq
      %v907 = vshrl.u32 %v906, 7
      %v908 = vsub.s32 0, %v907
      %v909 = vrot.slane %v904, %v908
      %v911 = vadd.f32 %v863, %v909
      %v912 = vadd.f32 %v864, %v909
      %v913 = vadd.f32 %v865, %v909
      %v914 = vadd.f32 %v866, %v909
      %v915 = vadd.f32 %v867, %v909
      %v916 = vadd.f32 %v868, %v909
      %v917 = vadd.f32 %v869, %v909
      %v918 = vadd.f32 %v870, %v909
      %v919 = vadd.f32 %v871, %v909
      %v920 = vadd.f32 %v872, %v909
      %v921 = vadd.f32 %v873, %v909
      %v922 = vadd.f32 %v874, %v909
      %v923 = vadd.f32 %v875, %v909
      %v924 = vadd.f32 %v876, %v909
      %v925 = vadd.f32 %v877, %v909
      %v926 = vadd.f32 %v878, %v909
      %v927 = vadd.f32 %v879, %v909
      %v928 = vadd.f32 %v880, %v909
      %v929 = vadd.f32 %v881, %v909
      %v930 = vadd.f32 %v882, %v909
      %v931 = vadd.f32 %v883, %v909
      %v932 = vadd.f32 %v884, %v909
      %v933 = vadd.f32 %v885, %v909
      %v934 = vadd.f32 %v886, %v909
      %v935 = vadd.f32 %v887, %v909
      %v936 = vadd.f32 %v888, %v909
      %v937 = vadd.f32 %v889, %v909
      %v938 = vadd.f32 %v890, %v909
      %v939 = vadd.f32 %v891, %v909
      %v940 = vadd.f32 %v892, %v909
      %v941 = vadd.f32 %v893, %v909
      %v942 = vadd.f32 %v894, %v909
      %v943 = vadd.f32 %v895, %v909
      %v944 = vadd.f32 %v896, %v909
      %v945 = vadd.f32 %v897, %v909
      %v946 = vadd.f32 %v898, %v909
      %v947 = vadd.f32 %v899, %v909
      %v948 = vadd.f32 %v900, %v909
      %v949 = vadd.f32 %v901, %v909
      %v950 = vadd.f32 %v902, %v909
      %v951 = vadd.f32 %v903, %v909
      %v952 = vmax.f32 %v911, 0.0
      %v953 = vmax.f32 %v912, 0.0
      %v954 = vmax.f32 %v913, 0.0
      %v955 = vmax.f32 %v914, 0.0
      %v956 = vmax.f32 %v915, 0.0
      %v957 = vmax.f32 %v916, 0.0
      %v958 = vmax.f32 %v917, 0.0
      %v959 = vmax.f32 %v918, 0.0
      %v960 = vmax.f32 %v919, 0.0
      %v961 = vmax.f32 %v920, 0.0
      %v962 = vmax.f32 %v921, 0.0
      %v963 = vmax.f32 %v922, 0.0
      %v964 = vmax.f32 %v923, 0.0
      %v965 = vmax.f32 %v924, 0.0
      %v966 = vmax.f32 %v925, 0.0
      %v967 = vmax.f32 %v926, 0.0
      %v968 = vmax.f32 %v927, 0.0
      %v969 = vmax.f32 %v928, 0.0
      %v970 = vmax.f32 %v929, 0.0
      %v971 = vmax.f32 %v930, 0.0
      %v972 = vmax.f32 %v931, 0.0
      %v973 = vmax.f32 %v932, 0.0
      %v974 = vmax.f32 %v933, 0.0
      %v975 = vmax.f32 %v934, 0.0
      %v976 = vmax.f32 %v935, 0.0
      %v977 = vmax.f32 %v936, 0.0
      %v978 = vmax.f32 %v937, 0.0
      %v979 = vmax.f32 %v938, 0.0
      %v980 = vmax.f32 %v939, 0.0
      %v981 = vmax.f32 %v940, 0.0
      %v982 = vmax.f32 %v941, 0.0
      %v983 = vmax.f32 %v942, 0.0
      %v984 = vmax.f32 %v943, 0.0
      %v985 = vmax.f32 %v944, 0.0
      %v986 = vmax.f32 %v945, 0.0
      %v987 = vmax.f32 %v946, 0.0
      %v988 = vmax.f32 %v947, 0.0
      %v989 = vmax.f32 %v948, 0.0
      %v990 = vmax.f32 %v949, 0.0
      %v991 = vmax.f32 %v950, 0.0
      %v992 = vmax.f32 %v951, 0.0
      %v993 = vlaneseq
      %v994 = vshrl.u32 %v993, 7
      %v995 = vadd.s32 %v994, 8
      %v996 = vadd.s32 %v994, 16
      %v997 = vadd.s32 %v994, 24
      %v998 = vadd.s32 %v994, 32
      %v999 = vadd.s32 %v994, 40
      %v1000 = vadd.s32 %v994, 48
      %v1001 = vadd.s32 %v994, 56
      %v1002 = vadd.s32 %v994, 64
      %v1003 = vadd.s32 %v994, 72
      %v1004 = vadd.s32 %v994, 80
      %v1005 = vadd.s32 %v994, 88
      %v1006 = vadd.s32 %v994, 96
      %v1007 = vadd.s32 %v994, 104
      %v1008 = vadd.s32 %v994, 112
      %v1009 = vadd.s32 %v994, 120
      %v1010 = vadd.s32 %v994, 128
      %v1011 = vadd.s32 %v994, 136
      %v1012 = vadd.s32 %v994, 144
      %v1013 = vadd.s32 %v994, 152
      %v1014 = vadd.s32 %v994, 160
      %v1015 = vadd.s32 %v994, 168
      %v1016 = vadd.s32 %v994, 176
      %v1017 = vadd.s32 %v994, 184
      %v1018 = vadd.s32 %v994, 192
      %v1019 = vadd.s32 %v994, 200
      %v1020 = vadd.s32 %v994, 208
      %v1021 = vadd.s32 %v994, 216
      %v1022 = vadd.s32 %v994, 224
      %v1023 = vadd.s32 %v994, 232
      %v1024 = vadd.s32 %v994, 240
      %v1025 = vadd.s32 %v994, 248
      %v1026 = vadd.s32 %v994, 256
      %v1027 = vadd.s32 %v994, 264
      %v1028 = vadd.s32 %v994, 272
      %v1029 = vadd.s32 %v994, 280
      %v1030 = vadd.s32 %v994, 288
      %v1031 = vadd.s32 %v994, 296
      %v1032 = vadd.s32 %v994, 304
      %v1033 = vadd.s32 %v994, 312
      %v1034 = vadd.s32 %v994, 320
      %v1035 = vcvt.s32.f32 %v994
      %v1036 = vcvt.s32.f32 %v995
      %v1037 = vcvt.s32.f32 %v996
      %v1038 = vcvt.s32.f32 %v997
      %v1039 = vcvt.s32.f32 %v998
      %v1040 = vcvt.s32.f32 %v999
      %v1041 = vcvt.s32.f32 %v1000
      %v1042 = vcvt.s32.f32 %v1001
      %v1043 = vcvt.s32.f32 %v1002
      %v1044 = vcvt.s32.f32 %v1003
      %v1045 = vcvt.s32.f32 %v1004
      %v1046 = vcvt.s32.f32 %v1005
      %v1047 = vcvt.s32.f32 %v1006
      %v1048 = vcvt.s32.f32 %v1007
      %v1049 = vcvt.s32.f32 %v1008
      %v1050 = vcvt.s32.f32 %v1009
      %v1051 = vcvt.s32.f32 %v1010
      %v1052 = vcvt.s32.f32 %v1011
      %v1053 = vcvt.s32.f32 %v1012
      %v1054 = vcvt.s32.f32 %v1013
      %v1055 = vcvt.s32.f32 %v1014
      %v1056 = vcvt.s32.f32 %v1015
      %v1057 = vcvt.s32.f32 %v1016
      %v1058 = vcvt.s32.f32 %v1017
      %v1059 = vcvt.s32.f32 %v1018
      %v1060 = vcvt.s32.f32 %v1019
      %v1061 = vcvt.s32.f32 %v1020
      %v1062 = vcvt.s32.f32 %v1021
      %v1063 = vcvt.s32.f32 %v1022
      %v1064 = vcvt.s32.f32 %v1023
      %v1065 = vcvt.s32.f32 %v1024
      %v1066 = vcvt.s32.f32 %v1025
      %v1067 = vcvt.s32.f32 %v1026
      %v1068 = vcvt.s32.f32 %v1027
      %v1069 = vcvt.s32.f32 %v1028
      %v1070 = vcvt.s32.f32 %v1029
      %v1071 = vcvt.s32.f32 %v1030
      %v1072 = vcvt.s32.f32 %v1031
      %v1073 = vcvt.s32.f32 %v1032
      %v1074 = vcvt.s32.f32 %v1033
      %v1075 = vcvt.s32.f32 %v1034
      %v1076 = vadd.f32 %v1035, 0.5
      %v1077 = vadd.f32 %v1036, 0.5
      %v1078 = vadd.f32 %v1037, 0.5
      %v1079 = vadd.f32 %v1038, 0.5
      %v1080 = vadd.f32 %v1039, 0.5
      %v1081 = vadd.f32 %v1040, 0.5
      %v1082 = vadd.f32 %v1041, 0.5
      %v1083 = vadd.f32 %v1042, 0.5
      %v1084 = vadd.f32 %v1043, 0.5
      %v1085 = vadd.f32 %v1044, 0.5
      %v1086 = vadd.f32 %v1045, 0.5
      %v1087 = vadd.f32 %v1046, 0.5
      %v1088 = vadd.f32 %v1047, 0.5
      %v1089 = vadd.f32 %v1048, 0.5
      %v1090 = vadd.f32 %v1049, 0.5
      %v1091 = vadd.f32 %v1050, 0.5
      %v1092 = vadd.f32 %v1051, 0.5
      %v1093 = vadd.f32 %v1052, 0.5
      %v1094 = vadd.f32 %v1053, 0.5
      %v1095 = vadd.f32 %v1054, 0.5
      %v1096 = vadd.f32 %v1055, 0.5
      %v1097 = vadd.f32 %v1056, 0.5
      %v1098 = vadd.f32 %v1057, 0.5
      %v1099 = vadd.f32 %v1058, 0.5
      %v1100 = vadd.f32 %v1059, 0.5
      %v1101 = vadd.f32 %v1060, 0.5
      %v1102 = vadd.f32 %v1061, 0.5
      %v1103 = vadd.f32 %v1062, 0.5
      %v1104 = vadd.f32 %v1063, 0.5
      %v1105 = vadd.f32 %v1064, 0.5
      %v1106 = vadd.f32 %v1065, 0.5
      %v1107 = vadd.f32 %v1066, 0.5
      %v1108 = vadd.f32 %v1067, 0.5
      %v1109 = vadd.f32 %v1068, 0.5
      %v1110 = vadd.f32 %v1069, 0.5
      %v1111 = vadd.f32 %v1070, 0.5
      %v1112 = vadd.f32 %v1071, 0.5
      %v1113 = vadd.f32 %v1072, 0.5
      %v1114 = vadd.f32 %v1073, 0.5
      %v1115 = vadd.f32 %v1074, 0.5
      %v1116 = vadd.f32 %v1075, 0.5
      %v1117 = vmul.f32 %v1076, 0.055555556
      %v1118 = vmul.f32 %v1077, 0.055555556
      %v1119 = vmul.f32 %v1078, 0.055555556
      %v1120 = vmul.f32 %v1079, 0.055555556
      %v1121 = vmul.f32 %v1080, 0.055555556
      %v1122 = vmul.f32 %v1081, 0.055555556
      %v1123 = vmul.f32 %v1082, 0.055555556
      %v1124 = vmul.f32 %v1083, 0.055555556
      %v1125 = vmul.f32 %v1084, 0.055555556
      %v1126 = vmul.f32 %v1085, 0.055555556
      %v1127 = vmul.f32 %v1086, 0.055555556
      %v1128 = vmul.f32 %v1087, 0.055555556
      %v1129 = vmul.f32 %v1088, 0.055555556
      %v1130 = vmul.f32 %v1089, 0.055555556
      %v1131 = vmul.f32 %v1090, 0.055555556
      %v1132 = vmul.f32 %v1091, 0.055555556
      %v1133 = vmul.f32 %v1092, 0.055555556
      %v1134 = vmul.f32 %v1093, 0.055555556
      %v1135 = vmul.f32 %v1094, 0.055555556
      %v1136 = vmul.f32 %v1095, 0.055555556
      %v1137 = vmul.f32 %v1096, 0.055555556
      %v1138 = vmul.f32 %v1097, 0.055555556
      %v1139 = vmul.f32 %v1098, 0.055555556
      %v1140 = vmul.f32 %v1099, 0.055555556
      %v1141 = vmul.f32 %v1100, 0.055555556
      %v1142 = vmul.f32 %v1101, 0.055555556
      %v1143 = vmul.f32 %v1102, 0.055555556
      %v1144 = vmul.f32 %v1103, 0.055555556
      %v1145 = vmul.f32 %v1104, 0.055555556
      %v1146 = vmul.f32 %v1105, 0.055555556
      %v1147 = vmul.f32 %v1106, 0.055555556
      %v1148 = vmul.f32 %v1107, 0.055555556
      %v1149 = vmul.f32 %v1108, 0.055555556
      %v1150 = vmul.f32 %v1109, 0.055555556
      %v1151 = vmul.f32 %v1110, 0.055555556
      %v1152 = vmul.f32 %v1111, 0.055555556
      %v1153 = vmul.f32 %v1112, 0.055555556
      %v1154 = vmul.f32 %v1113, 0.055555556
      %v1155 = vmul.f32 %v1114, 0.055555556
      %v1156 = vmul.f32 %v1115, 0.055555556
      %v1157 = vmul.f32 %v1116, 0.055555556
      %v1158 = vcvt.f32.s32.to.zero.pseudo %v1117
      %v1159 = vcvt.f32.s32.to.zero.pseudo %v1118
      %v1160 = vcvt.f32.s32.to.zero.pseudo %v1119
      %v1161 = vcvt.f32.s32.to.zero.pseudo %v1120
      %v1162 = vcvt.f32.s32.to.zero.pseudo %v1121
      %v1163 = vcvt.f32.s32.to.zero.pseudo %v1122
      %v1164 = vcvt.f32.s32.to.zero.pseudo %v1123
      %v1165 = vcvt.f32.s32.to.zero.pseudo %v1124
      %v1166 = vcvt.f32.s32.to.zero.pseudo %v1125
      %v1167 = vcvt.f32.s32.to.zero.pseudo %v1126
      %v1168 = vcvt.f32.s32.to.zero.pseudo %v1127
      %v1169 = vcvt.f32.s32.to.zero.pseudo %v1128
      %v1170 = vcvt.f32.s32.to.zero.pseudo %v1129
      %v1171 = vcvt.f32.s32.to.zero.pseudo %v1130
      %v1172 = vcvt.f32.s32.to.zero.pseudo %v1131
      %v1173 = vcvt.f32.s32.to.zero.pseudo %v1132
      %v1174 = vcvt.f32.s32.to.zero.pseudo %v1133
      %v1175 = vcvt.f32.s32.to.zero.pseudo %v1134
      %v1176 = vcvt.f32.s32.to.zero.pseudo %v1135
      %v1177 = vcvt.f32.s32.to.zero.pseudo %v1136
      %v1178 = vcvt.f32.s32.to.zero.pseudo %v1137
      %v1179 = vcvt.f32.s32.to.zero.pseudo %v1138
      %v1180 = vcvt.f32.s32.to.zero.pseudo %v1139
      %v1181 = vcvt.f32.s32.to.zero.pseudo %v1140
      %v1182 = vcvt.f32.s32.to.zero.pseudo %v1141
      %v1183 = vcvt.f32.s32.to.zero.pseudo %v1142
      %v1184 = vcvt.f32.s32.to.zero.pseudo %v1143
      %v1185 = vcvt.f32.s32.to.zero.pseudo %v1144
      %v1186 = vcvt.f32.s32.to.zero.pseudo %v1145
      %v1187 = vcvt.f32.s32.to.zero.pseudo %v1146
      %v1188 = vcvt.f32.s32.to.zero.pseudo %v1147
      %v1189 = vcvt.f32.s32.to.zero.pseudo %v1148
      %v1190 = vcvt.f32.s32.to.zero.pseudo %v1149
      %v1191 = vcvt.f32.s32.to.zero.pseudo %v1150
      %v1192 = vcvt.f32.s32.to.zero.pseudo %v1151
      %v1193 = vcvt.f32.s32.to.zero.pseudo %v1152
      %v1194 = vcvt.f32.s32.to.zero.pseudo %v1153
      %v1195 = vcvt.f32.s32.to.zero.pseudo %v1154
      %v1196 = vcvt.f32.s32.to.zero.pseudo %v1155
      %v1197 = vcvt.f32.s32.to.zero.pseudo %v1156
      %v1198 = vcvt.f32.s32.to.zero.pseudo %v1157
      %v1199 = vmul.u32 %v1158, 18
      %v1200 = vmul.u32 %v1159, 18
      %v1201 = vmul.u32 %v1160, 18
      %v1202 = vmul.u32 %v1161, 18
      %v1203 = vmul.u32 %v1162, 18
      %v1204 = vmul.u32 %v1163, 18
      %v1205 = vmul.u32 %v1164, 18
      %v1206 = vmul.u32 %v1165, 18
      %v1207 = vmul.u32 %v1166, 18
      %v1208 = vmul.u32 %v1167, 18
      %v1209 = vmul.u32 %v1168, 18
      %v1210 = vmul.u32 %v1169, 18
      %v1211 = vmul.u32 %v1170, 18
      %v1212 = vmul.u32 %v1171, 18
      %v1213 = vmul.u32 %v1172, 18
      %v1214 = vmul.u32 %v1173, 18
      %v1215 = vmul.u32 %v1174, 18
      %v1216 = vmul.u32 %v1175, 18
      %v1217 = vmul.u32 %v1176, 18
      %v1218 = vmul.u32 %v1177, 18
      %v1219 = vmul.u32 %v1178, 18
      %v1220 = vmul.u32 %v1179, 18
      %v1221 = vmul.u32 %v1180, 18
      %v1222 = vmul.u32 %v1181, 18
      %v1223 = vmul.u32 %v1182, 18
      %v1224 = vmul.u32 %v1183, 18
      %v1225 = vmul.u32 %v1184, 18
      %v1226 = vmul.u32 %v1185, 18
      %v1227 = vmul.u32 %v1186, 18
      %v1228 = vmul.u32 %v1187, 18
      %v1229 = vmul.u32 %v1188, 18
      %v1230 = vmul.u32 %v1189, 18
      %v1231 = vmul.u32 %v1190, 18
      %v1232 = vmul.u32 %v1191, 18
      %v1233 = vmul.u32 %v1192, 18
      %v1234 = vmul.u32 %v1193, 18
      %v1235 = vmul.u32 %v1194, 18
      %v1236 = vmul.u32 %v1195, 18
      %v1237 = vmul.u32 %v1196, 18
      %v1238 = vmul.u32 %v1197, 18
      %v1239 = vmul.u32 %v1198, 18
      %v1240 = vsub.s32 %v994, %v1199
      %v1241 = vsub.s32 %v995, %v1200
      %v1242 = vsub.s32 %v996, %v1201
      %v1243 = vsub.s32 %v997, %v1202
      %v1244 = vsub.s32 %v998, %v1203
      %v1245 = vsub.s32 %v999, %v1204
      %v1246 = vsub.s32 %v1000, %v1205
      %v1247 = vsub.s32 %v1001, %v1206
      %v1248 = vsub.s32 %v1002, %v1207
      %v1249 = vsub.s32 %v1003, %v1208
      %v1250 = vsub.s32 %v1004, %v1209
      %v1251 = vsub.s32 %v1005, %v1210
      %v1252 = vsub.s32 %v1006, %v1211
      %v1253 = vsub.s32 %v1007, %v1212
      %v1254 = vsub.s32 %v1008, %v1213
      %v1255 = vsub.s32 %v1009, %v1214
      %v1256 = vsub.s32 %v1010, %v1215
      %v1257 = vsub.s32 %v1011, %v1216
      %v1258 = vsub.s32 %v1012, %v1217
      %v1259 = vsub.s32 %v1013, %v1218
      %v1260 = vsub.s32 %v1014, %v1219
      %v1261 = vsub.s32 %v1015, %v1220
      %v1262 = vsub.s32 %v1016, %v1221
      %v1263 = vsub.s32 %v1017, %v1222
      %v1264 = vsub.s32 %v1018, %v1223
      %v1265 = vsub.s32 %v1019, %v1224
      %v1266 = vsub.s32 %v1020, %v1225
      %v1267 = vsub.s32 %v1021, %v1226
      %v1268 = vsub.s32 %v1022, %v1227
      %v1269 = vsub.s32 %v1023, %v1228
      %v1270 = vsub.s32 %v1024, %v1229
      %v1271 = vsub.s32 %v1025, %v1230
      %v1272 = vsub.s32 %v1026, %v1231
      %v1273 = vsub.s32 %v1027, %v1232
      %v1274 = vsub.s32 %v1028, %v1233
      %v1275 = vsub.s32 %v1029, %v1234
      %v1276 = vsub.s32 %v1030, %v1235
      %v1277 = vsub.s32 %v1031, %v1236
      %v1278 = vsub.s32 %v1032, %v1237
      %v1279 = vsub.s32 %v1033, %v1238
      %v1280 = vsub.s32 %v1034, %v1239
      %vm1281 = vcmp.ge.s32.totalorder %v1158, 1
      %vm1282 = vcmp.ge.s32.totalorder %v1159, 1
      %vm1283 = vcmp.ge.s32.totalorder %v1160, 1
      %vm1284 = vcmp.ge.s32.totalorder %v1161, 1
      %vm1285 = vcmp.ge.s32.totalorder %v1162, 1
      %vm1286 = vcmp.ge.s32.totalorder %v1163, 1
      %vm1287 = vcmp.ge.s32.totalorder %v1164, 1
      %vm1288 = vcmp.ge.s32.totalorder %v1165, 1
      %vm1289 = vcmp.ge.s32.totalorder %v1166, 1
      %vm1290 = vcmp.ge.s32.totalorder %v1167, 1
      %vm1291 = vcmp.ge.s32.totalorder %v1168, 1
      %vm1292 = vcmp.ge.s32.totalorder %v1169, 1
      %vm1293 = vcmp.ge.s32.totalorder %v1170, 1
      %vm1294 = vcmp.ge.s32.totalorder %v1171, 1
      %vm1295 = vcmp.ge.s32.totalorder %v1172, 1
      %vm1296 = vcmp.ge.s32.totalorder %v1173, 1
      %vm1297 = vcmp.ge.s32.totalorder %v1174, 1
      %vm1298 = vcmp.ge.s32.totalorder %v1175, 1
      %vm1299 = vcmp.ge.s32.totalorder %v1176, 1
      %vm1300 = vcmp.ge.s32.totalorder %v1177, 1
      %vm1301 = vcmp.ge.s32.totalorder %v1178, 1
      %vm1302 = vcmp.ge.s32.totalorder %v1179, 1
      %vm1303 = vcmp.ge.s32.totalorder %v1180, 1
      %vm1304 = vcmp.ge.s32.totalorder %v1181, 1
      %vm1305 = vcmp.ge.s32.totalorder %v1182, 1
      %vm1306 = vcmp.ge.s32.totalorder %v1183, 1
      %vm1307 = vcmp.ge.s32.totalorder %v1184, 1
      %vm1308 = vcmp.ge.s32.totalorder %v1185, 1
      %vm1309 = vcmp.ge.s32.totalorder %v1186, 1
      %vm1310 = vcmp.ge.s32.totalorder %v1187, 1
      %vm1311 = vcmp.ge.s32.totalorder %v1188, 1
      %vm1312 = vcmp.ge.s32.totalorder %v1189, 1
      %vm1313 = vcmp.ge.s32.totalorder %v1190, 1
      %vm1314 = vcmp.ge.s32.totalorder %v1191, 1
      %vm1315 = vcmp.ge.s32.totalorder %v1192, 1
      %vm1316 = vcmp.ge.s32.totalorder %v1193, 1
      %vm1317 = vcmp.ge.s32.totalorder %v1194, 1
      %vm1318 = vcmp.ge.s32.totalorder %v1195, 1
      %vm1319 = vcmp.ge.s32.totalorder %v1196, 1
      %vm1320 = vcmp.ge.s32.totalorder %v1197, 1
      %vm1321 = vcmp.ge.s32.totalorder %v1198, 1
      %vm1322 = vcmp.le.s32.totalorder %v1158, 16
      %vm1323 = vcmp.le.s32.totalorder %v1159, 16
      %vm1324 = vcmp.le.s32.totalorder %v1160, 16
      %vm1325 = vcmp.le.s32.totalorder %v1161, 16
      %vm1326 = vcmp.le.s32.totalorder %v1162, 16
      %vm1327 = vcmp.le.s32.totalorder %v1163, 16
      %vm1328 = vcmp.le.s32.totalorder %v1164, 16
      %vm1329 = vcmp.le.s32.totalorder %v1165, 16
      %vm1330 = vcmp.le.s32.totalorder %v1166, 16
      %vm1331 = vcmp.le.s32.totalorder %v1167, 16
      %vm1332 = vcmp.le.s32.totalorder %v1168, 16
      %vm1333 = vcmp.le.s32.totalorder %v1169, 16
      %vm1334 = vcmp.le.s32.totalorder %v1170, 16
      %vm1335 = vcmp.le.s32.totalorder %v1171, 16
      %vm1336 = vcmp.le.s32.totalorder %v1172, 16
      %vm1337 = vcmp.le.s32.totalorder %v1173, 16
      %vm1338 = vcmp.le.s32.totalorder %v1174, 16
      %vm1339 = vcmp.le.s32.totalorder %v1175, 16
      %vm1340 = vcmp.le.s32.totalorder %v1176, 16
      %vm1341 = vcmp.le.s32.totalorder %v1177, 16
      %vm1342 = vcmp.le.s32.totalorder %v1178, 16
      %vm1343 = vcmp.le.s32.totalorder %v1179, 16
      %vm1344 = vcmp.le.s32.totalorder %v1180, 16
      %vm1345 = vcmp.le.s32.totalorder %v1181, 16
      %vm1346 = vcmp.le.s32.totalorder %v1182, 16
      %vm1347 = vcmp.le.s32.totalorder %v1183, 16
      %vm1348 = vcmp.le.s32.totalorder %v1184, 16
      %vm1349 = vcmp.le.s32.totalorder %v1185, 16
      %vm1350 = vcmp.le.s32.totalorder %v1186, 16
      %vm1351 = vcmp.le.s32.totalorder %v1187, 16
      %vm1352 = vcmp.le.s32.totalorder %v1188, 16
      %vm1353 = vcmp.le.s32.totalorder %v1189, 16
      %vm1354 = vcmp.le.s32.totalorder %v1190, 16
      %vm1355 = vcmp.le.s32.totalorder %v1191, 16
      %vm1356 = vcmp.le.s32.totalorder %v1192, 16
      %vm1357 = vcmp.le.s32.totalorder %v1193, 16
      %vm1358 = vcmp.le.s32.totalorder %v1194, 16
      %vm1359 = vcmp.le.s32.totalorder %v1195, 16
      %vm1360 = vcmp.le.s32.totalorder %v1196, 16
      %vm1361 = vcmp.le.s32.totalorder %v1197, 16
      %vm1362 = vcmp.le.s32.totalorder %v1198, 16
      %vm1363 = vmand %vm1281, %vm1322
      %vm1364 = vmand %vm1282, %vm1323
      %vm1365 = vmand %vm1283, %vm1324
      %vm1366 = vmand %vm1284, %vm1325
      %vm1367 = vmand %vm1285, %vm1326
      %vm1368 = vmand %vm1286, %vm1327
      %vm1369 = vmand %vm1287, %vm1328
      %vm1370 = vmand %vm1288, %vm1329
      %vm1371 = vmand %vm1289, %vm1330
      %vm1372 = vmand %vm1290, %vm1331
      %vm1373 = vmand %vm1291, %vm1332
      %vm1374 = vmand %vm1292, %vm1333
      %vm1375 = vmand %vm1293, %vm1334
      %vm1376 = vmand %vm1294, %vm1335
      %vm1377 = vmand %vm1295, %vm1336
      %vm1378 = vmand %vm1296, %vm1337
      %vm1379 = vmand %vm1297, %vm1338
      %vm1380 = vmand %vm1298, %vm1339
      %vm1381 = vmand %vm1299, %vm1340
      %vm1382 = vmand %vm1300, %vm1341
      %vm1383 = vmand %vm1301, %vm1342
      %vm1384 = vmand %vm1302, %vm1343
      %vm1385 = vmand %vm1303, %vm1344
      %vm1386 = vmand %vm1304, %vm1345
      %vm1387 = vmand %vm1305, %vm1346
      %vm1388 = vmand %vm1306, %vm1347
      %vm1389 = vmand %vm1307, %vm1348
      %vm1390 = vmand %vm1308, %vm1349
      %vm1391 = vmand %vm1309, %vm1350
      %vm1392 = vmand %vm1310, %vm1351
      %vm1393 = vmand %vm1311, %vm1352
      %vm1394 = vmand %vm1312, %vm1353
      %vm1395 = vmand %vm1313, %vm1354
      %vm1396 = vmand %vm1314, %vm1355
      %vm1397 = vmand %vm1315, %vm1356
      %vm1398 = vmand %vm1316, %vm1357
      %vm1399 = vmand %vm1317, %vm1358
      %vm1400 = vmand %vm1318, %vm1359
      %vm1401 = vmand %vm1319, %vm1360
      %vm1402 = vmand %vm1320, %vm1361
      %vm1403 = vmand %vm1321, %vm1362
      %vm1404 = vcmp.ge.s32.totalorder %v1240, 1
      %vm1405 = vcmp.ge.s32.totalorder %v1241, 1
      %vm1406 = vcmp.ge.s32.totalorder %v1242, 1
      %vm1407 = vcmp.ge.s32.totalorder %v1243, 1
      %vm1408 = vcmp.ge.s32.totalorder %v1244, 1
      %vm1409 = vcmp.ge.s32.totalorder %v1245, 1
      %vm1410 = vcmp.ge.s32.totalorder %v1246, 1
      %vm1411 = vcmp.ge.s32.totalorder %v1247, 1
      %vm1412 = vcmp.ge.s32.totalorder %v1248, 1
      %vm1413 = vcmp.ge.s32.totalorder %v1249, 1
      %vm1414 = vcmp.ge.s32.totalorder %v1250, 1
      %vm1415 = vcmp.ge.s32.totalorder %v1251, 1
      %vm1416 = vcmp.ge.s32.totalorder %v1252, 1
      %vm1417 = vcmp.ge.s32.totalorder %v1253, 1
      %vm1418 = vcmp.ge.s32.totalorder %v1254, 1
      %vm1419 = vcmp.ge.s32.totalorder %v1255, 1
      %vm1420 = vcmp.ge.s32.totalorder %v1256, 1
      %vm1421 = vcmp.ge.s32.totalorder %v1257, 1
      %vm1422 = vcmp.ge.s32.totalorder %v1258, 1
      %vm1423 = vcmp.ge.s32.totalorder %v1259, 1
      %vm1424 = vcmp.ge.s32.totalorder %v1260, 1
      %vm1425 = vcmp.ge.s32.totalorder %v1261, 1
      %vm1426 = vcmp.ge.s32.totalorder %v1262, 1
      %vm1427 = vcmp.ge.s32.totalorder %v1263, 1
      %vm1428 = vcmp.ge.s32.totalorder %v1264, 1
      %vm1429 = vcmp.ge.s32.totalorder %v1265, 1
      %vm1430 = vcmp.ge.s32.totalorder %v1266, 1
      %vm1431 = vcmp.ge.s32.totalorder %v1267, 1
      %vm1432 = vcmp.ge.s32.totalorder %v1268, 1
      %vm1433 = vcmp.ge.s32.totalorder %v1269, 1
      %vm1434 = vcmp.ge.s32.totalorder %v1270, 1
      %vm1435 = vcmp.ge.s32.totalorder %v1271, 1
      %vm1436 = vcmp.ge.s32.totalorder %v1272, 1
      %vm1437 = vcmp.ge.s32.totalorder %v1273, 1
      %vm1438 = vcmp.ge.s32.totalorder %v1274, 1
      %vm1439 = vcmp.ge.s32.totalorder %v1275, 1
      %vm1440 = vcmp.ge.s32.totalorder %v1276, 1
      %vm1441 = vcmp.ge.s32.totalorder %v1277, 1
      %vm1442 = vcmp.ge.s32.totalorder %v1278, 1
      %vm1443 = vcmp.ge.s32.totalorder %v1279, 1
      %vm1444 = vcmp.ge.s32.totalorder %v1280, 1
      %vm1445 = vmand %vm1363, %vm1404
      %vm1446 = vmand %vm1364, %vm1405
      %vm1447 = vmand %vm1365, %vm1406
      %vm1448 = vmand %vm1366, %vm1407
      %vm1449 = vmand %vm1367, %vm1408
      %vm1450 = vmand %vm1368, %vm1409
      %vm1451 = vmand %vm1369, %vm1410
      %vm1452 = vmand %vm1370, %vm1411
      %vm1453 = vmand %vm1371, %vm1412
      %vm1454 = vmand %vm1372, %vm1413
      %vm1455 = vmand %vm1373, %vm1414
      %vm1456 = vmand %vm1374, %vm1415
      %vm1457 = vmand %vm1375, %vm1416
      %vm1458 = vmand %vm1376, %vm1417
      %vm1459 = vmand %vm1377, %vm1418
      %vm1460 = vmand %vm1378, %vm1419
      %vm1461 = vmand %vm1379, %vm1420
      %vm1462 = vmand %vm1380, %vm1421
      %vm1463 = vmand %vm1381, %vm1422
      %vm1464 = vmand %vm1382, %vm1423
      %vm1465 = vmand %vm1383, %vm1424
      %vm1466 = vmand %vm1384, %vm1425
      %vm1467 = vmand %vm1385, %vm1426
      %vm1468 = vmand %vm1386, %vm1427
      %vm1469 = vmand %vm1387, %vm1428
      %vm1470 = vmand %vm1388, %vm1429
      %vm1471 = vmand %vm1389, %vm1430
      %vm1472 = vmand %vm1390, %vm1431
      %vm1473 = vmand %vm1391, %vm1432
      %vm1474 = vmand %vm1392, %vm1433
      %vm1475 = vmand %vm1393, %vm1434
      %vm1476 = vmand %vm1394, %vm1435
      %vm1477 = vmand %vm1395, %vm1436
      %vm1478 = vmand %vm1396, %vm1437
      %vm1479 = vmand %vm1397, %vm1438
      %vm1480 = vmand %vm1398, %vm1439
      %vm1481 = vmand %vm1399, %vm1440
      %vm1482 = vmand %vm1400, %vm1441
      %vm1483 = vmand %vm1401, %vm1442
      %vm1484 = vmand %vm1402, %vm1443
      %vm1485 = vmand %vm1403, %vm1444
      %vm1486 = vcmp.le.s32.totalorder %v1240, 16
      %vm1487 = vcmp.le.s32.totalorder %v1241, 16
      %vm1488 = vcmp.le.s32.totalorder %v1242, 16
      %vm1489 = vcmp.le.s32.totalorder %v1243, 16
      %vm1490 = vcmp.le.s32.totalorder %v1244, 16
      %vm1491 = vcmp.le.s32.totalorder %v1245, 16
      %vm1492 = vcmp.le.s32.totalorder %v1246, 16
      %vm1493 = vcmp.le.s32.totalorder %v1247, 16
      %vm1494 = vcmp.le.s32.totalorder %v1248, 16
      %vm1495 = vcmp.le.s32.totalorder %v1249, 16
      %vm1496 = vcmp.le.s32.totalorder %v1250, 16
      %vm1497 = vcmp.le.s32.totalorder %v1251, 16
      %vm1498 = vcmp.le.s32.totalorder %v1252, 16
      %vm1499 = vcmp.le.s32.totalorder %v1253, 16
      %vm1500 = vcmp.le.s32.totalorder %v1254, 16
      %vm1501 = vcmp.le.s32.totalorder %v1255, 16
      %vm1502 = vcmp.le.s32.totalorder %v1256, 16
      %vm1503 = vcmp.le.s32.totalorder %v1257, 16
      %vm1504 = vcmp.le.s32.totalorder %v1258, 16
      %vm1505 = vcmp.le.s32.totalorder %v1259, 16
      %vm1506 = vcmp.le.s32.totalorder %v1260, 16
      %vm1507 = vcmp.le.s32.totalorder %v1261, 16
      %vm1508 = vcmp.le.s32.totalorder %v1262, 16
      %vm1509 = vcmp.le.s32.totalorder %v1263, 16
      %vm1510 = vcmp.le.s32.totalorder %v1264, 16
      %vm1511 = vcmp.le.s32.totalorder %v1265, 16
      %vm1512 = vcmp.le.s32.totalorder %v1266, 16
      %vm1513 = vcmp.le.s32.totalorder %v1267, 16
      %vm1514 = vcmp.le.s32.totalorder %v1268, 16
      %vm1515 = vcmp.le.s32.totalorder %v1269, 16
      %vm1516 = vcmp.le.s32.totalorder %v1270, 16
      %vm1517 = vcmp.le.s32.totalorder %v1271, 16
      %vm1518 = vcmp.le.s32.totalorder %v1272, 16
      %vm1519 = vcmp.le.s32.totalorder %v1273, 16
      %vm1520 = vcmp.le.s32.totalorder %v1274, 16
      %vm1521 = vcmp.le.s32.totalorder %v1275, 16
      %vm1522 = vcmp.le.s32.totalorder %v1276, 16
      %vm1523 = vcmp.le.s32.totalorder %v1277, 16
      %vm1524 = vcmp.le.s32.totalorder %v1278, 16
      %vm1525 = vcmp.le.s32.totalorder %v1279, 16
      %vm1526 = vcmp.le.s32.totalorder %v1280, 16
      %vm1527 = vmand %vm1445, %vm1486
      %vm1528 = vmand %vm1446, %vm1487
      %vm1529 = vmand %vm1447, %vm1488
      %vm1530 = vmand %vm1448, %vm1489
      %vm1531 = vmand %vm1449, %vm1490
      %vm1532 = vmand %vm1450, %vm1491
      %vm1533 = vmand %vm1451, %vm1492
      %vm1534 = vmand %vm1452, %vm1493
      %vm1535 = vmand %vm1453, %vm1494
      %vm1536 = vmand %vm1454, %vm1495
      %vm1537 = vmand %vm1455, %vm1496
      %vm1538 = vmand %vm1456, %vm1497
      %vm1539 = vmand %vm1457, %vm1498
      %vm1540 = vmand %vm1458, %vm1499
      %vm1541 = vmand %vm1459, %vm1500
      %vm1542 = vmand %vm1460, %vm1501
      %vm1543 = vmand %vm1461, %vm1502
      %vm1544 = vmand %vm1462, %vm1503
      %vm1545 = vmand %vm1463, %vm1504
      %vm1546 = vmand %vm1464, %vm1505
      %vm1547 = vmand %vm1465, %vm1506
      %vm1548 = vmand %vm1466, %vm1507
      %vm1549 = vmand %vm1467, %vm1508
      %vm1550 = vmand %vm1468, %vm1509
      %vm1551 = vmand %vm1469, %vm1510
      %vm1552 = vmand %vm1470, %vm1511
      %vm1553 = vmand %vm1471, %vm1512
      %vm1554 = vmand %vm1472, %vm1513
      %vm1555 = vmand %vm1473, %vm1514
      %vm1556 = vmand %vm1474, %vm1515
      %vm1557 = vmand %vm1475, %vm1516
      %vm1558 = vmand %vm1476, %vm1517
      %vm1559 = vmand %vm1477, %vm1518
      %vm1560 = vmand %vm1478, %vm1519
      %vm1561 = vmand %vm1479, %vm1520
      %vm1562 = vmand %vm1480, %vm1521
      %vm1563 = vmand %vm1481, %vm1522
      %vm1564 = vmand %vm1482, %vm1523
      %vm1565 = vmand %vm1483, %vm1524
      %vm1566 = vmand %vm1484, %vm1525
      %vm1567 = vmand %vm1485, %vm1526
      %v1568 = vsel %vm1527, 1, 0
      %v1569 = vsel %vm1528, 1, 0
      %v1570 = vsel %vm1529, 1, 0
      %v1571 = vsel %vm1530, 1, 0
      %v1572 = vsel %vm1531, 1, 0
      %v1573 = vsel %vm1532, 1, 0
      %v1574 = vsel %vm1533, 1, 0
      %v1575 = vsel %vm1534, 1, 0
      %v1576 = vsel %vm1535, 1, 0
      %v1577 = vsel %vm1536, 1, 0
      %v1578 = vsel %vm1537, 1, 0
      %v1579 = vsel %vm1538, 1, 0
      %v1580 = vsel %vm1539, 1, 0
      %v1581 = vsel %vm1540, 1, 0
      %v1582 = vsel %vm1541, 1, 0
      %v1583 = vsel %vm1542, 1, 0
      %v1584 = vsel %vm1543, 1, 0
      %v1585 = vsel %vm1544, 1, 0
      %v1586 = vsel %vm1545, 1, 0
      %v1587 = vsel %vm1546, 1, 0
      %v1588 = vsel %vm1547, 1, 0
      %v1589 = vsel %vm1548, 1, 0
      %v1590 = vsel %vm1549, 1, 0
      %v1591 = vsel %vm1550, 1, 0
      %v1592 = vsel %vm1551, 1, 0
      %v1593 = vsel %vm1552, 1, 0
      %v1594 = vsel %vm1553, 1, 0
      %v1595 = vsel %vm1554, 1, 0
      %v1596 = vsel %vm1555, 1, 0
      %v1597 = vsel %vm1556, 1, 0
      %v1598 = vsel %vm1557, 1, 0
      %v1599 = vsel %vm1558, 1, 0
      %v1600 = vsel %vm1559, 1, 0
      %v1601 = vsel %vm1560, 1, 0
      %v1602 = vsel %vm1561, 1, 0
      %v1603 = vsel %vm1562, 1, 0
      %v1604 = vsel %vm1563, 1, 0
      %v1605 = vsel %vm1564, 1, 0
      %v1606 = vsel %vm1565, 1, 0
      %v1607 = vsel %vm1566, 1, 0
      %v1608 = vsel %vm1567, 1, 0
      %v1609 = vcvt.s32.f32 %v1568
      %v1610 = vcvt.s32.f32 %v1569
      %v1611 = vcvt.s32.f32 %v1570
      %v1612 = vcvt.s32.f32 %v1571
      %v1613 = vcvt.s32.f32 %v1572
      %v1614 = vcvt.s32.f32 %v1573
      %v1615 = vcvt.s32.f32 %v1574
      %v1616 = vcvt.s32.f32 %v1575
      %v1617 = vcvt.s32.f32 %v1576
      %v1618 = vcvt.s32.f32 %v1577
      %v1619 = vcvt.s32.f32 %v1578
      %v1620 = vcvt.s32.f32 %v1579
      %v1621 = vcvt.s32.f32 %v1580
      %v1622 = vcvt.s32.f32 %v1581
      %v1623 = vcvt.s32.f32 %v1582
      %v1624 = vcvt.s32.f32 %v1583
      %v1625 = vcvt.s32.f32 %v1584
      %v1626 = vcvt.s32.f32 %v1585
      %v1627 = vcvt.s32.f32 %v1586
      %v1628 = vcvt.s32.f32 %v1587
      %v1629 = vcvt.s32.f32 %v1588
      %v1630 = vcvt.s32.f32 %v1589
      %v1631 = vcvt.s32.f32 %v1590
      %v1632 = vcvt.s32.f32 %v1591
      %v1633 = vcvt.s32.f32 %v1592
      %v1634 = vcvt.s32.f32 %v1593
      %v1635 = vcvt.s32.f32 %v1594
      %v1636 = vcvt.s32.f32 %v1595
      %v1637 = vcvt.s32.f32 %v1596
      %v1638 = vcvt.s32.f32 %v1597
      %v1639 = vcvt.s32.f32 %v1598
      %v1640 = vcvt.s32.f32 %v1599
      %v1641 = vcvt.s32.f32 %v1600
      %v1642 = vcvt.s32.f32 %v1601
      %v1643 = vcvt.s32.f32 %v1602
      %v1644 = vcvt.s32.f32 %v1603
      %v1645 = vcvt.s32.f32 %v1604
      %v1646 = vcvt.s32.f32 %v1605
      %v1647 = vcvt.s32.f32 %v1606
      %v1648 = vcvt.s32.f32 %v1607
      %v1649 = vcvt.s32.f32 %v1608
      %v1650 = vmul.f32 %v952, %v1609
      %v1651 = vmul.f32 %v953, %v1610
      %v1652 = vmul.f32 %v954, %v1611
      %v1653 = vmul.f32 %v955, %v1612
      %v1654 = vmul.f32 %v956, %v1613
      %v1655 = vmul.f32 %v957, %v1614
      %v1656 = vmul.f32 %v958, %v1615
      %v1657 = vmul.f32 %v959, %v1616
      %v1658 = vmul.f32 %v960, %v1617
      %v1659 = vmul.f32 %v961, %v1618
      %v1660 = vmul.f32 %v962, %v1619
      %v1661 = vmul.f32 %v963, %v1620
      %v1662 = vmul.f32 %v964, %v1621
      %v1663 = vmul.f32 %v965, %v1622
      %v1664 = vmul.f32 %v966, %v1623
      %v1665 = vmul.f32 %v967, %v1624
      %v1666 = vmul.f32 %v968, %v1625
      %v1667 = vmul.f32 %v969, %v1626
      %v1668 = vmul.f32 %v970, %v1627
      %v1669 = vmul.f32 %v971, %v1628
      %v1670 = vmul.f32 %v972, %v1629
      %v1671 = vmul.f32 %v973, %v1630
      %v1672 = vmul.f32 %v974, %v1631
      %v1673 = vmul.f32 %v975, %v1632
      %v1674 = vmul.f32 %v976, %v1633
      %v1675 = vmul.f32 %v977, %v1634
      %v1676 = vmul.f32 %v978, %v1635
      %v1677 = vmul.f32 %v979, %v1636
      %v1678 = vmul.f32 %v980, %v1637
      %v1679 = vmul.f32 %v981, %v1638
      %v1680 = vmul.f32 %v982, %v1639
      %v1681 = vmul.f32 %v983, %v1640
      %v1682 = vmul.f32 %v984, %v1641
      %v1683 = vmul.f32 %v985, %v1642
      %v1684 = vmul.f32 %v986, %v1643
      %v1685 = vmul.f32 %v987, %v1644
      %v1686 = vmul.f32 %v988, %v1645
      %v1687 = vmul.f32 %v989, %v1646
      %v1688 = vmul.f32 %v990, %v1647
      %v1689 = vmul.f32 %v991, %v1648
      %v1690 = vmul.f32 %v992, %v1649
      %v1691 = vld [vmem:[%s6] sm:$0xf]
      %v1692 = vld [vmem:[%s6 + $0x4] sm:$0x3]
      %v1693 = vpack.c.bf16 %v1651, %v1650
      %v1694 = vpack.c.bf16 %v1653, %v1652
      %v1695 = vpack.c.bf16 %v1655, %v1654
      %v1696 = vpack.c.bf16 %v1657, %v1656
      %v1697 = vpack.c.bf16 %v1659, %v1658
      %v1698 = vpack.c.bf16 %v1661, %v1660
      %v1699 = vpack.c.bf16 %v1663, %v1662
      %v1700 = vpack.c.bf16 %v1665, %v1664
      %v1701 = vpack.c.bf16 %v1667, %v1666
      %v1702 = vpack.c.bf16 %v1669, %v1668
      %v1703 = vpack.c.bf16 %v1671, %v1670
      %v1704 = vpack.c.bf16 %v1673, %v1672
      %v1705 = vpack.c.bf16 %v1675, %v1674
      %v1706 = vpack.c.bf16 %v1677, %v1676
      %v1707 = vpack.c.bf16 %v1679, %v1678
      %v1708 = vpack.c.bf16 %v1681, %v1680
      %v1709 = vpack.c.bf16 %v1683, %v1682
      %v1710 = vpack.c.bf16 %v1685, %v1684
      %vm1711 = vsmask.f32 7424
      %v1713 = vshrl.u32 %v1693, 16
      %v1715 = vshll.u32 %v1693, 16
      %v1717 = vrot.slane %v1715, 1
      %v1718 = vor.u32 %v1713, %v1717
      %v1720 = vshll.u32 %v1694, 16
      %v1722 = vrot.slane %v1720, 1
      %v1723 = vsel %vm1711, %v1718, %v1722
      %v1724 = vshrl.u32 %v1694, 16
      %v1726 = vor.u32 %v1724, %v1722
      %v1728 = vshll.u32 %v1695, 16
      %v1730 = vrot.slane %v1728, 1
      %v1731 = vsel %vm1711, %v1726, %v1730
      %v1732 = vshrl.u32 %v1695, 16
      %v1734 = vor.u32 %v1732, %v1730
      %v1736 = vshll.u32 %v1696, 16
      %v1738 = vrot.slane %v1736, 1
      %v1739 = vsel %vm1711, %v1734, %v1738
      %v1740 = vshrl.u32 %v1696, 16
      %v1742 = vor.u32 %v1740, %v1738
      %v1744 = vshll.u32 %v1697, 16
      %v1746 = vrot.slane %v1744, 1
      %v1747 = vsel %vm1711, %v1742, %v1746
      %v1748 = vshrl.u32 %v1697, 16
      %v1750 = vor.u32 %v1748, %v1746
      %v1752 = vshll.u32 %v1698, 16
      %v1754 = vrot.slane %v1752, 1
      %v1755 = vsel %vm1711, %v1750, %v1754
      %v1756 = vshrl.u32 %v1698, 16
      %v1758 = vor.u32 %v1756, %v1754
      %v1760 = vshll.u32 %v1699, 16
      %v1762 = vrot.slane %v1760, 1
      %v1763 = vsel %vm1711, %v1758, %v1762
      %v1764 = vshrl.u32 %v1699, 16
      %v1766 = vor.u32 %v1764, %v1762
      %v1768 = vshll.u32 %v1700, 16
      %v1770 = vrot.slane %v1768, 1
      %v1771 = vsel %vm1711, %v1766, %v1770
      %v1772 = vshrl.u32 %v1700, 16
      %v1774 = vor.u32 %v1772, %v1770
      %v1776 = vshll.u32 %v1701, 16
      %v1778 = vrot.slane %v1776, 1
      %v1779 = vsel %vm1711, %v1774, %v1778
      %v1780 = vshrl.u32 %v1701, 16
      %v1782 = vor.u32 %v1780, %v1778
      %v1784 = vshll.u32 %v1702, 16
      %v1786 = vrot.slane %v1784, 1
      %v1787 = vsel %vm1711, %v1782, %v1786
      %v1788 = vshrl.u32 %v1702, 16
      %v1790 = vor.u32 %v1788, %v1786
      %v1792 = vshll.u32 %v1703, 16
      %v1794 = vrot.slane %v1792, 1
      %v1795 = vsel %vm1711, %v1790, %v1794
      %v1796 = vshrl.u32 %v1703, 16
      %v1798 = vor.u32 %v1796, %v1794
      %v1800 = vshll.u32 %v1704, 16
      %v1802 = vrot.slane %v1800, 1
      %v1803 = vsel %vm1711, %v1798, %v1802
      %v1804 = vshrl.u32 %v1704, 16
      %v1806 = vor.u32 %v1804, %v1802
      %v1808 = vshll.u32 %v1705, 16
      %v1810 = vrot.slane %v1808, 1
      %v1811 = vsel %vm1711, %v1806, %v1810
      %v1812 = vshrl.u32 %v1705, 16
      %v1814 = vor.u32 %v1812, %v1810
      %v1816 = vshll.u32 %v1706, 16
      %v1818 = vrot.slane %v1816, 1
      %v1819 = vsel %vm1711, %v1814, %v1818
      %v1820 = vshrl.u32 %v1706, 16
      %v1822 = vor.u32 %v1820, %v1818
      %v1824 = vshll.u32 %v1707, 16
      %v1826 = vrot.slane %v1824, 1
      %v1827 = vsel %vm1711, %v1822, %v1826
      %v1828 = vshrl.u32 %v1707, 16
      %v1830 = vor.u32 %v1828, %v1826
      %v1832 = vshll.u32 %v1708, 16
      %v1834 = vrot.slane %v1832, 1
      %v1835 = vsel %vm1711, %v1830, %v1834
      %v1836 = vshrl.u32 %v1708, 16
      %v1838 = vor.u32 %v1836, %v1834
      %v1840 = vshll.u32 %v1709, 16
      %v1842 = vrot.slane %v1840, 1
      %v1843 = vsel %vm1711, %v1838, %v1842
      %v1844 = vshrl.u32 %v1709, 16
      %v1846 = vor.u32 %v1844, %v1842
      %v1848 = vshll.u32 %v1710, 16
      %v1850 = vrot.slane %v1848, 1
      %v1851 = vsel %vm1711, %v1846, %v1850
      %v1852 = vshrl.u32 %v1710, 16
      %v1854 = vor.u32 %v1852, %v1850
      %v1856 = vunpack.c.l.b16 %v1691
      %v1857 = vpack.c.b16 %v1856, %v1856
      %v1858 = vrot.slane %v1857, 2
      %vm1859 = vcmask 31744
      %v1861 = vsel %vm1859, %v1723, 0
      %v1864 = vsel %vm1859, %v1731, 0
      %v1867 = vsel %vm1859, %v1739, 0
      %v1870 = vsel %vm1859, %v1747, 0
      %v1873 = vsel %vm1859, %v1755, 0
      %v1876 = vsel %vm1859, %v1763, 0
      %v1879 = vsel %vm1859, %v1771, 0
      %v1882 = vsel %vm1859, %v1779, 0
      %v1885 = vsel %vm1859, %v1787, 0
      %v1888 = vsel %vm1859, %v1795, 0
      %v1891 = vsel %vm1859, %v1803, 0
      %v1894 = vsel %vm1859, %v1811, 0
      %v1897 = vsel %vm1859, %v1819, 0
      %v1900 = vsel %vm1859, %v1827, 0
      %v1903 = vsel %vm1859, %v1835, 0
      %v1906 = vsel %vm1859, %v1843, 0
      %v1909 = vsel %vm1859, %v1851, 0
      %v1912 = vsel %vm1859, %v1854, 0
      %vm1914 = vcmask 1041408
      %v1916 = vsel %vm1914, %v1858, 0
      %1918 = vmatprep.subr.bf16.mxu0 0
      %1919 = vmatpush1.bf16.msra.mxu0 0
      %1920 = vmatprep.subr.bf16.mxu0 0
      %1921 = vmatpush1.bf16.msra.mxu0 0
      %1922 = vmatprep.subr.bf16.mxu0 0
      %1923 = vmatpush1.bf16.msra.mxu0 0
      %1924 = vmatprep.subr.bf16.mxu0 0
      %1925 = vmatpush1.bf16.msra.mxu0 0
      %1926 = vmatprep.subr.bf16.mxu0 0
      %1927 = vmatpush1.bf16.msra.mxu0 0
      %1928 = vmatprep.subr.bf16.mxu0 0
      %1929 = vmatpush1.bf16.msra.mxu0 0
      %1930 = vmatprep.subr.bf16.mxu0 0
      %1931 = vmatpush1.bf16.msra.mxu0 0
      %1932 = vmatprep.subr.bf16.mxu0 0
      %1933 = vmatpush1.bf16.msra.mxu0 %v1916
      %1934 = vmatprep.subr.bf16.mxu0 0
      %1935 = vmatpush2.bf16.msra.mxu0 0
      %1936 = vmatprep.subr.bf16.mxu0 0
      %1937 = vmatpush2.bf16.msra.mxu0 0
      %1938 = vmatprep.subr.bf16.mxu0 0
      %1939 = vmatpush2.bf16.msra.mxu0 0
      %1940 = vmatprep.subr.bf16.mxu0 0
      %1941 = vmatpush2.bf16.msra.mxu0 0
      %1942 = vmatprep.subr.bf16.mxu0 0
      %1943 = vmatpush2.bf16.msra.mxu0 0
      %1944 = vmatprep.subr.bf16.mxu0 0
      %1945 = vmatpush2.bf16.msra.mxu0 0
      %1946 = vmatprep.subr.bf16.mxu0 0
      %1947 = vmatpush2.bf16.msra.mxu0 0
      %1948 = vmatprep.subr.bf16.mxu0 0
      %1949 = vmatpush2.bf16.msra.mxu0 0
      %1950 = vmatprep.mubr.bf16.mxu0 0
      %1951 = vmatmul.mubr.bf16.gmra.mxu0 %v1861
      %v1952 = vpop.f32.mrf.mxu0
      %v1953 = vadd.f32 0.0, %v1952
      %v1954 = vpop.f32.mrf.mxu0
      %v1955 = vpop.f32.mrf.mxu0
      %v1956 = vadd.f32 0.0, %v1955
      %v1957 = vpop.f32.mrf.mxu0
      %1958 = vmatprep.mubr.bf16.mxu0 0
      %1959 = vmatmul.mubr.bf16.gmra.mxu0 %v1864
      %v1960 = vpop.f32.mrf.mxu0
      %v1961 = vadd.f32 0.0, %v1960
      %v1962 = vpop.f32.mrf.mxu0
      %v1963 = vpop.f32.mrf.mxu0
      %v1964 = vadd.f32 0.0, %v1963
      %v1965 = vpop.f32.mrf.mxu0
      %1966 = vmatprep.mubr.bf16.mxu0 0
      %1967 = vmatmul.mubr.bf16.gmra.mxu0 %v1867
      %v1968 = vpop.f32.mrf.mxu0
      %v1969 = vadd.f32 0.0, %v1968
      %v1970 = vpop.f32.mrf.mxu0
      %v1971 = vpop.f32.mrf.mxu0
      %v1972 = vadd.f32 0.0, %v1971
      %v1973 = vpop.f32.mrf.mxu0
      %1974 = vmatprep.mubr.bf16.mxu0 0
      %1975 = vmatmul.mubr.bf16.gmra.mxu0 %v1870
      %v1976 = vpop.f32.mrf.mxu0
      %v1977 = vadd.f32 0.0, %v1976
      %v1978 = vpop.f32.mrf.mxu0
      %v1979 = vpop.f32.mrf.mxu0
      %v1980 = vadd.f32 0.0, %v1979
      %v1981 = vpop.f32.mrf.mxu0
      %1982 = vmatprep.mubr.bf16.mxu0 0
      %1983 = vmatmul.mubr.bf16.gmra.mxu0 %v1873
      %v1984 = vpop.f32.mrf.mxu0
      %v1985 = vadd.f32 0.0, %v1984
      %v1986 = vpop.f32.mrf.mxu0
      %v1987 = vpop.f32.mrf.mxu0
      %v1988 = vadd.f32 0.0, %v1987
      %v1989 = vpop.f32.mrf.mxu0
      %1990 = vmatprep.mubr.bf16.mxu0 0
      %1991 = vmatmul.mubr.bf16.gmra.mxu0 %v1876
      %v1992 = vpop.f32.mrf.mxu0
      %v1993 = vadd.f32 0.0, %v1992
      %v1994 = vpop.f32.mrf.mxu0
      %v1995 = vpop.f32.mrf.mxu0
      %v1996 = vadd.f32 0.0, %v1995
      %v1997 = vpop.f32.mrf.mxu0
      %1998 = vmatprep.mubr.bf16.mxu0 0
      %1999 = vmatmul.mubr.bf16.gmra.mxu0 %v1879
      %v2000 = vpop.f32.mrf.mxu0
      %v2001 = vadd.f32 0.0, %v2000
      %v2002 = vpop.f32.mrf.mxu0
      %v2003 = vpop.f32.mrf.mxu0
      %v2004 = vadd.f32 0.0, %v2003
      %v2005 = vpop.f32.mrf.mxu0
      %2006 = vmatprep.mubr.bf16.mxu0 0
      %2007 = vmatmul.mubr.bf16.gmra.mxu0 %v1882
      %v2008 = vpop.f32.mrf.mxu0
      %v2009 = vadd.f32 0.0, %v2008
      %v2010 = vpop.f32.mrf.mxu0
      %v2011 = vpop.f32.mrf.mxu0
      %v2012 = vadd.f32 0.0, %v2011
      %v2013 = vpop.f32.mrf.mxu0
      %2014 = vmatprep.mubr.bf16.mxu0 0
      %2015 = vmatmul.mubr.bf16.gmra.mxu0 %v1885
      %v2016 = vpop.f32.mrf.mxu0
      %v2017 = vadd.f32 0.0, %v2016
      %v2018 = vpop.f32.mrf.mxu0
      %v2019 = vpop.f32.mrf.mxu0
      %v2020 = vadd.f32 0.0, %v2019
      %v2021 = vpop.f32.mrf.mxu0
      %2022 = vmatprep.mubr.bf16.mxu0 0
      %2023 = vmatmul.mubr.bf16.gmra.mxu0 %v1888
      %v2024 = vpop.f32.mrf.mxu0
      %v2025 = vadd.f32 0.0, %v2024
      %v2026 = vpop.f32.mrf.mxu0
      %v2027 = vpop.f32.mrf.mxu0
      %v2028 = vadd.f32 0.0, %v2027
      %v2029 = vpop.f32.mrf.mxu0
      %2030 = vmatprep.mubr.bf16.mxu0 0
      %2031 = vmatmul.mubr.bf16.gmra.mxu0 %v1891
      %v2032 = vpop.f32.mrf.mxu0
      %v2033 = vadd.f32 0.0, %v2032
      %v2034 = vpop.f32.mrf.mxu0
      %v2035 = vpop.f32.mrf.mxu0
      %v2036 = vadd.f32 0.0, %v2035
      %v2037 = vpop.f32.mrf.mxu0
      %2038 = vmatprep.mubr.bf16.mxu0 0
      %2039 = vmatmul.mubr.bf16.gmra.mxu0 %v1894
      %v2040 = vpop.f32.mrf.mxu0
      %v2041 = vadd.f32 0.0, %v2040
      %v2042 = vpop.f32.mrf.mxu0
      %v2043 = vpop.f32.mrf.mxu0
      %v2044 = vadd.f32 0.0, %v2043
      %v2045 = vpop.f32.mrf.mxu0
      %2046 = vmatprep.mubr.bf16.mxu0 0
      %2047 = vmatmul.mubr.bf16.gmra.mxu0 %v1897
      %v2048 = vpop.f32.mrf.mxu0
      %v2049 = vadd.f32 0.0, %v2048
      %v2050 = vpop.f32.mrf.mxu0
      %v2051 = vpop.f32.mrf.mxu0
      %v2052 = vadd.f32 0.0, %v2051
      %v2053 = vpop.f32.mrf.mxu0
      %2054 = vmatprep.mubr.bf16.mxu0 0
      %2055 = vmatmul.mubr.bf16.gmra.mxu0 %v1900
      %v2056 = vpop.f32.mrf.mxu0
      %v2057 = vadd.f32 0.0, %v2056
      %v2058 = vpop.f32.mrf.mxu0
      %v2059 = vpop.f32.mrf.mxu0
      %v2060 = vadd.f32 0.0, %v2059
      %v2061 = vpop.f32.mrf.mxu0
      %2062 = vmatprep.mubr.bf16.mxu0 0
      %2063 = vmatmul.mubr.bf16.gmra.mxu0 %v1903
      %v2064 = vpop.f32.mrf.mxu0
      %v2065 = vadd.f32 0.0, %v2064
      %v2066 = vpop.f32.mrf.mxu0
      %v2067 = vpop.f32.mrf.mxu0
      %v2068 = vadd.f32 0.0, %v2067
      %v2069 = vpop.f32.mrf.mxu0
      %2070 = vmatprep.mubr.bf16.mxu0 0
      %2071 = vmatmul.mubr.bf16.gmra.mxu0 %v1906
      %v2072 = vpop.f32.mrf.mxu0
      %v2073 = vadd.f32 0.0, %v2072
      %v2074 = vpop.f32.mrf.mxu0
      %v2075 = vpop.f32.mrf.mxu0
      %v2076 = vadd.f32 0.0, %v2075
      %v2077 = vpop.f32.mrf.mxu0
      %2078 = vmatprep.mubr.bf16.mxu0 0
      %2079 = vmatmul.mubr.bf16.gmra.mxu0 %v1909
      %v2080 = vpop.f32.mrf.mxu0
      %v2081 = vadd.f32 0.0, %v2080
      %v2082 = vpop.f32.mrf.mxu0
      %v2083 = vpop.f32.mrf.mxu0
      %v2084 = vadd.f32 0.0, %v2083
      %v2085 = vpop.f32.mrf.mxu0
      %2086 = vmatprep.mubr.bf16.mxu0 0
      %2087 = vmatmul.mubr.bf16.gmra.mxu0 %v1912
      %v2088 = vpop.f32.mrf.mxu0
      %v2089 = vadd.f32 0.0, %v2088
      %v2090 = vpop.f32.mrf.mxu0
      %v2091 = vpop.f32.mrf.mxu0
      %v2092 = vadd.f32 0.0, %v2091
      %v2093 = vpop.f32.mrf.mxu0
      %2094 = vdwg.mxu0
      %v2095 = vsel %vm1859, %v1693, 0
      %v2097 = vsel %vm1859, %v1694, 0
      %v2099 = vsel %vm1859, %v1695, 0
      %v2101 = vsel %vm1859, %v1696, 0
      %v2103 = vsel %vm1859, %v1697, 0
      %v2105 = vsel %vm1859, %v1698, 0
      %v2107 = vsel %vm1859, %v1699, 0
      %v2109 = vsel %vm1859, %v1700, 0
      %v2111 = vsel %vm1859, %v1701, 0
      %v2113 = vsel %vm1859, %v1702, 0
      %v2115 = vsel %vm1859, %v1703, 0
      %v2117 = vsel %vm1859, %v1704, 0
      %v2119 = vsel %vm1859, %v1705, 0
      %v2121 = vsel %vm1859, %v1706, 0
      %v2123 = vsel %vm1859, %v1707, 0
      %v2125 = vsel %vm1859, %v1708, 0
      %v2127 = vsel %vm1859, %v1709, 0
      %v2129 = vsel %vm1859, %v1710, 0
      %v2132 = vsel %vm1914, %v1691, 0
      %2134 = vmatprep.subr.bf16.mxu0 0
      %2135 = vmatpush1.bf16.msra.mxu0 0
      %2136 = vmatprep.subr.bf16.mxu0 0
      %2137 = vmatpush1.bf16.msra.mxu0 0
      %2138 = vmatprep.subr.bf16.mxu0 0
      %2139 = vmatpush1.bf16.msra.mxu0 0
      %2140 = vmatprep.subr.bf16.mxu0 0
      %2141 = vmatpush1.bf16.msra.mxu0 0
      %2142 = vmatprep.subr.bf16.mxu0 0
      %2143 = vmatpush1.bf16.msra.mxu0 0
      %2144 = vmatprep.subr.bf16.mxu0 0
      %2145 = vmatpush1.bf16.msra.mxu0 0
      %2146 = vmatprep.subr.bf16.mxu0 0
      %2147 = vmatpush1.bf16.msra.mxu0 0
      %2148 = vmatprep.subr.bf16.mxu0 0
      %2149 = vmatpush1.bf16.msra.mxu0 %v2132
      %2150 = vmatprep.subr.bf16.mxu0 0
      %2151 = vmatpush2.bf16.msra.mxu0 0
      %2152 = vmatprep.subr.bf16.mxu0 0
      %2153 = vmatpush2.bf16.msra.mxu0 0
      %2154 = vmatprep.subr.bf16.mxu0 0
      %2155 = vmatpush2.bf16.msra.mxu0 0
      %2156 = vmatprep.subr.bf16.mxu0 0
      %2157 = vmatpush2.bf16.msra.mxu0 0
      %2158 = vmatprep.subr.bf16.mxu0 0
      %2159 = vmatpush2.bf16.msra.mxu0 0
      %2160 = vmatprep.subr.bf16.mxu0 0
      %2161 = vmatpush2.bf16.msra.mxu0 0
      %2162 = vmatprep.subr.bf16.mxu0 0
      %2163 = vmatpush2.bf16.msra.mxu0 0
      %2164 = vmatprep.subr.bf16.mxu0 0
      %2165 = vmatpush2.bf16.msra.mxu0 0
      %2166 = vmatprep.mubr.bf16.mxu0 0
      %2167 = vmatmul.mubr.bf16.gmra.mxu0 %v2095
      %v2168 = vpop.f32.mrf.mxu0
      %v2169 = vadd.f32 %v1953, %v2168
      %v2170 = vpop.f32.mrf.mxu0
      %v2171 = vpop.f32.mrf.mxu0
      %v2172 = vadd.f32 %v1956, %v2171
      %v2173 = vpop.f32.mrf.mxu0
      %2174 = vmatprep.mubr.bf16.mxu0 0
      %2175 = vmatmul.mubr.bf16.gmra.mxu0 %v2097
      %v2176 = vpop.f32.mrf.mxu0
      %v2177 = vadd.f32 %v1961, %v2176
      %v2178 = vpop.f32.mrf.mxu0
      %v2179 = vpop.f32.mrf.mxu0
      %v2180 = vadd.f32 %v1964, %v2179
      %v2181 = vpop.f32.mrf.mxu0
      %2182 = vmatprep.mubr.bf16.mxu0 0
      %2183 = vmatmul.mubr.bf16.gmra.mxu0 %v2099
      %v2184 = vpop.f32.mrf.mxu0
      %v2185 = vadd.f32 %v1969, %v2184
      %v2186 = vpop.f32.mrf.mxu0
      %v2187 = vpop.f32.mrf.mxu0
      %v2188 = vadd.f32 %v1972, %v2187
      %v2189 = vpop.f32.mrf.mxu0
      %2190 = vmatprep.mubr.bf16.mxu0 0
      %2191 = vmatmul.mubr.bf16.gmra.mxu0 %v2101
      %v2192 = vpop.f32.mrf.mxu0
      %v2193 = vadd.f32 %v1977, %v2192
      %v2194 = vpop.f32.mrf.mxu0
      %v2195 = vpop.f32.mrf.mxu0
      %v2196 = vadd.f32 %v1980, %v2195
      %v2197 = vpop.f32.mrf.mxu0
      %2198 = vmatprep.mubr.bf16.mxu0 0
      %2199 = vmatmul.mubr.bf16.gmra.mxu0 %v2103
      %v2200 = vpop.f32.mrf.mxu0
      %v2201 = vadd.f32 %v1985, %v2200
      %v2202 = vpop.f32.mrf.mxu0
      %v2203 = vpop.f32.mrf.mxu0
      %v2204 = vadd.f32 %v1988, %v2203
      %v2205 = vpop.f32.mrf.mxu0
      %2206 = vmatprep.mubr.bf16.mxu0 0
      %2207 = vmatmul.mubr.bf16.gmra.mxu0 %v2105
      %v2208 = vpop.f32.mrf.mxu0
      %v2209 = vadd.f32 %v1993, %v2208
      %v2210 = vpop.f32.mrf.mxu0
      %v2211 = vpop.f32.mrf.mxu0
      %v2212 = vadd.f32 %v1996, %v2211
      %v2213 = vpop.f32.mrf.mxu0
      %2214 = vmatprep.mubr.bf16.mxu0 0
      %2215 = vmatmul.mubr.bf16.gmra.mxu0 %v2107
      %v2216 = vpop.f32.mrf.mxu0
      %v2217 = vadd.f32 %v2001, %v2216
      %v2218 = vpop.f32.mrf.mxu0
      %v2219 = vpop.f32.mrf.mxu0
      %v2220 = vadd.f32 %v2004, %v2219
      %v2221 = vpop.f32.mrf.mxu0
      %2222 = vmatprep.mubr.bf16.mxu0 0
      %2223 = vmatmul.mubr.bf16.gmra.mxu0 %v2109
      %v2224 = vpop.f32.mrf.mxu0
      %v2225 = vadd.f32 %v2009, %v2224
      %v2226 = vpop.f32.mrf.mxu0
      %v2227 = vpop.f32.mrf.mxu0
      %v2228 = vadd.f32 %v2012, %v2227
      %v2229 = vpop.f32.mrf.mxu0
      %2230 = vmatprep.mubr.bf16.mxu0 0
      %2231 = vmatmul.mubr.bf16.gmra.mxu0 %v2111
      %v2232 = vpop.f32.mrf.mxu0
      %v2233 = vadd.f32 %v2017, %v2232
      %v2234 = vpop.f32.mrf.mxu0
      %v2235 = vpop.f32.mrf.mxu0
      %v2236 = vadd.f32 %v2020, %v2235
      %v2237 = vpop.f32.mrf.mxu0
      %2238 = vmatprep.mubr.bf16.mxu0 0
      %2239 = vmatmul.mubr.bf16.gmra.mxu0 %v2113
      %v2240 = vpop.f32.mrf.mxu0
      %v2241 = vadd.f32 %v2025, %v2240
      %v2242 = vpop.f32.mrf.mxu0
      %v2243 = vpop.f32.mrf.mxu0
      %v2244 = vadd.f32 %v2028, %v2243
      %v2245 = vpop.f32.mrf.mxu0
      %2246 = vmatprep.mubr.bf16.mxu0 0
      %2247 = vmatmul.mubr.bf16.gmra.mxu0 %v2115
      %v2248 = vpop.f32.mrf.mxu0
      %v2249 = vadd.f32 %v2033, %v2248
      %v2250 = vpop.f32.mrf.mxu0
      %v2251 = vpop.f32.mrf.mxu0
      %v2252 = vadd.f32 %v2036, %v2251
      %v2253 = vpop.f32.mrf.mxu0
      %2254 = vmatprep.mubr.bf16.mxu0 0
      %2255 = vmatmul.mubr.bf16.gmra.mxu0 %v2117
      %v2256 = vpop.f32.mrf.mxu0
      %v2257 = vadd.f32 %v2041, %v2256
      %v2258 = vpop.f32.mrf.mxu0
      %v2259 = vpop.f32.mrf.mxu0
      %v2260 = vadd.f32 %v2044, %v2259
      %v2261 = vpop.f32.mrf.mxu0
      %2262 = vmatprep.mubr.bf16.mxu0 0
      %2263 = vmatmul.mubr.bf16.gmra.mxu0 %v2119
      %v2264 = vpop.f32.mrf.mxu0
      %v2265 = vadd.f32 %v2049, %v2264
      %v2266 = vpop.f32.mrf.mxu0
      %v2267 = vpop.f32.mrf.mxu0
      %v2268 = vadd.f32 %v2052, %v2267
      %v2269 = vpop.f32.mrf.mxu0
      %2270 = vmatprep.mubr.bf16.mxu0 0
      %2271 = vmatmul.mubr.bf16.gmra.mxu0 %v2121
      %v2272 = vpop.f32.mrf.mxu0
      %v2273 = vadd.f32 %v2057, %v2272
      %v2274 = vpop.f32.mrf.mxu0
      %v2275 = vpop.f32.mrf.mxu0
      %v2276 = vadd.f32 %v2060, %v2275
      %v2277 = vpop.f32.mrf.mxu0
      %2278 = vmatprep.mubr.bf16.mxu0 0
      %2279 = vmatmul.mubr.bf16.gmra.mxu0 %v2123
      %v2280 = vpop.f32.mrf.mxu0
      %v2281 = vadd.f32 %v2065, %v2280
      %v2282 = vpop.f32.mrf.mxu0
      %v2283 = vpop.f32.mrf.mxu0
      %v2284 = vadd.f32 %v2068, %v2283
      %v2285 = vpop.f32.mrf.mxu0
      %2286 = vmatprep.mubr.bf16.mxu0 0
      %2287 = vmatmul.mubr.bf16.gmra.mxu0 %v2125
      %v2288 = vpop.f32.mrf.mxu0
      %v2289 = vadd.f32 %v2073, %v2288
      %v2290 = vpop.f32.mrf.mxu0
      %v2291 = vpop.f32.mrf.mxu0
      %v2292 = vadd.f32 %v2076, %v2291
      %v2293 = vpop.f32.mrf.mxu0
      %2294 = vmatprep.mubr.bf16.mxu0 0
      %2295 = vmatmul.mubr.bf16.gmra.mxu0 %v2127
      %v2296 = vpop.f32.mrf.mxu0
      %v2297 = vadd.f32 %v2081, %v2296
      %v2298 = vpop.f32.mrf.mxu0
      %v2299 = vpop.f32.mrf.mxu0
      %v2300 = vadd.f32 %v2084, %v2299
      %v2301 = vpop.f32.mrf.mxu0
      %2302 = vmatprep.mubr.bf16.mxu0 0
      %2303 = vmatmul.mubr.bf16.gmra.mxu0 %v2129
      %v2304 = vpop.f32.mrf.mxu0
      %v2305 = vadd.f32 %v2089, %v2304
      %v2306 = vpop.f32.mrf.mxu0
      %v2307 = vpop.f32.mrf.mxu0
      %v2308 = vadd.f32 %v2092, %v2307
      %v2309 = vpop.f32.mrf.mxu0
      %2310 = vdwg.mxu0
      %vm2329 = vcmask 1046528
      %v2330 = vrot.slane %v1693, 1
      %v2331 = vrot.slane %v1694, 1
      %v2332 = vsel %vm2329, %v2330, %v2331
      %v2333 = vrot.slane %v1695, 1
      %v2334 = vsel %vm2329, %v2331, %v2333
      %v2335 = vrot.slane %v1696, 1
      %v2336 = vsel %vm2329, %v2333, %v2335
      %v2337 = vrot.slane %v1697, 1
      %v2338 = vsel %vm2329, %v2335, %v2337
      %v2339 = vrot.slane %v1698, 1
      %v2340 = vsel %vm2329, %v2337, %v2339
      %v2341 = vrot.slane %v1699, 1
      %v2342 = vsel %vm2329, %v2339, %v2341
      %v2343 = vrot.slane %v1700, 1
      %v2344 = vsel %vm2329, %v2341, %v2343
      %v2345 = vrot.slane %v1701, 1
      %v2346 = vsel %vm2329, %v2343, %v2345
      %v2347 = vrot.slane %v1702, 1
      %v2348 = vsel %vm2329, %v2345, %v2347
      %v2349 = vrot.slane %v1703, 1
      %v2350 = vsel %vm2329, %v2347, %v2349
      %v2351 = vrot.slane %v1704, 1
      %v2352 = vsel %vm2329, %v2349, %v2351
      %v2353 = vrot.slane %v1705, 1
      %v2354 = vsel %vm2329, %v2351, %v2353
      %v2355 = vrot.slane %v1706, 1
      %v2356 = vsel %vm2329, %v2353, %v2355
      %v2357 = vrot.slane %v1707, 1
      %v2358 = vsel %vm2329, %v2355, %v2357
      %v2359 = vrot.slane %v1708, 1
      %v2360 = vsel %vm2329, %v2357, %v2359
      %v2361 = vrot.slane %v1709, 1
      %v2362 = vsel %vm2329, %v2359, %v2361
      %v2363 = vrot.slane %v1710, 1
      %v2364 = vsel %vm2329, %v2361, %v2363
      %v2366 = vsel %vm1859, %v2332, 0
      %v2369 = vsel %vm1859, %v2334, 0
      %v2372 = vsel %vm1859, %v2336, 0
      %v2375 = vsel %vm1859, %v2338, 0
      %v2378 = vsel %vm1859, %v2340, 0
      %v2381 = vsel %vm1859, %v2342, 0
      %v2384 = vsel %vm1859, %v2344, 0
      %v2387 = vsel %vm1859, %v2346, 0
      %v2390 = vsel %vm1859, %v2348, 0
      %v2393 = vsel %vm1859, %v2350, 0
      %v2396 = vsel %vm1859, %v2352, 0
      %v2399 = vsel %vm1859, %v2354, 0
      %v2402 = vsel %vm1859, %v2356, 0
      %v2405 = vsel %vm1859, %v2358, 0
      %v2408 = vsel %vm1859, %v2360, 0
      %v2411 = vsel %vm1859, %v2362, 0
      %v2414 = vsel %vm1859, %v2364, 0
      %v2417 = vsel %vm1859, %v2363, 0
      %v2420 = vsel %vm1914, %v1692, 0
      %2422 = vmatprep.subr.bf16.mxu0 0
      %2423 = vmatpush1.bf16.msra.mxu0 0
      %2424 = vmatprep.subr.bf16.mxu0 0
      %2425 = vmatpush1.bf16.msra.mxu0 0
      %2426 = vmatprep.subr.bf16.mxu0 0
      %2427 = vmatpush1.bf16.msra.mxu0 0
      %2428 = vmatprep.subr.bf16.mxu0 0
      %2429 = vmatpush1.bf16.msra.mxu0 0
      %2430 = vmatprep.subr.bf16.mxu0 0
      %2431 = vmatpush1.bf16.msra.mxu0 0
      %2432 = vmatprep.subr.bf16.mxu0 0
      %2433 = vmatpush1.bf16.msra.mxu0 0
      %2434 = vmatprep.subr.bf16.mxu0 0
      %2435 = vmatpush1.bf16.msra.mxu0 0
      %2436 = vmatprep.subr.bf16.mxu0 0
      %2437 = vmatpush1.bf16.msra.mxu0 %v2420
      %2438 = vmatprep.subr.bf16.mxu0 0
      %2439 = vmatpush2.bf16.msra.mxu0 0
      %2440 = vmatprep.subr.bf16.mxu0 0
      %2441 = vmatpush2.bf16.msra.mxu0 0
      %2442 = vmatprep.subr.bf16.mxu0 0
      %2443 = vmatpush2.bf16.msra.mxu0 0
      %2444 = vmatprep.subr.bf16.mxu0 0
      %2445 = vmatpush2.bf16.msra.mxu0 0
      %2446 = vmatprep.subr.bf16.mxu0 0
      %2447 = vmatpush2.bf16.msra.mxu0 0
      %2448 = vmatprep.subr.bf16.mxu0 0
      %2449 = vmatpush2.bf16.msra.mxu0 0
      %2450 = vmatprep.subr.bf16.mxu0 0
      %2451 = vmatpush2.bf16.msra.mxu0 0
      %2452 = vmatprep.subr.bf16.mxu0 0
      %2453 = vmatpush2.bf16.msra.mxu0 0
      %2454 = vmatprep.mubr.bf16.mxu0 0
      %2455 = vmatmul.mubr.bf16.gmra.mxu0 %v2366
      %v2456 = vpop.f32.mrf.mxu0
      %v2457 = vadd.f32 0.0, %v2456
      %v2458 = vpop.f32.mrf.mxu0
      %v2459 = vpop.f32.mrf.mxu0
      %v2460 = vadd.f32 0.0, %v2459
      %v2461 = vpop.f32.mrf.mxu0
      %2462 = vmatprep.mubr.bf16.mxu0 0
      %2463 = vmatmul.mubr.bf16.gmra.mxu0 %v2369
      %v2464 = vpop.f32.mrf.mxu0
      %v2465 = vadd.f32 0.0, %v2464
      %v2466 = vpop.f32.mrf.mxu0
      %v2467 = vpop.f32.mrf.mxu0
      %v2468 = vadd.f32 0.0, %v2467
      %v2469 = vpop.f32.mrf.mxu0
      %2470 = vmatprep.mubr.bf16.mxu0 0
      %2471 = vmatmul.mubr.bf16.gmra.mxu0 %v2372
      %v2472 = vpop.f32.mrf.mxu0
      %v2473 = vadd.f32 0.0, %v2472
      %v2474 = vpop.f32.mrf.mxu0
      %v2475 = vpop.f32.mrf.mxu0
      %v2476 = vadd.f32 0.0, %v2475
      %v2477 = vpop.f32.mrf.mxu0
      %2478 = vmatprep.mubr.bf16.mxu0 0
      %2479 = vmatmul.mubr.bf16.gmra.mxu0 %v2375
      %v2480 = vpop.f32.mrf.mxu0
      %v2481 = vadd.f32 0.0, %v2480
      %v2482 = vpop.f32.mrf.mxu0
      %v2483 = vpop.f32.mrf.mxu0
      %v2484 = vadd.f32 0.0, %v2483
      %v2485 = vpop.f32.mrf.mxu0
      %2486 = vmatprep.mubr.bf16.mxu0 0
      %2487 = vmatmul.mubr.bf16.gmra.mxu0 %v2378
      %v2488 = vpop.f32.mrf.mxu0
      %v2489 = vadd.f32 0.0, %v2488
      %v2490 = vpop.f32.mrf.mxu0
      %v2491 = vpop.f32.mrf.mxu0
      %v2492 = vadd.f32 0.0, %v2491
      %v2493 = vpop.f32.mrf.mxu0
      %2494 = vmatprep.mubr.bf16.mxu0 0
      %2495 = vmatmul.mubr.bf16.gmra.mxu0 %v2381
      %v2496 = vpop.f32.mrf.mxu0
      %v2497 = vadd.f32 0.0, %v2496
      %v2498 = vpop.f32.mrf.mxu0
      %v2499 = vpop.f32.mrf.mxu0
      %v2500 = vadd.f32 0.0, %v2499
      %v2501 = vpop.f32.mrf.mxu0
      %2502 = vmatprep.mubr.bf16.mxu0 0
      %2503 = vmatmul.mubr.bf16.gmra.mxu0 %v2384
      %v2504 = vpop.f32.mrf.mxu0
      %v2505 = vadd.f32 0.0, %v2504
      %v2506 = vpop.f32.mrf.mxu0
      %v2507 = vpop.f32.mrf.mxu0
      %v2508 = vadd.f32 0.0, %v2507
      %v2509 = vpop.f32.mrf.mxu0
      %2510 = vmatprep.mubr.bf16.mxu0 0
      %2511 = vmatmul.mubr.bf16.gmra.mxu0 %v2387
      %v2512 = vpop.f32.mrf.mxu0
      %v2513 = vadd.f32 0.0, %v2512
      %v2514 = vpop.f32.mrf.mxu0
      %v2515 = vpop.f32.mrf.mxu0
      %v2516 = vadd.f32 0.0, %v2515
      %v2517 = vpop.f32.mrf.mxu0
      %2518 = vmatprep.mubr.bf16.mxu0 0
      %2519 = vmatmul.mubr.bf16.gmra.mxu0 %v2390
      %v2520 = vpop.f32.mrf.mxu0
      %v2521 = vadd.f32 0.0, %v2520
      %v2522 = vpop.f32.mrf.mxu0
      %v2523 = vpop.f32.mrf.mxu0
      %v2524 = vadd.f32 0.0, %v2523
      %v2525 = vpop.f32.mrf.mxu0
      %2526 = vmatprep.mubr.bf16.mxu0 0
      %2527 = vmatmul.mubr.bf16.gmra.mxu0 %v2393
      %v2528 = vpop.f32.mrf.mxu0
      %v2529 = vadd.f32 0.0, %v2528
      %v2530 = vpop.f32.mrf.mxu0
      %v2531 = vpop.f32.mrf.mxu0
      %v2532 = vadd.f32 0.0, %v2531
      %v2533 = vpop.f32.mrf.mxu0
      %2534 = vmatprep.mubr.bf16.mxu0 0
      %2535 = vmatmul.mubr.bf16.gmra.mxu0 %v2396
      %v2536 = vpop.f32.mrf.mxu0
      %v2537 = vadd.f32 0.0, %v2536
      %v2538 = vpop.f32.mrf.mxu0
      %v2539 = vpop.f32.mrf.mxu0
      %v2540 = vadd.f32 0.0, %v2539
      %v2541 = vpop.f32.mrf.mxu0
      %2542 = vmatprep.mubr.bf16.mxu0 0
      %2543 = vmatmul.mubr.bf16.gmra.mxu0 %v2399
      %v2544 = vpop.f32.mrf.mxu0
      %v2545 = vadd.f32 0.0, %v2544
      %v2546 = vpop.f32.mrf.mxu0
      %v2547 = vpop.f32.mrf.mxu0
      %v2548 = vadd.f32 0.0, %v2547
      %v2549 = vpop.f32.mrf.mxu0
      %2550 = vmatprep.mubr.bf16.mxu0 0
      %2551 = vmatmul.mubr.bf16.gmra.mxu0 %v2402
      %v2552 = vpop.f32.mrf.mxu0
      %v2553 = vadd.f32 0.0, %v2552
      %v2554 = vpop.f32.mrf.mxu0
      %v2555 = vpop.f32.mrf.mxu0
      %v2556 = vadd.f32 0.0, %v2555
      %v2557 = vpop.f32.mrf.mxu0
      %2558 = vmatprep.mubr.bf16.mxu0 0
      %2559 = vmatmul.mubr.bf16.gmra.mxu0 %v2405
      %v2560 = vpop.f32.mrf.mxu0
      %v2561 = vadd.f32 0.0, %v2560
      %v2562 = vpop.f32.mrf.mxu0
      %v2563 = vpop.f32.mrf.mxu0
      %v2564 = vadd.f32 0.0, %v2563
      %v2565 = vpop.f32.mrf.mxu0
      %2566 = vmatprep.mubr.bf16.mxu0 0
      %2567 = vmatmul.mubr.bf16.gmra.mxu0 %v2408
      %v2568 = vpop.f32.mrf.mxu0
      %v2569 = vadd.f32 0.0, %v2568
      %v2570 = vpop.f32.mrf.mxu0
      %v2571 = vpop.f32.mrf.mxu0
      %v2572 = vadd.f32 0.0, %v2571
      %v2573 = vpop.f32.mrf.mxu0
      %2574 = vmatprep.mubr.bf16.mxu0 0
      %2575 = vmatmul.mubr.bf16.gmra.mxu0 %v2411
      %v2576 = vpop.f32.mrf.mxu0
      %v2577 = vadd.f32 0.0, %v2576
      %v2578 = vpop.f32.mrf.mxu0
      %v2579 = vpop.f32.mrf.mxu0
      %v2580 = vadd.f32 0.0, %v2579
      %v2581 = vpop.f32.mrf.mxu0
      %2582 = vmatprep.mubr.bf16.mxu0 0
      %2583 = vmatmul.mubr.bf16.gmra.mxu0 %v2414
      %v2584 = vpop.f32.mrf.mxu0
      %v2585 = vadd.f32 0.0, %v2584
      %v2586 = vpop.f32.mrf.mxu0
      %v2587 = vpop.f32.mrf.mxu0
      %v2588 = vadd.f32 0.0, %v2587
      %v2589 = vpop.f32.mrf.mxu0
      %2590 = vmatprep.mubr.bf16.mxu0 0
      %2591 = vmatmul.mubr.bf16.gmra.mxu0 %v2417
      %v2592 = vpop.f32.mrf.mxu0
      %v2593 = vadd.f32 0.0, %v2592
      %v2594 = vpop.f32.mrf.mxu0
      %v2595 = vpop.f32.mrf.mxu0
      %v2596 = vadd.f32 0.0, %v2595
      %v2597 = vpop.f32.mrf.mxu0
      %2598 = vdwg.mxu0
      %v2599 = vadd.f32 %v2169, %v2457
      %v2600 = vadd.f32 %v2172, %v2460
      %v2601 = vadd.f32 %v2177, %v2465
      %v2602 = vadd.f32 %v2180, %v2468
      %v2603 = vadd.f32 %v2185, %v2473
      %v2604 = vadd.f32 %v2188, %v2476
      %v2605 = vadd.f32 %v2193, %v2481
      %v2606 = vadd.f32 %v2196, %v2484
      %v2607 = vadd.f32 %v2201, %v2489
      %v2608 = vadd.f32 %v2204, %v2492
      %v2609 = vadd.f32 %v2209, %v2497
      %v2610 = vadd.f32 %v2212, %v2500
      %v2611 = vadd.f32 %v2217, %v2505
      %v2612 = vadd.f32 %v2220, %v2508
      %v2613 = vadd.f32 %v2225, %v2513
      %v2614 = vadd.f32 %v2228, %v2516
      %v2615 = vadd.f32 %v2233, %v2521
      %v2616 = vadd.f32 %v2236, %v2524
      %v2617 = vadd.f32 %v2241, %v2529
      %v2618 = vadd.f32 %v2244, %v2532
      %v2619 = vadd.f32 %v2249, %v2537
      %v2620 = vadd.f32 %v2252, %v2540
      %v2621 = vadd.f32 %v2257, %v2545
      %v2622 = vadd.f32 %v2260, %v2548
      %v2623 = vadd.f32 %v2265, %v2553
      %v2624 = vadd.f32 %v2268, %v2556
      %v2625 = vadd.f32 %v2273, %v2561
      %v2626 = vadd.f32 %v2276, %v2564
      %v2627 = vadd.f32 %v2281, %v2569
      %v2628 = vadd.f32 %v2284, %v2572
      %v2629 = vadd.f32 %v2289, %v2577
      %v2630 = vadd.f32 %v2292, %v2580
      %v2631 = vadd.f32 %v2297, %v2585
      %v2632 = vadd.f32 %v2300, %v2588
      %v2633 = vadd.f32 %v2305, %v2593
      %v2634 = vadd.f32 %v2308, %v2596
      %s2635 = scalar_lea.vmem %s6, 8
      %v2636 = vld [vmem:[%s2635] sm:$0xf]
      %v2637 = vld [vmem:[%s2635 + $0x4] sm:$0x3]
      %v2638 = vpack.c.bf16 %v1687, %v1686
      %v2640 = vrot.slane %v2638, 1
      %v2641 = vsel %vm2329, %v2363, %v2640
      %v2643 = vsel %vm1859, %v2641, 0
      %v2646 = vsel %vm1859, %v2640, 0
      %v2649 = vsel %vm1914, %v2636, 0
      %2651 = vmatprep.subr.bf16.mxu0 0
      %2652 = vmatpush1.bf16.msra.mxu0 0
      %2653 = vmatprep.subr.bf16.mxu0 0
      %2654 = vmatpush1.bf16.msra.mxu0 0
      %2655 = vmatprep.subr.bf16.mxu0 0
      %2656 = vmatpush1.bf16.msra.mxu0 0
      %2657 = vmatprep.subr.bf16.mxu0 0
      %2658 = vmatpush1.bf16.msra.mxu0 0
      %2659 = vmatprep.subr.bf16.mxu0 0
      %2660 = vmatpush1.bf16.msra.mxu0 0
      %2661 = vmatprep.subr.bf16.mxu0 0
      %2662 = vmatpush1.bf16.msra.mxu0 0
      %2663 = vmatprep.subr.bf16.mxu0 0
      %2664 = vmatpush1.bf16.msra.mxu0 0
      %2665 = vmatprep.subr.bf16.mxu0 0
      %2666 = vmatpush1.bf16.msra.mxu0 %v2649
      %2667 = vmatprep.subr.bf16.mxu0 0
      %2668 = vmatpush2.bf16.msra.mxu0 0
      %2669 = vmatprep.subr.bf16.mxu0 0
      %2670 = vmatpush2.bf16.msra.mxu0 0
      %2671 = vmatprep.subr.bf16.mxu0 0
      %2672 = vmatpush2.bf16.msra.mxu0 0
      %2673 = vmatprep.subr.bf16.mxu0 0
      %2674 = vmatpush2.bf16.msra.mxu0 0
      %2675 = vmatprep.subr.bf16.mxu0 0
      %2676 = vmatpush2.bf16.msra.mxu0 0
      %2677 = vmatprep.subr.bf16.mxu0 0
      %2678 = vmatpush2.bf16.msra.mxu0 0
      %2679 = vmatprep.subr.bf16.mxu0 0
      %2680 = vmatpush2.bf16.msra.mxu0 0
      %2681 = vmatprep.subr.bf16.mxu0 0
      %2682 = vmatpush2.bf16.msra.mxu0 0
      %2683 = vmatprep.mubr.bf16.mxu0 0
      %2684 = vmatmul.mubr.bf16.gmra.mxu0 %v2369
      %v2685 = vpop.f32.mrf.mxu0
      %v2686 = vadd.f32 0.0, %v2685
      %v2687 = vpop.f32.mrf.mxu0
      %v2688 = vpop.f32.mrf.mxu0
      %v2689 = vadd.f32 0.0, %v2688
      %v2690 = vpop.f32.mrf.mxu0
      %2691 = vmatprep.mubr.bf16.mxu0 0
      %2692 = vmatmul.mubr.bf16.gmra.mxu0 %v2372
      %v2693 = vpop.f32.mrf.mxu0
      %v2694 = vadd.f32 0.0, %v2693
      %v2695 = vpop.f32.mrf.mxu0
      %v2696 = vpop.f32.mrf.mxu0
      %v2697 = vadd.f32 0.0, %v2696
      %v2698 = vpop.f32.mrf.mxu0
      %2699 = vmatprep.mubr.bf16.mxu0 0
      %2700 = vmatmul.mubr.bf16.gmra.mxu0 %v2375
      %v2701 = vpop.f32.mrf.mxu0
      %v2702 = vadd.f32 0.0, %v2701
      %v2703 = vpop.f32.mrf.mxu0
      %v2704 = vpop.f32.mrf.mxu0
      %v2705 = vadd.f32 0.0, %v2704
      %v2706 = vpop.f32.mrf.mxu0
      %2707 = vmatprep.mubr.bf16.mxu0 0
      %2708 = vmatmul.mubr.bf16.gmra.mxu0 %v2378
      %v2709 = vpop.f32.mrf.mxu0
      %v2710 = vadd.f32 0.0, %v2709
      %v2711 = vpop.f32.mrf.mxu0
      %v2712 = vpop.f32.mrf.mxu0
      %v2713 = vadd.f32 0.0, %v2712
      %v2714 = vpop.f32.mrf.mxu0
      %2715 = vmatprep.mubr.bf16.mxu0 0
      %2716 = vmatmul.mubr.bf16.gmra.mxu0 %v2381
      %v2717 = vpop.f32.mrf.mxu0
      %v2718 = vadd.f32 0.0, %v2717
      %v2719 = vpop.f32.mrf.mxu0
      %v2720 = vpop.f32.mrf.mxu0
      %v2721 = vadd.f32 0.0, %v2720
      %v2722 = vpop.f32.mrf.mxu0
      %2723 = vmatprep.mubr.bf16.mxu0 0
      %2724 = vmatmul.mubr.bf16.gmra.mxu0 %v2384
      %v2725 = vpop.f32.mrf.mxu0
      %v2726 = vadd.f32 0.0, %v2725
      %v2727 = vpop.f32.mrf.mxu0
      %v2728 = vpop.f32.mrf.mxu0
      %v2729 = vadd.f32 0.0, %v2728
      %v2730 = vpop.f32.mrf.mxu0
      %2731 = vmatprep.mubr.bf16.mxu0 0
      %2732 = vmatmul.mubr.bf16.gmra.mxu0 %v2387
      %v2733 = vpop.f32.mrf.mxu0
      %v2734 = vadd.f32 0.0, %v2733
      %v2735 = vpop.f32.mrf.mxu0
      %v2736 = vpop.f32.mrf.mxu0
      %v2737 = vadd.f32 0.0, %v2736
      %v2738 = vpop.f32.mrf.mxu0
      %2739 = vmatprep.mubr.bf16.mxu0 0
      %2740 = vmatmul.mubr.bf16.gmra.mxu0 %v2390
      %v2741 = vpop.f32.mrf.mxu0
      %v2742 = vadd.f32 0.0, %v2741
      %v2743 = vpop.f32.mrf.mxu0
      %v2744 = vpop.f32.mrf.mxu0
      %v2745 = vadd.f32 0.0, %v2744
      %v2746 = vpop.f32.mrf.mxu0
      %2747 = vmatprep.mubr.bf16.mxu0 0
      %2748 = vmatmul.mubr.bf16.gmra.mxu0 %v2393
      %v2749 = vpop.f32.mrf.mxu0
      %v2750 = vadd.f32 0.0, %v2749
      %v2751 = vpop.f32.mrf.mxu0
      %v2752 = vpop.f32.mrf.mxu0
      %v2753 = vadd.f32 0.0, %v2752
      %v2754 = vpop.f32.mrf.mxu0
      %2755 = vmatprep.mubr.bf16.mxu0 0
      %2756 = vmatmul.mubr.bf16.gmra.mxu0 %v2396
      %v2757 = vpop.f32.mrf.mxu0
      %v2758 = vadd.f32 0.0, %v2757
      %v2759 = vpop.f32.mrf.mxu0
      %v2760 = vpop.f32.mrf.mxu0
      %v2761 = vadd.f32 0.0, %v2760
      %v2762 = vpop.f32.mrf.mxu0
      %2763 = vmatprep.mubr.bf16.mxu0 0
      %2764 = vmatmul.mubr.bf16.gmra.mxu0 %v2399
      %v2765 = vpop.f32.mrf.mxu0
      %v2766 = vadd.f32 0.0, %v2765
      %v2767 = vpop.f32.mrf.mxu0
      %v2768 = vpop.f32.mrf.mxu0
      %v2769 = vadd.f32 0.0, %v2768
      %v2770 = vpop.f32.mrf.mxu0
      %2771 = vmatprep.mubr.bf16.mxu0 0
      %2772 = vmatmul.mubr.bf16.gmra.mxu0 %v2402
      %v2773 = vpop.f32.mrf.mxu0
      %v2774 = vadd.f32 0.0, %v2773
      %v2775 = vpop.f32.mrf.mxu0
      %v2776 = vpop.f32.mrf.mxu0
      %v2777 = vadd.f32 0.0, %v2776
      %v2778 = vpop.f32.mrf.mxu0
      %2779 = vmatprep.mubr.bf16.mxu0 0
      %2780 = vmatmul.mubr.bf16.gmra.mxu0 %v2405
      %v2781 = vpop.f32.mrf.mxu0
      %v2782 = vadd.f32 0.0, %v2781
      %v2783 = vpop.f32.mrf.mxu0
      %v2784 = vpop.f32.mrf.mxu0
      %v2785 = vadd.f32 0.0, %v2784
      %v2786 = vpop.f32.mrf.mxu0
      %2787 = vmatprep.mubr.bf16.mxu0 0
      %2788 = vmatmul.mubr.bf16.gmra.mxu0 %v2408
      %v2789 = vpop.f32.mrf.mxu0
      %v2790 = vadd.f32 0.0, %v2789
      %v2791 = vpop.f32.mrf.mxu0
      %v2792 = vpop.f32.mrf.mxu0
      %v2793 = vadd.f32 0.0, %v2792
      %v2794 = vpop.f32.mrf.mxu0
      %2795 = vmatprep.mubr.bf16.mxu0 0
      %2796 = vmatmul.mubr.bf16.gmra.mxu0 %v2411
      %v2797 = vpop.f32.mrf.mxu0
      %v2798 = vadd.f32 0.0, %v2797
      %v2799 = vpop.f32.mrf.mxu0
      %v2800 = vpop.f32.mrf.mxu0
      %v2801 = vadd.f32 0.0, %v2800
      %v2802 = vpop.f32.mrf.mxu0
      %2803 = vmatprep.mubr.bf16.mxu0 0
      %2804 = vmatmul.mubr.bf16.gmra.mxu0 %v2414
      %v2805 = vpop.f32.mrf.mxu0
      %v2806 = vadd.f32 0.0, %v2805
      %v2807 = vpop.f32.mrf.mxu0
      %v2808 = vpop.f32.mrf.mxu0
      %v2809 = vadd.f32 0.0, %v2808
      %v2810 = vpop.f32.mrf.mxu0
      %2811 = vmatprep.mubr.bf16.mxu0 0
      %2812 = vmatmul.mubr.bf16.gmra.mxu0 %v2643
      %v2813 = vpop.f32.mrf.mxu0
      %v2814 = vadd.f32 0.0, %v2813
      %v2815 = vpop.f32.mrf.mxu0
      %v2816 = vpop.f32.mrf.mxu0
      %v2817 = vadd.f32 0.0, %v2816
      %v2818 = vpop.f32.mrf.mxu0
      %2819 = vmatprep.mubr.bf16.mxu0 0
      %2820 = vmatmul.mubr.bf16.gmra.mxu0 %v2646
      %v2821 = vpop.f32.mrf.mxu0
      %v2822 = vadd.f32 0.0, %v2821
      %v2823 = vpop.f32.mrf.mxu0
      %v2824 = vpop.f32.mrf.mxu0
      %v2825 = vadd.f32 0.0, %v2824
      %v2826 = vpop.f32.mrf.mxu0
      %2827 = vdwg.mxu0
      %v2828 = vadd.f32 %v2599, %v2686
      %v2829 = vadd.f32 %v2600, %v2689
      %v2830 = vadd.f32 %v2601, %v2694
      %v2831 = vadd.f32 %v2602, %v2697
      %v2832 = vadd.f32 %v2603, %v2702
      %v2833 = vadd.f32 %v2604, %v2705
      %v2834 = vadd.f32 %v2605, %v2710
      %v2835 = vadd.f32 %v2606, %v2713
      %v2836 = vadd.f32 %v2607, %v2718
      %v2837 = vadd.f32 %v2608, %v2721
      %v2838 = vadd.f32 %v2609, %v2726
      %v2839 = vadd.f32 %v2610, %v2729
      %v2840 = vadd.f32 %v2611, %v2734
      %v2841 = vadd.f32 %v2612, %v2737
      %v2842 = vadd.f32 %v2613, %v2742
      %v2843 = vadd.f32 %v2614, %v2745
      %v2844 = vadd.f32 %v2615, %v2750
      %v2845 = vadd.f32 %v2616, %v2753
      %v2846 = vadd.f32 %v2617, %v2758
      %v2847 = vadd.f32 %v2618, %v2761
      %v2848 = vadd.f32 %v2619, %v2766
      %v2849 = vadd.f32 %v2620, %v2769
      %v2850 = vadd.f32 %v2621, %v2774
      %v2851 = vadd.f32 %v2622, %v2777
      %v2852 = vadd.f32 %v2623, %v2782
      %v2853 = vadd.f32 %v2624, %v2785
      %v2854 = vadd.f32 %v2625, %v2790
      %v2855 = vadd.f32 %v2626, %v2793
      %v2856 = vadd.f32 %v2627, %v2798
      %v2857 = vadd.f32 %v2628, %v2801
      %v2858 = vadd.f32 %v2629, %v2806
      %v2859 = vadd.f32 %v2630, %v2809
      %v2860 = vadd.f32 %v2631, %v2814
      %v2861 = vadd.f32 %v2632, %v2817
      %v2862 = vadd.f32 %v2633, %v2822
      %v2863 = vadd.f32 %v2634, %v2825
      %v2864 = vpack.c.bf16 %v1688, %v1688
      %vm2865 = vsmask.f32 6400
      %v2866 = vrot.slane %v1724, 1
      %v2867 = vrot.slane %v1720, 2
      %v2868 = vor.u32 %v2866, %v2867
      %v2869 = vrot.slane %v1732, 1
      %v2870 = vrot.slane %v1728, 2
      %v2871 = vor.u32 %v2869, %v2870
      %v2872 = vsel %vm2865, %v2868, %v2871
      %v2873 = vrot.slane %v1740, 1
      %v2874 = vrot.slane %v1736, 2
      %v2875 = vor.u32 %v2873, %v2874
      %v2876 = vsel %vm2865, %v2871, %v2875
      %v2877 = vrot.slane %v1748, 1
      %v2878 = vrot.slane %v1744, 2
      %v2879 = vor.u32 %v2877, %v2878
      %v2880 = vsel %vm2865, %v2875, %v2879
      %v2881 = vrot.slane %v1756, 1
      %v2882 = vrot.slane %v1752, 2
      %v2883 = vor.u32 %v2881, %v2882
      %v2884 = vsel %vm2865, %v2879, %v2883
      %v2885 = vrot.slane %v1764, 1
      %v2886 = vrot.slane %v1760, 2
      %v2887 = vor.u32 %v2885, %v2886
      %v2888 = vsel %vm2865, %v2883, %v2887
      %v2889 = vrot.slane %v1772, 1
      %v2890 = vrot.slane %v1768, 2
      %v2891 = vor.u32 %v2889, %v2890
      %v2892 = vsel %vm2865, %v2887, %v2891
      %v2893 = vrot.slane %v1780, 1
      %v2894 = vrot.slane %v1776, 2
      %v2895 = vor.u32 %v2893, %v2894
      %v2896 = vsel %vm2865, %v2891, %v2895
      %v2897 = vrot.slane %v1788, 1
      %v2898 = vrot.slane %v1784, 2
      %v2899 = vor.u32 %v2897, %v2898
      %v2900 = vsel %vm2865, %v2895, %v2899
      %v2901 = vrot.slane %v1796, 1
      %v2902 = vrot.slane %v1792, 2
      %v2903 = vor.u32 %v2901, %v2902
      %v2904 = vsel %vm2865, %v2899, %v2903
      %v2905 = vrot.slane %v1804, 1
      %v2906 = vrot.slane %v1800, 2
      %v2907 = vor.u32 %v2905, %v2906
      %v2908 = vsel %vm2865, %v2903, %v2907
      %v2909 = vrot.slane %v1812, 1
      %v2910 = vrot.slane %v1808, 2
      %v2911 = vor.u32 %v2909, %v2910
      %v2912 = vsel %vm2865, %v2907, %v2911
      %v2913 = vrot.slane %v1820, 1
      %v2914 = vrot.slane %v1816, 2
      %v2915 = vor.u32 %v2913, %v2914
      %v2916 = vsel %vm2865, %v2911, %v2915
      %v2917 = vrot.slane %v1828, 1
      %v2918 = vrot.slane %v1824, 2
      %v2919 = vor.u32 %v2917, %v2918
      %v2920 = vsel %vm2865, %v2915, %v2919
      %v2921 = vrot.slane %v1836, 1
      %v2922 = vrot.slane %v1832, 2
      %v2923 = vor.u32 %v2921, %v2922
      %v2924 = vsel %vm2865, %v2919, %v2923
      %v2925 = vrot.slane %v1844, 1
      %v2926 = vrot.slane %v1840, 2
      %v2927 = vor.u32 %v2925, %v2926
      %v2928 = vsel %vm2865, %v2923, %v2927
      %v2929 = vrot.slane %v1852, 1
      %v2930 = vrot.slane %v1848, 2
      %v2931 = vor.u32 %v2929, %v2930
      %v2932 = vsel %vm2865, %v2927, %v2931
      %v2934 = vshrl.u32 %v2638, 16
      %v2936 = vrot.slane %v2934, 1
      %v2937 = vshll.u32 %v2638, 16
      %v2939 = vrot.slane %v2937, 2
      %v2940 = vor.u32 %v2936, %v2939
      %v2941 = vsel %vm2865, %v2931, %v2940
      %v2943 = vshll.u32 %v2864, 16
      %v2945 = vrot.slane %v2943, 2
      %v2946 = vsel %vm2865, %v2940, %v2945
      %v2948 = vunpack.c.l.b16 %v2636
      %v2949 = vpack.c.b16 %v2948, %v2948
      %v2950 = vrot.slane %v2949, 2
      %v2952 = vsel %vm1859, %v2872, 0
      %v2955 = vsel %vm1859, %v2876, 0
      %v2958 = vsel %vm1859, %v2880, 0
      %v2961 = vsel %vm1859, %v2884, 0
      %v2964 = vsel %vm1859, %v2888, 0
      %v2967 = vsel %vm1859, %v2892, 0
      %v2970 = vsel %vm1859, %v2896, 0
      %v2973 = vsel %vm1859, %v2900, 0
      %v2976 = vsel %vm1859, %v2904, 0
      %v2979 = vsel %vm1859, %v2908, 0
      %v2982 = vsel %vm1859, %v2912, 0
      %v2985 = vsel %vm1859, %v2916, 0
      %v2988 = vsel %vm1859, %v2920, 0
      %v2991 = vsel %vm1859, %v2924, 0
      %v2994 = vsel %vm1859, %v2928, 0
      %v2997 = vsel %vm1859, %v2932, 0
      %v3000 = vsel %vm1859, %v2941, 0
      %v3003 = vsel %vm1859, %v2946, 0
      %v3006 = vsel %vm1914, %v2950, 0
      %3008 = vmatprep.subr.bf16.mxu0 0
      %3009 = vmatpush1.bf16.msra.mxu0 0
      %3010 = vmatprep.subr.bf16.mxu0 0
      %3011 = vmatpush1.bf16.msra.mxu0 0
      %3012 = vmatprep.subr.bf16.mxu0 0
      %3013 = vmatpush1.bf16.msra.mxu0 0
      %3014 = vmatprep.subr.bf16.mxu0 0
      %3015 = vmatpush1.bf16.msra.mxu0 0
      %3016 = vmatprep.subr.bf16.mxu0 0
      %3017 = vmatpush1.bf16.msra.mxu0 0
      %3018 = vmatprep.subr.bf16.mxu0 0
      %3019 = vmatpush1.bf16.msra.mxu0 0
      %3020 = vmatprep.subr.bf16.mxu0 0
      %3021 = vmatpush1.bf16.msra.mxu0 0
      %3022 = vmatprep.subr.bf16.mxu0 0
      %3023 = vmatpush1.bf16.msra.mxu0 %v3006
      %3024 = vmatprep.subr.bf16.mxu0 0
      %3025 = vmatpush2.bf16.msra.mxu0 0
      %3026 = vmatprep.subr.bf16.mxu0 0
      %3027 = vmatpush2.bf16.msra.mxu0 0
      %3028 = vmatprep.subr.bf16.mxu0 0
      %3029 = vmatpush2.bf16.msra.mxu0 0
      %3030 = vmatprep.subr.bf16.mxu0 0
      %3031 = vmatpush2.bf16.msra.mxu0 0
      %3032 = vmatprep.subr.bf16.mxu0 0
      %3033 = vmatpush2.bf16.msra.mxu0 0
      %3034 = vmatprep.subr.bf16.mxu0 0
      %3035 = vmatpush2.bf16.msra.mxu0 0
      %3036 = vmatprep.subr.bf16.mxu0 0
      %3037 = vmatpush2.bf16.msra.mxu0 0
      %3038 = vmatprep.subr.bf16.mxu0 0
      %3039 = vmatpush2.bf16.msra.mxu0 0
      %3040 = vmatprep.mubr.bf16.mxu0 0
      %3041 = vmatmul.mubr.bf16.gmra.mxu0 %v2952
      %v3042 = vpop.f32.mrf.mxu0
      %v3043 = vadd.f32 0.0, %v3042
      %v3044 = vpop.f32.mrf.mxu0
      %v3045 = vpop.f32.mrf.mxu0
      %v3046 = vadd.f32 0.0, %v3045
      %v3047 = vpop.f32.mrf.mxu0
      %3048 = vmatprep.mubr.bf16.mxu0 0
      %3049 = vmatmul.mubr.bf16.gmra.mxu0 %v2955
      %v3050 = vpop.f32.mrf.mxu0
      %v3051 = vadd.f32 0.0, %v3050
      %v3052 = vpop.f32.mrf.mxu0
      %v3053 = vpop.f32.mrf.mxu0
      %v3054 = vadd.f32 0.0, %v3053
      %v3055 = vpop.f32.mrf.mxu0
      %3056 = vmatprep.mubr.bf16.mxu0 0
      %3057 = vmatmul.mubr.bf16.gmra.mxu0 %v2958
      %v3058 = vpop.f32.mrf.mxu0
      %v3059 = vadd.f32 0.0, %v3058
      %v3060 = vpop.f32.mrf.mxu0
      %v3061 = vpop.f32.mrf.mxu0
      %v3062 = vadd.f32 0.0, %v3061
      %v3063 = vpop.f32.mrf.mxu0
      %3064 = vmatprep.mubr.bf16.mxu0 0
      %3065 = vmatmul.mubr.bf16.gmra.mxu0 %v2961
      %v3066 = vpop.f32.mrf.mxu0
      %v3067 = vadd.f32 0.0, %v3066
      %v3068 = vpop.f32.mrf.mxu0
      %v3069 = vpop.f32.mrf.mxu0
      %v3070 = vadd.f32 0.0, %v3069
      %v3071 = vpop.f32.mrf.mxu0
      %3072 = vmatprep.mubr.bf16.mxu0 0
      %3073 = vmatmul.mubr.bf16.gmra.mxu0 %v2964
      %v3074 = vpop.f32.mrf.mxu0
      %v3075 = vadd.f32 0.0, %v3074
      %v3076 = vpop.f32.mrf.mxu0
      %v3077 = vpop.f32.mrf.mxu0
      %v3078 = vadd.f32 0.0, %v3077
      %v3079 = vpop.f32.mrf.mxu0
      %3080 = vmatprep.mubr.bf16.mxu0 0
      %3081 = vmatmul.mubr.bf16.gmra.mxu0 %v2967
      %v3082 = vpop.f32.mrf.mxu0
      %v3083 = vadd.f32 0.0, %v3082
      %v3084 = vpop.f32.mrf.mxu0
      %v3085 = vpop.f32.mrf.mxu0
      %v3086 = vadd.f32 0.0, %v3085
      %v3087 = vpop.f32.mrf.mxu0
      %3088 = vmatprep.mubr.bf16.mxu0 0
      %3089 = vmatmul.mubr.bf16.gmra.mxu0 %v2970
      %v3090 = vpop.f32.mrf.mxu0
      %v3091 = vadd.f32 0.0, %v3090
      %v3092 = vpop.f32.mrf.mxu0
      %v3093 = vpop.f32.mrf.mxu0
      %v3094 = vadd.f32 0.0, %v3093
      %v3095 = vpop.f32.mrf.mxu0
      %3096 = vmatprep.mubr.bf16.mxu0 0
      %3097 = vmatmul.mubr.bf16.gmra.mxu0 %v2973
      %v3098 = vpop.f32.mrf.mxu0
      %v3099 = vadd.f32 0.0, %v3098
      %v3100 = vpop.f32.mrf.mxu0
      %v3101 = vpop.f32.mrf.mxu0
      %v3102 = vadd.f32 0.0, %v3101
      %v3103 = vpop.f32.mrf.mxu0
      %3104 = vmatprep.mubr.bf16.mxu0 0
      %3105 = vmatmul.mubr.bf16.gmra.mxu0 %v2976
      %v3106 = vpop.f32.mrf.mxu0
      %v3107 = vadd.f32 0.0, %v3106
      %v3108 = vpop.f32.mrf.mxu0
      %v3109 = vpop.f32.mrf.mxu0
      %v3110 = vadd.f32 0.0, %v3109
      %v3111 = vpop.f32.mrf.mxu0
      %3112 = vmatprep.mubr.bf16.mxu0 0
      %3113 = vmatmul.mubr.bf16.gmra.mxu0 %v2979
      %v3114 = vpop.f32.mrf.mxu0
      %v3115 = vadd.f32 0.0, %v3114
      %v3116 = vpop.f32.mrf.mxu0
      %v3117 = vpop.f32.mrf.mxu0
      %v3118 = vadd.f32 0.0, %v3117
      %v3119 = vpop.f32.mrf.mxu0
      %3120 = vmatprep.mubr.bf16.mxu0 0
      %3121 = vmatmul.mubr.bf16.gmra.mxu0 %v2982
      %v3122 = vpop.f32.mrf.mxu0
      %v3123 = vadd.f32 0.0, %v3122
      %v3124 = vpop.f32.mrf.mxu0
      %v3125 = vpop.f32.mrf.mxu0
      %v3126 = vadd.f32 0.0, %v3125
      %v3127 = vpop.f32.mrf.mxu0
      %3128 = vmatprep.mubr.bf16.mxu0 0
      %3129 = vmatmul.mubr.bf16.gmra.mxu0 %v2985
      %v3130 = vpop.f32.mrf.mxu0
      %v3131 = vadd.f32 0.0, %v3130
      %v3132 = vpop.f32.mrf.mxu0
      %v3133 = vpop.f32.mrf.mxu0
      %v3134 = vadd.f32 0.0, %v3133
      %v3135 = vpop.f32.mrf.mxu0
      %3136 = vmatprep.mubr.bf16.mxu0 0
      %3137 = vmatmul.mubr.bf16.gmra.mxu0 %v2988
      %v3138 = vpop.f32.mrf.mxu0
      %v3139 = vadd.f32 0.0, %v3138
      %v3140 = vpop.f32.mrf.mxu0
      %v3141 = vpop.f32.mrf.mxu0
      %v3142 = vadd.f32 0.0, %v3141
      %v3143 = vpop.f32.mrf.mxu0
      %3144 = vmatprep.mubr.bf16.mxu0 0
      %3145 = vmatmul.mubr.bf16.gmra.mxu0 %v2991
      %v3146 = vpop.f32.mrf.mxu0
      %v3147 = vadd.f32 0.0, %v3146
      %v3148 = vpop.f32.mrf.mxu0
      %v3149 = vpop.f32.mrf.mxu0
      %v3150 = vadd.f32 0.0, %v3149
      %v3151 = vpop.f32.mrf.mxu0
      %3152 = vmatprep.mubr.bf16.mxu0 0
      %3153 = vmatmul.mubr.bf16.gmra.mxu0 %v2994
      %v3154 = vpop.f32.mrf.mxu0
      %v3155 = vadd.f32 0.0, %v3154
      %v3156 = vpop.f32.mrf.mxu0
      %v3157 = vpop.f32.mrf.mxu0
      %v3158 = vadd.f32 0.0, %v3157
      %v3159 = vpop.f32.mrf.mxu0
      %3160 = vmatprep.mubr.bf16.mxu0 0
      %3161 = vmatmul.mubr.bf16.gmra.mxu0 %v2997
      %v3162 = vpop.f32.mrf.mxu0
      %v3163 = vadd.f32 0.0, %v3162
      %v3164 = vpop.f32.mrf.mxu0
      %v3165 = vpop.f32.mrf.mxu0
      %v3166 = vadd.f32 0.0, %v3165
      %v3167 = vpop.f32.mrf.mxu0
      %3168 = vmatprep.mubr.bf16.mxu0 0
      %3169 = vmatmul.mubr.bf16.gmra.mxu0 %v3000
      %v3170 = vpop.f32.mrf.mxu0
      %v3171 = vadd.f32 0.0, %v3170
      %v3172 = vpop.f32.mrf.mxu0
      %v3173 = vpop.f32.mrf.mxu0
      %v3174 = vadd.f32 0.0, %v3173
      %v3175 = vpop.f32.mrf.mxu0
      %3176 = vmatprep.mubr.bf16.mxu0 0
      %3177 = vmatmul.mubr.bf16.gmra.mxu0 %v3003
      %v3178 = vpop.f32.mrf.mxu0
      %v3179 = vadd.f32 0.0, %v3178
      %v3180 = vpop.f32.mrf.mxu0
      %v3181 = vpop.f32.mrf.mxu0
      %v3182 = vadd.f32 0.0, %v3181
      %v3183 = vpop.f32.mrf.mxu0
      %3184 = vdwg.mxu0
      %v3185 = vadd.f32 %v2828, %v3043
      %v3186 = vadd.f32 %v2829, %v3046
      %v3187 = vadd.f32 %v2830, %v3051
      %v3188 = vadd.f32 %v2831, %v3054
      %v3189 = vadd.f32 %v2832, %v3059
      %v3190 = vadd.f32 %v2833, %v3062
      %v3191 = vadd.f32 %v2834, %v3067
      %v3192 = vadd.f32 %v2835, %v3070
      %v3193 = vadd.f32 %v2836, %v3075
      %v3194 = vadd.f32 %v2837, %v3078
      %v3195 = vadd.f32 %v2838, %v3083
      %v3196 = vadd.f32 %v2839, %v3086
      %v3197 = vadd.f32 %v2840, %v3091
      %v3198 = vadd.f32 %v2841, %v3094
      %v3199 = vadd.f32 %v2842, %v3099
      %v3200 = vadd.f32 %v2843, %v3102
      %v3201 = vadd.f32 %v2844, %v3107
      %v3202 = vadd.f32 %v2845, %v3110
      %v3203 = vadd.f32 %v2846, %v3115
      %v3204 = vadd.f32 %v2847, %v3118
      %v3205 = vadd.f32 %v2848, %v3123
      %v3206 = vadd.f32 %v2849, %v3126
      %v3207 = vadd.f32 %v2850, %v3131
      %v3208 = vadd.f32 %v2851, %v3134
      %v3209 = vadd.f32 %v2852, %v3139
      %v3210 = vadd.f32 %v2853, %v3142
      %v3211 = vadd.f32 %v2854, %v3147
      %v3212 = vadd.f32 %v2855, %v3150
      %v3213 = vadd.f32 %v2856, %v3155
      %v3214 = vadd.f32 %v2857, %v3158
      %v3215 = vadd.f32 %v2858, %v3163
      %v3216 = vadd.f32 %v2859, %v3166
      %v3217 = vadd.f32 %v2860, %v3171
      %v3218 = vadd.f32 %v2861, %v3174
      %v3219 = vadd.f32 %v2862, %v3179
      %v3220 = vadd.f32 %v2863, %v3182
      %vm3222 = vcmask 1045504
      %v3223 = vrot.slane %v1694, 2
      %v3224 = vrot.slane %v1695, 2
      %v3225 = vsel %vm3222, %v3223, %v3224
      %v3226 = vrot.slane %v1696, 2
      %v3227 = vsel %vm3222, %v3224, %v3226
      %v3228 = vrot.slane %v1697, 2
      %v3229 = vsel %vm3222, %v3226, %v3228
      %v3230 = vrot.slane %v1698, 2
      %v3231 = vsel %vm3222, %v3228, %v3230
      %v3232 = vrot.slane %v1699, 2
      %v3233 = vsel %vm3222, %v3230, %v3232
      %v3234 = vrot.slane %v1700, 2
      %v3235 = vsel %vm3222, %v3232, %v3234
      %v3236 = vrot.slane %v1701, 2
      %v3237 = vsel %vm3222, %v3234, %v3236
      %v3238 = vrot.slane %v1702, 2
      %v3239 = vsel %vm3222, %v3236, %v3238
      %v3240 = vrot.slane %v1703, 2
      %v3241 = vsel %vm3222, %v3238, %v3240
      %v3242 = vrot.slane %v1704, 2
      %v3243 = vsel %vm3222, %v3240, %v3242
      %v3244 = vrot.slane %v1705, 2
      %v3245 = vsel %vm3222, %v3242, %v3244
      %v3246 = vrot.slane %v1706, 2
      %v3247 = vsel %vm3222, %v3244, %v3246
      %v3248 = vrot.slane %v1707, 2
      %v3249 = vsel %vm3222, %v3246, %v3248
      %v3250 = vrot.slane %v1708, 2
      %v3251 = vsel %vm3222, %v3248, %v3250
      %v3252 = vrot.slane %v1709, 2
      %v3253 = vsel %vm3222, %v3250, %v3252
      %v3254 = vrot.slane %v1710, 2
      %v3255 = vsel %vm3222, %v3252, %v3254
      %v3256 = vrot.slane %v2638, 2
      %v3257 = vsel %vm3222, %v3254, %v3256
      %v3258 = vrot.slane %v2864, 2
      %v3259 = vsel %vm3222, %v3256, %v3258
      %v3261 = vsel %vm1859, %v3225, 0
      %v3264 = vsel %vm1859, %v3227, 0
      %v3267 = vsel %vm1859, %v3229, 0
      %v3270 = vsel %vm1859, %v3231, 0
      %v3273 = vsel %vm1859, %v3233, 0
      %v3276 = vsel %vm1859, %v3235, 0
      %v3279 = vsel %vm1859, %v3237, 0
      %v3282 = vsel %vm1859, %v3239, 0
      %v3285 = vsel %vm1859, %v3241, 0
      %v3288 = vsel %vm1859, %v3243, 0
      %v3291 = vsel %vm1859, %v3245, 0
      %v3294 = vsel %vm1859, %v3247, 0
      %v3297 = vsel %vm1859, %v3249, 0
      %v3300 = vsel %vm1859, %v3251, 0
      %v3303 = vsel %vm1859, %v3253, 0
      %v3306 = vsel %vm1859, %v3255, 0
      %v3309 = vsel %vm1859, %v3257, 0
      %v3312 = vsel %vm1859, %v3259, 0
      %v3315 = vsel %vm1914, %v2637, 0
      %3317 = vmatprep.subr.bf16.mxu0 0
      %3318 = vmatpush1.bf16.msra.mxu0 0
      %3319 = vmatprep.subr.bf16.mxu0 0
      %3320 = vmatpush1.bf16.msra.mxu0 0
      %3321 = vmatprep.subr.bf16.mxu0 0
      %3322 = vmatpush1.bf16.msra.mxu0 0
      %3323 = vmatprep.subr.bf16.mxu0 0
      %3324 = vmatpush1.bf16.msra.mxu0 0
      %3325 = vmatprep.subr.bf16.mxu0 0
      %3326 = vmatpush1.bf16.msra.mxu0 0
      %3327 = vmatprep.subr.bf16.mxu0 0
      %3328 = vmatpush1.bf16.msra.mxu0 0
      %3329 = vmatprep.subr.bf16.mxu0 0
      %3330 = vmatpush1.bf16.msra.mxu0 0
      %3331 = vmatprep.subr.bf16.mxu0 0
      %3332 = vmatpush1.bf16.msra.mxu0 %v3315
      %3333 = vmatprep.subr.bf16.mxu0 0
      %3334 = vmatpush2.bf16.msra.mxu0 0
      %3335 = vmatprep.subr.bf16.mxu0 0
      %3336 = vmatpush2.bf16.msra.mxu0 0
      %3337 = vmatprep.subr.bf16.mxu0 0
      %3338 = vmatpush2.bf16.msra.mxu0 0
      %3339 = vmatprep.subr.bf16.mxu0 0
      %3340 = vmatpush2.bf16.msra.mxu0 0
      %3341 = vmatprep.subr.bf16.mxu0 0
      %3342 = vmatpush2.bf16.msra.mxu0 0
      %3343 = vmatprep.subr.bf16.mxu0 0
      %3344 = vmatpush2.bf16.msra.mxu0 0
      %3345 = vmatprep.subr.bf16.mxu0 0
      %3346 = vmatpush2.bf16.msra.mxu0 0
      %3347 = vmatprep.subr.bf16.mxu0 0
      %3348 = vmatpush2.bf16.msra.mxu0 0
      %3349 = vmatprep.mubr.bf16.mxu0 0
      %3350 = vmatmul.mubr.bf16.gmra.mxu0 %v3261
      %v3351 = vpop.f32.mrf.mxu0
      %v3352 = vadd.f32 0.0, %v3351
      %v3353 = vpop.f32.mrf.mxu0
      %v3354 = vpop.f32.mrf.mxu0
      %v3355 = vadd.f32 0.0, %v3354
      %v3356 = vpop.f32.mrf.mxu0
      %3357 = vmatprep.mubr.bf16.mxu0 0
      %3358 = vmatmul.mubr.bf16.gmra.mxu0 %v3264
      %v3359 = vpop.f32.mrf.mxu0
      %v3360 = vadd.f32 0.0, %v3359
      %v3361 = vpop.f32.mrf.mxu0
      %v3362 = vpop.f32.mrf.mxu0
      %v3363 = vadd.f32 0.0, %v3362
      %v3364 = vpop.f32.mrf.mxu0
      %3365 = vmatprep.mubr.bf16.mxu0 0
      %3366 = vmatmul.mubr.bf16.gmra.mxu0 %v3267
      %v3367 = vpop.f32.mrf.mxu0
      %v3368 = vadd.f32 0.0, %v3367
      %v3369 = vpop.f32.mrf.mxu0
      %v3370 = vpop.f32.mrf.mxu0
      %v3371 = vadd.f32 0.0, %v3370
      %v3372 = vpop.f32.mrf.mxu0
      %3373 = vmatprep.mubr.bf16.mxu0 0
      %3374 = vmatmul.mubr.bf16.gmra.mxu0 %v3270
      %v3375 = vpop.f32.mrf.mxu0
      %v3376 = vadd.f32 0.0, %v3375
      %v3377 = vpop.f32.mrf.mxu0
      %v3378 = vpop.f32.mrf.mxu0
      %v3379 = vadd.f32 0.0, %v3378
      %v3380 = vpop.f32.mrf.mxu0
      %3381 = vmatprep.mubr.bf16.mxu0 0
      %3382 = vmatmul.mubr.bf16.gmra.mxu0 %v3273
      %v3383 = vpop.f32.mrf.mxu0
      %v3384 = vadd.f32 0.0, %v3383
      %v3385 = vpop.f32.mrf.mxu0
      %v3386 = vpop.f32.mrf.mxu0
      %v3387 = vadd.f32 0.0, %v3386
      %v3388 = vpop.f32.mrf.mxu0
      %3389 = vmatprep.mubr.bf16.mxu0 0
      %3390 = vmatmul.mubr.bf16.gmra.mxu0 %v3276
      %v3391 = vpop.f32.mrf.mxu0
      %v3392 = vadd.f32 0.0, %v3391
      %v3393 = vpop.f32.mrf.mxu0
      %v3394 = vpop.f32.mrf.mxu0
      %v3395 = vadd.f32 0.0, %v3394
      %v3396 = vpop.f32.mrf.mxu0
      %3397 = vmatprep.mubr.bf16.mxu0 0
      %3398 = vmatmul.mubr.bf16.gmra.mxu0 %v3279
      %v3399 = vpop.f32.mrf.mxu0
      %v3400 = vadd.f32 0.0, %v3399
      %v3401 = vpop.f32.mrf.mxu0
      %v3402 = vpop.f32.mrf.mxu0
      %v3403 = vadd.f32 0.0, %v3402
      %v3404 = vpop.f32.mrf.mxu0
      %3405 = vmatprep.mubr.bf16.mxu0 0
      %3406 = vmatmul.mubr.bf16.gmra.mxu0 %v3282
      %v3407 = vpop.f32.mrf.mxu0
      %v3408 = vadd.f32 0.0, %v3407
      %v3409 = vpop.f32.mrf.mxu0
      %v3410 = vpop.f32.mrf.mxu0
      %v3411 = vadd.f32 0.0, %v3410
      %v3412 = vpop.f32.mrf.mxu0
      %3413 = vmatprep.mubr.bf16.mxu0 0
      %3414 = vmatmul.mubr.bf16.gmra.mxu0 %v3285
      %v3415 = vpop.f32.mrf.mxu0
      %v3416 = vadd.f32 0.0, %v3415
      %v3417 = vpop.f32.mrf.mxu0
      %v3418 = vpop.f32.mrf.mxu0
      %v3419 = vadd.f32 0.0, %v3418
      %v3420 = vpop.f32.mrf.mxu0
      %3421 = vmatprep.mubr.bf16.mxu0 0
      %3422 = vmatmul.mubr.bf16.gmra.mxu0 %v3288
      %v3423 = vpop.f32.mrf.mxu0
      %v3424 = vadd.f32 0.0, %v3423
      %v3425 = vpop.f32.mrf.mxu0
      %v3426 = vpop.f32.mrf.mxu0
      %v3427 = vadd.f32 0.0, %v3426
      %v3428 = vpop.f32.mrf.mxu0
      %3429 = vmatprep.mubr.bf16.mxu0 0
      %3430 = vmatmul.mubr.bf16.gmra.mxu0 %v3291
      %v3431 = vpop.f32.mrf.mxu0
      %v3432 = vadd.f32 0.0, %v3431
      %v3433 = vpop.f32.mrf.mxu0
      %v3434 = vpop.f32.mrf.mxu0
      %v3435 = vadd.f32 0.0, %v3434
      %v3436 = vpop.f32.mrf.mxu0
      %3437 = vmatprep.mubr.bf16.mxu0 0
      %3438 = vmatmul.mubr.bf16.gmra.mxu0 %v3294
      %v3439 = vpop.f32.mrf.mxu0
      %v3440 = vadd.f32 0.0, %v3439
      %v3441 = vpop.f32.mrf.mxu0
      %v3442 = vpop.f32.mrf.mxu0
      %v3443 = vadd.f32 0.0, %v3442
      %v3444 = vpop.f32.mrf.mxu0
      %3445 = vmatprep.mubr.bf16.mxu0 0
      %3446 = vmatmul.mubr.bf16.gmra.mxu0 %v3297
      %v3447 = vpop.f32.mrf.mxu0
      %v3448 = vadd.f32 0.0, %v3447
      %v3449 = vpop.f32.mrf.mxu0
      %v3450 = vpop.f32.mrf.mxu0
      %v3451 = vadd.f32 0.0, %v3450
      %v3452 = vpop.f32.mrf.mxu0
      %3453 = vmatprep.mubr.bf16.mxu0 0
      %3454 = vmatmul.mubr.bf16.gmra.mxu0 %v3300
      %v3455 = vpop.f32.mrf.mxu0
      %v3456 = vadd.f32 0.0, %v3455
      %v3457 = vpop.f32.mrf.mxu0
      %v3458 = vpop.f32.mrf.mxu0
      %v3459 = vadd.f32 0.0, %v3458
      %v3460 = vpop.f32.mrf.mxu0
      %3461 = vmatprep.mubr.bf16.mxu0 0
      %3462 = vmatmul.mubr.bf16.gmra.mxu0 %v3303
      %v3463 = vpop.f32.mrf.mxu0
      %v3464 = vadd.f32 0.0, %v3463
      %v3465 = vpop.f32.mrf.mxu0
      %v3466 = vpop.f32.mrf.mxu0
      %v3467 = vadd.f32 0.0, %v3466
      %v3468 = vpop.f32.mrf.mxu0
      %3469 = vmatprep.mubr.bf16.mxu0 0
      %3470 = vmatmul.mubr.bf16.gmra.mxu0 %v3306
      %v3471 = vpop.f32.mrf.mxu0
      %v3472 = vadd.f32 0.0, %v3471
      %v3473 = vpop.f32.mrf.mxu0
      %v3474 = vpop.f32.mrf.mxu0
      %v3475 = vadd.f32 0.0, %v3474
      %v3476 = vpop.f32.mrf.mxu0
      %3477 = vmatprep.mubr.bf16.mxu0 0
      %3478 = vmatmul.mubr.bf16.gmra.mxu0 %v3309
      %v3479 = vpop.f32.mrf.mxu0
      %v3480 = vadd.f32 0.0, %v3479
      %v3481 = vpop.f32.mrf.mxu0
      %v3482 = vpop.f32.mrf.mxu0
      %v3483 = vadd.f32 0.0, %v3482
      %v3484 = vpop.f32.mrf.mxu0
      %3485 = vmatprep.mubr.bf16.mxu0 0
      %3486 = vmatmul.mubr.bf16.gmra.mxu0 %v3312
      %v3487 = vpop.f32.mrf.mxu0
      %v3488 = vadd.f32 0.0, %v3487
      %v3489 = vpop.f32.mrf.mxu0
      %v3490 = vpop.f32.mrf.mxu0
      %v3491 = vadd.f32 0.0, %v3490
      %v3492 = vpop.f32.mrf.mxu0
      %3493 = vdwg.mxu0
      %v3494 = vadd.f32 %v3185, %v3352
      %v3495 = vadd.f32 %v3186, %v3355
      %v3496 = vadd.f32 %v3187, %v3360
      %v3497 = vadd.f32 %v3188, %v3363
      %v3498 = vadd.f32 %v3189, %v3368
      %v3499 = vadd.f32 %v3190, %v3371
      %v3500 = vadd.f32 %v3191, %v3376
      %v3501 = vadd.f32 %v3192, %v3379
      %v3502 = vadd.f32 %v3193, %v3384
      %v3503 = vadd.f32 %v3194, %v3387
      %v3504 = vadd.f32 %v3195, %v3392
      %v3505 = vadd.f32 %v3196, %v3395
      %v3506 = vadd.f32 %v3197, %v3400
      %v3507 = vadd.f32 %v3198, %v3403
      %v3508 = vadd.f32 %v3199, %v3408
      %v3509 = vadd.f32 %v3200, %v3411
      %v3510 = vadd.f32 %v3201, %v3416
      %v3511 = vadd.f32 %v3202, %v3419
      %v3512 = vadd.f32 %v3203, %v3424
      %v3513 = vadd.f32 %v3204, %v3427
      %v3514 = vadd.f32 %v3205, %v3432
      %v3515 = vadd.f32 %v3206, %v3435
      %v3516 = vadd.f32 %v3207, %v3440
      %v3517 = vadd.f32 %v3208, %v3443
      %v3518 = vadd.f32 %v3209, %v3448
      %v3519 = vadd.f32 %v3210, %v3451
      %v3520 = vadd.f32 %v3211, %v3456
      %v3521 = vadd.f32 %v3212, %v3459
      %v3522 = vadd.f32 %v3213, %v3464
      %v3523 = vadd.f32 %v3214, %v3467
      %v3524 = vadd.f32 %v3215, %v3472
      %v3525 = vadd.f32 %v3216, %v3475
      %v3526 = vadd.f32 %v3217, %v3480
      %v3527 = vadd.f32 %v3218, %v3483
      %v3528 = vadd.f32 %v3219, %v3488
      %v3529 = vadd.f32 %v3220, %v3491
      %s3530 = scalar_lea.vmem %s6, 16
      %v3531 = vld [vmem:[%s3530] sm:$0xf]
      %v3532 = vld [vmem:[%s3530 + $0x4] sm:$0x3]
      %v3533 = vpack.c.bf16 %v1689, %v1688
      %v3534 = vpack.c.bf16 %v1690, %v1690
      %v3537 = vrot.slane %v3533, 2
      %v3538 = vsel %vm3222, %v3256, %v3537
      %v3539 = vrot.slane %v3534, 2
      %v3540 = vsel %vm3222, %v3537, %v3539
      %v3542 = vsel %vm1859, %v3538, 0
      %v3545 = vsel %vm1859, %v3540, 0
      %v3548 = vsel %vm1914, %v3531, 0
      %3550 = vmatprep.subr.bf16.mxu0 0
      %3551 = vmatpush1.bf16.msra.mxu0 0
      %3552 = vmatprep.subr.bf16.mxu0 0
      %3553 = vmatpush1.bf16.msra.mxu0 0
      %3554 = vmatprep.subr.bf16.mxu0 0
      %3555 = vmatpush1.bf16.msra.mxu0 0
      %3556 = vmatprep.subr.bf16.mxu0 0
      %3557 = vmatpush1.bf16.msra.mxu0 0
      %3558 = vmatprep.subr.bf16.mxu0 0
      %3559 = vmatpush1.bf16.msra.mxu0 0
      %3560 = vmatprep.subr.bf16.mxu0 0
      %3561 = vmatpush1.bf16.msra.mxu0 0
      %3562 = vmatprep.subr.bf16.mxu0 0
      %3563 = vmatpush1.bf16.msra.mxu0 0
      %3564 = vmatprep.subr.bf16.mxu0 0
      %3565 = vmatpush1.bf16.msra.mxu0 %v3548
      %3566 = vmatprep.subr.bf16.mxu0 0
      %3567 = vmatpush2.bf16.msra.mxu0 0
      %3568 = vmatprep.subr.bf16.mxu0 0
      %3569 = vmatpush2.bf16.msra.mxu0 0
      %3570 = vmatprep.subr.bf16.mxu0 0
      %3571 = vmatpush2.bf16.msra.mxu0 0
      %3572 = vmatprep.subr.bf16.mxu0 0
      %3573 = vmatpush2.bf16.msra.mxu0 0
      %3574 = vmatprep.subr.bf16.mxu0 0
      %3575 = vmatpush2.bf16.msra.mxu0 0
      %3576 = vmatprep.subr.bf16.mxu0 0
      %3577 = vmatpush2.bf16.msra.mxu0 0
      %3578 = vmatprep.subr.bf16.mxu0 0
      %3579 = vmatpush2.bf16.msra.mxu0 0
      %3580 = vmatprep.subr.bf16.mxu0 0
      %3581 = vmatpush2.bf16.msra.mxu0 0
      %3582 = vmatprep.mubr.bf16.mxu0 0
      %3583 = vmatmul.mubr.bf16.gmra.mxu0 %v3264
      %v3584 = vpop.f32.mrf.mxu0
      %v3585 = vadd.f32 0.0, %v3584
      %v3586 = vpop.f32.mrf.mxu0
      %v3587 = vpop.f32.mrf.mxu0
      %v3588 = vadd.f32 0.0, %v3587
      %v3589 = vpop.f32.mrf.mxu0
      %3590 = vmatprep.mubr.bf16.mxu0 0
      %3591 = vmatmul.mubr.bf16.gmra.mxu0 %v3267
      %v3592 = vpop.f32.mrf.mxu0
      %v3593 = vadd.f32 0.0, %v3592
      %v3594 = vpop.f32.mrf.mxu0
      %v3595 = vpop.f32.mrf.mxu0
      %v3596 = vadd.f32 0.0, %v3595
      %v3597 = vpop.f32.mrf.mxu0
      %3598 = vmatprep.mubr.bf16.mxu0 0
      %3599 = vmatmul.mubr.bf16.gmra.mxu0 %v3270
      %v3600 = vpop.f32.mrf.mxu0
      %v3601 = vadd.f32 0.0, %v3600
      %v3602 = vpop.f32.mrf.mxu0
      %v3603 = vpop.f32.mrf.mxu0
      %v3604 = vadd.f32 0.0, %v3603
      %v3605 = vpop.f32.mrf.mxu0
      %3606 = vmatprep.mubr.bf16.mxu0 0
      %3607 = vmatmul.mubr.bf16.gmra.mxu0 %v3273
      %v3608 = vpop.f32.mrf.mxu0
      %v3609 = vadd.f32 0.0, %v3608
      %v3610 = vpop.f32.mrf.mxu0
      %v3611 = vpop.f32.mrf.mxu0
      %v3612 = vadd.f32 0.0, %v3611
      %v3613 = vpop.f32.mrf.mxu0
      %3614 = vmatprep.mubr.bf16.mxu0 0
      %3615 = vmatmul.mubr.bf16.gmra.mxu0 %v3276
      %v3616 = vpop.f32.mrf.mxu0
      %v3617 = vadd.f32 0.0, %v3616
      %v3618 = vpop.f32.mrf.mxu0
      %v3619 = vpop.f32.mrf.mxu0
      %v3620 = vadd.f32 0.0, %v3619
      %v3621 = vpop.f32.mrf.mxu0
      %3622 = vmatprep.mubr.bf16.mxu0 0
      %3623 = vmatmul.mubr.bf16.gmra.mxu0 %v3279
      %v3624 = vpop.f32.mrf.mxu0
      %v3625 = vadd.f32 0.0, %v3624
      %v3626 = vpop.f32.mrf.mxu0
      %v3627 = vpop.f32.mrf.mxu0
      %v3628 = vadd.f32 0.0, %v3627
      %v3629 = vpop.f32.mrf.mxu0
      %3630 = vmatprep.mubr.bf16.mxu0 0
      %3631 = vmatmul.mubr.bf16.gmra.mxu0 %v3282
      %v3632 = vpop.f32.mrf.mxu0
      %v3633 = vadd.f32 0.0, %v3632
      %v3634 = vpop.f32.mrf.mxu0
      %v3635 = vpop.f32.mrf.mxu0
      %v3636 = vadd.f32 0.0, %v3635
      %v3637 = vpop.f32.mrf.mxu0
      %3638 = vmatprep.mubr.bf16.mxu0 0
      %3639 = vmatmul.mubr.bf16.gmra.mxu0 %v3285
      %v3640 = vpop.f32.mrf.mxu0
      %v3641 = vadd.f32 0.0, %v3640
      %v3642 = vpop.f32.mrf.mxu0
      %v3643 = vpop.f32.mrf.mxu0
      %v3644 = vadd.f32 0.0, %v3643
      %v3645 = vpop.f32.mrf.mxu0
      %3646 = vmatprep.mubr.bf16.mxu0 0
      %3647 = vmatmul.mubr.bf16.gmra.mxu0 %v3288
      %v3648 = vpop.f32.mrf.mxu0
      %v3649 = vadd.f32 0.0, %v3648
      %v3650 = vpop.f32.mrf.mxu0
      %v3651 = vpop.f32.mrf.mxu0
      %v3652 = vadd.f32 0.0, %v3651
      %v3653 = vpop.f32.mrf.mxu0
      %3654 = vmatprep.mubr.bf16.mxu0 0
      %3655 = vmatmul.mubr.bf16.gmra.mxu0 %v3291
      %v3656 = vpop.f32.mrf.mxu0
      %v3657 = vadd.f32 0.0, %v3656
      %v3658 = vpop.f32.mrf.mxu0
      %v3659 = vpop.f32.mrf.mxu0
      %v3660 = vadd.f32 0.0, %v3659
      %v3661 = vpop.f32.mrf.mxu0
      %3662 = vmatprep.mubr.bf16.mxu0 0
      %3663 = vmatmul.mubr.bf16.gmra.mxu0 %v3294
      %v3664 = vpop.f32.mrf.mxu0
      %v3665 = vadd.f32 0.0, %v3664
      %v3666 = vpop.f32.mrf.mxu0
      %v3667 = vpop.f32.mrf.mxu0
      %v3668 = vadd.f32 0.0, %v3667
      %v3669 = vpop.f32.mrf.mxu0
      %3670 = vmatprep.mubr.bf16.mxu0 0
      %3671 = vmatmul.mubr.bf16.gmra.mxu0 %v3297
      %v3672 = vpop.f32.mrf.mxu0
      %v3673 = vadd.f32 0.0, %v3672
      %v3674 = vpop.f32.mrf.mxu0
      %v3675 = vpop.f32.mrf.mxu0
      %v3676 = vadd.f32 0.0, %v3675
      %v3677 = vpop.f32.mrf.mxu0
      %3678 = vmatprep.mubr.bf16.mxu0 0
      %3679 = vmatmul.mubr.bf16.gmra.mxu0 %v3300
      %v3680 = vpop.f32.mrf.mxu0
      %v3681 = vadd.f32 0.0, %v3680
      %v3682 = vpop.f32.mrf.mxu0
      %v3683 = vpop.f32.mrf.mxu0
      %v3684 = vadd.f32 0.0, %v3683
      %v3685 = vpop.f32.mrf.mxu0
      %3686 = vmatprep.mubr.bf16.mxu0 0
      %3687 = vmatmul.mubr.bf16.gmra.mxu0 %v3303
      %v3688 = vpop.f32.mrf.mxu0
      %v3689 = vadd.f32 0.0, %v3688
      %v3690 = vpop.f32.mrf.mxu0
      %v3691 = vpop.f32.mrf.mxu0
      %v3692 = vadd.f32 0.0, %v3691
      %v3693 = vpop.f32.mrf.mxu0
      %3694 = vmatprep.mubr.bf16.mxu0 0
      %3695 = vmatmul.mubr.bf16.gmra.mxu0 %v3306
      %v3696 = vpop.f32.mrf.mxu0
      %v3697 = vadd.f32 0.0, %v3696
      %v3698 = vpop.f32.mrf.mxu0
      %v3699 = vpop.f32.mrf.mxu0
      %v3700 = vadd.f32 0.0, %v3699
      %v3701 = vpop.f32.mrf.mxu0
      %3702 = vmatprep.mubr.bf16.mxu0 0
      %3703 = vmatmul.mubr.bf16.gmra.mxu0 %v3309
      %v3704 = vpop.f32.mrf.mxu0
      %v3705 = vadd.f32 0.0, %v3704
      %v3706 = vpop.f32.mrf.mxu0
      %v3707 = vpop.f32.mrf.mxu0
      %v3708 = vadd.f32 0.0, %v3707
      %v3709 = vpop.f32.mrf.mxu0
      %3710 = vmatprep.mubr.bf16.mxu0 0
      %3711 = vmatmul.mubr.bf16.gmra.mxu0 %v3542
      %v3712 = vpop.f32.mrf.mxu0
      %v3713 = vadd.f32 0.0, %v3712
      %v3714 = vpop.f32.mrf.mxu0
      %v3715 = vpop.f32.mrf.mxu0
      %v3716 = vadd.f32 0.0, %v3715
      %v3717 = vpop.f32.mrf.mxu0
      %3718 = vmatprep.mubr.bf16.mxu0 0
      %3719 = vmatmul.mubr.bf16.gmra.mxu0 %v3545
      %v3720 = vpop.f32.mrf.mxu0
      %v3721 = vadd.f32 0.0, %v3720
      %v3722 = vpop.f32.mrf.mxu0
      %v3723 = vpop.f32.mrf.mxu0
      %v3724 = vadd.f32 0.0, %v3723
      %v3725 = vpop.f32.mrf.mxu0
      %3726 = vdwg.mxu0
      %v3727 = vadd.f32 %v3494, %v3585
      %v3728 = vadd.f32 %v3495, %v3588
      %v3729 = vadd.f32 %v3496, %v3593
      %v3730 = vadd.f32 %v3497, %v3596
      %v3731 = vadd.f32 %v3498, %v3601
      %v3732 = vadd.f32 %v3499, %v3604
      %v3733 = vadd.f32 %v3500, %v3609
      %v3734 = vadd.f32 %v3501, %v3612
      %v3735 = vadd.f32 %v3502, %v3617
      %v3736 = vadd.f32 %v3503, %v3620
      %v3737 = vadd.f32 %v3504, %v3625
      %v3738 = vadd.f32 %v3505, %v3628
      %v3739 = vadd.f32 %v3506, %v3633
      %v3740 = vadd.f32 %v3507, %v3636
      %v3741 = vadd.f32 %v3508, %v3641
      %v3742 = vadd.f32 %v3509, %v3644
      %v3743 = vadd.f32 %v3510, %v3649
      %v3744 = vadd.f32 %v3511, %v3652
      %v3745 = vadd.f32 %v3512, %v3657
      %v3746 = vadd.f32 %v3513, %v3660
      %v3747 = vadd.f32 %v3514, %v3665
      %v3748 = vadd.f32 %v3515, %v3668
      %v3749 = vadd.f32 %v3516, %v3673
      %v3750 = vadd.f32 %v3517, %v3676
      %v3751 = vadd.f32 %v3518, %v3681
      %v3752 = vadd.f32 %v3519, %v3684
      %v3753 = vadd.f32 %v3520, %v3689
      %v3754 = vadd.f32 %v3521, %v3692
      %v3755 = vadd.f32 %v3522, %v3697
      %v3756 = vadd.f32 %v3523, %v3700
      %v3757 = vadd.f32 %v3524, %v3705
      %v3758 = vadd.f32 %v3525, %v3708
      %v3759 = vadd.f32 %v3526, %v3713
      %v3760 = vadd.f32 %v3527, %v3716
      %v3761 = vadd.f32 %v3528, %v3721
      %v3762 = vadd.f32 %v3529, %v3724
      %vm3763 = vsmask.f32 5376
      %v3764 = vrot.slane %v1732, 2
      %v3765 = vrot.slane %v1728, 3
      %v3766 = vor.u32 %v3764, %v3765
      %v3767 = vrot.slane %v1740, 2
      %v3768 = vrot.slane %v1736, 3
      %v3769 = vor.u32 %v3767, %v3768
      %v3770 = vsel %vm3763, %v3766, %v3769
      %v3771 = vrot.slane %v1748, 2
      %v3772 = vrot.slane %v1744, 3
      %v3773 = vor.u32 %v3771, %v3772
      %v3774 = vsel %vm3763, %v3769, %v3773
      %v3775 = vrot.slane %v1756, 2
      %v3776 = vrot.slane %v1752, 3
      %v3777 = vor.u32 %v3775, %v3776
      %v3778 = vsel %vm3763, %v3773, %v3777
      %v3779 = vrot.slane %v1764, 2
      %v3780 = vrot.slane %v1760, 3
      %v3781 = vor.u32 %v3779, %v3780
      %v3782 = vsel %vm3763, %v3777, %v3781
      %v3783 = vrot.slane %v1772, 2
      %v3784 = vrot.slane %v1768, 3
      %v3785 = vor.u32 %v3783, %v3784
      %v3786 = vsel %vm3763, %v3781, %v3785
      %v3787 = vrot.slane %v1780, 2
      %v3788 = vrot.slane %v1776, 3
      %v3789 = vor.u32 %v3787, %v3788
      %v3790 = vsel %vm3763, %v3785, %v3789
      %v3791 = vrot.slane %v1788, 2
      %v3792 = vrot.slane %v1784, 3
      %v3793 = vor.u32 %v3791, %v3792
      %v3794 = vsel %vm3763, %v3789, %v3793
      %v3795 = vrot.slane %v1796, 2
      %v3796 = vrot.slane %v1792, 3
      %v3797 = vor.u32 %v3795, %v3796
      %v3798 = vsel %vm3763, %v3793, %v3797
      %v3799 = vrot.slane %v1804, 2
      %v3800 = vrot.slane %v1800, 3
      %v3801 = vor.u32 %v3799, %v3800
      %v3802 = vsel %vm3763, %v3797, %v3801
      %v3803 = vrot.slane %v1812, 2
      %v3804 = vrot.slane %v1808, 3
      %v3805 = vor.u32 %v3803, %v3804
      %v3806 = vsel %vm3763, %v3801, %v3805
      %v3807 = vrot.slane %v1820, 2
      %v3808 = vrot.slane %v1816, 3
      %v3809 = vor.u32 %v3807, %v3808
      %v3810 = vsel %vm3763, %v3805, %v3809
      %v3811 = vrot.slane %v1828, 2
      %v3812 = vrot.slane %v1824, 3
      %v3813 = vor.u32 %v3811, %v3812
      %v3814 = vsel %vm3763, %v3809, %v3813
      %v3815 = vrot.slane %v1836, 2
      %v3816 = vrot.slane %v1832, 3
      %v3817 = vor.u32 %v3815, %v3816
      %v3818 = vsel %vm3763, %v3813, %v3817
      %v3819 = vrot.slane %v1844, 2
      %v3820 = vrot.slane %v1840, 3
      %v3821 = vor.u32 %v3819, %v3820
      %v3822 = vsel %vm3763, %v3817, %v3821
      %v3823 = vrot.slane %v1852, 2
      %v3824 = vrot.slane %v1848, 3
      %v3825 = vor.u32 %v3823, %v3824
      %v3826 = vsel %vm3763, %v3821, %v3825
      %v3827 = vrot.slane %v2934, 2
      %v3828 = vrot.slane %v2937, 3
      %v3829 = vor.u32 %v3827, %v3828
      %v3830 = vsel %vm3763, %v3825, %v3829
      %v3832 = vshrl.u32 %v3533, 16
      %v3834 = vrot.slane %v3832, 2
      %v3835 = vshll.u32 %v3533, 16
      %v3837 = vrot.slane %v3835, 3
      %v3838 = vor.u32 %v3834, %v3837
      %v3839 = vsel %vm3763, %v3829, %v3838
      %v3841 = vshrl.u32 %v3534, 16
      %v3843 = vrot.slane %v3841, 2
      %v3844 = vshll.u32 %v3534, 16
      %v3846 = vrot.slane %v3844, 3
      %v3847 = vor.u32 %v3843, %v3846
      %v3848 = vsel %vm3763, %v3838, %v3847
      %v3850 = vunpack.c.l.b16 %v3531
      %v3851 = vpack.c.b16 %v3850, %v3850
      %v3852 = vrot.slane %v3851, 2
      %v3854 = vsel %vm1859, %v3770, 0
      %v3857 = vsel %vm1859, %v3774, 0
      %v3860 = vsel %vm1859, %v3778, 0
      %v3863 = vsel %vm1859, %v3782, 0
      %v3866 = vsel %vm1859, %v3786, 0
      %v3869 = vsel %vm1859, %v3790, 0
      %v3872 = vsel %vm1859, %v3794, 0
      %v3875 = vsel %vm1859, %v3798, 0
      %v3878 = vsel %vm1859, %v3802, 0
      %v3881 = vsel %vm1859, %v3806, 0
      %v3884 = vsel %vm1859, %v3810, 0
      %v3887 = vsel %vm1859, %v3814, 0
      %v3890 = vsel %vm1859, %v3818, 0
      %v3893 = vsel %vm1859, %v3822, 0
      %v3896 = vsel %vm1859, %v3826, 0
      %v3899 = vsel %vm1859, %v3830, 0
      %v3902 = vsel %vm1859, %v3839, 0
      %v3905 = vsel %vm1859, %v3848, 0
      %v3908 = vsel %vm1914, %v3852, 0
      %3910 = vmatprep.subr.bf16.mxu0 0
      %3911 = vmatpush1.bf16.msra.mxu0 0
      %3912 = vmatprep.subr.bf16.mxu0 0
      %3913 = vmatpush1.bf16.msra.mxu0 0
      %3914 = vmatprep.subr.bf16.mxu0 0
      %3915 = vmatpush1.bf16.msra.mxu0 0
      %3916 = vmatprep.subr.bf16.mxu0 0
      %3917 = vmatpush1.bf16.msra.mxu0 0
      %3918 = vmatprep.subr.bf16.mxu0 0
      %3919 = vmatpush1.bf16.msra.mxu0 0
      %3920 = vmatprep.subr.bf16.mxu0 0
      %3921 = vmatpush1.bf16.msra.mxu0 0
      %3922 = vmatprep.subr.bf16.mxu0 0
      %3923 = vmatpush1.bf16.msra.mxu0 0
      %3924 = vmatprep.subr.bf16.mxu0 0
      %3925 = vmatpush1.bf16.msra.mxu0 %v3908
      %3926 = vmatprep.subr.bf16.mxu0 0
      %3927 = vmatpush2.bf16.msra.mxu0 0
      %3928 = vmatprep.subr.bf16.mxu0 0
      %3929 = vmatpush2.bf16.msra.mxu0 0
      %3930 = vmatprep.subr.bf16.mxu0 0
      %3931 = vmatpush2.bf16.msra.mxu0 0
      %3932 = vmatprep.subr.bf16.mxu0 0
      %3933 = vmatpush2.bf16.msra.mxu0 0
      %3934 = vmatprep.subr.bf16.mxu0 0
      %3935 = vmatpush2.bf16.msra.mxu0 0
      %3936 = vmatprep.subr.bf16.mxu0 0
      %3937 = vmatpush2.bf16.msra.mxu0 0
      %3938 = vmatprep.subr.bf16.mxu0 0
      %3939 = vmatpush2.bf16.msra.mxu0 0
      %3940 = vmatprep.subr.bf16.mxu0 0
      %3941 = vmatpush2.bf16.msra.mxu0 0
      %3942 = vmatprep.mubr.bf16.mxu0 0
      %3943 = vmatmul.mubr.bf16.gmra.mxu0 %v3854
      %v3944 = vpop.f32.mrf.mxu0
      %v3945 = vadd.f32 0.0, %v3944
      %v3946 = vpop.f32.mrf.mxu0
      %v3947 = vpop.f32.mrf.mxu0
      %v3948 = vadd.f32 0.0, %v3947
      %v3949 = vpop.f32.mrf.mxu0
      %3950 = vmatprep.mubr.bf16.mxu0 0
      %3951 = vmatmul.mubr.bf16.gmra.mxu0 %v3857
      %v3952 = vpop.f32.mrf.mxu0
      %v3953 = vadd.f32 0.0, %v3952
      %v3954 = vpop.f32.mrf.mxu0
      %v3955 = vpop.f32.mrf.mxu0
      %v3956 = vadd.f32 0.0, %v3955
      %v3957 = vpop.f32.mrf.mxu0
      %3958 = vmatprep.mubr.bf16.mxu0 0
      %3959 = vmatmul.mubr.bf16.gmra.mxu0 %v3860
      %v3960 = vpop.f32.mrf.mxu0
      %v3961 = vadd.f32 0.0, %v3960
      %v3962 = vpop.f32.mrf.mxu0
      %v3963 = vpop.f32.mrf.mxu0
      %v3964 = vadd.f32 0.0, %v3963
      %v3965 = vpop.f32.mrf.mxu0
      %3966 = vmatprep.mubr.bf16.mxu0 0
      %3967 = vmatmul.mubr.bf16.gmra.mxu0 %v3863
      %v3968 = vpop.f32.mrf.mxu0
      %v3969 = vadd.f32 0.0, %v3968
      %v3970 = vpop.f32.mrf.mxu0
      %v3971 = vpop.f32.mrf.mxu0
      %v3972 = vadd.f32 0.0, %v3971
      %v3973 = vpop.f32.mrf.mxu0
      %3974 = vmatprep.mubr.bf16.mxu0 0
      %3975 = vmatmul.mubr.bf16.gmra.mxu0 %v3866
      %v3976 = vpop.f32.mrf.mxu0
      %v3977 = vadd.f32 0.0, %v3976
      %v3978 = vpop.f32.mrf.mxu0
      %v3979 = vpop.f32.mrf.mxu0
      %v3980 = vadd.f32 0.0, %v3979
      %v3981 = vpop.f32.mrf.mxu0
      %3982 = vmatprep.mubr.bf16.mxu0 0
      %3983 = vmatmul.mubr.bf16.gmra.mxu0 %v3869
      %v3984 = vpop.f32.mrf.mxu0
      %v3985 = vadd.f32 0.0, %v3984
      %v3986 = vpop.f32.mrf.mxu0
      %v3987 = vpop.f32.mrf.mxu0
      %v3988 = vadd.f32 0.0, %v3987
      %v3989 = vpop.f32.mrf.mxu0
      %3990 = vmatprep.mubr.bf16.mxu0 0
      %3991 = vmatmul.mubr.bf16.gmra.mxu0 %v3872
      %v3992 = vpop.f32.mrf.mxu0
      %v3993 = vadd.f32 0.0, %v3992
      %v3994 = vpop.f32.mrf.mxu0
      %v3995 = vpop.f32.mrf.mxu0
      %v3996 = vadd.f32 0.0, %v3995
      %v3997 = vpop.f32.mrf.mxu0
      %3998 = vmatprep.mubr.bf16.mxu0 0
      %3999 = vmatmul.mubr.bf16.gmra.mxu0 %v3875
      %v4000 = vpop.f32.mrf.mxu0
      %v4001 = vadd.f32 0.0, %v4000
      %v4002 = vpop.f32.mrf.mxu0
      %v4003 = vpop.f32.mrf.mxu0
      %v4004 = vadd.f32 0.0, %v4003
      %v4005 = vpop.f32.mrf.mxu0
      %4006 = vmatprep.mubr.bf16.mxu0 0
      %4007 = vmatmul.mubr.bf16.gmra.mxu0 %v3878
      %v4008 = vpop.f32.mrf.mxu0
      %v4009 = vadd.f32 0.0, %v4008
      %v4010 = vpop.f32.mrf.mxu0
      %v4011 = vpop.f32.mrf.mxu0
      %v4012 = vadd.f32 0.0, %v4011
      %v4013 = vpop.f32.mrf.mxu0
      %4014 = vmatprep.mubr.bf16.mxu0 0
      %4015 = vmatmul.mubr.bf16.gmra.mxu0 %v3881
      %v4016 = vpop.f32.mrf.mxu0
      %v4017 = vadd.f32 0.0, %v4016
      %v4018 = vpop.f32.mrf.mxu0
      %v4019 = vpop.f32.mrf.mxu0
      %v4020 = vadd.f32 0.0, %v4019
      %v4021 = vpop.f32.mrf.mxu0
      %4022 = vmatprep.mubr.bf16.mxu0 0
      %4023 = vmatmul.mubr.bf16.gmra.mxu0 %v3884
      %v4024 = vpop.f32.mrf.mxu0
      %v4025 = vadd.f32 0.0, %v4024
      %v4026 = vpop.f32.mrf.mxu0
      %v4027 = vpop.f32.mrf.mxu0
      %v4028 = vadd.f32 0.0, %v4027
      %v4029 = vpop.f32.mrf.mxu0
      %4030 = vmatprep.mubr.bf16.mxu0 0
      %4031 = vmatmul.mubr.bf16.gmra.mxu0 %v3887
      %v4032 = vpop.f32.mrf.mxu0
      %v4033 = vadd.f32 0.0, %v4032
      %v4034 = vpop.f32.mrf.mxu0
      %v4035 = vpop.f32.mrf.mxu0
      %v4036 = vadd.f32 0.0, %v4035
      %v4037 = vpop.f32.mrf.mxu0
      %4038 = vmatprep.mubr.bf16.mxu0 0
      %4039 = vmatmul.mubr.bf16.gmra.mxu0 %v3890
      %v4040 = vpop.f32.mrf.mxu0
      %v4041 = vadd.f32 0.0, %v4040
      %v4042 = vpop.f32.mrf.mxu0
      %v4043 = vpop.f32.mrf.mxu0
      %v4044 = vadd.f32 0.0, %v4043
      %v4045 = vpop.f32.mrf.mxu0
      %4046 = vmatprep.mubr.bf16.mxu0 0
      %4047 = vmatmul.mubr.bf16.gmra.mxu0 %v3893
      %v4048 = vpop.f32.mrf.mxu0
      %v4049 = vadd.f32 0.0, %v4048
      %v4050 = vpop.f32.mrf.mxu0
      %v4051 = vpop.f32.mrf.mxu0
      %v4052 = vadd.f32 0.0, %v4051
      %v4053 = vpop.f32.mrf.mxu0
      %4054 = vmatprep.mubr.bf16.mxu0 0
      %4055 = vmatmul.mubr.bf16.gmra.mxu0 %v3896
      %v4056 = vpop.f32.mrf.mxu0
      %v4057 = vadd.f32 0.0, %v4056
      %v4058 = vpop.f32.mrf.mxu0
      %v4059 = vpop.f32.mrf.mxu0
      %v4060 = vadd.f32 0.0, %v4059
      %v4061 = vpop.f32.mrf.mxu0
      %4062 = vmatprep.mubr.bf16.mxu0 0
      %4063 = vmatmul.mubr.bf16.gmra.mxu0 %v3899
      %v4064 = vpop.f32.mrf.mxu0
      %v4065 = vadd.f32 0.0, %v4064
      %v4066 = vpop.f32.mrf.mxu0
      %v4067 = vpop.f32.mrf.mxu0
      %v4068 = vadd.f32 0.0, %v4067
      %v4069 = vpop.f32.mrf.mxu0
      %4070 = vmatprep.mubr.bf16.mxu0 0
      %4071 = vmatmul.mubr.bf16.gmra.mxu0 %v3902
      %v4072 = vpop.f32.mrf.mxu0
      %v4073 = vadd.f32 0.0, %v4072
      %v4074 = vpop.f32.mrf.mxu0
      %v4075 = vpop.f32.mrf.mxu0
      %v4076 = vadd.f32 0.0, %v4075
      %v4077 = vpop.f32.mrf.mxu0
      %4078 = vmatprep.mubr.bf16.mxu0 0
      %4079 = vmatmul.mubr.bf16.gmra.mxu0 %v3905
      %v4080 = vpop.f32.mrf.mxu0
      %v4081 = vadd.f32 0.0, %v4080
      %v4082 = vpop.f32.mrf.mxu0
      %v4083 = vpop.f32.mrf.mxu0
      %v4084 = vadd.f32 0.0, %v4083
      %v4085 = vpop.f32.mrf.mxu0
      %4086 = vdwg.mxu0
      %v4087 = vadd.f32 %v3727, %v3945
      %v4088 = vadd.f32 %v3728, %v3948
      %v4089 = vadd.f32 %v3729, %v3953
      %v4090 = vadd.f32 %v3730, %v3956
      %v4091 = vadd.f32 %v3731, %v3961
      %v4092 = vadd.f32 %v3732, %v3964
      %v4093 = vadd.f32 %v3733, %v3969
      %v4094 = vadd.f32 %v3734, %v3972
      %v4095 = vadd.f32 %v3735, %v3977
      %v4096 = vadd.f32 %v3736, %v3980
      %v4097 = vadd.f32 %v3737, %v3985
      %v4098 = vadd.f32 %v3738, %v3988
      %v4099 = vadd.f32 %v3739, %v3993
      %v4100 = vadd.f32 %v3740, %v3996
      %v4101 = vadd.f32 %v3741, %v4001
      %v4102 = vadd.f32 %v3742, %v4004
      %v4103 = vadd.f32 %v3743, %v4009
      %v4104 = vadd.f32 %v3744, %v4012
      %v4105 = vadd.f32 %v3745, %v4017
      %v4106 = vadd.f32 %v3746, %v4020
      %v4107 = vadd.f32 %v3747, %v4025
      %v4108 = vadd.f32 %v3748, %v4028
      %v4109 = vadd.f32 %v3749, %v4033
      %v4110 = vadd.f32 %v3750, %v4036
      %v4111 = vadd.f32 %v3751, %v4041
      %v4112 = vadd.f32 %v3752, %v4044
      %v4113 = vadd.f32 %v3753, %v4049
      %v4114 = vadd.f32 %v3754, %v4052
      %v4115 = vadd.f32 %v3755, %v4057
      %v4116 = vadd.f32 %v3756, %v4060
      %v4117 = vadd.f32 %v3757, %v4065
      %v4118 = vadd.f32 %v3758, %v4068
      %v4119 = vadd.f32 %v3759, %v4073
      %v4120 = vadd.f32 %v3760, %v4076
      %v4121 = vadd.f32 %v3761, %v4081
      %v4122 = vadd.f32 %v3762, %v4084
      %vm4123 = vcmask 1044480
      %v4124 = vrot.slane %v1695, 3
      %v4125 = vrot.slane %v1696, 3
      %v4126 = vsel %vm4123, %v4124, %v4125
      %v4127 = vrot.slane %v1697, 3
      %v4128 = vsel %vm4123, %v4125, %v4127
      %v4129 = vrot.slane %v1698, 3
      %v4130 = vsel %vm4123, %v4127, %v4129
      %v4131 = vrot.slane %v1699, 3
      %v4132 = vsel %vm4123, %v4129, %v4131
      %v4133 = vrot.slane %v1700, 3
      %v4134 = vsel %vm4123, %v4131, %v4133
      %v4135 = vrot.slane %v1701, 3
      %v4136 = vsel %vm4123, %v4133, %v4135
      %v4137 = vrot.slane %v1702, 3
      %v4138 = vsel %vm4123, %v4135, %v4137
      %v4139 = vrot.slane %v1703, 3
      %v4140 = vsel %vm4123, %v4137, %v4139
      %v4141 = vrot.slane %v1704, 3
      %v4142 = vsel %vm4123, %v4139, %v4141
      %v4143 = vrot.slane %v1705, 3
      %v4144 = vsel %vm4123, %v4141, %v4143
      %v4145 = vrot.slane %v1706, 3
      %v4146 = vsel %vm4123, %v4143, %v4145
      %v4147 = vrot.slane %v1707, 3
      %v4148 = vsel %vm4123, %v4145, %v4147
      %v4149 = vrot.slane %v1708, 3
      %v4150 = vsel %vm4123, %v4147, %v4149
      %v4151 = vrot.slane %v1709, 3
      %v4152 = vsel %vm4123, %v4149, %v4151
      %v4153 = vrot.slane %v1710, 3
      %v4154 = vsel %vm4123, %v4151, %v4153
      %v4155 = vrot.slane %v2638, 3
      %v4156 = vsel %vm4123, %v4153, %v4155
      %v4157 = vrot.slane %v3533, 3
      %v4158 = vsel %vm4123, %v4155, %v4157
      %v4159 = vrot.slane %v3534, 3
      %v4160 = vsel %vm4123, %v4157, %v4159
      %v4162 = vsel %vm1859, %v4126, 0
      %v4165 = vsel %vm1859, %v4128, 0
      %v4168 = vsel %vm1859, %v4130, 0
      %v4171 = vsel %vm1859, %v4132, 0
      %v4174 = vsel %vm1859, %v4134, 0
      %v4177 = vsel %vm1859, %v4136, 0
      %v4180 = vsel %vm1859, %v4138, 0
      %v4183 = vsel %vm1859, %v4140, 0
      %v4186 = vsel %vm1859, %v4142, 0
      %v4189 = vsel %vm1859, %v4144, 0
      %v4192 = vsel %vm1859, %v4146, 0
      %v4195 = vsel %vm1859, %v4148, 0
      %v4198 = vsel %vm1859, %v4150, 0
      %v4201 = vsel %vm1859, %v4152, 0
      %v4204 = vsel %vm1859, %v4154, 0
      %v4207 = vsel %vm1859, %v4156, 0
      %v4210 = vsel %vm1859, %v4158, 0
      %v4213 = vsel %vm1859, %v4160, 0
      %v4216 = vsel %vm1914, %v3532, 0
      %4218 = vmatprep.subr.bf16.mxu0 0
      %4219 = vmatpush1.bf16.msra.mxu0 0
      %4220 = vmatprep.subr.bf16.mxu0 0
      %4221 = vmatpush1.bf16.msra.mxu0 0
      %4222 = vmatprep.subr.bf16.mxu0 0
      %4223 = vmatpush1.bf16.msra.mxu0 0
      %4224 = vmatprep.subr.bf16.mxu0 0
      %4225 = vmatpush1.bf16.msra.mxu0 0
      %4226 = vmatprep.subr.bf16.mxu0 0
      %4227 = vmatpush1.bf16.msra.mxu0 0
      %4228 = vmatprep.subr.bf16.mxu0 0
      %4229 = vmatpush1.bf16.msra.mxu0 0
      %4230 = vmatprep.subr.bf16.mxu0 0
      %4231 = vmatpush1.bf16.msra.mxu0 0
      %4232 = vmatprep.subr.bf16.mxu0 0
      %4233 = vmatpush1.bf16.msra.mxu0 %v4216
      %4234 = vmatprep.subr.bf16.mxu0 0
      %4235 = vmatpush2.bf16.msra.mxu0 0
      %4236 = vmatprep.subr.bf16.mxu0 0
      %4237 = vmatpush2.bf16.msra.mxu0 0
      %4238 = vmatprep.subr.bf16.mxu0 0
      %4239 = vmatpush2.bf16.msra.mxu0 0
      %4240 = vmatprep.subr.bf16.mxu0 0
      %4241 = vmatpush2.bf16.msra.mxu0 0
      %4242 = vmatprep.subr.bf16.mxu0 0
      %4243 = vmatpush2.bf16.msra.mxu0 0
      %4244 = vmatprep.subr.bf16.mxu0 0
      %4245 = vmatpush2.bf16.msra.mxu0 0
      %4246 = vmatprep.subr.bf16.mxu0 0
      %4247 = vmatpush2.bf16.msra.mxu0 0
      %4248 = vmatprep.subr.bf16.mxu0 0
      %4249 = vmatpush2.bf16.msra.mxu0 0
      %4250 = vmatprep.mubr.bf16.mxu0 0
      %4251 = vmatmul.mubr.bf16.gmra.mxu0 %v4162
      %v4252 = vpop.f32.mrf.mxu0
      %v4253 = vadd.f32 0.0, %v4252
      %v4254 = vpop.f32.mrf.mxu0
      %v4255 = vpop.f32.mrf.mxu0
      %v4256 = vadd.f32 0.0, %v4255
      %v4257 = vpop.f32.mrf.mxu0
      %4258 = vmatprep.mubr.bf16.mxu0 0
      %4259 = vmatmul.mubr.bf16.gmra.mxu0 %v4165
      %v4260 = vpop.f32.mrf.mxu0
      %v4261 = vadd.f32 0.0, %v4260
      %v4262 = vpop.f32.mrf.mxu0
      %v4263 = vpop.f32.mrf.mxu0
      %v4264 = vadd.f32 0.0, %v4263
      %v4265 = vpop.f32.mrf.mxu0
      %4266 = vmatprep.mubr.bf16.mxu0 0
      %4267 = vmatmul.mubr.bf16.gmra.mxu0 %v4168
      %v4268 = vpop.f32.mrf.mxu0
      %v4269 = vadd.f32 0.0, %v4268
      %v4270 = vpop.f32.mrf.mxu0
      %v4271 = vpop.f32.mrf.mxu0
      %v4272 = vadd.f32 0.0, %v4271
      %v4273 = vpop.f32.mrf.mxu0
      %4274 = vmatprep.mubr.bf16.mxu0 0
      %4275 = vmatmul.mubr.bf16.gmra.mxu0 %v4171
      %v4276 = vpop.f32.mrf.mxu0
      %v4277 = vadd.f32 0.0, %v4276
      %v4278 = vpop.f32.mrf.mxu0
      %v4279 = vpop.f32.mrf.mxu0
      %v4280 = vadd.f32 0.0, %v4279
      %v4281 = vpop.f32.mrf.mxu0
      %4282 = vmatprep.mubr.bf16.mxu0 0
      %4283 = vmatmul.mubr.bf16.gmra.mxu0 %v4174
      %v4284 = vpop.f32.mrf.mxu0
      %v4285 = vadd.f32 0.0, %v4284
      %v4286 = vpop.f32.mrf.mxu0
      %v4287 = vpop.f32.mrf.mxu0
      %v4288 = vadd.f32 0.0, %v4287
      %v4289 = vpop.f32.mrf.mxu0
      %4290 = vmatprep.mubr.bf16.mxu0 0
      %4291 = vmatmul.mubr.bf16.gmra.mxu0 %v4177
      %v4292 = vpop.f32.mrf.mxu0
      %v4293 = vadd.f32 0.0, %v4292
      %v4294 = vpop.f32.mrf.mxu0
      %v4295 = vpop.f32.mrf.mxu0
      %v4296 = vadd.f32 0.0, %v4295
      %v4297 = vpop.f32.mrf.mxu0
      %4298 = vmatprep.mubr.bf16.mxu0 0
      %4299 = vmatmul.mubr.bf16.gmra.mxu0 %v4180
      %v4300 = vpop.f32.mrf.mxu0
      %v4301 = vadd.f32 0.0, %v4300
      %v4302 = vpop.f32.mrf.mxu0
      %v4303 = vpop.f32.mrf.mxu0
      %v4304 = vadd.f32 0.0, %v4303
      %v4305 = vpop.f32.mrf.mxu0
      %4306 = vmatprep.mubr.bf16.mxu0 0
      %4307 = vmatmul.mubr.bf16.gmra.mxu0 %v4183
      %v4308 = vpop.f32.mrf.mxu0
      %v4309 = vadd.f32 0.0, %v4308
      %v4310 = vpop.f32.mrf.mxu0
      %v4311 = vpop.f32.mrf.mxu0
      %v4312 = vadd.f32 0.0, %v4311
      %v4313 = vpop.f32.mrf.mxu0
      %4314 = vmatprep.mubr.bf16.mxu0 0
      %4315 = vmatmul.mubr.bf16.gmra.mxu0 %v4186
      %v4316 = vpop.f32.mrf.mxu0
      %v4317 = vadd.f32 0.0, %v4316
      %v4318 = vpop.f32.mrf.mxu0
      %v4319 = vpop.f32.mrf.mxu0
      %v4320 = vadd.f32 0.0, %v4319
      %v4321 = vpop.f32.mrf.mxu0
      %4322 = vmatprep.mubr.bf16.mxu0 0
      %4323 = vmatmul.mubr.bf16.gmra.mxu0 %v4189
      %v4324 = vpop.f32.mrf.mxu0
      %v4325 = vadd.f32 0.0, %v4324
      %v4326 = vpop.f32.mrf.mxu0
      %v4327 = vpop.f32.mrf.mxu0
      %v4328 = vadd.f32 0.0, %v4327
      %v4329 = vpop.f32.mrf.mxu0
      %4330 = vmatprep.mubr.bf16.mxu0 0
      %4331 = vmatmul.mubr.bf16.gmra.mxu0 %v4192
      %v4332 = vpop.f32.mrf.mxu0
      %v4333 = vadd.f32 0.0, %v4332
      %v4334 = vpop.f32.mrf.mxu0
      %v4335 = vpop.f32.mrf.mxu0
      %v4336 = vadd.f32 0.0, %v4335
      %v4337 = vpop.f32.mrf.mxu0
      %4338 = vmatprep.mubr.bf16.mxu0 0
      %4339 = vmatmul.mubr.bf16.gmra.mxu0 %v4195
      %v4340 = vpop.f32.mrf.mxu0
      %v4341 = vadd.f32 0.0, %v4340
      %v4342 = vpop.f32.mrf.mxu0
      %v4343 = vpop.f32.mrf.mxu0
      %v4344 = vadd.f32 0.0, %v4343
      %v4345 = vpop.f32.mrf.mxu0
      %4346 = vmatprep.mubr.bf16.mxu0 0
      %4347 = vmatmul.mubr.bf16.gmra.mxu0 %v4198
      %v4348 = vpop.f32.mrf.mxu0
      %v4349 = vadd.f32 0.0, %v4348
      %v4350 = vpop.f32.mrf.mxu0
      %v4351 = vpop.f32.mrf.mxu0
      %v4352 = vadd.f32 0.0, %v4351
      %v4353 = vpop.f32.mrf.mxu0
      %4354 = vmatprep.mubr.bf16.mxu0 0
      %4355 = vmatmul.mubr.bf16.gmra.mxu0 %v4201
      %v4356 = vpop.f32.mrf.mxu0
      %v4357 = vadd.f32 0.0, %v4356
      %v4358 = vpop.f32.mrf.mxu0
      %v4359 = vpop.f32.mrf.mxu0
      %v4360 = vadd.f32 0.0, %v4359
      %v4361 = vpop.f32.mrf.mxu0
      %4362 = vmatprep.mubr.bf16.mxu0 0
      %4363 = vmatmul.mubr.bf16.gmra.mxu0 %v4204
      %v4364 = vpop.f32.mrf.mxu0
      %v4365 = vadd.f32 0.0, %v4364
      %v4366 = vpop.f32.mrf.mxu0
      %v4367 = vpop.f32.mrf.mxu0
      %v4368 = vadd.f32 0.0, %v4367
      %v4369 = vpop.f32.mrf.mxu0
      %4370 = vmatprep.mubr.bf16.mxu0 0
      %4371 = vmatmul.mubr.bf16.gmra.mxu0 %v4207
      %v4372 = vpop.f32.mrf.mxu0
      %v4373 = vadd.f32 0.0, %v4372
      %v4374 = vpop.f32.mrf.mxu0
      %v4375 = vpop.f32.mrf.mxu0
      %v4376 = vadd.f32 0.0, %v4375
      %v4377 = vpop.f32.mrf.mxu0
      %4378 = vmatprep.mubr.bf16.mxu0 0
      %4379 = vmatmul.mubr.bf16.gmra.mxu0 %v4210
      %v4380 = vpop.f32.mrf.mxu0
      %v4381 = vadd.f32 0.0, %v4380
      %v4382 = vpop.f32.mrf.mxu0
      %v4383 = vpop.f32.mrf.mxu0
      %v4384 = vadd.f32 0.0, %v4383
      %v4385 = vpop.f32.mrf.mxu0
      %4386 = vmatprep.mubr.bf16.mxu0 0
      %4387 = vmatmul.mubr.bf16.gmra.mxu0 %v4213
      %v4388 = vpop.f32.mrf.mxu0
      %v4389 = vadd.f32 0.0, %v4388
      %v4390 = vpop.f32.mrf.mxu0
      %v4391 = vpop.f32.mrf.mxu0
      %v4392 = vadd.f32 0.0, %v4391
      %v4393 = vpop.f32.mrf.mxu0
      %4394 = vdwg.mxu0
      %v4395 = vadd.f32 %v4087, %v4253
      %v4396 = vadd.f32 %v4088, %v4256
      %v4397 = vadd.f32 %v4089, %v4261
      %v4398 = vadd.f32 %v4090, %v4264
      %v4399 = vadd.f32 %v4091, %v4269
      %v4400 = vadd.f32 %v4092, %v4272
      %v4401 = vadd.f32 %v4093, %v4277
      %v4402 = vadd.f32 %v4094, %v4280
      %v4403 = vadd.f32 %v4095, %v4285
      %v4404 = vadd.f32 %v4096, %v4288
      %v4405 = vadd.f32 %v4097, %v4293
      %v4406 = vadd.f32 %v4098, %v4296
      %v4407 = vadd.f32 %v4099, %v4301
      %v4408 = vadd.f32 %v4100, %v4304
      %v4409 = vadd.f32 %v4101, %v4309
      %v4410 = vadd.f32 %v4102, %v4312
      %v4411 = vadd.f32 %v4103, %v4317
      %v4412 = vadd.f32 %v4104, %v4320
      %v4413 = vadd.f32 %v4105, %v4325
      %v4414 = vadd.f32 %v4106, %v4328
      %v4415 = vadd.f32 %v4107, %v4333
      %v4416 = vadd.f32 %v4108, %v4336
      %v4417 = vadd.f32 %v4109, %v4341
      %v4418 = vadd.f32 %v4110, %v4344
      %v4419 = vadd.f32 %v4111, %v4349
      %v4420 = vadd.f32 %v4112, %v4352
      %v4421 = vadd.f32 %v4113, %v4357
      %v4422 = vadd.f32 %v4114, %v4360
      %v4423 = vadd.f32 %v4115, %v4365
      %v4424 = vadd.f32 %v4116, %v4368
      %v4425 = vadd.f32 %v4117, %v4373
      %v4426 = vadd.f32 %v4118, %v4376
      %v4427 = vadd.f32 %v4119, %v4381
      %v4428 = vadd.f32 %v4120, %v4384
      %v4429 = vadd.f32 %v4121, %v4389
      %v4430 = vadd.f32 %v4122, %v4392
      %v4431 = vld [vmem:[%s7] sm:$0x1]
      %v4433 = vlaneseq
      %v4434 = vshrl.u32 %v4433, 7
      %v4435 = vsub.s32 0, %v4434
      %v4436 = vrot.slane %v4431, %v4435
      %v4438 = vmul.f32 %v4395, %v4436
      %v4439 = vmul.f32 %v4396, %v4436
      %v4440 = vmul.f32 %v4397, %v4436
      %v4441 = vmul.f32 %v4398, %v4436
      %v4442 = vmul.f32 %v4399, %v4436
      %v4443 = vmul.f32 %v4400, %v4436
      %v4444 = vmul.f32 %v4401, %v4436
      %v4445 = vmul.f32 %v4402, %v4436
      %v4446 = vmul.f32 %v4403, %v4436
      %v4447 = vmul.f32 %v4404, %v4436
      %v4448 = vmul.f32 %v4405, %v4436
      %v4449 = vmul.f32 %v4406, %v4436
      %v4450 = vmul.f32 %v4407, %v4436
      %v4451 = vmul.f32 %v4408, %v4436
      %v4452 = vmul.f32 %v4409, %v4436
      %v4453 = vmul.f32 %v4410, %v4436
      %v4454 = vmul.f32 %v4411, %v4436
      %v4455 = vmul.f32 %v4412, %v4436
      %v4456 = vmul.f32 %v4413, %v4436
      %v4457 = vmul.f32 %v4414, %v4436
      %v4458 = vmul.f32 %v4415, %v4436
      %v4459 = vmul.f32 %v4416, %v4436
      %v4460 = vmul.f32 %v4417, %v4436
      %v4461 = vmul.f32 %v4418, %v4436
      %v4462 = vmul.f32 %v4419, %v4436
      %v4463 = vmul.f32 %v4420, %v4436
      %v4464 = vmul.f32 %v4421, %v4436
      %v4465 = vmul.f32 %v4422, %v4436
      %v4466 = vmul.f32 %v4423, %v4436
      %v4467 = vmul.f32 %v4424, %v4436
      %v4468 = vmul.f32 %v4425, %v4436
      %v4469 = vmul.f32 %v4426, %v4436
      %v4470 = vmul.f32 %v4427, %v4436
      %v4471 = vmul.f32 %v4428, %v4436
      %v4472 = vmul.f32 %v4429, %v4436
      %v4473 = vmul.f32 %v4430, %v4436
      %v4474 = vld [vmem:[%s8] sm:$0x1]
      %v4476 = vlaneseq
      %v4477 = vshrl.u32 %v4476, 7
      %v4478 = vsub.s32 0, %v4477
      %v4479 = vrot.slane %v4474, %v4478
      %v4481 = vadd.f32 %v4438, %v4479
      %v4482 = vadd.f32 %v4439, %v4479
      %v4483 = vadd.f32 %v4440, %v4479
      %v4484 = vadd.f32 %v4441, %v4479
      %v4485 = vadd.f32 %v4442, %v4479
      %v4486 = vadd.f32 %v4443, %v4479
      %v4487 = vadd.f32 %v4444, %v4479
      %v4488 = vadd.f32 %v4445, %v4479
      %v4489 = vadd.f32 %v4446, %v4479
      %v4490 = vadd.f32 %v4447, %v4479
      %v4491 = vadd.f32 %v4448, %v4479
      %v4492 = vadd.f32 %v4449, %v4479
      %v4493 = vadd.f32 %v4450, %v4479
      %v4494 = vadd.f32 %v4451, %v4479
      %v4495 = vadd.f32 %v4452, %v4479
      %v4496 = vadd.f32 %v4453, %v4479
      %v4497 = vadd.f32 %v4454, %v4479
      %v4498 = vadd.f32 %v4455, %v4479
      %v4499 = vadd.f32 %v4456, %v4479
      %v4500 = vadd.f32 %v4457, %v4479
      %v4501 = vadd.f32 %v4458, %v4479
      %v4502 = vadd.f32 %v4459, %v4479
      %v4503 = vadd.f32 %v4460, %v4479
      %v4504 = vadd.f32 %v4461, %v4479
      %v4505 = vadd.f32 %v4462, %v4479
      %v4506 = vadd.f32 %v4463, %v4479
      %v4507 = vadd.f32 %v4464, %v4479
      %v4508 = vadd.f32 %v4465, %v4479
      %v4509 = vadd.f32 %v4466, %v4479
      %v4510 = vadd.f32 %v4467, %v4479
      %v4511 = vadd.f32 %v4468, %v4479
      %v4512 = vadd.f32 %v4469, %v4479
      %v4513 = vadd.f32 %v4470, %v4479
      %v4514 = vadd.f32 %v4471, %v4479
      %v4515 = vadd.f32 %v4472, %v4479
      %v4516 = vadd.f32 %v4473, %v4479
      %v4517 = vmax.f32 %v4481, 0.0
      %v4518 = vmax.f32 %v4482, 0.0
      %v4519 = vmax.f32 %v4483, 0.0
      %v4520 = vmax.f32 %v4484, 0.0
      %v4521 = vmax.f32 %v4485, 0.0
      %v4522 = vmax.f32 %v4486, 0.0
      %v4523 = vmax.f32 %v4487, 0.0
      %v4524 = vmax.f32 %v4488, 0.0
      %v4525 = vmax.f32 %v4489, 0.0
      %v4526 = vmax.f32 %v4490, 0.0
      %v4527 = vmax.f32 %v4491, 0.0
      %v4528 = vmax.f32 %v4492, 0.0
      %v4529 = vmax.f32 %v4493, 0.0
      %v4530 = vmax.f32 %v4494, 0.0
      %v4531 = vmax.f32 %v4495, 0.0
      %v4532 = vmax.f32 %v4496, 0.0
      %v4533 = vmax.f32 %v4497, 0.0
      %v4534 = vmax.f32 %v4498, 0.0
      %v4535 = vmax.f32 %v4499, 0.0
      %v4536 = vmax.f32 %v4500, 0.0
      %v4537 = vmax.f32 %v4501, 0.0
      %v4538 = vmax.f32 %v4502, 0.0
      %v4539 = vmax.f32 %v4503, 0.0
      %v4540 = vmax.f32 %v4504, 0.0
      %v4541 = vmax.f32 %v4505, 0.0
      %v4542 = vmax.f32 %v4506, 0.0
      %v4543 = vmax.f32 %v4507, 0.0
      %v4544 = vmax.f32 %v4508, 0.0
      %v4545 = vmax.f32 %v4509, 0.0
      %v4546 = vmax.f32 %v4510, 0.0
      %v4547 = vmax.f32 %v4511, 0.0
      %v4548 = vmax.f32 %v4512, 0.0
      %v4549 = vmax.f32 %v4513, 0.0
      %v4550 = vmax.f32 %v4514, 0.0
      %v4551 = vmax.f32 %v4515, 0.0
      %v4552 = vmax.f32 %v4516, 0.0
      %v4553 = vpack.c.bf16 %v4518, %v4517
      %v4554 = vpack.c.bf16 %v4520, %v4519
      %v4555 = vpack.c.bf16 %v4522, %v4521
      %v4556 = vpack.c.bf16 %v4524, %v4523
      %v4557 = vpack.c.bf16 %v4526, %v4525
      %v4558 = vpack.c.bf16 %v4528, %v4527
      %v4559 = vpack.c.bf16 %v4530, %v4529
      %v4560 = vpack.c.bf16 %v4532, %v4531
      %v4561 = vpack.c.bf16 %v4534, %v4533
      %v4562 = vpack.c.bf16 %v4536, %v4535
      %v4563 = vpack.c.bf16 %v4538, %v4537
      %v4564 = vpack.c.bf16 %v4540, %v4539
      %v4565 = vpack.c.bf16 %v4542, %v4541
      %v4566 = vpack.c.bf16 %v4544, %v4543
      %v4567 = vpack.c.bf16 %v4546, %v4545
      %v4568 = vpack.c.bf16 %v4548, %v4547
      %v4569 = vpack.c.bf16 %v4550, %v4549
      %v4570 = vpack.c.bf16 %v4552, %v4551
      %v4571 = vld [vmem:[%s9] sm:$0x3]
      %v4572 = vld [vmem:[%s10] sm:$0x1]
      %v4574 = vlaneseq
      %v4575 = vshrl.u32 %v4574, 7
      %v4576 = vsub.s32 0, %v4575
      %v4577 = vrot.slane %v4572, %v4576
      %v4580 = vsel %vm1859, %v4553, 0
      %v4583 = vsel %vm1859, %v4554, 0
      %v4586 = vsel %vm1859, %v4555, 0
      %v4589 = vsel %vm1859, %v4556, 0
      %v4592 = vsel %vm1859, %v4557, 0
      %v4595 = vsel %vm1859, %v4558, 0
      %v4598 = vsel %vm1859, %v4559, 0
      %v4601 = vsel %vm1859, %v4560, 0
      %v4604 = vsel %vm1859, %v4561, 0
      %v4607 = vsel %vm1859, %v4562, 0
      %v4610 = vsel %vm1859, %v4563, 0
      %v4613 = vsel %vm1859, %v4564, 0
      %v4616 = vsel %vm1859, %v4565, 0
      %v4619 = vsel %vm1859, %v4566, 0
      %v4622 = vsel %vm1859, %v4567, 0
      %v4625 = vsel %vm1859, %v4568, 0
      %v4628 = vsel %vm1859, %v4569, 0
      %v4631 = vsel %vm1859, %v4570, 0
      %v4634 = vsel %vm1914, %v4571, 0
      %4636 = vmatprep.subr.bf16.mxu0 0
      %4637 = vmatpush1.bf16.msra.mxu0 0
      %4638 = vmatprep.subr.bf16.mxu0 0
      %4639 = vmatpush1.bf16.msra.mxu0 0
      %4640 = vmatprep.subr.bf16.mxu0 0
      %4641 = vmatpush1.bf16.msra.mxu0 0
      %4642 = vmatprep.subr.bf16.mxu0 0
      %4643 = vmatpush1.bf16.msra.mxu0 0
      %4644 = vmatprep.subr.bf16.mxu0 0
      %4645 = vmatpush1.bf16.msra.mxu0 0
      %4646 = vmatprep.subr.bf16.mxu0 0
      %4647 = vmatpush1.bf16.msra.mxu0 0
      %4648 = vmatprep.subr.bf16.mxu0 0
      %4649 = vmatpush1.bf16.msra.mxu0 0
      %4650 = vmatprep.subr.bf16.mxu0 0
      %4651 = vmatpush1.bf16.msra.mxu0 %v4634
      %4652 = vmatprep.subr.bf16.mxu0 0
      %4653 = vmatpush2.bf16.msra.mxu0 0
      %4654 = vmatprep.subr.bf16.mxu0 0
      %4655 = vmatpush2.bf16.msra.mxu0 0
      %4656 = vmatprep.subr.bf16.mxu0 0
      %4657 = vmatpush2.bf16.msra.mxu0 0
      %4658 = vmatprep.subr.bf16.mxu0 0
      %4659 = vmatpush2.bf16.msra.mxu0 0
      %4660 = vmatprep.subr.bf16.mxu0 0
      %4661 = vmatpush2.bf16.msra.mxu0 0
      %4662 = vmatprep.subr.bf16.mxu0 0
      %4663 = vmatpush2.bf16.msra.mxu0 0
      %4664 = vmatprep.subr.bf16.mxu0 0
      %4665 = vmatpush2.bf16.msra.mxu0 0
      %4666 = vmatprep.subr.bf16.mxu0 0
      %4667 = vmatpush2.bf16.msra.mxu0 0
      %4668 = vmatprep.mubr.bf16.mxu0 0
      %4669 = vmatmul.mubr.bf16.gmra.mxu0 %v4580
      %v4670 = vpop.f32.mrf.mxu0
      %v4671 = vadd.f32 %v4577, %v4670
      %v4672 = vpop.f32.mrf.mxu0
      %v4673 = vpop.f32.mrf.mxu0
      %v4674 = vadd.f32 %v4577, %v4673
      %v4675 = vpop.f32.mrf.mxu0
      %4676 = vmatprep.mubr.bf16.mxu0 0
      %4677 = vmatmul.mubr.bf16.gmra.mxu0 %v4583
      %v4678 = vpop.f32.mrf.mxu0
      %v4679 = vadd.f32 %v4577, %v4678
      %v4680 = vpop.f32.mrf.mxu0
      %v4681 = vpop.f32.mrf.mxu0
      %v4682 = vadd.f32 %v4577, %v4681
      %v4683 = vpop.f32.mrf.mxu0
      %4684 = vmatprep.mubr.bf16.mxu0 0
      %4685 = vmatmul.mubr.bf16.gmra.mxu0 %v4586
      %v4686 = vpop.f32.mrf.mxu0
      %v4687 = vadd.f32 %v4577, %v4686
      %v4688 = vpop.f32.mrf.mxu0
      %v4689 = vpop.f32.mrf.mxu0
      %v4690 = vadd.f32 %v4577, %v4689
      %v4691 = vpop.f32.mrf.mxu0
      %4692 = vmatprep.mubr.bf16.mxu0 0
      %4693 = vmatmul.mubr.bf16.gmra.mxu0 %v4589
      %v4694 = vpop.f32.mrf.mxu0
      %v4695 = vadd.f32 %v4577, %v4694
      %v4696 = vpop.f32.mrf.mxu0
      %v4697 = vpop.f32.mrf.mxu0
      %v4698 = vadd.f32 %v4577, %v4697
      %v4699 = vpop.f32.mrf.mxu0
      %4700 = vmatprep.mubr.bf16.mxu0 0
      %4701 = vmatmul.mubr.bf16.gmra.mxu0 %v4592
      %v4702 = vpop.f32.mrf.mxu0
      %v4703 = vadd.f32 %v4577, %v4702
      %v4704 = vpop.f32.mrf.mxu0
      %v4705 = vpop.f32.mrf.mxu0
      %v4706 = vadd.f32 %v4577, %v4705
      %v4707 = vpop.f32.mrf.mxu0
      %4708 = vmatprep.mubr.bf16.mxu0 0
      %4709 = vmatmul.mubr.bf16.gmra.mxu0 %v4595
      %v4710 = vpop.f32.mrf.mxu0
      %v4711 = vadd.f32 %v4577, %v4710
      %v4712 = vpop.f32.mrf.mxu0
      %v4713 = vpop.f32.mrf.mxu0
      %v4714 = vadd.f32 %v4577, %v4713
      %v4715 = vpop.f32.mrf.mxu0
      %4716 = vmatprep.mubr.bf16.mxu0 0
      %4717 = vmatmul.mubr.bf16.gmra.mxu0 %v4598
      %v4718 = vpop.f32.mrf.mxu0
      %v4719 = vadd.f32 %v4577, %v4718
      %v4720 = vpop.f32.mrf.mxu0
      %v4721 = vpop.f32.mrf.mxu0
      %v4722 = vadd.f32 %v4577, %v4721
      %v4723 = vpop.f32.mrf.mxu0
      %4724 = vmatprep.mubr.bf16.mxu0 0
      %4725 = vmatmul.mubr.bf16.gmra.mxu0 %v4601
      %v4726 = vpop.f32.mrf.mxu0
      %v4727 = vadd.f32 %v4577, %v4726
      %v4728 = vpop.f32.mrf.mxu0
      %v4729 = vpop.f32.mrf.mxu0
      %v4730 = vadd.f32 %v4577, %v4729
      %v4731 = vpop.f32.mrf.mxu0
      %4732 = vmatprep.mubr.bf16.mxu0 0
      %4733 = vmatmul.mubr.bf16.gmra.mxu0 %v4604
      %v4734 = vpop.f32.mrf.mxu0
      %v4735 = vadd.f32 %v4577, %v4734
      %v4736 = vpop.f32.mrf.mxu0
      %v4737 = vpop.f32.mrf.mxu0
      %v4738 = vadd.f32 %v4577, %v4737
      %v4739 = vpop.f32.mrf.mxu0
      %4740 = vmatprep.mubr.bf16.mxu0 0
      %4741 = vmatmul.mubr.bf16.gmra.mxu0 %v4607
      %v4742 = vpop.f32.mrf.mxu0
      %v4743 = vadd.f32 %v4577, %v4742
      %v4744 = vpop.f32.mrf.mxu0
      %v4745 = vpop.f32.mrf.mxu0
      %v4746 = vadd.f32 %v4577, %v4745
      %v4747 = vpop.f32.mrf.mxu0
      %4748 = vmatprep.mubr.bf16.mxu0 0
      %4749 = vmatmul.mubr.bf16.gmra.mxu0 %v4610
      %v4750 = vpop.f32.mrf.mxu0
      %v4751 = vadd.f32 %v4577, %v4750
      %v4752 = vpop.f32.mrf.mxu0
      %v4753 = vpop.f32.mrf.mxu0
      %v4754 = vadd.f32 %v4577, %v4753
      %v4755 = vpop.f32.mrf.mxu0
      %4756 = vmatprep.mubr.bf16.mxu0 0
      %4757 = vmatmul.mubr.bf16.gmra.mxu0 %v4613
      %v4758 = vpop.f32.mrf.mxu0
      %v4759 = vadd.f32 %v4577, %v4758
      %v4760 = vpop.f32.mrf.mxu0
      %v4761 = vpop.f32.mrf.mxu0
      %v4762 = vadd.f32 %v4577, %v4761
      %v4763 = vpop.f32.mrf.mxu0
      %4764 = vmatprep.mubr.bf16.mxu0 0
      %4765 = vmatmul.mubr.bf16.gmra.mxu0 %v4616
      %v4766 = vpop.f32.mrf.mxu0
      %v4767 = vadd.f32 %v4577, %v4766
      %v4768 = vpop.f32.mrf.mxu0
      %v4769 = vpop.f32.mrf.mxu0
      %v4770 = vadd.f32 %v4577, %v4769
      %v4771 = vpop.f32.mrf.mxu0
      %4772 = vmatprep.mubr.bf16.mxu0 0
      %4773 = vmatmul.mubr.bf16.gmra.mxu0 %v4619
      %v4774 = vpop.f32.mrf.mxu0
      %v4775 = vadd.f32 %v4577, %v4774
      %v4776 = vpop.f32.mrf.mxu0
      %v4777 = vpop.f32.mrf.mxu0
      %v4778 = vadd.f32 %v4577, %v4777
      %v4779 = vpop.f32.mrf.mxu0
      %4780 = vmatprep.mubr.bf16.mxu0 0
      %4781 = vmatmul.mubr.bf16.gmra.mxu0 %v4622
      %v4782 = vpop.f32.mrf.mxu0
      %v4783 = vadd.f32 %v4577, %v4782
      %v4784 = vpop.f32.mrf.mxu0
      %v4785 = vpop.f32.mrf.mxu0
      %v4786 = vadd.f32 %v4577, %v4785
      %v4787 = vpop.f32.mrf.mxu0
      %4788 = vmatprep.mubr.bf16.mxu0 0
      %4789 = vmatmul.mubr.bf16.gmra.mxu0 %v4625
      %v4790 = vpop.f32.mrf.mxu0
      %v4791 = vadd.f32 %v4577, %v4790
      %v4792 = vpop.f32.mrf.mxu0
      %v4793 = vpop.f32.mrf.mxu0
      %v4794 = vadd.f32 %v4577, %v4793
      %v4795 = vpop.f32.mrf.mxu0
      %4796 = vmatprep.mubr.bf16.mxu0 0
      %4797 = vmatmul.mubr.bf16.gmra.mxu0 %v4628
      %v4798 = vpop.f32.mrf.mxu0
      %v4799 = vadd.f32 %v4577, %v4798
      %v4800 = vpop.f32.mrf.mxu0
      %v4801 = vpop.f32.mrf.mxu0
      %v4802 = vadd.f32 %v4577, %v4801
      %v4803 = vpop.f32.mrf.mxu0
      %4804 = vmatprep.mubr.bf16.mxu0 0
      %4805 = vmatmul.mubr.bf16.gmra.mxu0 %v4631
      %v4806 = vpop.f32.mrf.mxu0
      %v4807 = vadd.f32 %v4577, %v4806
      %v4808 = vpop.f32.mrf.mxu0
      %v4809 = vpop.f32.mrf.mxu0
      %v4810 = vadd.f32 %v4577, %v4809
      %v4811 = vpop.f32.mrf.mxu0
      %4812 = vdwg.mxu0
      %v4813 = vadd.s32 %v994, 19
      %v4814 = vadd.s32 %v995, 19
      %v4815 = vadd.s32 %v996, 19
      %v4816 = vadd.s32 %v997, 19
      %v4817 = vadd.s32 %v998, 19
      %v4818 = vadd.s32 %v999, 19
      %v4819 = vadd.s32 %v1000, 19
      %v4820 = vadd.s32 %v1001, 19
      %v4821 = vadd.s32 %v1002, 19
      %v4822 = vadd.s32 %v1003, 19
      %v4823 = vadd.s32 %v1004, 19
      %v4824 = vadd.s32 %v1005, 19
      %v4825 = vadd.s32 %v1006, 19
      %v4826 = vadd.s32 %v1007, 19
      %v4827 = vadd.s32 %v1008, 19
      %v4828 = vadd.s32 %v1009, 19
      %v4829 = vadd.s32 %v1010, 19
      %v4830 = vadd.s32 %v1011, 19
      %v4831 = vadd.s32 %v1012, 19
      %v4832 = vadd.s32 %v1013, 19
      %v4833 = vadd.s32 %v1014, 19
      %v4834 = vadd.s32 %v1015, 19
      %v4835 = vadd.s32 %v1016, 19
      %v4836 = vadd.s32 %v1017, 19
      %v4837 = vadd.s32 %v1018, 19
      %v4838 = vadd.s32 %v1019, 19
      %v4839 = vadd.s32 %v1020, 19
      %v4840 = vadd.s32 %v1021, 19
      %v4841 = vadd.s32 %v1022, 19
      %v4842 = vadd.s32 %v1023, 19
      %v4843 = vadd.s32 %v1024, 19
      %v4844 = vadd.s32 %v1025, 19
      %v4845 = vadd.s32 %v1026, 19
      %v4846 = vadd.s32 %v1027, 19
      %v4847 = vadd.s32 %v1028, 19
      %v4848 = vadd.s32 %v1029, 19
      %v4849 = vcvt.s32.f32 %v4813
      %v4850 = vcvt.s32.f32 %v4814
      %v4851 = vcvt.s32.f32 %v4815
      %v4852 = vcvt.s32.f32 %v4816
      %v4853 = vcvt.s32.f32 %v4817
      %v4854 = vcvt.s32.f32 %v4818
      %v4855 = vcvt.s32.f32 %v4819
      %v4856 = vcvt.s32.f32 %v4820
      %v4857 = vcvt.s32.f32 %v4821
      %v4858 = vcvt.s32.f32 %v4822
      %v4859 = vcvt.s32.f32 %v4823
      %v4860 = vcvt.s32.f32 %v4824
      %v4861 = vcvt.s32.f32 %v4825
      %v4862 = vcvt.s32.f32 %v4826
      %v4863 = vcvt.s32.f32 %v4827
      %v4864 = vcvt.s32.f32 %v4828
      %v4865 = vcvt.s32.f32 %v4829
      %v4866 = vcvt.s32.f32 %v4830
      %v4867 = vcvt.s32.f32 %v4831
      %v4868 = vcvt.s32.f32 %v4832
      %v4869 = vcvt.s32.f32 %v4833
      %v4870 = vcvt.s32.f32 %v4834
      %v4871 = vcvt.s32.f32 %v4835
      %v4872 = vcvt.s32.f32 %v4836
      %v4873 = vcvt.s32.f32 %v4837
      %v4874 = vcvt.s32.f32 %v4838
      %v4875 = vcvt.s32.f32 %v4839
      %v4876 = vcvt.s32.f32 %v4840
      %v4877 = vcvt.s32.f32 %v4841
      %v4878 = vcvt.s32.f32 %v4842
      %v4879 = vcvt.s32.f32 %v4843
      %v4880 = vcvt.s32.f32 %v4844
      %v4881 = vcvt.s32.f32 %v4845
      %v4882 = vcvt.s32.f32 %v4846
      %v4883 = vcvt.s32.f32 %v4847
      %v4884 = vcvt.s32.f32 %v4848
      %v4885 = vadd.f32 %v4849, 0.5
      %v4886 = vadd.f32 %v4850, 0.5
      %v4887 = vadd.f32 %v4851, 0.5
      %v4888 = vadd.f32 %v4852, 0.5
      %v4889 = vadd.f32 %v4853, 0.5
      %v4890 = vadd.f32 %v4854, 0.5
      %v4891 = vadd.f32 %v4855, 0.5
      %v4892 = vadd.f32 %v4856, 0.5
      %v4893 = vadd.f32 %v4857, 0.5
      %v4894 = vadd.f32 %v4858, 0.5
      %v4895 = vadd.f32 %v4859, 0.5
      %v4896 = vadd.f32 %v4860, 0.5
      %v4897 = vadd.f32 %v4861, 0.5
      %v4898 = vadd.f32 %v4862, 0.5
      %v4899 = vadd.f32 %v4863, 0.5
      %v4900 = vadd.f32 %v4864, 0.5
      %v4901 = vadd.f32 %v4865, 0.5
      %v4902 = vadd.f32 %v4866, 0.5
      %v4903 = vadd.f32 %v4867, 0.5
      %v4904 = vadd.f32 %v4868, 0.5
      %v4905 = vadd.f32 %v4869, 0.5
      %v4906 = vadd.f32 %v4870, 0.5
      %v4907 = vadd.f32 %v4871, 0.5
      %v4908 = vadd.f32 %v4872, 0.5
      %v4909 = vadd.f32 %v4873, 0.5
      %v4910 = vadd.f32 %v4874, 0.5
      %v4911 = vadd.f32 %v4875, 0.5
      %v4912 = vadd.f32 %v4876, 0.5
      %v4913 = vadd.f32 %v4877, 0.5
      %v4914 = vadd.f32 %v4878, 0.5
      %v4915 = vadd.f32 %v4879, 0.5
      %v4916 = vadd.f32 %v4880, 0.5
      %v4917 = vadd.f32 %v4881, 0.5
      %v4918 = vadd.f32 %v4882, 0.5
      %v4919 = vadd.f32 %v4883, 0.5
      %v4920 = vadd.f32 %v4884, 0.5
      %v4921 = vmul.f32 %v4885, 0.055555556
      %v4922 = vmul.f32 %v4886, 0.055555556
      %v4923 = vmul.f32 %v4887, 0.055555556
      %v4924 = vmul.f32 %v4888, 0.055555556
      %v4925 = vmul.f32 %v4889, 0.055555556
      %v4926 = vmul.f32 %v4890, 0.055555556
      %v4927 = vmul.f32 %v4891, 0.055555556
      %v4928 = vmul.f32 %v4892, 0.055555556
      %v4929 = vmul.f32 %v4893, 0.055555556
      %v4930 = vmul.f32 %v4894, 0.055555556
      %v4931 = vmul.f32 %v4895, 0.055555556
      %v4932 = vmul.f32 %v4896, 0.055555556
      %v4933 = vmul.f32 %v4897, 0.055555556
      %v4934 = vmul.f32 %v4898, 0.055555556
      %v4935 = vmul.f32 %v4899, 0.055555556
      %v4936 = vmul.f32 %v4900, 0.055555556
      %v4937 = vmul.f32 %v4901, 0.055555556
      %v4938 = vmul.f32 %v4902, 0.055555556
      %v4939 = vmul.f32 %v4903, 0.055555556
      %v4940 = vmul.f32 %v4904, 0.055555556
      %v4941 = vmul.f32 %v4905, 0.055555556
      %v4942 = vmul.f32 %v4906, 0.055555556
      %v4943 = vmul.f32 %v4907, 0.055555556
      %v4944 = vmul.f32 %v4908, 0.055555556
      %v4945 = vmul.f32 %v4909, 0.055555556
      %v4946 = vmul.f32 %v4910, 0.055555556
      %v4947 = vmul.f32 %v4911, 0.055555556
      %v4948 = vmul.f32 %v4912, 0.055555556
      %v4949 = vmul.f32 %v4913, 0.055555556
      %v4950 = vmul.f32 %v4914, 0.055555556
      %v4951 = vmul.f32 %v4915, 0.055555556
      %v4952 = vmul.f32 %v4916, 0.055555556
      %v4953 = vmul.f32 %v4917, 0.055555556
      %v4954 = vmul.f32 %v4918, 0.055555556
      %v4955 = vmul.f32 %v4919, 0.055555556
      %v4956 = vmul.f32 %v4920, 0.055555556
      %v4957 = vcvt.f32.s32.to.zero.pseudo %v4921
      %v4958 = vcvt.f32.s32.to.zero.pseudo %v4922
      %v4959 = vcvt.f32.s32.to.zero.pseudo %v4923
      %v4960 = vcvt.f32.s32.to.zero.pseudo %v4924
      %v4961 = vcvt.f32.s32.to.zero.pseudo %v4925
      %v4962 = vcvt.f32.s32.to.zero.pseudo %v4926
      %v4963 = vcvt.f32.s32.to.zero.pseudo %v4927
      %v4964 = vcvt.f32.s32.to.zero.pseudo %v4928
      %v4965 = vcvt.f32.s32.to.zero.pseudo %v4929
      %v4966 = vcvt.f32.s32.to.zero.pseudo %v4930
      %v4967 = vcvt.f32.s32.to.zero.pseudo %v4931
      %v4968 = vcvt.f32.s32.to.zero.pseudo %v4932
      %v4969 = vcvt.f32.s32.to.zero.pseudo %v4933
      %v4970 = vcvt.f32.s32.to.zero.pseudo %v4934
      %v4971 = vcvt.f32.s32.to.zero.pseudo %v4935
      %v4972 = vcvt.f32.s32.to.zero.pseudo %v4936
      %v4973 = vcvt.f32.s32.to.zero.pseudo %v4937
      %v4974 = vcvt.f32.s32.to.zero.pseudo %v4938
      %v4975 = vcvt.f32.s32.to.zero.pseudo %v4939
      %v4976 = vcvt.f32.s32.to.zero.pseudo %v4940
      %v4977 = vcvt.f32.s32.to.zero.pseudo %v4941
      %v4978 = vcvt.f32.s32.to.zero.pseudo %v4942
      %v4979 = vcvt.f32.s32.to.zero.pseudo %v4943
      %v4980 = vcvt.f32.s32.to.zero.pseudo %v4944
      %v4981 = vcvt.f32.s32.to.zero.pseudo %v4945
      %v4982 = vcvt.f32.s32.to.zero.pseudo %v4946
      %v4983 = vcvt.f32.s32.to.zero.pseudo %v4947
      %v4984 = vcvt.f32.s32.to.zero.pseudo %v4948
      %v4985 = vcvt.f32.s32.to.zero.pseudo %v4949
      %v4986 = vcvt.f32.s32.to.zero.pseudo %v4950
      %v4987 = vcvt.f32.s32.to.zero.pseudo %v4951
      %v4988 = vcvt.f32.s32.to.zero.pseudo %v4952
      %v4989 = vcvt.f32.s32.to.zero.pseudo %v4953
      %v4990 = vcvt.f32.s32.to.zero.pseudo %v4954
      %v4991 = vcvt.f32.s32.to.zero.pseudo %v4955
      %v4992 = vcvt.f32.s32.to.zero.pseudo %v4956
      %v4993 = vmul.u32 %v4957, 18
      %v4994 = vmul.u32 %v4958, 18
      %v4995 = vmul.u32 %v4959, 18
      %v4996 = vmul.u32 %v4960, 18
      %v4997 = vmul.u32 %v4961, 18
      %v4998 = vmul.u32 %v4962, 18
      %v4999 = vmul.u32 %v4963, 18
      %v5000 = vmul.u32 %v4964, 18
      %v5001 = vmul.u32 %v4965, 18
      %v5002 = vmul.u32 %v4966, 18
      %v5003 = vmul.u32 %v4967, 18
      %v5004 = vmul.u32 %v4968, 18
      %v5005 = vmul.u32 %v4969, 18
      %v5006 = vmul.u32 %v4970, 18
      %v5007 = vmul.u32 %v4971, 18
      %v5008 = vmul.u32 %v4972, 18
      %v5009 = vmul.u32 %v4973, 18
      %v5010 = vmul.u32 %v4974, 18
      %v5011 = vmul.u32 %v4975, 18
      %v5012 = vmul.u32 %v4976, 18
      %v5013 = vmul.u32 %v4977, 18
      %v5014 = vmul.u32 %v4978, 18
      %v5015 = vmul.u32 %v4979, 18
      %v5016 = vmul.u32 %v4980, 18
      %v5017 = vmul.u32 %v4981, 18
      %v5018 = vmul.u32 %v4982, 18
      %v5019 = vmul.u32 %v4983, 18
      %v5020 = vmul.u32 %v4984, 18
      %v5021 = vmul.u32 %v4985, 18
      %v5022 = vmul.u32 %v4986, 18
      %v5023 = vmul.u32 %v4987, 18
      %v5024 = vmul.u32 %v4988, 18
      %v5025 = vmul.u32 %v4989, 18
      %v5026 = vmul.u32 %v4990, 18
      %v5027 = vmul.u32 %v4991, 18
      %v5028 = vmul.u32 %v4992, 18
      %v5029 = vsub.s32 %v4813, %v4993
      %v5030 = vsub.s32 %v4814, %v4994
      %v5031 = vsub.s32 %v4815, %v4995
      %v5032 = vsub.s32 %v4816, %v4996
      %v5033 = vsub.s32 %v4817, %v4997
      %v5034 = vsub.s32 %v4818, %v4998
      %v5035 = vsub.s32 %v4819, %v4999
      %v5036 = vsub.s32 %v4820, %v5000
      %v5037 = vsub.s32 %v4821, %v5001
      %v5038 = vsub.s32 %v4822, %v5002
      %v5039 = vsub.s32 %v4823, %v5003
      %v5040 = vsub.s32 %v4824, %v5004
      %v5041 = vsub.s32 %v4825, %v5005
      %v5042 = vsub.s32 %v4826, %v5006
      %v5043 = vsub.s32 %v4827, %v5007
      %v5044 = vsub.s32 %v4828, %v5008
      %v5045 = vsub.s32 %v4829, %v5009
      %v5046 = vsub.s32 %v4830, %v5010
      %v5047 = vsub.s32 %v4831, %v5011
      %v5048 = vsub.s32 %v4832, %v5012
      %v5049 = vsub.s32 %v4833, %v5013
      %v5050 = vsub.s32 %v4834, %v5014
      %v5051 = vsub.s32 %v4835, %v5015
      %v5052 = vsub.s32 %v4836, %v5016
      %v5053 = vsub.s32 %v4837, %v5017
      %v5054 = vsub.s32 %v4838, %v5018
      %v5055 = vsub.s32 %v4839, %v5019
      %v5056 = vsub.s32 %v4840, %v5020
      %v5057 = vsub.s32 %v4841, %v5021
      %v5058 = vsub.s32 %v4842, %v5022
      %v5059 = vsub.s32 %v4843, %v5023
      %v5060 = vsub.s32 %v4844, %v5024
      %v5061 = vsub.s32 %v4845, %v5025
      %v5062 = vsub.s32 %v4846, %v5026
      %v5063 = vsub.s32 %v4847, %v5027
      %v5064 = vsub.s32 %v4848, %v5028
      %vm5065 = vcmp.ge.s32.totalorder %v4957, 1
      %vm5066 = vcmp.ge.s32.totalorder %v4958, 1
      %vm5067 = vcmp.ge.s32.totalorder %v4959, 1
      %vm5068 = vcmp.ge.s32.totalorder %v4960, 1
      %vm5069 = vcmp.ge.s32.totalorder %v4961, 1
      %vm5070 = vcmp.ge.s32.totalorder %v4962, 1
      %vm5071 = vcmp.ge.s32.totalorder %v4963, 1
      %vm5072 = vcmp.ge.s32.totalorder %v4964, 1
      %vm5073 = vcmp.ge.s32.totalorder %v4965, 1
      %vm5074 = vcmp.ge.s32.totalorder %v4966, 1
      %vm5075 = vcmp.ge.s32.totalorder %v4967, 1
      %vm5076 = vcmp.ge.s32.totalorder %v4968, 1
      %vm5077 = vcmp.ge.s32.totalorder %v4969, 1
      %vm5078 = vcmp.ge.s32.totalorder %v4970, 1
      %vm5079 = vcmp.ge.s32.totalorder %v4971, 1
      %vm5080 = vcmp.ge.s32.totalorder %v4972, 1
      %vm5081 = vcmp.ge.s32.totalorder %v4973, 1
      %vm5082 = vcmp.ge.s32.totalorder %v4974, 1
      %vm5083 = vcmp.ge.s32.totalorder %v4975, 1
      %vm5084 = vcmp.ge.s32.totalorder %v4976, 1
      %vm5085 = vcmp.ge.s32.totalorder %v4977, 1
      %vm5086 = vcmp.ge.s32.totalorder %v4978, 1
      %vm5087 = vcmp.ge.s32.totalorder %v4979, 1
      %vm5088 = vcmp.ge.s32.totalorder %v4980, 1
      %vm5089 = vcmp.ge.s32.totalorder %v4981, 1
      %vm5090 = vcmp.ge.s32.totalorder %v4982, 1
      %vm5091 = vcmp.ge.s32.totalorder %v4983, 1
      %vm5092 = vcmp.ge.s32.totalorder %v4984, 1
      %vm5093 = vcmp.ge.s32.totalorder %v4985, 1
      %vm5094 = vcmp.ge.s32.totalorder %v4986, 1
      %vm5095 = vcmp.ge.s32.totalorder %v4987, 1
      %vm5096 = vcmp.ge.s32.totalorder %v4988, 1
      %vm5097 = vcmp.ge.s32.totalorder %v4989, 1
      %vm5098 = vcmp.ge.s32.totalorder %v4990, 1
      %vm5099 = vcmp.ge.s32.totalorder %v4991, 1
      %vm5100 = vcmp.ge.s32.totalorder %v4992, 1
      %vm5101 = vcmp.le.s32.totalorder %v4957, 16
      %vm5102 = vcmp.le.s32.totalorder %v4958, 16
      %vm5103 = vcmp.le.s32.totalorder %v4959, 16
      %vm5104 = vcmp.le.s32.totalorder %v4960, 16
      %vm5105 = vcmp.le.s32.totalorder %v4961, 16
      %vm5106 = vcmp.le.s32.totalorder %v4962, 16
      %vm5107 = vcmp.le.s32.totalorder %v4963, 16
      %vm5108 = vcmp.le.s32.totalorder %v4964, 16
      %vm5109 = vcmp.le.s32.totalorder %v4965, 16
      %vm5110 = vcmp.le.s32.totalorder %v4966, 16
      %vm5111 = vcmp.le.s32.totalorder %v4967, 16
      %vm5112 = vcmp.le.s32.totalorder %v4968, 16
      %vm5113 = vcmp.le.s32.totalorder %v4969, 16
      %vm5114 = vcmp.le.s32.totalorder %v4970, 16
      %vm5115 = vcmp.le.s32.totalorder %v4971, 16
      %vm5116 = vcmp.le.s32.totalorder %v4972, 16
      %vm5117 = vcmp.le.s32.totalorder %v4973, 16
      %vm5118 = vcmp.le.s32.totalorder %v4974, 16
      %vm5119 = vcmp.le.s32.totalorder %v4975, 16
      %vm5120 = vcmp.le.s32.totalorder %v4976, 16
      %vm5121 = vcmp.le.s32.totalorder %v4977, 16
      %vm5122 = vcmp.le.s32.totalorder %v4978, 16
      %vm5123 = vcmp.le.s32.totalorder %v4979, 16
      %vm5124 = vcmp.le.s32.totalorder %v4980, 16
      %vm5125 = vcmp.le.s32.totalorder %v4981, 16
      %vm5126 = vcmp.le.s32.totalorder %v4982, 16
      %vm5127 = vcmp.le.s32.totalorder %v4983, 16
      %vm5128 = vcmp.le.s32.totalorder %v4984, 16
      %vm5129 = vcmp.le.s32.totalorder %v4985, 16
      %vm5130 = vcmp.le.s32.totalorder %v4986, 16
      %vm5131 = vcmp.le.s32.totalorder %v4987, 16
      %vm5132 = vcmp.le.s32.totalorder %v4988, 16
      %vm5133 = vcmp.le.s32.totalorder %v4989, 16
      %vm5134 = vcmp.le.s32.totalorder %v4990, 16
      %vm5135 = vcmp.le.s32.totalorder %v4991, 16
      %vm5136 = vcmp.le.s32.totalorder %v4992, 16
      %vm5137 = vmand %vm5065, %vm5101
      %vm5138 = vmand %vm5066, %vm5102
      %vm5139 = vmand %vm5067, %vm5103
      %vm5140 = vmand %vm5068, %vm5104
      %vm5141 = vmand %vm5069, %vm5105
      %vm5142 = vmand %vm5070, %vm5106
      %vm5143 = vmand %vm5071, %vm5107
      %vm5144 = vmand %vm5072, %vm5108
      %vm5145 = vmand %vm5073, %vm5109
      %vm5146 = vmand %vm5074, %vm5110
      %vm5147 = vmand %vm5075, %vm5111
      %vm5148 = vmand %vm5076, %vm5112
      %vm5149 = vmand %vm5077, %vm5113
      %vm5150 = vmand %vm5078, %vm5114
      %vm5151 = vmand %vm5079, %vm5115
      %vm5152 = vmand %vm5080, %vm5116
      %vm5153 = vmand %vm5081, %vm5117
      %vm5154 = vmand %vm5082, %vm5118
      %vm5155 = vmand %vm5083, %vm5119
      %vm5156 = vmand %vm5084, %vm5120
      %vm5157 = vmand %vm5085, %vm5121
      %vm5158 = vmand %vm5086, %vm5122
      %vm5159 = vmand %vm5087, %vm5123
      %vm5160 = vmand %vm5088, %vm5124
      %vm5161 = vmand %vm5089, %vm5125
      %vm5162 = vmand %vm5090, %vm5126
      %vm5163 = vmand %vm5091, %vm5127
      %vm5164 = vmand %vm5092, %vm5128
      %vm5165 = vmand %vm5093, %vm5129
      %vm5166 = vmand %vm5094, %vm5130
      %vm5167 = vmand %vm5095, %vm5131
      %vm5168 = vmand %vm5096, %vm5132
      %vm5169 = vmand %vm5097, %vm5133
      %vm5170 = vmand %vm5098, %vm5134
      %vm5171 = vmand %vm5099, %vm5135
      %vm5172 = vmand %vm5100, %vm5136
      %vm5173 = vcmp.ge.s32.totalorder %v5029, 1
      %vm5174 = vcmp.ge.s32.totalorder %v5030, 1
      %vm5175 = vcmp.ge.s32.totalorder %v5031, 1
      %vm5176 = vcmp.ge.s32.totalorder %v5032, 1
      %vm5177 = vcmp.ge.s32.totalorder %v5033, 1
      %vm5178 = vcmp.ge.s32.totalorder %v5034, 1
      %vm5179 = vcmp.ge.s32.totalorder %v5035, 1
      %vm5180 = vcmp.ge.s32.totalorder %v5036, 1
      %vm5181 = vcmp.ge.s32.totalorder %v5037, 1
      %vm5182 = vcmp.ge.s32.totalorder %v5038, 1
      %vm5183 = vcmp.ge.s32.totalorder %v5039, 1
      %vm5184 = vcmp.ge.s32.totalorder %v5040, 1
      %vm5185 = vcmp.ge.s32.totalorder %v5041, 1
      %vm5186 = vcmp.ge.s32.totalorder %v5042, 1
      %vm5187 = vcmp.ge.s32.totalorder %v5043, 1
      %vm5188 = vcmp.ge.s32.totalorder %v5044, 1
      %vm5189 = vcmp.ge.s32.totalorder %v5045, 1
      %vm5190 = vcmp.ge.s32.totalorder %v5046, 1
      %vm5191 = vcmp.ge.s32.totalorder %v5047, 1
      %vm5192 = vcmp.ge.s32.totalorder %v5048, 1
      %vm5193 = vcmp.ge.s32.totalorder %v5049, 1
      %vm5194 = vcmp.ge.s32.totalorder %v5050, 1
      %vm5195 = vcmp.ge.s32.totalorder %v5051, 1
      %vm5196 = vcmp.ge.s32.totalorder %v5052, 1
      %vm5197 = vcmp.ge.s32.totalorder %v5053, 1
      %vm5198 = vcmp.ge.s32.totalorder %v5054, 1
      %vm5199 = vcmp.ge.s32.totalorder %v5055, 1
      %vm5200 = vcmp.ge.s32.totalorder %v5056, 1
      %vm5201 = vcmp.ge.s32.totalorder %v5057, 1
      %vm5202 = vcmp.ge.s32.totalorder %v5058, 1
      %vm5203 = vcmp.ge.s32.totalorder %v5059, 1
      %vm5204 = vcmp.ge.s32.totalorder %v5060, 1
      %vm5205 = vcmp.ge.s32.totalorder %v5061, 1
      %vm5206 = vcmp.ge.s32.totalorder %v5062, 1
      %vm5207 = vcmp.ge.s32.totalorder %v5063, 1
      %vm5208 = vcmp.ge.s32.totalorder %v5064, 1
      %vm5209 = vmand %vm5137, %vm5173
      %vm5210 = vmand %vm5138, %vm5174
      %vm5211 = vmand %vm5139, %vm5175
      %vm5212 = vmand %vm5140, %vm5176
      %vm5213 = vmand %vm5141, %vm5177
      %vm5214 = vmand %vm5142, %vm5178
      %vm5215 = vmand %vm5143, %vm5179
      %vm5216 = vmand %vm5144, %vm5180
      %vm5217 = vmand %vm5145, %vm5181
      %vm5218 = vmand %vm5146, %vm5182
      %vm5219 = vmand %vm5147, %vm5183
      %vm5220 = vmand %vm5148, %vm5184
      %vm5221 = vmand %vm5149, %vm5185
      %vm5222 = vmand %vm5150, %vm5186
      %vm5223 = vmand %vm5151, %vm5187
      %vm5224 = vmand %vm5152, %vm5188
      %vm5225 = vmand %vm5153, %vm5189
      %vm5226 = vmand %vm5154, %vm5190
      %vm5227 = vmand %vm5155, %vm5191
      %vm5228 = vmand %vm5156, %vm5192
      %vm5229 = vmand %vm5157, %vm5193
      %vm5230 = vmand %vm5158, %vm5194
      %vm5231 = vmand %vm5159, %vm5195
      %vm5232 = vmand %vm5160, %vm5196
      %vm5233 = vmand %vm5161, %vm5197
      %vm5234 = vmand %vm5162, %vm5198
      %vm5235 = vmand %vm5163, %vm5199
      %vm5236 = vmand %vm5164, %vm5200
      %vm5237 = vmand %vm5165, %vm5201
      %vm5238 = vmand %vm5166, %vm5202
      %vm5239 = vmand %vm5167, %vm5203
      %vm5240 = vmand %vm5168, %vm5204
      %vm5241 = vmand %vm5169, %vm5205
      %vm5242 = vmand %vm5170, %vm5206
      %vm5243 = vmand %vm5171, %vm5207
      %vm5244 = vmand %vm5172, %vm5208
      %vm5245 = vcmp.le.s32.totalorder %v5029, 16
      %vm5246 = vcmp.le.s32.totalorder %v5030, 16
      %vm5247 = vcmp.le.s32.totalorder %v5031, 16
      %vm5248 = vcmp.le.s32.totalorder %v5032, 16
      %vm5249 = vcmp.le.s32.totalorder %v5033, 16
      %vm5250 = vcmp.le.s32.totalorder %v5034, 16
      %vm5251 = vcmp.le.s32.totalorder %v5035, 16
      %vm5252 = vcmp.le.s32.totalorder %v5036, 16
      %vm5253 = vcmp.le.s32.totalorder %v5037, 16
      %vm5254 = vcmp.le.s32.totalorder %v5038, 16
      %vm5255 = vcmp.le.s32.totalorder %v5039, 16
      %vm5256 = vcmp.le.s32.totalorder %v5040, 16
      %vm5257 = vcmp.le.s32.totalorder %v5041, 16
      %vm5258 = vcmp.le.s32.totalorder %v5042, 16
      %vm5259 = vcmp.le.s32.totalorder %v5043, 16
      %vm5260 = vcmp.le.s32.totalorder %v5044, 16
      %vm5261 = vcmp.le.s32.totalorder %v5045, 16
      %vm5262 = vcmp.le.s32.totalorder %v5046, 16
      %vm5263 = vcmp.le.s32.totalorder %v5047, 16
      %vm5264 = vcmp.le.s32.totalorder %v5048, 16
      %vm5265 = vcmp.le.s32.totalorder %v5049, 16
      %vm5266 = vcmp.le.s32.totalorder %v5050, 16
      %vm5267 = vcmp.le.s32.totalorder %v5051, 16
      %vm5268 = vcmp.le.s32.totalorder %v5052, 16
      %vm5269 = vcmp.le.s32.totalorder %v5053, 16
      %vm5270 = vcmp.le.s32.totalorder %v5054, 16
      %vm5271 = vcmp.le.s32.totalorder %v5055, 16
      %vm5272 = vcmp.le.s32.totalorder %v5056, 16
      %vm5273 = vcmp.le.s32.totalorder %v5057, 16
      %vm5274 = vcmp.le.s32.totalorder %v5058, 16
      %vm5275 = vcmp.le.s32.totalorder %v5059, 16
      %vm5276 = vcmp.le.s32.totalorder %v5060, 16
      %vm5277 = vcmp.le.s32.totalorder %v5061, 16
      %vm5278 = vcmp.le.s32.totalorder %v5062, 16
      %vm5279 = vcmp.le.s32.totalorder %v5063, 16
      %vm5280 = vcmp.le.s32.totalorder %v5064, 16
      %vm5281 = vmand %vm5209, %vm5245
      %vm5282 = vmand %vm5210, %vm5246
      %vm5283 = vmand %vm5211, %vm5247
      %vm5284 = vmand %vm5212, %vm5248
      %vm5285 = vmand %vm5213, %vm5249
      %vm5286 = vmand %vm5214, %vm5250
      %vm5287 = vmand %vm5215, %vm5251
      %vm5288 = vmand %vm5216, %vm5252
      %vm5289 = vmand %vm5217, %vm5253
      %vm5290 = vmand %vm5218, %vm5254
      %vm5291 = vmand %vm5219, %vm5255
      %vm5292 = vmand %vm5220, %vm5256
      %vm5293 = vmand %vm5221, %vm5257
      %vm5294 = vmand %vm5222, %vm5258
      %vm5295 = vmand %vm5223, %vm5259
      %vm5296 = vmand %vm5224, %vm5260
      %vm5297 = vmand %vm5225, %vm5261
      %vm5298 = vmand %vm5226, %vm5262
      %vm5299 = vmand %vm5227, %vm5263
      %vm5300 = vmand %vm5228, %vm5264
      %vm5301 = vmand %vm5229, %vm5265
      %vm5302 = vmand %vm5230, %vm5266
      %vm5303 = vmand %vm5231, %vm5267
      %vm5304 = vmand %vm5232, %vm5268
      %vm5305 = vmand %vm5233, %vm5269
      %vm5306 = vmand %vm5234, %vm5270
      %vm5307 = vmand %vm5235, %vm5271
      %vm5308 = vmand %vm5236, %vm5272
      %vm5309 = vmand %vm5237, %vm5273
      %vm5310 = vmand %vm5238, %vm5274
      %vm5311 = vmand %vm5239, %vm5275
      %vm5312 = vmand %vm5240, %vm5276
      %vm5313 = vmand %vm5241, %vm5277
      %vm5314 = vmand %vm5242, %vm5278
      %vm5315 = vmand %vm5243, %vm5279
      %vm5316 = vmand %vm5244, %vm5280
      %v5317 = vsel %vm5281, 1, 0
      %v5318 = vsel %vm5282, 1, 0
      %v5319 = vsel %vm5283, 1, 0
      %v5320 = vsel %vm5284, 1, 0
      %v5321 = vsel %vm5285, 1, 0
      %v5322 = vsel %vm5286, 1, 0
      %v5323 = vsel %vm5287, 1, 0
      %v5324 = vsel %vm5288, 1, 0
      %v5325 = vsel %vm5289, 1, 0
      %v5326 = vsel %vm5290, 1, 0
      %v5327 = vsel %vm5291, 1, 0
      %v5328 = vsel %vm5292, 1, 0
      %v5329 = vsel %vm5293, 1, 0
      %v5330 = vsel %vm5294, 1, 0
      %v5331 = vsel %vm5295, 1, 0
      %v5332 = vsel %vm5296, 1, 0
      %v5333 = vsel %vm5297, 1, 0
      %v5334 = vsel %vm5298, 1, 0
      %v5335 = vsel %vm5299, 1, 0
      %v5336 = vsel %vm5300, 1, 0
      %v5337 = vsel %vm5301, 1, 0
      %v5338 = vsel %vm5302, 1, 0
      %v5339 = vsel %vm5303, 1, 0
      %v5340 = vsel %vm5304, 1, 0
      %v5341 = vsel %vm5305, 1, 0
      %v5342 = vsel %vm5306, 1, 0
      %v5343 = vsel %vm5307, 1, 0
      %v5344 = vsel %vm5308, 1, 0
      %v5345 = vsel %vm5309, 1, 0
      %v5346 = vsel %vm5310, 1, 0
      %v5347 = vsel %vm5311, 1, 0
      %v5348 = vsel %vm5312, 1, 0
      %v5349 = vsel %vm5313, 1, 0
      %v5350 = vsel %vm5314, 1, 0
      %v5351 = vsel %vm5315, 1, 0
      %v5352 = vsel %vm5316, 1, 0
      %v5353 = vcvt.s32.f32 %v5317
      %v5354 = vcvt.s32.f32 %v5318
      %v5355 = vcvt.s32.f32 %v5319
      %v5356 = vcvt.s32.f32 %v5320
      %v5357 = vcvt.s32.f32 %v5321
      %v5358 = vcvt.s32.f32 %v5322
      %v5359 = vcvt.s32.f32 %v5323
      %v5360 = vcvt.s32.f32 %v5324
      %v5361 = vcvt.s32.f32 %v5325
      %v5362 = vcvt.s32.f32 %v5326
      %v5363 = vcvt.s32.f32 %v5327
      %v5364 = vcvt.s32.f32 %v5328
      %v5365 = vcvt.s32.f32 %v5329
      %v5366 = vcvt.s32.f32 %v5330
      %v5367 = vcvt.s32.f32 %v5331
      %v5368 = vcvt.s32.f32 %v5332
      %v5369 = vcvt.s32.f32 %v5333
      %v5370 = vcvt.s32.f32 %v5334
      %v5371 = vcvt.s32.f32 %v5335
      %v5372 = vcvt.s32.f32 %v5336
      %v5373 = vcvt.s32.f32 %v5337
      %v5374 = vcvt.s32.f32 %v5338
      %v5375 = vcvt.s32.f32 %v5339
      %v5376 = vcvt.s32.f32 %v5340
      %v5377 = vcvt.s32.f32 %v5341
      %v5378 = vcvt.s32.f32 %v5342
      %v5379 = vcvt.s32.f32 %v5343
      %v5380 = vcvt.s32.f32 %v5344
      %v5381 = vcvt.s32.f32 %v5345
      %v5382 = vcvt.s32.f32 %v5346
      %v5383 = vcvt.s32.f32 %v5347
      %v5384 = vcvt.s32.f32 %v5348
      %v5385 = vcvt.s32.f32 %v5349
      %v5386 = vcvt.s32.f32 %v5350
      %v5387 = vcvt.s32.f32 %v5351
      %v5388 = vcvt.s32.f32 %v5352
      %vm5426 = vcmask 1044480
      %v5427 = vrot.slane %v390, 3
      %v5428 = vrot.slane %v391, 3
      %v5429 = vsel %vm5426, %v5427, %v5428
      %v5430 = vrot.slane %v392, 3
      %v5431 = vsel %vm5426, %v5428, %v5430
      %v5432 = vrot.slane %v393, 3
      %v5433 = vsel %vm5426, %v5430, %v5432
      %v5434 = vrot.slane %v394, 3
      %v5435 = vsel %vm5426, %v5432, %v5434
      %v5436 = vrot.slane %v395, 3
      %v5437 = vsel %vm5426, %v5434, %v5436
      %v5438 = vrot.slane %v396, 3
      %v5439 = vsel %vm5426, %v5436, %v5438
      %v5440 = vrot.slane %v397, 3
      %v5441 = vsel %vm5426, %v5438, %v5440
      %v5442 = vrot.slane %v398, 3
      %v5443 = vsel %vm5426, %v5440, %v5442
      %v5444 = vrot.slane %v399, 3
      %v5445 = vsel %vm5426, %v5442, %v5444
      %v5446 = vrot.slane %v400, 3
      %v5447 = vsel %vm5426, %v5444, %v5446
      %v5448 = vrot.slane %v401, 3
      %v5449 = vsel %vm5426, %v5446, %v5448
      %v5450 = vrot.slane %v402, 3
      %v5451 = vsel %vm5426, %v5448, %v5450
      %v5452 = vrot.slane %v403, 3
      %v5453 = vsel %vm5426, %v5450, %v5452
      %v5454 = vrot.slane %v404, 3
      %v5455 = vsel %vm5426, %v5452, %v5454
      %v5456 = vrot.slane %v405, 3
      %v5457 = vsel %vm5426, %v5454, %v5456
      %v5458 = vrot.slane %v406, 3
      %v5459 = vsel %vm5426, %v5456, %v5458
      %v5460 = vrot.slane %v407, 3
      %v5461 = vsel %vm5426, %v5458, %v5460
      %v5462 = vrot.slane %v408, 3
      %v5463 = vsel %vm5426, %v5460, %v5462
      %v5464 = vrot.slane %v409, 3
      %v5465 = vsel %vm5426, %v5462, %v5464
      %v5466 = vrot.slane %v410, 3
      %v5467 = vsel %vm5426, %v5464, %v5466
      %v5468 = vrot.slane %v411, 3
      %v5469 = vsel %vm5426, %v5466, %v5468
      %v5470 = vrot.slane %v412, 3
      %v5471 = vsel %vm5426, %v5468, %v5470
      %v5472 = vrot.slane %v413, 3
      %v5473 = vsel %vm5426, %v5470, %v5472
      %v5474 = vrot.slane %v414, 3
      %v5475 = vsel %vm5426, %v5472, %v5474
      %v5476 = vrot.slane %v415, 3
      %v5477 = vsel %vm5426, %v5474, %v5476
      %v5478 = vrot.slane %v416, 3
      %v5479 = vsel %vm5426, %v5476, %v5478
      %v5480 = vrot.slane %v417, 3
      %v5481 = vsel %vm5426, %v5478, %v5480
      %v5482 = vrot.slane %v418, 3
      %v5483 = vsel %vm5426, %v5480, %v5482
      %v5484 = vrot.slane %v419, 3
      %v5485 = vsel %vm5426, %v5482, %v5484
      %v5486 = vrot.slane %v420, 3
      %v5487 = vsel %vm5426, %v5484, %v5486
      %v5488 = vrot.slane %v421, 3
      %v5489 = vsel %vm5426, %v5486, %v5488
      %v5490 = vrot.slane %v422, 3
      %v5491 = vsel %vm5426, %v5488, %v5490
      %v5492 = vrot.slane %v423, 3
      %v5493 = vsel %vm5426, %v5490, %v5492
      %v5494 = vrot.slane %v424, 3
      %v5495 = vsel %vm5426, %v5492, %v5494
      %v5496 = vrot.slane %v425, 3
      %v5497 = vsel %vm5426, %v5494, %v5496
      %v5498 = vrot.slane %v426, 3
      %v5499 = vsel %vm5426, %v5496, %v5498
      %v5536 = vadd.f32 %v4671, %v5429
      %v5537 = vadd.f32 %v4674, %v5431
      %v5538 = vadd.f32 %v4679, %v5433
      %v5539 = vadd.f32 %v4682, %v5435
      %v5540 = vadd.f32 %v4687, %v5437
      %v5541 = vadd.f32 %v4690, %v5439
      %v5542 = vadd.f32 %v4695, %v5441
      %v5543 = vadd.f32 %v4698, %v5443
      %v5544 = vadd.f32 %v4703, %v5445
      %v5545 = vadd.f32 %v4706, %v5447
      %v5546 = vadd.f32 %v4711, %v5449
      %v5547 = vadd.f32 %v4714, %v5451
      %v5548 = vadd.f32 %v4719, %v5453
      %v5549 = vadd.f32 %v4722, %v5455
      %v5550 = vadd.f32 %v4727, %v5457
      %v5551 = vadd.f32 %v4730, %v5459
      %v5552 = vadd.f32 %v4735, %v5461
      %v5553 = vadd.f32 %v4738, %v5463
      %v5554 = vadd.f32 %v4743, %v5465
      %v5555 = vadd.f32 %v4746, %v5467
      %v5556 = vadd.f32 %v4751, %v5469
      %v5557 = vadd.f32 %v4754, %v5471
      %v5558 = vadd.f32 %v4759, %v5473
      %v5559 = vadd.f32 %v4762, %v5475
      %v5560 = vadd.f32 %v4767, %v5477
      %v5561 = vadd.f32 %v4770, %v5479
      %v5562 = vadd.f32 %v4775, %v5481
      %v5563 = vadd.f32 %v4778, %v5483
      %v5564 = vadd.f32 %v4783, %v5485
      %v5565 = vadd.f32 %v4786, %v5487
      %v5566 = vadd.f32 %v4791, %v5489
      %v5567 = vadd.f32 %v4794, %v5491
      %v5568 = vadd.f32 %v4799, %v5493
      %v5569 = vadd.f32 %v4802, %v5495
      %v5570 = vadd.f32 %v4807, %v5497
      %v5571 = vadd.f32 %v4810, %v5499
      %v5572 = vmul.f32 %v5536, %v5353
      %v5573 = vmul.f32 %v5537, %v5354
      %v5574 = vmul.f32 %v5538, %v5355
      %v5575 = vmul.f32 %v5539, %v5356
      %v5576 = vmul.f32 %v5540, %v5357
      %v5577 = vmul.f32 %v5541, %v5358
      %v5578 = vmul.f32 %v5542, %v5359
      %v5579 = vmul.f32 %v5543, %v5360
      %v5580 = vmul.f32 %v5544, %v5361
      %v5581 = vmul.f32 %v5545, %v5362
      %v5582 = vmul.f32 %v5546, %v5363
      %v5583 = vmul.f32 %v5547, %v5364
      %v5584 = vmul.f32 %v5548, %v5365
      %v5585 = vmul.f32 %v5549, %v5366
      %v5586 = vmul.f32 %v5550, %v5367
      %v5587 = vmul.f32 %v5551, %v5368
      %v5588 = vmul.f32 %v5552, %v5369
      %v5589 = vmul.f32 %v5553, %v5370
      %v5590 = vmul.f32 %v5554, %v5371
      %v5591 = vmul.f32 %v5555, %v5372
      %v5592 = vmul.f32 %v5556, %v5373
      %v5593 = vmul.f32 %v5557, %v5374
      %v5594 = vmul.f32 %v5558, %v5375
      %v5595 = vmul.f32 %v5559, %v5376
      %v5596 = vmul.f32 %v5560, %v5377
      %v5597 = vmul.f32 %v5561, %v5378
      %v5598 = vmul.f32 %v5562, %v5379
      %v5599 = vmul.f32 %v5563, %v5380
      %v5600 = vmul.f32 %v5564, %v5381
      %v5601 = vmul.f32 %v5565, %v5382
      %v5602 = vmul.f32 %v5566, %v5383
      %v5603 = vmul.f32 %v5567, %v5384
      %v5604 = vmul.f32 %v5568, %v5385
      %v5605 = vmul.f32 %v5569, %v5386
      %v5606 = vmul.f32 %v5570, %v5387
      %v5607 = vmul.f32 %v5571, %v5388
      %5608 = vst.msk [vmem:[%s386] sm:$0xff] %vm588, 0.0
      %5609 = vst.msk [vmem:[%s386 + $0x8] sm:$0xff] %vm588, 0.0
      %vm5610 = vcmask 59392
      %5611 = vst.msk [vmem:[%s386 + $0x10] sm:$0x7] %vm5610, 0.0
      %5612 = vst.msk [vmem:[%s386 + $0x131] sm:$0xff] %vm588, 0.0
      %5613 = vst.msk [vmem:[%s386 + $0x139] sm:$0xff] %vm588, 0.0
      %5614 = vst.msk [vmem:[%s386 + $0x141] sm:$0x7] %vm5610, 0.0
      %5615 = vst.msk [vmem:[%s386 + $0x13] sm:$0xff] %vm588, %v5572
      %5616 = vst.msk [vmem:[%s386 + $0x1b] sm:$0xff] %vm588, %v5573
      %5617 = vst.msk [vmem:[%s386 + $0x23] sm:$0xff] %vm588, %v5574
      %5618 = vst.msk [vmem:[%s386 + $0x2b] sm:$0xff] %vm588, %v5575
      %5619 = vst.msk [vmem:[%s386 + $0x33] sm:$0xff] %vm588, %v5576
      %5620 = vst.msk [vmem:[%s386 + $0x3b] sm:$0xff] %vm588, %v5577
      %5621 = vst.msk [vmem:[%s386 + $0x43] sm:$0xff] %vm588, %v5578
      %5622 = vst.msk [vmem:[%s386 + $0x4b] sm:$0xff] %vm588, %v5579
      %5623 = vst.msk [vmem:[%s386 + $0x53] sm:$0xff] %vm588, %v5580
      %5624 = vst.msk [vmem:[%s386 + $0x5b] sm:$0xff] %vm588, %v5581
      %5625 = vst.msk [vmem:[%s386 + $0x63] sm:$0xff] %vm588, %v5582
      %5626 = vst.msk [vmem:[%s386 + $0x6b] sm:$0xff] %vm588, %v5583
      %5627 = vst.msk [vmem:[%s386 + $0x73] sm:$0xff] %vm588, %v5584
      %5628 = vst.msk [vmem:[%s386 + $0x7b] sm:$0xff] %vm588, %v5585
      %5629 = vst.msk [vmem:[%s386 + $0x83] sm:$0xff] %vm588, %v5586
      %5630 = vst.msk [vmem:[%s386 + $0x8b] sm:$0xff] %vm588, %v5587
      %5631 = vst.msk [vmem:[%s386 + $0x93] sm:$0xff] %vm588, %v5588
      %5632 = vst.msk [vmem:[%s386 + $0x9b] sm:$0xff] %vm588, %v5589
      %5633 = vst.msk [vmem:[%s386 + $0xa3] sm:$0xff] %vm588, %v5590
      %5634 = vst.msk [vmem:[%s386 + $0xab] sm:$0xff] %vm588, %v5591
      %5635 = vst.msk [vmem:[%s386 + $0xb3] sm:$0xff] %vm588, %v5592
      %5636 = vst.msk [vmem:[%s386 + $0xbb] sm:$0xff] %vm588, %v5593
      %5637 = vst.msk [vmem:[%s386 + $0xc3] sm:$0xff] %vm588, %v5594
      %5638 = vst.msk [vmem:[%s386 + $0xcb] sm:$0xff] %vm588, %v5595
      %5639 = vst.msk [vmem:[%s386 + $0xd3] sm:$0xff] %vm588, %v5596
      %5640 = vst.msk [vmem:[%s386 + $0xdb] sm:$0xff] %vm588, %v5597
      %5641 = vst.msk [vmem:[%s386 + $0xe3] sm:$0xff] %vm588, %v5598
      %5642 = vst.msk [vmem:[%s386 + $0xeb] sm:$0xff] %vm588, %v5599
      %5643 = vst.msk [vmem:[%s386 + $0xf3] sm:$0xff] %vm588, %v5600
      %5644 = vst.msk [vmem:[%s386 + $0xfb] sm:$0xff] %vm588, %v5601
      %5645 = vst.msk [vmem:[%s386 + $0x103] sm:$0xff] %vm588, %v5602
      %5646 = vst.msk [vmem:[%s386 + $0x10b] sm:$0xff] %vm588, %v5603
      %5647 = vst.msk [vmem:[%s386 + $0x113] sm:$0xff] %vm588, %v5604
      %5648 = vst.msk [vmem:[%s386 + $0x11b] sm:$0xff] %vm588, %v5605
      %5649 = vst.msk [vmem:[%s386 + $0x123] sm:$0xff] %vm588, %v5606
      %vm5650 = vcmask 62464
      %5651 = vst.msk [vmem:[%s386 + $0x12b] sm:$0x3f] %vm5650, %v5607
      %p5652 = scmp.lt.s32.totalorder %s22, 1
      %s5653 = scalar_select %p5652, %s22, 1
      %s5654 = smul.addr %s5653, 41
      %s5655 = smul.addr %s5654, 8
      %s5656 = scalar_lea.vmem %s11, %s5655
      // Predicated region
      $region65: #{hourglass_forward.7} parent=63 // pred_check
        %p5657 = pneg %p276
      $region66: #{hourglass_forward.7} parent=63 // pred_check_branch
        %5659 = sbr.rel (%p5657) target = $region68
      $region67: #{hourglass_forward.7} parent=63 // pred_region
        _
      $region68: #{hourglass_forward.7} parent=63 // pred_fallthru
        _
    $region64: #{hourglass_forward.7} parent=5 // pred_fallthru
      _
    %p5660 = scmp.le.s32.totalorder 2, %s17
    // Predicated region
    $region69: #{hourglass_forward.7} parent=5 // pred_check
      %p5661 = pneg %p5660
    $region70: #{hourglass_forward.7} parent=5 // pred_check_branch
      %5663 = sbr.rel (%p5661) target = $region72
    $region71: #{hourglass_forward.7} parent=5 // pred_region
      %s5664 = ssub.s32 %s17, 2
      // Predicated region
      $region73: #{hourglass_forward.7} parent=71 // pred_check
        %p5665 = pneg %p282
      $region74: #{hourglass_forward.7} parent=71 // pred_check_branch
        %5667 = sbr.rel (%p5665) target = $region76
      $region75: #{hourglass_forward.7} parent=71 // pred_region
        %p5668 = scmp.lt.s32.totalorder %s23, 1
        %s5669 = scalar_select %p5668, %s23, 1
        %s5670 = smul.addr %s5669, 41
        %s5671 = smul.addr %s5670, 8
        %s5672 = scalar_lea.vmem %s11, %s5671
      $region76: #{hourglass_forward.7} parent=71 // pred_fallthru
        _
    $region72: #{hourglass_forward.7} parent=5 // pred_fallthru
      _
  $region6: #{hourglass_forward.7} parent=0 // loop_footer
    %s21 = sadd.s32 1, %s17
  $region7: #{hourglass_forward.7} parent=0 // loop_footer_branch
    %16 = sbr.rel target = $region3
  $region8: #{hourglass_forward.7} parent=0 // loop_exit
    _

</llo_original>
